<compile_context>
chip_gen: v7x
topology: tpu7x:2x2x1
jax: 0.10.0
libtpu: 0.0.40
codegen_flags: <defaults>
</compile_context>

<pallas_src>
import functools

import jax
import jax.numpy as jnp
from jax.experimental import pallas as pl
from jax.experimental.pallas import tpu as pltpu

EPS = 1e-5
EXPANSION = 4
LANE = 128
WB = 8          # sublane-aligned column at which the halo interior starts


def _round_up(v, m=LANE):
    return ((v + m - 1) // m) * m


def _bn_train(y, gamma, beta):
    """Training-mode batchnorm over rows (rows = batch x spatial). f32 math.

    d = y - mean is computed once and reused for variance + normalization.
    Biased variance + eps, like nn.BatchNorm2d's training forward.
    """
    mean = jnp.mean(y, axis=0, keepdims=True)
    d = y - mean
    var = jnp.mean(d * d, axis=0, keepdims=True)
    return d * jax.lax.rsqrt(var + EPS) * gamma + beta


# ---------------------------------------------------------------------------
# Fused Bottleneck kernel (one static configuration per build)
# ---------------------------------------------------------------------------
def _make_bottleneck_kernel(N, H, W, stride, has_proj):
    s = stride
    Hq, Wq = H // s, W // s                       # per-phase spatial extent
    Ho, Wo = (H - 1) // s + 1, (W - 1) // s + 1   # conv2 output (== Hq, Wq here)
    M2 = N * Ho * Wo
    f32, bf16 = jnp.float32, jnp.bfloat16

    def kernel(*refs):
        if has_proj:
            (x2_ref, w1_ref, g1_ref, b1_ref, w2_ref, g2_ref, b2_ref,
             w3_ref, g3_ref, b3_ref, wsc_ref, gsc_ref, bsc_ref,
             out_ref, halo_ref, lhs_ref) = refs
        else:
            (x2_ref, w1_ref, g1_ref, b1_ref, w2_ref, g2_ref, b2_ref,
             w3_ref, g3_ref, b3_ref, out_ref, halo_ref, lhs_ref) = refs

        S2N, _, Wqp, Pp = halo_ref.shape          # s*s*N phase planes
        Cp = x2_ref.shape[1]

        # ---- stage 1: 1x1 conv (bf16 MXU, f32 acc) + BN1 + ReLU ------------
        x2 = x2_ref[...]                          # (N*H*W, Cp) bf16, phase-major rows
        y1 = jnp.dot(x2, w1_ref[...], preferred_element_type=f32)
        h1 = jnp.maximum(_bn_train(y1, g1_ref[...], b1_ref[...]), 0.0)   # f32

        # ---- halo scratch: zero only the border cells the taps can read ----
        halo_ref[:, 0:1, :, :] = jnp.zeros((S2N, 1, Wqp, Pp), bf16)
        halo_ref[:, Hq + 1:Hq + 2, :, :] = jnp.zeros((S2N, 1, Wqp, Pp), bf16)
        halo_ref[:, 1:Hq + 1, 0:WB, :] = jnp.zeros((S2N, Hq, WB, Pp), bf16)
        halo_ref[:, 1:Hq + 1, WB + Wq:Wqp, :] = (
            jnp.zeros((S2N, Hq, Wqp - WB - Wq, Pp), bf16))

        # ---- bulk interior stores, one per stride phase, bf16 --------------
        h1b = h1.astype(bf16).reshape(N, s * s, Hq, Wq, Pp)
        for pidx in range(s * s):
            halo_ref[pidx * N:(pidx + 1) * N, 1:Hq + 1, WB:WB + Wq, :] = h1b[:, pidx]

        # ---- stage 2: 3x3/stride conv as ONE K=9*Pp matmul -----------------
        # Each tap is a contiguous slice of its (h-phase, w-phase) halo plane;
        # taps are packed lane-aligned into an in-VMEM im2col scratch.
        for kh in range(3):
            ph = (kh - 1) % s
            roff = 1 + (kh - 1 - ph) // s
            for kw in range(3):
                pw = (kw - 1) % s
                coff = WB + (kw - 1 - pw) // s
                pidx = ph * s + pw
                t = kh * 3 + kw
                tap = halo_ref[pidx * N:(pidx + 1) * N,
                               roff:roff + Ho, coff:coff + Wo, :]
                lhs_ref[:, t * Pp:(t + 1) * Pp] = tap.reshape(M2, Pp)
        y2 = jnp.dot(lhs_ref[...], w2_ref[...], preferred_element_type=f32)
        h2 = jnp.maximum(_bn_train(y2, g2_ref[...], b2_ref[...]), 0.0)

        # ---- stage 3: 1x1 conv + BN3, shortcut, residual add, final ReLU ---
        y3 = _bn_train(jnp.dot(h2.astype(bf16), w3_ref[...],
                               preferred_element_type=f32),
                       g3_ref[...], b3_ref[...])
        if has_proj:
            if s == 1:
                xs = x2
            else:
                # strided 1x1 shortcut reads exactly the (0,0) stride phase
                xs = x2.reshape(N, s * s, Hq, Wq, Cp)[:, 0].reshape(M2, Cp)
            sc = _bn_train(jnp.dot(xs, wsc_ref[...], preferred_element_type=f32),
                           gsc_ref[...], bsc_ref[...])
        else:
            sc = x2.astype(f32)                   # identity (s==1, Cp==Ep)
        out_ref[...] = jnp.maximum(y3 + sc, 0.0).astype(out_ref.dtype)

    return kernel


# ---------------------------------------------------------------------------
# One-time parameter preprocessing (hoisted out of the per-call wrapper)
# ---------------------------------------------------------------------------
def prepare_params(params):
    """Pad channels to 128 lanes, pack the 3x3 taps into a (9*Pp, Pp) block,
    cast matmul operands to bf16.  Run once per parameter set."""
    Cin, P = params["w1"].shape
    E = params["w3"].shape[1]
    Cp, Pp, Ep = _round_up(Cin), _round_up(P), _round_up(E)

    def pad_w(w, r, c):
        return jnp.zeros((r, c), jnp.bfloat16).at[:w.shape[0], :w.shape[1]].set(
            w.astype(jnp.bfloat16))

    def pad_gb(g, b, c):
        # gamma pads to 1, beta pads to 0 so padded lanes stay exactly zero.
        gp = jnp.ones((1, c), jnp.float32).at[:, :g.shape[1]].set(g.astype(jnp.float32))
        bp = jnp.zeros((1, c), jnp.float32).at[:, :b.shape[1]].set(b.astype(jnp.float32))
        return gp, bp

    prep = {}
    prep["w1"] = pad_w(params["w1"], Cp, Pp)
    prep["g1"], prep["b1"] = pad_gb(params["g1"], params["b1"], Pp)
    w2 = params["w2"].reshape(9, P, P)
    w2p = jnp.zeros((9 * Pp, Pp), jnp.bfloat16)
    for t in range(9):
        w2p = w2p.at[t * Pp:t * Pp + P, :P].set(w2[t].astype(jnp.bfloat16))
    prep["w2"] = w2p
    prep["g2"], prep["b2"] = pad_gb(params["g2"], params["b2"], Pp)
    prep["w3"] = pad_w(params["w3"], Pp, Ep)
    prep["g3"], prep["b3"] = pad_gb(params["g3"], params["b3"], Ep)
    if "wsc" in params:
        prep["wsc"] = pad_w(params["wsc"], Cp, Ep)
        prep["gsc"], prep["bsc"] = pad_gb(params["gsc"], params["bsc"], Ep)
    return prep, E


# ---------------------------------------------------------------------------
# Bottleneck forward (Pallas-backed)
# ---------------------------------------------------------------------------
@functools.partial(jax.jit, static_argnames=("stride", "e_real"))
def bottleneck_forward(x_nchw, prep, stride, e_real):
    N, Cin, H, W = x_nchw.shape
    s = stride
    assert H % s == 0 and W % s == 0, "spatial dims must be divisible by stride"
    Hq, Wq = H // s, W // s
    Ho, Wo = (H - 1) // s + 1, (W - 1) // s + 1
    M2 = N * Ho * Wo
    Cp, Pp = prep["w1"].shape
    Ep = prep["w3"].shape[1]
    has_proj = "wsc" in prep
    Wqp = _round_up(WB + Wq + 1, 8)               # 8-sublane aligned halo width

    # XLA glue: NCHW -> stride-phase-major NHWC rows, channel pad, bf16 cast.
    x = jnp.transpose(x_nchw, (0, 2, 3, 1)).astype(jnp.float32)
    xph = x.reshape(N, Hq, s, Wq, s, Cin).transpose(0, 2, 4, 1, 3, 5)
    rows = xph.reshape(N * H * W, Cin).astype(jnp.bfloat16)
    x2 = jnp.zeros((N * H * W, Cp), jnp.bfloat16).at[:, :Cin].set(rows)

    args = [x2, prep["w1"], prep["g1"], prep["b1"], prep["w2"], prep["g2"],
            prep["b2"], prep["w3"], prep["g3"], prep["b3"]]
    if has_proj:
        args += [prep["wsc"], prep["gsc"], prep["bsc"]]

    kernel = _make_bottleneck_kernel(N, H, W, s, has_proj)
    vmem = pl.BlockSpec(memory_space=pltpu.MemorySpace.VMEM)
    out2d = pl.pallas_call(
        kernel,
        out_shape=jax.ShapeDtypeStruct((M2, Ep), jnp.bfloat16),
        in_specs=[vmem] * len(args),
        out_specs=vmem,
        scratch_shapes=[
            pltpu.VMEM((s * s * N, Hq + 2, Wqp, Pp), jnp.bfloat16),  # halo planes
            pltpu.VMEM((M2, 9 * Pp), jnp.bfloat16),                  # im2col lhs
        ],
        compiler_params=pltpu.CompilerParams(vmem_limit_bytes=32 * 1024 * 1024),
    )(*args)

    out = out2d.reshape(N, Ho, Wo, Ep)[..., :e_real].astype(jnp.float32)
    return jnp.transpose(out, (0, 3, 1, 2))       # back to NCHW


# ---------------------------------------------------------------------------
# Deterministic parameter init (mirrors module __init__ shapes; synthetic)
# ---------------------------------------------------------------------------
def init_params(key, in_planes, planes, stride):
    ks = jax.random.split(key, 10)
    exp_planes = EXPANSION * planes

    def affine(k, c):
        g = 1.0 + 0.1 * jax.random.normal(k, (1, c), jnp.float32)
        b = 0.1 * jax.random.normal(jax.random.fold_in(k, 1), (1, c), jnp.float32)
        return g, b

    p = {}
    p["w1"] = 0.1 * jax.random.normal(ks[0], (in_planes, planes), jnp.float32)
    p["g1"], p["b1"] = affine(ks[1], planes)
    p["w2"] = 0.1 * jax.random.normal(ks[2], (3, 3, planes, planes), jnp.float32)
    p["g2"], p["b2"] = affine(ks[3], planes)
    p["w3"] = 0.1 * jax.random.normal(ks[4], (planes, exp_planes), jnp.float32)
    p["g3"], p["b3"] = affine(ks[5], exp_planes)
    if stride != 1 or in_planes != exp_planes:
        p["wsc"] = 0.1 * jax.random.normal(ks[6], (in_planes, exp_planes),
                                           jnp.float32)
        p["gsc"], p["bsc"] = affine(ks[7], exp_planes)
    return p


# ---------------------------------------------------------------------------
# Pure-JAX reference (independent lax.conv path) with the SAME numerics policy
# as the kernel: conv operands rounded to bf16, accumulation + BN in f32.
# ---------------------------------------------------------------------------
def reference_forward(x_nchw, params, stride=1):
    f32 = jnp.float32
    bf = lambda a: a.astype(jnp.bfloat16).astype(f32)
    x = bf(jnp.transpose(x_nchw, (0, 2, 3, 1)).astype(f32))

    def conv(inp, w, s, pad):
        return jax.lax.conv_general_dilated(
            bf(inp), bf(w), (s, s), pad,
            dimension_numbers=("NHWC", "HWIO", "NHWC"))

    def bn(y, g, b):
        mean = jnp.mean(y, axis=(0, 1, 2), keepdims=True)
        var = jnp.mean(jnp.square(y - mean), axis=(0, 1, 2), keepdims=True)
        return ((y - mean) * jax.lax.rsqrt(var + EPS)
                * g.reshape(1, 1, 1, -1) + b.reshape(1, 1, 1, -1))

    h = jax.nn.relu(bn(conv(x, params["w1"][None, None], 1, "VALID"),
                       params["g1"], params["b1"]))
    h = jax.nn.relu(bn(conv(h, params["w2"], stride, ((1, 1), (1, 1))),
                       params["g2"], params["b2"]))
    h = bn(conv(h, params["w3"][None, None], 1, "VALID"),
           params["g3"], params["b3"])
    if "wsc" in params:
        s_ = bn(conv(x, params["wsc"][None, None], stride, "VALID"),
                params["gsc"], params["bsc"])
    else:
        s_ = x
    return jnp.transpose(jax.nn.relu(h + s_), (0, 3, 1, 2))


# ---------------------------------------------------------------------------
if __name__ == "__main__":
    key = jax.random.PRNGKey(0)
    k_x, k_p, k_x2, k_p2, k_p3 = jax.random.split(key, 5)

    # Kernel output is bf16; compare against the bf16-rounded reference.
    ATOL = RTOL = 2e-2
    to_bf = lambda a: a.astype(jnp.bfloat16).astype(jnp.float32)

    # Case 1: projection shortcut (in_planes != 4*planes), stride=1
    x = jax.random.normal(k_x, (2, 4, 16, 16), jnp.float32)     # NCHW
    params = init_params(k_p, in_planes=4, planes=4, stride=1)
    prep, E = prepare_params(params)
    out = jax.block_until_ready(bottleneck_forward(x, prep, stride=1, e_real=E))
    ref = to_bf(reference_forward(x, params, stride=1))
    assert out.shape == (2, 16, 16, 16), out.shape
    assert jnp.allclose(out, ref, atol=ATOL, rtol=RTOL), "mismatch (proj, s=1)"

    # Case 2: identity shortcut (in_planes == 4*planes, stride=1)
    x2 = jax.random.normal(k_x2, (2, 16, 8, 8), jnp.float32)
    params2 = init_params(k_p2, in_planes=16, planes=4, stride=1)
    prep2, E2 = prepare_params(params2)
    out2 = jax.block_until_ready(bottleneck_forward(x2, prep2, stride=1, e_real=E2))
    ref2 = to_bf(reference_forward(x2, params2, stride=1))
    assert out2.shape == (2, 16, 8, 8), out2.shape
    assert jnp.allclose(out2, ref2, atol=ATOL, rtol=RTOL), "mismatch (identity)"

    # Case 3: strided projection shortcut (stride=2)
    params3 = init_params(k_p3, in_planes=4, planes=4, stride=2)
    prep3, E3 = prepare_params(params3)
    out3 = jax.block_until_ready(bottleneck_forward(x, prep3, stride=2, e_real=E3))
    ref3 = to_bf(reference_forward(x, params3, stride=2))
    assert out3.shape == (2, 16, 8, 8), out3.shape
    assert jnp.allclose(out3, ref3, atol=ATOL, rtol=RTOL), "mismatch (proj, s=2)"

    print("KERNEL_OK")
</pallas_src>

<mosaic_0001>
module attributes {stable_mosaic.version = 11 : i64} {
  func.func @kernel(%arg0: memref<512x128xbf16, #tpu.memory_space<vmem>>, %arg1: memref<128x128xbf16, #tpu.memory_space<vmem>>, %arg2: memref<1x128xf32, #tpu.memory_space<vmem>>, %arg3: memref<1x128xf32, #tpu.memory_space<vmem>>, %arg4: memref<1152x128xbf16, #tpu.memory_space<vmem>>, %arg5: memref<1x128xf32, #tpu.memory_space<vmem>>, %arg6: memref<1x128xf32, #tpu.memory_space<vmem>>, %arg7: memref<128x128xbf16, #tpu.memory_space<vmem>>, %arg8: memref<1x128xf32, #tpu.memory_space<vmem>>, %arg9: memref<1x128xf32, #tpu.memory_space<vmem>>, %arg10: memref<128x128xbf16, #tpu.memory_space<vmem>>, %arg11: memref<1x128xf32, #tpu.memory_space<vmem>>, %arg12: memref<1x128xf32, #tpu.memory_space<vmem>>, %arg13: memref<512x128xbf16, #tpu.memory_space<vmem>>, %arg14: memref<2x18x32x128xbf16, #tpu.memory_space<vmem>>, %arg15: memref<512x1152xbf16, #tpu.memory_space<vmem>>) attributes {dimension_semantics = [], scalar_prefetch = 0 : i64, scratch_operands = 2 : i64, tpu.core_type = #tpu.core_type<tc>} {
    %c0 = arith.constant 0 : index
    %c0_0 = arith.constant 0 : index
    %0 = vector.load %arg0[%c0, %c0_0] : memref<512x128xbf16, #tpu.memory_space<vmem>>, vector<512x128xbf16>
    %c0_1 = arith.constant 0 : index
    %c0_2 = arith.constant 0 : index
    %1 = vector.load %arg1[%c0_1, %c0_2] : memref<128x128xbf16, #tpu.memory_space<vmem>>, vector<128x128xbf16>
    %cst = arith.constant dense<0.000000e+00> : vector<512x128xf32>
    %2 = tpu.matmul %0, %1, %cst {dimension_numbers = #tpu.dot_dimension_numbers<[1], [0], [0], [1], [0, 0, 1, 1], [], []>} : vector<512x128xbf16>, vector<128x128xbf16>, vector<512x128xf32> -> vector<512x128xf32>
    %c0_3 = arith.constant 0 : index
    %c0_4 = arith.constant 0 : index
    %3 = vector.load %arg2[%c0_3, %c0_4] : memref<1x128xf32, #tpu.memory_space<vmem>>, vector<1x128xf32>
    %c0_5 = arith.constant 0 : index
    %c0_6 = arith.constant 0 : index
    %4 = vector.load %arg3[%c0_5, %c0_6] : memref<1x128xf32, #tpu.memory_space<vmem>>, vector<1x128xf32>
    %cst_7 = arith.constant dense<0.000000e+00> : vector<128xf32>
    %5 = vector.multi_reduction <add>, %2, %cst_7 [0] : vector<512x128xf32> to vector<128xf32>
    %6 = vector.shape_cast %5 : vector<128xf32> to vector<1x128xf32>
    %cst_8 = arith.constant 5.120000e+02 : f32
    %7 = vector.broadcast %cst_8 : f32 to vector<1x128xf32>
    %8 = arith.divf %6, %7 : vector<1x128xf32>
    %9 = vector.broadcast %8 : vector<1x128xf32> to vector<512x128xf32>
    %10 = arith.subf %2, %9 : vector<512x128xf32>
    %11 = arith.mulf %10, %10 : vector<512x128xf32>
    %cst_9 = arith.constant dense<0.000000e+00> : vector<128xf32>
    %12 = vector.multi_reduction <add>, %11, %cst_9 [0] : vector<512x128xf32> to vector<128xf32>
    %13 = vector.shape_cast %12 : vector<128xf32> to vector<1x128xf32>
    %cst_10 = arith.constant 5.120000e+02 : f32
    %14 = vector.broadcast %cst_10 : f32 to vector<1x128xf32>
    %15 = arith.divf %13, %14 : vector<1x128xf32>
    %cst_11 = arith.constant 9.99999974E-6 : f32
    %16 = vector.broadcast %cst_11 : f32 to vector<1x128xf32>
    %17 = arith.addf %15, %16 : vector<1x128xf32>
    %18 = math.rsqrt %17 : vector<1x128xf32>
    %19 = vector.broadcast %18 : vector<1x128xf32> to vector<512x128xf32>
    %20 = arith.mulf %10, %19 : vector<512x128xf32>
    %21 = vector.broadcast %3 : vector<1x128xf32> to vector<512x128xf32>
    %22 = arith.mulf %20, %21 : vector<512x128xf32>
    %23 = vector.broadcast %4 : vector<1x128xf32> to vector<512x128xf32>
    %24 = arith.addf %22, %23 : vector<512x128xf32>
    %cst_12 = arith.constant 0.000000e+00 : f32
    %25 = vector.broadcast %cst_12 : f32 to vector<512x128xf32>
    %26 = arith.maximumf %24, %25 : vector<512x128xf32>
    %cst_13 = arith.constant 0.000000e+00 : bf16
    %27 = vector.broadcast %cst_13 : bf16 to vector<2x1x32x128xbf16>
    %c0_14 = arith.constant 0 : index
    %c0_15 = arith.constant 0 : index
    %c0_16 = arith.constant 0 : index
    %c0_17 = arith.constant 0 : index
    %28 = vector.load %arg14[%c0_14, %c0_15, %c0_16, %c0_17] : memref<2x18x32x128xbf16, #tpu.memory_space<vmem>>, vector<2x1x32x128xbf16>
    tpu.vector_store %arg14[%c0_14, %c0_15, %c0_16, %c0_17], %27 {strides = array<i32>} : memref<2x18x32x128xbf16, #tpu.memory_space<vmem>>, vector<2x1x32x128xbf16>,
    %cst_18 = arith.constant 0.000000e+00 : bf16
    %29 = vector.broadcast %cst_18 : bf16 to vector<2x1x32x128xbf16>
    %c0_19 = arith.constant 0 : index
    %c17 = arith.constant 17 : index
    %c0_20 = arith.constant 0 : index
    %c0_21 = arith.constant 0 : index
    %30 = vector.load %arg14[%c0_19, %c17, %c0_20, %c0_21] : memref<2x18x32x128xbf16, #tpu.memory_space<vmem>>, vector<2x1x32x128xbf16>
    tpu.vector_store %arg14[%c0_19, %c17, %c0_20, %c0_21], %29 {strides = array<i32>} : memref<2x18x32x128xbf16, #tpu.memory_space<vmem>>, vector<2x1x32x128xbf16>,
    %cst_22 = arith.constant 0.000000e+00 : bf16
    %31 = vector.broadcast %cst_22 : bf16 to vector<2x16x8x128xbf16>
    %c0_23 = arith.constant 0 : index
    %c1 = arith.constant 1 : index
    %c0_24 = arith.constant 0 : index
    %c0_25 = arith.constant 0 : index
    %32 = vector.load %arg14[%c0_23, %c1, %c0_24, %c0_25] : memref<2x18x32x128xbf16, #tpu.memory_space<vmem>>, vector<2x16x8x128xbf16>
    tpu.vector_store %arg14[%c0_23, %c1, %c0_24, %c0_25], %31 {strides = array<i32>} : memref<2x18x32x128xbf16, #tpu.memory_space<vmem>>, vector<2x16x8x128xbf16>,
    %cst_26 = arith.constant 0.000000e+00 : bf16
    %33 = vector.broadcast %cst_26 : bf16 to vector<2x16x8x128xbf16>
    %c0_27 = arith.constant 0 : index
    %c1_28 = arith.constant 1 : index
    %c24 = arith.constant 24 : index
    %c0_29 = arith.constant 0 : index
    %34 = vector.load %arg14[%c0_27, %c1_28, %c24, %c0_29] : memref<2x18x32x128xbf16, #tpu.memory_space<vmem>>, vector<2x16x8x128xbf16>
    tpu.vector_store %arg14[%c0_27, %c1_28, %c24, %c0_29], %33 {strides = array<i32>} : memref<2x18x32x128xbf16, #tpu.memory_space<vmem>>, vector<2x16x8x128xbf16>,
    %35 = arith.truncf %26 : vector<512x128xf32> to vector<512x128xbf16>
    %36 = vector.shape_cast %35 : vector<512x128xbf16> to vector<2x1x16x16x128xbf16>
    %37 = vector.shape_cast %36 : vector<2x1x16x16x128xbf16> to vector<2x16x16x128xbf16>
    %c0_30 = arith.constant 0 : index
    %c1_31 = arith.constant 1 : index
    %c8 = arith.constant 8 : index
    %c0_32 = arith.constant 0 : index
    %38 = vector.load %arg14[%c0_30, %c1_31, %c8, %c0_32] : memref<2x18x32x128xbf16, #tpu.memory_space<vmem>>, vector<2x16x16x128xbf16>
    tpu.vector_store %arg14[%c0_30, %c1_31, %c8, %c0_32], %37 {strides = array<i32>} : memref<2x18x32x128xbf16, #tpu.memory_space<vmem>>, vector<2x16x16x128xbf16>,
    %c0_33 = arith.constant 0 : index
    %c0_34 = arith.constant 0 : index
    %c7 = arith.constant 7 : index
    %c0_35 = arith.constant 0 : index
    %39 = vector.load %arg14[%c0_33, %c0_34, %c7, %c0_35] : memref<2x18x32x128xbf16, #tpu.memory_space<vmem>>, vector<2x16x16x128xbf16>
    %40 = vector.shape_cast %39 : vector<2x16x16x128xbf16> to vector<512x128xbf16>
    %c0_36 = arith.constant 0 : index
    %c0_37 = arith.constant 0 : index
    %41 = vector.load %arg15[%c0_36, %c0_37] : memref<512x1152xbf16, #tpu.memory_space<vmem>>, vector<512x128xbf16>
    tpu.vector_store %arg15[%c0_36, %c0_37], %40 {strides = array<i32>} : memref<512x1152xbf16, #tpu.memory_space<vmem>>, vector<512x128xbf16>,
    %c0_38 = arith.constant 0 : index
    %c0_39 = arith.constant 0 : index
    %c8_40 = arith.constant 8 : index
    %c0_41 = arith.constant 0 : index
    %42 = vector.load %arg14[%c0_38, %c0_39, %c8_40, %c0_41] : memref<2x18x32x128xbf16, #tpu.memory_space<vmem>>, vector<2x16x16x128xbf16>
    %43 = vector.shape_cast %42 : vector<2x16x16x128xbf16> to vector<512x128xbf16>
    %c0_42 = arith.constant 0 : index
    %c128 = arith.constant 128 : index
    %44 = vector.load %arg15[%c0_42, %c128] : memref<512x1152xbf16, #tpu.memory_space<vmem>>, vector<512x128xbf16>
    tpu.vector_store %arg15[%c0_42, %c128], %43 {strides = array<i32>} : memref<512x1152xbf16, #tpu.memory_space<vmem>>, vector<512x128xbf16>,
    %c0_43 = arith.constant 0 : index
    %c0_44 = arith.constant 0 : index
    %c9 = arith.constant 9 : index
    %c0_45 = arith.constant 0 : index
    %45 = vector.load %arg14[%c0_43, %c0_44, %c9, %c0_45] : memref<2x18x32x128xbf16, #tpu.memory_space<vmem>>, vector<2x16x16x128xbf16>
    %46 = vector.shape_cast %45 : vector<2x16x16x128xbf16> to vector<512x128xbf16>
    %c0_46 = arith.constant 0 : index
    %c256 = arith.constant 256 : index
    %47 = vector.load %arg15[%c0_46, %c256] : memref<512x1152xbf16, #tpu.memory_space<vmem>>, vector<512x128xbf16>
    tpu.vector_store %arg15[%c0_46, %c256], %46 {strides = array<i32>} : memref<512x1152xbf16, #tpu.memory_space<vmem>>, vector<512x128xbf16>,
    %c0_47 = arith.constant 0 : index
    %c1_48 = arith.constant 1 : index
    %c7_49 = arith.constant 7 : index
    %c0_50 = arith.constant 0 : index
    %48 = vector.load %arg14[%c0_47, %c1_48, %c7_49, %c0_50] : memref<2x18x32x128xbf16, #tpu.memory_space<vmem>>, vector<2x16x16x128xbf16>
    %49 = vector.shape_cast %48 : vector<2x16x16x128xbf16> to vector<512x128xbf16>
    %c0_51 = arith.constant 0 : index
    %c384 = arith.constant 384 : index
    %50 = vector.load %arg15[%c0_51, %c384] : memref<512x1152xbf16, #tpu.memory_space<vmem>>, vector<512x128xbf16>
    tpu.vector_store %arg15[%c0_51, %c384], %49 {strides = array<i32>} : memref<512x1152xbf16, #tpu.memory_space<vmem>>, vector<512x128xbf16>,
    %c0_52 = arith.constant 0 : index
    %c1_53 = arith.constant 1 : index
    %c8_54 = arith.constant 8 : index
    %c0_55 = arith.constant 0 : index
    %51 = vector.load %arg14[%c0_52, %c1_53, %c8_54, %c0_55] : memref<2x18x32x128xbf16, #tpu.memory_space<vmem>>, vector<2x16x16x128xbf16>
    %52 = vector.shape_cast %51 : vector<2x16x16x128xbf16> to vector<512x128xbf16>
    %c0_56 = arith.constant 0 : index
    %c512 = arith.constant 512 : index
    %53 = vector.load %arg15[%c0_56, %c512] : memref<512x1152xbf16, #tpu.memory_space<vmem>>, vector<512x128xbf16>
    tpu.vector_store %arg15[%c0_56, %c512], %52 {strides = array<i32>} : memref<512x1152xbf16, #tpu.memory_space<vmem>>, vector<512x128xbf16>,
    %c0_57 = arith.constant 0 : index
    %c1_58 = arith.constant 1 : index
    %c9_59 = arith.constant 9 : index
    %c0_60 = arith.constant 0 : index
    %54 = vector.load %arg14[%c0_57, %c1_58, %c9_59, %c0_60] : memref<2x18x32x128xbf16, #tpu.memory_space<vmem>>, vector<2x16x16x128xbf16>
    %55 = vector.shape_cast %54 : vector<2x16x16x128xbf16> to vector<512x128xbf16>
    %c0_61 = arith.constant 0 : index
    %c640 = arith.constant 640 : index
    %56 = vector.load %arg15[%c0_61, %c640] : memref<512x1152xbf16, #tpu.memory_space<vmem>>, vector<512x128xbf16>
    tpu.vector_store %arg15[%c0_61, %c640], %55 {strides = array<i32>} : memref<512x1152xbf16, #tpu.memory_space<vmem>>, vector<512x128xbf16>,
    %c0_62 = arith.constant 0 : index
    %c2 = arith.constant 2 : index
    %c7_63 = arith.constant 7 : index
    %c0_64 = arith.constant 0 : index
    %57 = vector.load %arg14[%c0_62, %c2, %c7_63, %c0_64] : memref<2x18x32x128xbf16, #tpu.memory_space<vmem>>, vector<2x16x16x128xbf16>
    %58 = vector.shape_cast %57 : vector<2x16x16x128xbf16> to vector<512x128xbf16>
    %c0_65 = arith.constant 0 : index
    %c768 = arith.constant 768 : index
    %59 = vector.load %arg15[%c0_65, %c768] : memref<512x1152xbf16, #tpu.memory_space<vmem>>, vector<512x128xbf16>
    tpu.vector_store %arg15[%c0_65, %c768], %58 {strides = array<i32>} : memref<512x1152xbf16, #tpu.memory_space<vmem>>, vector<512x128xbf16>,
    %c0_66 = arith.constant 0 : index
    %c2_67 = arith.constant 2 : index
    %c8_68 = arith.constant 8 : index
    %c0_69 = arith.constant 0 : index
    %60 = vector.load %arg14[%c0_66, %c2_67, %c8_68, %c0_69] : memref<2x18x32x128xbf16, #tpu.memory_space<vmem>>, vector<2x16x16x128xbf16>
    %61 = vector.shape_cast %60 : vector<2x16x16x128xbf16> to vector<512x128xbf16>
    %c0_70 = arith.constant 0 : index
    %c896 = arith.constant 896 : index
    %62 = vector.load %arg15[%c0_70, %c896] : memref<512x1152xbf16, #tpu.memory_space<vmem>>, vector<512x128xbf16>
    tpu.vector_store %arg15[%c0_70, %c896], %61 {strides = array<i32>} : memref<512x1152xbf16, #tpu.memory_space<vmem>>, vector<512x128xbf16>,
    %c0_71 = arith.constant 0 : index
    %c2_72 = arith.constant 2 : index
    %c9_73 = arith.constant 9 : index
    %c0_74 = arith.constant 0 : index
    %63 = vector.load %arg14[%c0_71, %c2_72, %c9_73, %c0_74] : memref<2x18x32x128xbf16, #tpu.memory_space<vmem>>, vector<2x16x16x128xbf16>
    %64 = vector.shape_cast %63 : vector<2x16x16x128xbf16> to vector<512x128xbf16>
    %c0_75 = arith.constant 0 : index
    %c1024 = arith.constant 1024 : index
    %65 = vector.load %arg15[%c0_75, %c1024] : memref<512x1152xbf16, #tpu.memory_space<vmem>>, vector<512x128xbf16>
    tpu.vector_store %arg15[%c0_75, %c1024], %64 {strides = array<i32>} : memref<512x1152xbf16, #tpu.memory_space<vmem>>, vector<512x128xbf16>,
    %c0_76 = arith.constant 0 : index
    %c0_77 = arith.constant 0 : index
    %66 = vector.load %arg15[%c0_76, %c0_77] : memref<512x1152xbf16, #tpu.memory_space<vmem>>, vector<512x1152xbf16>
    %c0_78 = arith.constant 0 : index
    %c0_79 = arith.constant 0 : index
    %67 = vector.load %arg4[%c0_78, %c0_79] : memref<1152x128xbf16, #tpu.memory_space<vmem>>, vector<1152x128xbf16>
    %cst_80 = arith.constant dense<0.000000e+00> : vector<512x128xf32>
    %68 = tpu.matmul %66, %67, %cst_80 {dimension_numbers = #tpu.dot_dimension_numbers<[1], [0], [0], [1], [0, 0, 1, 1], [], []>} : vector<512x1152xbf16>, vector<1152x128xbf16>, vector<512x128xf32> -> vector<512x128xf32>
    %c0_81 = arith.constant 0 : index
    %c0_82 = arith.constant 0 : index
    %69 = vector.load %arg5[%c0_81, %c0_82] : memref<1x128xf32, #tpu.memory_space<vmem>>, vector<1x128xf32>
    %c0_83 = arith.constant 0 : index
    %c0_84 = arith.constant 0 : index
    %70 = vector.load %arg6[%c0_83, %c0_84] : memref<1x128xf32, #tpu.memory_space<vmem>>, vector<1x128xf32>
    %cst_85 = arith.constant dense<0.000000e+00> : vector<128xf32>
    %71 = vector.multi_reduction <add>, %68, %cst_85 [0] : vector<512x128xf32> to vector<128xf32>
    %72 = vector.shape_cast %71 : vector<128xf32> to vector<1x128xf32>
    %cst_86 = arith.constant 5.120000e+02 : f32
    %73 = vector.broadcast %cst_86 : f32 to vector<1x128xf32>
    %74 = arith.divf %72, %73 : vector<1x128xf32>
    %75 = vector.broadcast %74 : vector<1x128xf32> to vector<512x128xf32>
    %76 = arith.subf %68, %75 : vector<512x128xf32>
    %77 = arith.mulf %76, %76 : vector<512x128xf32>
    %cst_87 = arith.constant dense<0.000000e+00> : vector<128xf32>
    %78 = vector.multi_reduction <add>, %77, %cst_87 [0] : vector<512x128xf32> to vector<128xf32>
    %79 = vector.shape_cast %78 : vector<128xf32> to vector<1x128xf32>
    %cst_88 = arith.constant 5.120000e+02 : f32
    %80 = vector.broadcast %cst_88 : f32 to vector<1x128xf32>
    %81 = arith.divf %79, %80 : vector<1x128xf32>
    %cst_89 = arith.constant 9.99999974E-6 : f32
    %82 = vector.broadcast %cst_89 : f32 to vector<1x128xf32>
    %83 = arith.addf %81, %82 : vector<1x128xf32>
    %84 = math.rsqrt %83 : vector<1x128xf32>
    %85 = vector.broadcast %84 : vector<1x128xf32> to vector<512x128xf32>
    %86 = arith.mulf %76, %85 : vector<512x128xf32>
    %87 = vector.broadcast %69 : vector<1x128xf32> to vector<512x128xf32>
    %88 = arith.mulf %86, %87 : vector<512x128xf32>
    %89 = vector.broadcast %70 : vector<1x128xf32> to vector<512x128xf32>
    %90 = arith.addf %88, %89 : vector<512x128xf32>
    %cst_90 = arith.constant 0.000000e+00 : f32
    %91 = vector.broadcast %cst_90 : f32 to vector<512x128xf32>
    %92 = arith.maximumf %90, %91 : vector<512x128xf32>
    %93 = arith.truncf %92 : vector<512x128xf32> to vector<512x128xbf16>
    %c0_91 = arith.constant 0 : index
    %c0_92 = arith.constant 0 : index
    %94 = vector.load %arg7[%c0_91, %c0_92] : memref<128x128xbf16, #tpu.memory_space<vmem>>, vector<128x128xbf16>
    %cst_93 = arith.constant dense<0.000000e+00> : vector<512x128xf32>
    %95 = tpu.matmul %93, %94, %cst_93 {dimension_numbers = #tpu.dot_dimension_numbers<[1], [0], [0], [1], [0, 0, 1, 1], [], []>} : vector<512x128xbf16>, vector<128x128xbf16>, vector<512x128xf32> -> vector<512x128xf32>
    %c0_94 = arith.constant 0 : index
    %c0_95 = arith.constant 0 : index
    %96 = vector.load %arg8[%c0_94, %c0_95] : memref<1x128xf32, #tpu.memory_space<vmem>>, vector<1x128xf32>
    %c0_96 = arith.constant 0 : index
    %c0_97 = arith.constant 0 : index
    %97 = vector.load %arg9[%c0_96, %c0_97] : memref<1x128xf32, #tpu.memory_space<vmem>>, vector<1x128xf32>
    %cst_98 = arith.constant dense<0.000000e+00> : vector<128xf32>
    %98 = vector.multi_reduction <add>, %95, %cst_98 [0] : vector<512x128xf32> to vector<128xf32>
    %99 = vector.shape_cast %98 : vector<128xf32> to vector<1x128xf32>
    %cst_99 = arith.constant 5.120000e+02 : f32
    %100 = vector.broadcast %cst_99 : f32 to vector<1x128xf32>
    %101 = arith.divf %99, %100 : vector<1x128xf32>
    %102 = vector.broadcast %101 : vector<1x128xf32> to vector<512x128xf32>
    %103 = arith.subf %95, %102 : vector<512x128xf32>
    %104 = arith.mulf %103, %103 : vector<512x128xf32>
    %cst_100 = arith.constant dense<0.000000e+00> : vector<128xf32>
    %105 = vector.multi_reduction <add>, %104, %cst_100 [0] : vector<512x128xf32> to vector<128xf32>
    %106 = vector.shape_cast %105 : vector<128xf32> to vector<1x128xf32>
    %cst_101 = arith.constant 5.120000e+02 : f32
    %107 = vector.broadcast %cst_101 : f32 to vector<1x128xf32>
    %108 = arith.divf %106, %107 : vector<1x128xf32>
    %cst_102 = arith.constant 9.99999974E-6 : f32
    %109 = vector.broadcast %cst_102 : f32 to vector<1x128xf32>
    %110 = arith.addf %108, %109 : vector<1x128xf32>
    %111 = math.rsqrt %110 : vector<1x128xf32>
    %112 = vector.broadcast %111 : vector<1x128xf32> to vector<512x128xf32>
    %113 = arith.mulf %103, %112 : vector<512x128xf32>
    %114 = vector.broadcast %96 : vector<1x128xf32> to vector<512x128xf32>
    %115 = arith.mulf %113, %114 : vector<512x128xf32>
    %116 = vector.broadcast %97 : vector<1x128xf32> to vector<512x128xf32>
    %117 = arith.addf %115, %116 : vector<512x128xf32>
    %c0_103 = arith.constant 0 : index
    %c0_104 = arith.constant 0 : index
    %118 = vector.load %arg10[%c0_103, %c0_104] : memref<128x128xbf16, #tpu.memory_space<vmem>>, vector<128x128xbf16>
    %cst_105 = arith.constant dense<0.000000e+00> : vector<512x128xf32>
    %119 = tpu.matmul %0, %118, %cst_105 {dimension_numbers = #tpu.dot_dimension_numbers<[1], [0], [0], [1], [0, 0, 1, 1], [], []>} : vector<512x128xbf16>, vector<128x128xbf16>, vector<512x128xf32> -> vector<512x128xf32>
    %c0_106 = arith.constant 0 : index
    %c0_107 = arith.constant 0 : index
    %120 = vector.load %arg11[%c0_106, %c0_107] : memref<1x128xf32, #tpu.memory_space<vmem>>, vector<1x128xf32>
    %c0_108 = arith.constant 0 : index
    %c0_109 = arith.constant 0 : index
    %121 = vector.load %arg12[%c0_108, %c0_109] : memref<1x128xf32, #tpu.memory_space<vmem>>, vector<1x128xf32>
    %cst_110 = arith.constant dense<0.000000e+00> : vector<128xf32>
    %122 = vector.multi_reduction <add>, %119, %cst_110 [0] : vector<512x128xf32> to vector<128xf32>
    %123 = vector.shape_cast %122 : vector<128xf32> to vector<1x128xf32>
    %cst_111 = arith.constant 5.120000e+02 : f32
    %124 = vector.broadcast %cst_111 : f32 to vector<1x128xf32>
    %125 = arith.divf %123, %124 : vector<1x128xf32>
    %126 = vector.broadcast %125 : vector<1x128xf32> to vector<512x128xf32>
    %127 = arith.subf %119, %126 : vector<512x128xf32>
    %128 = arith.mulf %127, %127 : vector<512x128xf32>
    %cst_112 = arith.constant dense<0.000000e+00> : vector<128xf32>
    %129 = vector.multi_reduction <add>, %128, %cst_112 [0] : vector<512x128xf32> to vector<128xf32>
    %130 = vector.shape_cast %129 : vector<128xf32> to vector<1x128xf32>
    %cst_113 = arith.constant 5.120000e+02 : f32
    %131 = vector.broadcast %cst_113 : f32 to vector<1x128xf32>
    %132 = arith.divf %130, %131 : vector<1x128xf32>
    %cst_114 = arith.constant 9.99999974E-6 : f32
    %133 = vector.broadcast %cst_114 : f32 to vector<1x128xf32>
    %134 = arith.addf %132, %133 : vector<1x128xf32>
    %135 = math.rsqrt %134 : vector<1x128xf32>
    %136 = vector.broadcast %135 : vector<1x128xf32> to vector<512x128xf32>
    %137 = arith.mulf %127, %136 : vector<512x128xf32>
    %138 = vector.broadcast %120 : vector<1x128xf32> to vector<512x128xf32>
    %139 = arith.mulf %137, %138 : vector<512x128xf32>
    %140 = vector.broadcast %121 : vector<1x128xf32> to vector<512x128xf32>
    %141 = arith.addf %139, %140 : vector<512x128xf32>
    %142 = arith.addf %117, %141 : vector<512x128xf32>
    %cst_115 = arith.constant 0.000000e+00 : f32
    %143 = vector.broadcast %cst_115 : f32 to vector<512x128xf32>
    %144 = arith.maximumf %142, %143 : vector<512x128xf32>
    %145 = arith.truncf %144 : vector<512x128xf32> to vector<512x128xbf16>
    %c0_116 = arith.constant 0 : index
    %c0_117 = arith.constant 0 : index
    %146 = vector.load %arg13[%c0_116, %c0_117] : memref<512x128xbf16, #tpu.memory_space<vmem>>, vector<512x128xbf16>
    tpu.vector_store %arg13[%c0_116, %c0_117], %145 {strides = array<i32>} : memref<512x128xbf16, #tpu.memory_space<vmem>>, vector<512x128xbf16>,
    return
  }
}

</mosaic_0001>

<llo_original>
// kernel: bottleneck_forward.1
$region0: #{bottleneck_forward.1}
  #allocation0 [shape = 'u32[]', space=smem, size = 0x4, offset = 0x4, fixed_abs, tag = 'smem constant byte address 0x4 - core index']
  #allocation1 [shape = 'u32[144,128]{1,0:T(1,128)}', space=vmem, size = 0x12000, scoped, tag = 'internal scratch']
  #allocation2 [shape = 'bf16[2,18,32,128]{3,2,1,0:T(16,128)(2,1)}', space=vmem, size = 0x48000, scoped, tag = 'scratch operand']
  #allocation3 [shape = 'bf16[512,1152]{1,0:T(16,128)(2,1)}', space=vmem, size = 0x120000, scoped, tag = 'scratch operand']
  %s0 = inlined_call_operand.vmem [shape: bf16[512,128], index: 0, kind: input, shape index: {}]
  %s1 = inlined_call_operand.vmem [shape: bf16[128,128], index: 1, kind: input, shape index: {}]
  %s2 = inlined_call_operand.vmem [shape: f32[1,128], index: 2, kind: input, shape index: {}]
  %s3 = inlined_call_operand.vmem [shape: f32[1,128], index: 3, kind: input, shape index: {}]
  %s4 = inlined_call_operand.vmem [shape: bf16[1152,128], index: 4, kind: input, shape index: {}]
  %s5 = inlined_call_operand.vmem [shape: f32[1,128], index: 5, kind: input, shape index: {}]
  %s6 = inlined_call_operand.vmem [shape: f32[1,128], index: 6, kind: input, shape index: {}]
  %s7 = inlined_call_operand.vmem [shape: bf16[128,128], index: 7, kind: input, shape index: {}]
  %s8 = inlined_call_operand.vmem [shape: f32[1,128], index: 8, kind: input, shape index: {}]
  %s9 = inlined_call_operand.vmem [shape: f32[1,128], index: 9, kind: input, shape index: {}]
  %s10 = inlined_call_operand.vmem [shape: bf16[128,128], index: 10, kind: input, shape index: {}]
  %s11 = inlined_call_operand.vmem [shape: f32[1,128], index: 11, kind: input, shape index: {}]
  %s12 = inlined_call_operand.vmem [shape: f32[1,128], index: 12, kind: input, shape index: {}]
  %s13 = inlined_call_operand.vmem [shape: bf16[512,128], index: 13, kind: output, shape index: {}]
  %s14 = sld [smem:[#allocation0]]
  $region62: #{bottleneck_forward.1} parent=0
    _
  %s16 = ssub.s32 1, %s14
  %s17 = scalar_select 0, %s16, %s14
  // Predicated region
  $region2: #{bottleneck_forward.1} parent=0 // pred_check
    _
  $region3: #{bottleneck_forward.1} parent=0 // pred_check_branch
    %19 = sbr.rel (0) target = $region5
  $region4: #{bottleneck_forward.1} parent=0 // pred_region
    _
  $region5: #{bottleneck_forward.1} parent=0 // pred_fallthru
    _
  // Predicated region
  $region6: #{bottleneck_forward.1} parent=0 // pred_check
    _
  $region7: #{bottleneck_forward.1} parent=0 // pred_check_branch
    %21 = sbr.rel (0) target = $region9
  $region8: #{bottleneck_forward.1} parent=0 // pred_region
    _
  $region9: #{bottleneck_forward.1} parent=0 // pred_fallthru
    _
  // Predicated region
  $region10: #{bottleneck_forward.1} parent=0 // pred_check
    _
  $region11: #{bottleneck_forward.1} parent=0 // pred_check_branch
    %23 = sbr.rel (0) target = $region13
  $region12: #{bottleneck_forward.1} parent=0 // pred_region
    _
  $region13: #{bottleneck_forward.1} parent=0 // pred_fallthru
    _
  // Predicated region
  $region14: #{bottleneck_forward.1} parent=0 // pred_check
    _
  $region15: #{bottleneck_forward.1} parent=0 // pred_check_branch
    %25 = sbr.rel (0) target = $region17
  $region16: #{bottleneck_forward.1} parent=0 // pred_region
    _
  $region17: #{bottleneck_forward.1} parent=0 // pred_fallthru
    _
  // Predicated region
  $region18: #{bottleneck_forward.1} parent=0 // pred_check
    _
  $region19: #{bottleneck_forward.1} parent=0 // pred_check_branch
    %27 = sbr.rel (0) target = $region21
  $region20: #{bottleneck_forward.1} parent=0 // pred_region
    _
  $region21: #{bottleneck_forward.1} parent=0 // pred_fallthru
    _
  // Predicated region
  $region22: #{bottleneck_forward.1} parent=0 // pred_check
    _
  $region23: #{bottleneck_forward.1} parent=0 // pred_check_branch
    %29 = sbr.rel (0) target = $region25
  $region24: #{bottleneck_forward.1} parent=0 // pred_region
    _
  $region25: #{bottleneck_forward.1} parent=0 // pred_fallthru
    _
  // Predicated region
  $region26: #{bottleneck_forward.1} parent=0 // pred_check
    _
  $region27: #{bottleneck_forward.1} parent=0 // pred_check_branch
    %31 = sbr.rel (0) target = $region29
  $region28: #{bottleneck_forward.1} parent=0 // pred_region
    _
  $region29: #{bottleneck_forward.1} parent=0 // pred_fallthru
    _
  // Predicated region
  $region30: #{bottleneck_forward.1} parent=0 // pred_check
    _
  $region31: #{bottleneck_forward.1} parent=0 // pred_check_branch
    %33 = sbr.rel (0) target = $region33
  $region32: #{bottleneck_forward.1} parent=0 // pred_region
    _
  $region33: #{bottleneck_forward.1} parent=0 // pred_fallthru
    _
  // Predicated region
  $region34: #{bottleneck_forward.1} parent=0 // pred_check
    _
  $region35: #{bottleneck_forward.1} parent=0 // pred_check_branch
    %35 = sbr.rel (0) target = $region37
  $region36: #{bottleneck_forward.1} parent=0 // pred_region
    _
  $region37: #{bottleneck_forward.1} parent=0 // pred_fallthru
    _
  // Predicated region
  $region38: #{bottleneck_forward.1} parent=0 // pred_check
    _
  $region39: #{bottleneck_forward.1} parent=0 // pred_check_branch
    %37 = sbr.rel (0) target = $region41
  $region40: #{bottleneck_forward.1} parent=0 // pred_region
    _
  $region41: #{bottleneck_forward.1} parent=0 // pred_fallthru
    _
  // Predicated region
  $region42: #{bottleneck_forward.1} parent=0 // pred_check
    _
  $region43: #{bottleneck_forward.1} parent=0 // pred_check_branch
    %39 = sbr.rel (0) target = $region45
  $region44: #{bottleneck_forward.1} parent=0 // pred_region
    _
  $region45: #{bottleneck_forward.1} parent=0 // pred_fallthru
    _
  // Predicated region
  $region46: #{bottleneck_forward.1} parent=0 // pred_check
    _
  $region47: #{bottleneck_forward.1} parent=0 // pred_check_branch
    %41 = sbr.rel (0) target = $region49
  $region48: #{bottleneck_forward.1} parent=0 // pred_region
    _
  $region49: #{bottleneck_forward.1} parent=0 // pred_fallthru
    _
  // Predicated region
  $region50: #{bottleneck_forward.1} parent=0 // pred_check
    _
  $region51: #{bottleneck_forward.1} parent=0 // pred_check_branch
    %43 = sbr.rel (0) target = $region53
  $region52: #{bottleneck_forward.1} parent=0 // pred_region
    _
  $region53: #{bottleneck_forward.1} parent=0 // pred_fallthru
    _
  %v45 = vld [vmem:[%s0] sm:$0xf]
  %v46 = vld [vmem:[%s0 + $0x4] sm:$0xf]
  %v47 = vld [vmem:[%s0 + $0x8] sm:$0xf]
  %v48 = vld [vmem:[%s0 + $0xc] sm:$0xf]
  %v49 = vld [vmem:[%s0 + $0x10] sm:$0xf]
  %v50 = vld [vmem:[%s0 + $0x14] sm:$0xf]
  %v51 = vld [vmem:[%s0 + $0x18] sm:$0xf]
  %v52 = vld [vmem:[%s0 + $0x1c] sm:$0xf]
  %v53 = vld [vmem:[%s0 + $0x20] sm:$0xf]
  %v54 = vld [vmem:[%s0 + $0x24] sm:$0xf]
  %v55 = vld [vmem:[%s0 + $0x28] sm:$0xf]
  %v56 = vld [vmem:[%s0 + $0x2c] sm:$0xf]
  %v57 = vld [vmem:[%s0 + $0x30] sm:$0xf]
  %v58 = vld [vmem:[%s0 + $0x34] sm:$0xf]
  %v59 = vld [vmem:[%s0 + $0x38] sm:$0xf]
  %v60 = vld [vmem:[%s0 + $0x3c] sm:$0xf]
  %v61 = vld [vmem:[%s0 + $0x40] sm:$0xf]
  %v62 = vld [vmem:[%s0 + $0x44] sm:$0xf]
  %v63 = vld [vmem:[%s0 + $0x48] sm:$0xf]
  %v64 = vld [vmem:[%s0 + $0x4c] sm:$0xf]
  %v65 = vld [vmem:[%s0 + $0x50] sm:$0xf]
  %v66 = vld [vmem:[%s0 + $0x54] sm:$0xf]
  %v67 = vld [vmem:[%s0 + $0x58] sm:$0xf]
  %v68 = vld [vmem:[%s0 + $0x5c] sm:$0xf]
  %v69 = vld [vmem:[%s0 + $0x60] sm:$0xf]
  %v70 = vld [vmem:[%s0 + $0x64] sm:$0xf]
  %v71 = vld [vmem:[%s0 + $0x68] sm:$0xf]
  %v72 = vld [vmem:[%s0 + $0x6c] sm:$0xf]
  %v73 = vld [vmem:[%s0 + $0x70] sm:$0xf]
  %v74 = vld [vmem:[%s0 + $0x74] sm:$0xf]
  %v75 = vld [vmem:[%s0 + $0x78] sm:$0xf]
  %v76 = vld [vmem:[%s0 + $0x7c] sm:$0xf]
  %v77 = vld [vmem:[%s0 + $0x80] sm:$0xf]
  %v78 = vld [vmem:[%s0 + $0x84] sm:$0xf]
  %v79 = vld [vmem:[%s0 + $0x88] sm:$0xf]
  %v80 = vld [vmem:[%s0 + $0x8c] sm:$0xf]
  %v81 = vld [vmem:[%s0 + $0x90] sm:$0xf]
  %v82 = vld [vmem:[%s0 + $0x94] sm:$0xf]
  %v83 = vld [vmem:[%s0 + $0x98] sm:$0xf]
  %v84 = vld [vmem:[%s0 + $0x9c] sm:$0xf]
  %v85 = vld [vmem:[%s0 + $0xa0] sm:$0xf]
  %v86 = vld [vmem:[%s0 + $0xa4] sm:$0xf]
  %v87 = vld [vmem:[%s0 + $0xa8] sm:$0xf]
  %v88 = vld [vmem:[%s0 + $0xac] sm:$0xf]
  %v89 = vld [vmem:[%s0 + $0xb0] sm:$0xf]
  %v90 = vld [vmem:[%s0 + $0xb4] sm:$0xf]
  %v91 = vld [vmem:[%s0 + $0xb8] sm:$0xf]
  %v92 = vld [vmem:[%s0 + $0xbc] sm:$0xf]
  %v93 = vld [vmem:[%s0 + $0xc0] sm:$0xf]
  %v94 = vld [vmem:[%s0 + $0xc4] sm:$0xf]
  %v95 = vld [vmem:[%s0 + $0xc8] sm:$0xf]
  %v96 = vld [vmem:[%s0 + $0xcc] sm:$0xf]
  %v97 = vld [vmem:[%s0 + $0xd0] sm:$0xf]
  %v98 = vld [vmem:[%s0 + $0xd4] sm:$0xf]
  %v99 = vld [vmem:[%s0 + $0xd8] sm:$0xf]
  %v100 = vld [vmem:[%s0 + $0xdc] sm:$0xf]
  %v101 = vld [vmem:[%s0 + $0xe0] sm:$0xf]
  %v102 = vld [vmem:[%s0 + $0xe4] sm:$0xf]
  %v103 = vld [vmem:[%s0 + $0xe8] sm:$0xf]
  %v104 = vld [vmem:[%s0 + $0xec] sm:$0xf]
  %v105 = vld [vmem:[%s0 + $0xf0] sm:$0xf]
  %v106 = vld [vmem:[%s0 + $0xf4] sm:$0xf]
  %v107 = vld [vmem:[%s0 + $0xf8] sm:$0xf]
  %v108 = vld [vmem:[%s0 + $0xfc] sm:$0xf]
  %v109 = vld [vmem:[%s1] sm:$0xf]
  %v110 = vld [vmem:[%s1 + $0x4] sm:$0xf]
  %v111 = vld [vmem:[%s1 + $0x8] sm:$0xf]
  %v112 = vld [vmem:[%s1 + $0xc] sm:$0xf]
  %v113 = vld [vmem:[%s1 + $0x10] sm:$0xf]
  %v114 = vld [vmem:[%s1 + $0x14] sm:$0xf]
  %v115 = vld [vmem:[%s1 + $0x18] sm:$0xf]
  %v116 = vld [vmem:[%s1 + $0x1c] sm:$0xf]
  %v117 = vld [vmem:[%s1 + $0x20] sm:$0xf]
  %v118 = vld [vmem:[%s1 + $0x24] sm:$0xf]
  %v119 = vld [vmem:[%s1 + $0x28] sm:$0xf]
  %v120 = vld [vmem:[%s1 + $0x2c] sm:$0xf]
  %v121 = vld [vmem:[%s1 + $0x30] sm:$0xf]
  %v122 = vld [vmem:[%s1 + $0x34] sm:$0xf]
  %v123 = vld [vmem:[%s1 + $0x38] sm:$0xf]
  %v124 = vld [vmem:[%s1 + $0x3c] sm:$0xf]
  %v189 = vunpack.c.l.b16 %v45
  %v190 = vunpack.c.l.b16 %v46
  %v191 = vunpack.c.l.b16 %v47
  %v192 = vunpack.c.l.b16 %v48
  %v193 = vunpack.c.l.b16 %v49
  %v194 = vunpack.c.l.b16 %v50
  %v195 = vunpack.c.l.b16 %v51
  %v196 = vunpack.c.l.b16 %v52
  %v197 = vunpack.c.l.b16 %v53
  %v198 = vunpack.c.l.b16 %v54
  %v199 = vunpack.c.l.b16 %v55
  %v200 = vunpack.c.l.b16 %v56
  %v201 = vunpack.c.l.b16 %v57
  %v202 = vunpack.c.l.b16 %v58
  %v203 = vunpack.c.l.b16 %v59
  %v204 = vunpack.c.l.b16 %v60
  %v205 = vunpack.c.l.b16 %v61
  %v206 = vunpack.c.l.b16 %v62
  %v207 = vunpack.c.l.b16 %v63
  %v208 = vunpack.c.l.b16 %v64
  %v209 = vunpack.c.l.b16 %v65
  %v210 = vunpack.c.l.b16 %v66
  %v211 = vunpack.c.l.b16 %v67
  %v212 = vunpack.c.l.b16 %v68
  %v213 = vunpack.c.l.b16 %v69
  %v214 = vunpack.c.l.b16 %v70
  %v215 = vunpack.c.l.b16 %v71
  %v216 = vunpack.c.l.b16 %v72
  %v217 = vunpack.c.l.b16 %v73
  %v218 = vunpack.c.l.b16 %v74
  %v219 = vunpack.c.l.b16 %v75
  %v220 = vunpack.c.l.b16 %v76
  %v221 = vunpack.c.l.b16 %v77
  %v222 = vunpack.c.l.b16 %v78
  %v223 = vunpack.c.l.b16 %v79
  %v224 = vunpack.c.l.b16 %v80
  %v225 = vunpack.c.l.b16 %v81
  %v226 = vunpack.c.l.b16 %v82
  %v227 = vunpack.c.l.b16 %v83
  %v228 = vunpack.c.l.b16 %v84
  %v229 = vunpack.c.l.b16 %v85
  %v230 = vunpack.c.l.b16 %v86
  %v231 = vunpack.c.l.b16 %v87
  %v232 = vunpack.c.l.b16 %v88
  %v233 = vunpack.c.l.b16 %v89
  %v234 = vunpack.c.l.b16 %v90
  %v235 = vunpack.c.l.b16 %v91
  %v236 = vunpack.c.l.b16 %v92
  %v237 = vunpack.c.l.b16 %v93
  %v238 = vunpack.c.l.b16 %v94
  %v239 = vunpack.c.l.b16 %v95
  %v240 = vunpack.c.l.b16 %v96
  %v241 = vunpack.c.l.b16 %v97
  %v242 = vunpack.c.l.b16 %v98
  %v243 = vunpack.c.l.b16 %v99
  %v244 = vunpack.c.l.b16 %v100
  %v245 = vunpack.c.l.b16 %v101
  %v246 = vunpack.c.l.b16 %v102
  %v247 = vunpack.c.l.b16 %v103
  %v248 = vunpack.c.l.b16 %v104
  %v249 = vunpack.c.l.b16 %v105
  %v250 = vunpack.c.l.b16 %v106
  %v251 = vunpack.c.l.b16 %v107
  %v252 = vunpack.c.l.b16 %v108
  %v253 = vpack.c.b16 %v190, %v189
  %v254 = vpack.c.b16 %v192, %v191
  %v255 = vpack.c.b16 %v194, %v193
  %v256 = vpack.c.b16 %v196, %v195
  %v257 = vpack.c.b16 %v198, %v197
  %v258 = vpack.c.b16 %v200, %v199
  %v259 = vpack.c.b16 %v202, %v201
  %v260 = vpack.c.b16 %v204, %v203
  %v261 = vpack.c.b16 %v206, %v205
  %v262 = vpack.c.b16 %v208, %v207
  %v263 = vpack.c.b16 %v210, %v209
  %v264 = vpack.c.b16 %v212, %v211
  %v265 = vpack.c.b16 %v214, %v213
  %v266 = vpack.c.b16 %v216, %v215
  %v267 = vpack.c.b16 %v218, %v217
  %v268 = vpack.c.b16 %v220, %v219
  %v269 = vpack.c.b16 %v222, %v221
  %v270 = vpack.c.b16 %v224, %v223
  %v271 = vpack.c.b16 %v226, %v225
  %v272 = vpack.c.b16 %v228, %v227
  %v273 = vpack.c.b16 %v230, %v229
  %v274 = vpack.c.b16 %v232, %v231
  %v275 = vpack.c.b16 %v234, %v233
  %v276 = vpack.c.b16 %v236, %v235
  %v277 = vpack.c.b16 %v238, %v237
  %v278 = vpack.c.b16 %v240, %v239
  %v279 = vpack.c.b16 %v242, %v241
  %v280 = vpack.c.b16 %v244, %v243
  %v281 = vpack.c.b16 %v246, %v245
  %v282 = vpack.c.b16 %v248, %v247
  %v283 = vpack.c.b16 %v250, %v249
  %v284 = vpack.c.b16 %v252, %v251
  %v333 = vunpack.c.l.b16 %v109
  %v334 = vunpack.c.l.b16 %v110
  %v335 = vunpack.c.l.b16 %v111
  %v336 = vunpack.c.l.b16 %v112
  %v337 = vunpack.c.l.b16 %v113
  %v338 = vunpack.c.l.b16 %v114
  %v339 = vunpack.c.l.b16 %v115
  %v340 = vunpack.c.l.b16 %v116
  %v341 = vunpack.c.l.b16 %v117
  %v342 = vunpack.c.l.b16 %v118
  %v343 = vunpack.c.l.b16 %v119
  %v344 = vunpack.c.l.b16 %v120
  %v345 = vunpack.c.l.b16 %v121
  %v346 = vunpack.c.l.b16 %v122
  %v347 = vunpack.c.l.b16 %v123
  %v348 = vunpack.c.l.b16 %v124
  %v349 = vpack.c.b16 %v334, %v333
  %v350 = vpack.c.b16 %v336, %v335
  %v351 = vpack.c.b16 %v338, %v337
  %v352 = vpack.c.b16 %v340, %v339
  %v353 = vpack.c.b16 %v342, %v341
  %v354 = vpack.c.b16 %v344, %v343
  %v355 = vpack.c.b16 %v346, %v345
  %v356 = vpack.c.b16 %v348, %v347
  %365 = vmatprep.subr.bf16.mxu0 0
  %366 = vmatpush1.bf16.msra.mxu0 %v349
  %367 = vmatprep.subr.bf16.mxu0 0
  %368 = vmatpush1.bf16.msra.mxu0 %v350
  %369 = vmatprep.subr.bf16.mxu0 0
  %370 = vmatpush1.bf16.msra.mxu0 %v351
  %371 = vmatprep.subr.bf16.mxu0 0
  %372 = vmatpush1.bf16.msra.mxu0 %v352
  %373 = vmatprep.subr.bf16.mxu0 0
  %374 = vmatpush1.bf16.msra.mxu0 %v353
  %375 = vmatprep.subr.bf16.mxu0 0
  %376 = vmatpush1.bf16.msra.mxu0 %v354
  %377 = vmatprep.subr.bf16.mxu0 0
  %378 = vmatpush1.bf16.msra.mxu0 %v355
  %379 = vmatprep.subr.bf16.mxu0 0
  %380 = vmatpush1.bf16.msra.mxu0 %v356
  %381 = vmatprep.subr.bf16.mxu0 0
  %382 = vmatpush1.bf16.msra.mxu0 0
  %383 = vmatprep.subr.bf16.mxu0 0
  %384 = vmatpush1.bf16.msra.mxu0 0
  %385 = vmatprep.subr.bf16.mxu0 0
  %386 = vmatpush1.bf16.msra.mxu0 0
  %387 = vmatprep.subr.bf16.mxu0 0
  %388 = vmatpush1.bf16.msra.mxu0 0
  %389 = vmatprep.subr.bf16.mxu0 0
  %390 = vmatpush1.bf16.msra.mxu0 0
  %391 = vmatprep.subr.bf16.mxu0 0
  %392 = vmatpush1.bf16.msra.mxu0 0
  %393 = vmatprep.subr.bf16.mxu0 0
  %394 = vmatpush1.bf16.msra.mxu0 0
  %395 = vmatprep.subr.bf16.mxu0 0
  %396 = vmatpush1.bf16.msra.mxu0 0
  %397 = vmatprep.mubr.bf16.mxu0 0
  %398 = vmatmul.mubr.bf16.gmra.mrb[0].mxu0 %v253
  %v399 = vpop.f32.mrb[0].mxu0
  %v400 = vadd.f32 0.0, %v399
  %v401 = vpop.f32.mrb[0].mxu0
  %v402 = vpop.f32.mrb[0].mxu0
  %v403 = vadd.f32 0.0, %v402
  %v404 = vpop.f32.mrb[0].mxu0
  %405 = vmatprep.mubr.bf16.mxu0 0
  %406 = vmatmul.mubr.bf16.gmra.mrb[0].mxu0 %v254
  %v407 = vpop.f32.mrb[0].mxu0
  %v408 = vadd.f32 0.0, %v407
  %v409 = vpop.f32.mrb[0].mxu0
  %v410 = vpop.f32.mrb[0].mxu0
  %v411 = vadd.f32 0.0, %v410
  %v412 = vpop.f32.mrb[0].mxu0
  %413 = vmatprep.mubr.bf16.mxu0 0
  %414 = vmatmul.mubr.bf16.gmra.mrb[0].mxu0 %v255
  %v415 = vpop.f32.mrb[0].mxu0
  %v416 = vadd.f32 0.0, %v415
  %v417 = vpop.f32.mrb[0].mxu0
  %v418 = vpop.f32.mrb[0].mxu0
  %v419 = vadd.f32 0.0, %v418
  %v420 = vpop.f32.mrb[0].mxu0
  %421 = vmatprep.mubr.bf16.mxu0 0
  %422 = vmatmul.mubr.bf16.gmra.mrb[0].mxu0 %v256
  %v423 = vpop.f32.mrb[0].mxu0
  %v424 = vadd.f32 0.0, %v423
  %v425 = vpop.f32.mrb[0].mxu0
  %v426 = vpop.f32.mrb[0].mxu0
  %v427 = vadd.f32 0.0, %v426
  %v428 = vpop.f32.mrb[0].mxu0
  %429 = vmatprep.mubr.bf16.mxu0 0
  %430 = vmatmul.mubr.bf16.gmra.mrb[0].mxu0 %v257
  %v431 = vpop.f32.mrb[0].mxu0
  %v432 = vadd.f32 0.0, %v431
  %v433 = vpop.f32.mrb[0].mxu0
  %v434 = vpop.f32.mrb[0].mxu0
  %v435 = vadd.f32 0.0, %v434
  %v436 = vpop.f32.mrb[0].mxu0
  %437 = vmatprep.mubr.bf16.mxu0 0
  %438 = vmatmul.mubr.bf16.gmra.mrb[0].mxu0 %v258
  %v439 = vpop.f32.mrb[0].mxu0
  %v440 = vadd.f32 0.0, %v439
  %v441 = vpop.f32.mrb[0].mxu0
  %v442 = vpop.f32.mrb[0].mxu0
  %v443 = vadd.f32 0.0, %v442
  %v444 = vpop.f32.mrb[0].mxu0
  %445 = vmatprep.mubr.bf16.mxu0 0
  %446 = vmatmul.mubr.bf16.gmra.mrb[0].mxu0 %v259
  %v447 = vpop.f32.mrb[0].mxu0
  %v448 = vadd.f32 0.0, %v447
  %v449 = vpop.f32.mrb[0].mxu0
  %v450 = vpop.f32.mrb[0].mxu0
  %v451 = vadd.f32 0.0, %v450
  %v452 = vpop.f32.mrb[0].mxu0
  %453 = vmatprep.mubr.bf16.mxu0 0
  %454 = vmatmul.mubr.bf16.gmra.mrb[0].mxu0 %v260
  %v455 = vpop.f32.mrb[0].mxu0
  %v456 = vadd.f32 0.0, %v455
  %v457 = vpop.f32.mrb[0].mxu0
  %v458 = vpop.f32.mrb[0].mxu0
  %v459 = vadd.f32 0.0, %v458
  %v460 = vpop.f32.mrb[0].mxu0
  %461 = vmatprep.mubr.bf16.mxu0 0
  %462 = vmatmul.mubr.bf16.gmra.mrb[0].mxu0 %v261
  %v463 = vpop.f32.mrb[0].mxu0
  %v464 = vadd.f32 0.0, %v463
  %v465 = vpop.f32.mrb[0].mxu0
  %v466 = vpop.f32.mrb[0].mxu0
  %v467 = vadd.f32 0.0, %v466
  %v468 = vpop.f32.mrb[0].mxu0
  %469 = vmatprep.mubr.bf16.mxu0 0
  %470 = vmatmul.mubr.bf16.gmra.mrb[0].mxu0 %v262
  %v471 = vpop.f32.mrb[0].mxu0
  %v472 = vadd.f32 0.0, %v471
  %v473 = vpop.f32.mrb[0].mxu0
  %v474 = vpop.f32.mrb[0].mxu0
  %v475 = vadd.f32 0.0, %v474
  %v476 = vpop.f32.mrb[0].mxu0
  %477 = vmatprep.mubr.bf16.mxu0 0
  %478 = vmatmul.mubr.bf16.gmra.mrb[0].mxu0 %v263
  %v479 = vpop.f32.mrb[0].mxu0
  %v480 = vadd.f32 0.0, %v479
  %v481 = vpop.f32.mrb[0].mxu0
  %v482 = vpop.f32.mrb[0].mxu0
  %v483 = vadd.f32 0.0, %v482
  %v484 = vpop.f32.mrb[0].mxu0
  %485 = vmatprep.mubr.bf16.mxu0 0
  %486 = vmatmul.mubr.bf16.gmra.mrb[0].mxu0 %v264
  %v487 = vpop.f32.mrb[0].mxu0
  %v488 = vadd.f32 0.0, %v487
  %v489 = vpop.f32.mrb[0].mxu0
  %v490 = vpop.f32.mrb[0].mxu0
  %v491 = vadd.f32 0.0, %v490
  %v492 = vpop.f32.mrb[0].mxu0
  %493 = vmatprep.mubr.bf16.mxu0 0
  %494 = vmatmul.mubr.bf16.gmra.mrb[0].mxu0 %v265
  %v495 = vpop.f32.mrb[0].mxu0
  %v496 = vadd.f32 0.0, %v495
  %v497 = vpop.f32.mrb[0].mxu0
  %v498 = vpop.f32.mrb[0].mxu0
  %v499 = vadd.f32 0.0, %v498
  %v500 = vpop.f32.mrb[0].mxu0
  %501 = vmatprep.mubr.bf16.mxu0 0
  %502 = vmatmul.mubr.bf16.gmra.mrb[0].mxu0 %v266
  %v503 = vpop.f32.mrb[0].mxu0
  %v504 = vadd.f32 0.0, %v503
  %v505 = vpop.f32.mrb[0].mxu0
  %v506 = vpop.f32.mrb[0].mxu0
  %v507 = vadd.f32 0.0, %v506
  %v508 = vpop.f32.mrb[0].mxu0
  %509 = vmatprep.mubr.bf16.mxu0 0
  %510 = vmatmul.mubr.bf16.gmra.mrb[0].mxu0 %v267
  %v511 = vpop.f32.mrb[0].mxu0
  %v512 = vadd.f32 0.0, %v511
  %v513 = vpop.f32.mrb[0].mxu0
  %v514 = vpop.f32.mrb[0].mxu0
  %v515 = vadd.f32 0.0, %v514
  %v516 = vpop.f32.mrb[0].mxu0
  %517 = vmatprep.mubr.bf16.mxu0 0
  %518 = vmatmul.mubr.bf16.gmra.mrb[0].mxu0 %v268
  %v519 = vpop.f32.mrb[0].mxu0
  %v520 = vadd.f32 0.0, %v519
  %v521 = vpop.f32.mrb[0].mxu0
  %v522 = vpop.f32.mrb[0].mxu0
  %v523 = vadd.f32 0.0, %v522
  %v524 = vpop.f32.mrb[0].mxu0
  %525 = vmatprep.mubr.bf16.mxu0 0
  %526 = vmatmul.mubr.bf16.gmra.mrb[0].mxu0 %v269
  %v527 = vpop.f32.mrb[0].mxu0
  %v528 = vadd.f32 0.0, %v527
  %v529 = vpop.f32.mrb[0].mxu0
  %v530 = vpop.f32.mrb[0].mxu0
  %v531 = vadd.f32 0.0, %v530
  %v532 = vpop.f32.mrb[0].mxu0
  %533 = vmatprep.mubr.bf16.mxu0 0
  %534 = vmatmul.mubr.bf16.gmra.mrb[0].mxu0 %v270
  %v535 = vpop.f32.mrb[0].mxu0
  %v536 = vadd.f32 0.0, %v535
  %v537 = vpop.f32.mrb[0].mxu0
  %v538 = vpop.f32.mrb[0].mxu0
  %v539 = vadd.f32 0.0, %v538
  %v540 = vpop.f32.mrb[0].mxu0
  %541 = vmatprep.mubr.bf16.mxu0 0
  %542 = vmatmul.mubr.bf16.gmra.mrb[0].mxu0 %v271
  %v543 = vpop.f32.mrb[0].mxu0
  %v544 = vadd.f32 0.0, %v543
  %v545 = vpop.f32.mrb[0].mxu0
  %v546 = vpop.f32.mrb[0].mxu0
  %v547 = vadd.f32 0.0, %v546
  %v548 = vpop.f32.mrb[0].mxu0
  %549 = vmatprep.mubr.bf16.mxu0 0
  %550 = vmatmul.mubr.bf16.gmra.mrb[0].mxu0 %v272
  %v551 = vpop.f32.mrb[0].mxu0
  %v552 = vadd.f32 0.0, %v551
  %v553 = vpop.f32.mrb[0].mxu0
  %v554 = vpop.f32.mrb[0].mxu0
  %v555 = vadd.f32 0.0, %v554
  %v556 = vpop.f32.mrb[0].mxu0
  %557 = vmatprep.mubr.bf16.mxu0 0
  %558 = vmatmul.mubr.bf16.gmra.mrb[0].mxu0 %v273
  %v559 = vpop.f32.mrb[0].mxu0
  %v560 = vadd.f32 0.0, %v559
  %v561 = vpop.f32.mrb[0].mxu0
  %v562 = vpop.f32.mrb[0].mxu0
  %v563 = vadd.f32 0.0, %v562
  %v564 = vpop.f32.mrb[0].mxu0
  %565 = vmatprep.mubr.bf16.mxu0 0
  %566 = vmatmul.mubr.bf16.gmra.mrb[0].mxu0 %v274
  %v567 = vpop.f32.mrb[0].mxu0
  %v568 = vadd.f32 0.0, %v567
  %v569 = vpop.f32.mrb[0].mxu0
  %v570 = vpop.f32.mrb[0].mxu0
  %v571 = vadd.f32 0.0, %v570
  %v572 = vpop.f32.mrb[0].mxu0
  %573 = vmatprep.mubr.bf16.mxu0 0
  %574 = vmatmul.mubr.bf16.gmra.mrb[0].mxu0 %v275
  %v575 = vpop.f32.mrb[0].mxu0
  %v576 = vadd.f32 0.0, %v575
  %v577 = vpop.f32.mrb[0].mxu0
  %v578 = vpop.f32.mrb[0].mxu0
  %v579 = vadd.f32 0.0, %v578
  %v580 = vpop.f32.mrb[0].mxu0
  %581 = vmatprep.mubr.bf16.mxu0 0
  %582 = vmatmul.mubr.bf16.gmra.mrb[0].mxu0 %v276
  %v583 = vpop.f32.mrb[0].mxu0
  %v584 = vadd.f32 0.0, %v583
  %v585 = vpop.f32.mrb[0].mxu0
  %v586 = vpop.f32.mrb[0].mxu0
  %v587 = vadd.f32 0.0, %v586
  %v588 = vpop.f32.mrb[0].mxu0
  %589 = vmatprep.mubr.bf16.mxu0 0
  %590 = vmatmul.mubr.bf16.gmra.mrb[0].mxu0 %v277
  %v591 = vpop.f32.mrb[0].mxu0
  %v592 = vadd.f32 0.0, %v591
  %v593 = vpop.f32.mrb[0].mxu0
  %v594 = vpop.f32.mrb[0].mxu0
  %v595 = vadd.f32 0.0, %v594
  %v596 = vpop.f32.mrb[0].mxu0
  %597 = vmatprep.mubr.bf16.mxu0 0
  %598 = vmatmul.mubr.bf16.gmra.mrb[0].mxu0 %v278
  %v599 = vpop.f32.mrb[0].mxu0
  %v600 = vadd.f32 0.0, %v599
  %v601 = vpop.f32.mrb[0].mxu0
  %v602 = vpop.f32.mrb[0].mxu0
  %v603 = vadd.f32 0.0, %v602
  %v604 = vpop.f32.mrb[0].mxu0
  %605 = vmatprep.mubr.bf16.mxu0 0
  %606 = vmatmul.mubr.bf16.gmra.mrb[0].mxu0 %v279
  %v607 = vpop.f32.mrb[0].mxu0
  %v608 = vadd.f32 0.0, %v607
  %v609 = vpop.f32.mrb[0].mxu0
  %v610 = vpop.f32.mrb[0].mxu0
  %v611 = vadd.f32 0.0, %v610
  %v612 = vpop.f32.mrb[0].mxu0
  %613 = vmatprep.mubr.bf16.mxu0 0
  %614 = vmatmul.mubr.bf16.gmra.mrb[0].mxu0 %v280
  %v615 = vpop.f32.mrb[0].mxu0
  %v616 = vadd.f32 0.0, %v615
  %v617 = vpop.f32.mrb[0].mxu0
  %v618 = vpop.f32.mrb[0].mxu0
  %v619 = vadd.f32 0.0, %v618
  %v620 = vpop.f32.mrb[0].mxu0
  %621 = vmatprep.mubr.bf16.mxu0 0
  %622 = vmatmul.mubr.bf16.gmra.mrb[0].mxu0 %v281
  %v623 = vpop.f32.mrb[0].mxu0
  %v624 = vadd.f32 0.0, %v623
  %v625 = vpop.f32.mrb[0].mxu0
  %v626 = vpop.f32.mrb[0].mxu0
  %v627 = vadd.f32 0.0, %v626
  %v628 = vpop.f32.mrb[0].mxu0
  %629 = vmatprep.mubr.bf16.mxu0 0
  %630 = vmatmul.mubr.bf16.gmra.mrb[0].mxu0 %v282
  %v631 = vpop.f32.mrb[0].mxu0
  %v632 = vadd.f32 0.0, %v631
  %v633 = vpop.f32.mrb[0].mxu0
  %v634 = vpop.f32.mrb[0].mxu0
  %v635 = vadd.f32 0.0, %v634
  %v636 = vpop.f32.mrb[0].mxu0
  %637 = vmatprep.mubr.bf16.mxu0 0
  %638 = vmatmul.mubr.bf16.gmra.mrb[0].mxu0 %v283
  %v639 = vpop.f32.mrb[0].mxu0
  %v640 = vadd.f32 0.0, %v639
  %v641 = vpop.f32.mrb[0].mxu0
  %v642 = vpop.f32.mrb[0].mxu0
  %v643 = vadd.f32 0.0, %v642
  %v644 = vpop.f32.mrb[0].mxu0
  %645 = vmatprep.mubr.bf16.mxu0 0
  %646 = vmatmul.mubr.bf16.gmra.mrb[0].mxu0 %v284
  %v647 = vpop.f32.mrb[0].mxu0
  %v648 = vadd.f32 0.0, %v647
  %v649 = vpop.f32.mrb[0].mxu0
  %v650 = vpop.f32.mrb[0].mxu0
  %v651 = vadd.f32 0.0, %v650
  %v652 = vpop.f32.mrb[0].mxu0
  %653 = vdwg.mxu0
  %v654 = vld [vmem:[%s2] sm:$0x1]
  %v655 = vld [vmem:[%s3] sm:$0x1]
  %v656 = vadd.f32 %v400, %v403
  %v657 = vadd.f32 %v656, %v408
  %v658 = vadd.f32 %v657, %v411
  %v659 = vadd.f32 %v658, %v416
  %v660 = vadd.f32 %v659, %v419
  %v661 = vadd.f32 %v660, %v424
  %v662 = vadd.f32 %v661, %v427
  %v663 = vadd.f32 %v662, %v432
  %v664 = vadd.f32 %v663, %v435
  %v665 = vadd.f32 %v664, %v440
  %v666 = vadd.f32 %v665, %v443
  %v667 = vadd.f32 %v666, %v448
  %v668 = vadd.f32 %v667, %v451
  %v669 = vadd.f32 %v668, %v456
  %v670 = vadd.f32 %v669, %v459
  %v671 = vadd.f32 %v670, %v464
  %v672 = vadd.f32 %v671, %v467
  %v673 = vadd.f32 %v672, %v472
  %v674 = vadd.f32 %v673, %v475
  %v675 = vadd.f32 %v674, %v480
  %v676 = vadd.f32 %v675, %v483
  %v677 = vadd.f32 %v676, %v488
  %v678 = vadd.f32 %v677, %v491
  %v679 = vadd.f32 %v678, %v496
  %v680 = vadd.f32 %v679, %v499
  %v681 = vadd.f32 %v680, %v504
  %v682 = vadd.f32 %v681, %v507
  %v683 = vadd.f32 %v682, %v512
  %v684 = vadd.f32 %v683, %v515
  %v685 = vadd.f32 %v684, %v520
  %v686 = vadd.f32 %v685, %v523
  %v687 = vadd.f32 %v686, %v528
  %v688 = vadd.f32 %v687, %v531
  %v689 = vadd.f32 %v688, %v536
  %v690 = vadd.f32 %v689, %v539
  %v691 = vadd.f32 %v690, %v544
  %v692 = vadd.f32 %v691, %v547
  %v693 = vadd.f32 %v692, %v552
  %v694 = vadd.f32 %v693, %v555
  %v695 = vadd.f32 %v694, %v560
  %v696 = vadd.f32 %v695, %v563
  %v697 = vadd.f32 %v696, %v568
  %v698 = vadd.f32 %v697, %v571
  %v699 = vadd.f32 %v698, %v576
  %v700 = vadd.f32 %v699, %v579
  %v701 = vadd.f32 %v700, %v584
  %v702 = vadd.f32 %v701, %v587
  %v703 = vadd.f32 %v702, %v592
  %v704 = vadd.f32 %v703, %v595
  %v705 = vadd.f32 %v704, %v600
  %v706 = vadd.f32 %v705, %v603
  %v707 = vadd.f32 %v706, %v608
  %v708 = vadd.f32 %v707, %v611
  %v709 = vadd.f32 %v708, %v616
  %v710 = vadd.f32 %v709, %v619
  %v711 = vadd.f32 %v710, %v624
  %v712 = vadd.f32 %v711, %v627
  %v713 = vadd.f32 %v712, %v632
  %v714 = vadd.f32 %v713, %v635
  %v715 = vadd.f32 %v714, %v640
  %v716 = vadd.f32 %v715, %v643
  %v717 = vadd.f32 %v716, %v648
  %v718 = vadd.f32 %v717, %v651
  %v719 = vrot.slane %v718, 4
  %v720 = vadd.f32 %v718, %v719
  %v721 = vrot.slane %v720, 2
  %v722 = vadd.f32 %v720, %v721
  %v723 = vrot.slane %v722, 1
  %v724 = vadd.f32 %v722, %v723
  %v725 = vrcp.pop 512.0
  %v726 = vmul.f32 %v724, %v725
  %v727 = vsub.f32 %v400, %v726
  %v728 = vsub.f32 %v403, %v726
  %v729 = vsub.f32 %v408, %v726
  %v730 = vsub.f32 %v411, %v726
  %v731 = vsub.f32 %v416, %v726
  %v732 = vsub.f32 %v419, %v726
  %v733 = vsub.f32 %v424, %v726
  %v734 = vsub.f32 %v427, %v726
  %v735 = vsub.f32 %v432, %v726
  %v736 = vsub.f32 %v435, %v726
  %v737 = vsub.f32 %v440, %v726
  %v738 = vsub.f32 %v443, %v726
  %v739 = vsub.f32 %v448, %v726
  %v740 = vsub.f32 %v451, %v726
  %v741 = vsub.f32 %v456, %v726
  %v742 = vsub.f32 %v459, %v726
  %v743 = vsub.f32 %v464, %v726
  %v744 = vsub.f32 %v467, %v726
  %v745 = vsub.f32 %v472, %v726
  %v746 = vsub.f32 %v475, %v726
  %v747 = vsub.f32 %v480, %v726
  %v748 = vsub.f32 %v483, %v726
  %v749 = vsub.f32 %v488, %v726
  %v750 = vsub.f32 %v491, %v726
  %v751 = vsub.f32 %v496, %v726
  %v752 = vsub.f32 %v499, %v726
  %v753 = vsub.f32 %v504, %v726
  %v754 = vsub.f32 %v507, %v726
  %v755 = vsub.f32 %v512, %v726
  %v756 = vsub.f32 %v515, %v726
  %v757 = vsub.f32 %v520, %v726
  %v758 = vsub.f32 %v523, %v726
  %v759 = vsub.f32 %v528, %v726
  %v760 = vsub.f32 %v531, %v726
  %v761 = vsub.f32 %v536, %v726
  %v762 = vsub.f32 %v539, %v726
  %v763 = vsub.f32 %v544, %v726
  %v764 = vsub.f32 %v547, %v726
  %v765 = vsub.f32 %v552, %v726
  %v766 = vsub.f32 %v555, %v726
  %v767 = vsub.f32 %v560, %v726
  %v768 = vsub.f32 %v563, %v726
  %v769 = vsub.f32 %v568, %v726
  %v770 = vsub.f32 %v571, %v726
  %v771 = vsub.f32 %v576, %v726
  %v772 = vsub.f32 %v579, %v726
  %v773 = vsub.f32 %v584, %v726
  %v774 = vsub.f32 %v587, %v726
  %v775 = vsub.f32 %v592, %v726
  %v776 = vsub.f32 %v595, %v726
  %v777 = vsub.f32 %v600, %v726
  %v778 = vsub.f32 %v603, %v726
  %v779 = vsub.f32 %v608, %v726
  %v780 = vsub.f32 %v611, %v726
  %v781 = vsub.f32 %v616, %v726
  %v782 = vsub.f32 %v619, %v726
  %v783 = vsub.f32 %v624, %v726
  %v784 = vsub.f32 %v627, %v726
  %v785 = vsub.f32 %v632, %v726
  %v786 = vsub.f32 %v635, %v726
  %v787 = vsub.f32 %v640, %v726
  %v788 = vsub.f32 %v643, %v726
  %v789 = vsub.f32 %v648, %v726
  %v790 = vsub.f32 %v651, %v726
  %v791 = vmul.f32 %v727, %v727
  %v792 = vmul.f32 %v728, %v728
  %v793 = vmul.f32 %v729, %v729
  %v794 = vmul.f32 %v730, %v730
  %v795 = vmul.f32 %v731, %v731
  %v796 = vmul.f32 %v732, %v732
  %v797 = vmul.f32 %v733, %v733
  %v798 = vmul.f32 %v734, %v734
  %v799 = vmul.f32 %v735, %v735
  %v800 = vmul.f32 %v736, %v736
  %v801 = vmul.f32 %v737, %v737
  %v802 = vmul.f32 %v738, %v738
  %v803 = vmul.f32 %v739, %v739
  %v804 = vmul.f32 %v740, %v740
  %v805 = vmul.f32 %v741, %v741
  %v806 = vmul.f32 %v742, %v742
  %v807 = vmul.f32 %v743, %v743
  %v808 = vmul.f32 %v744, %v744
  %v809 = vmul.f32 %v745, %v745
  %v810 = vmul.f32 %v746, %v746
  %v811 = vmul.f32 %v747, %v747
  %v812 = vmul.f32 %v748, %v748
  %v813 = vmul.f32 %v749, %v749
  %v814 = vmul.f32 %v750, %v750
  %v815 = vmul.f32 %v751, %v751
  %v816 = vmul.f32 %v752, %v752
  %v817 = vmul.f32 %v753, %v753
  %v818 = vmul.f32 %v754, %v754
  %v819 = vmul.f32 %v755, %v755
  %v820 = vmul.f32 %v756, %v756
  %v821 = vmul.f32 %v757, %v757
  %v822 = vmul.f32 %v758, %v758
  %v823 = vmul.f32 %v759, %v759
  %v824 = vmul.f32 %v760, %v760
  %v825 = vmul.f32 %v761, %v761
  %v826 = vmul.f32 %v762, %v762
  %v827 = vmul.f32 %v763, %v763
  %v828 = vmul.f32 %v764, %v764
  %v829 = vmul.f32 %v765, %v765
  %v830 = vmul.f32 %v766, %v766
  %v831 = vmul.f32 %v767, %v767
  %v832 = vmul.f32 %v768, %v768
  %v833 = vmul.f32 %v769, %v769
  %v834 = vmul.f32 %v770, %v770
  %v835 = vmul.f32 %v771, %v771
  %v836 = vmul.f32 %v772, %v772
  %v837 = vmul.f32 %v773, %v773
  %v838 = vmul.f32 %v774, %v774
  %v839 = vmul.f32 %v775, %v775
  %v840 = vmul.f32 %v776, %v776
  %v841 = vmul.f32 %v777, %v777
  %v842 = vmul.f32 %v778, %v778
  %v843 = vmul.f32 %v779, %v779
  %v844 = vmul.f32 %v780, %v780
  %v845 = vmul.f32 %v781, %v781
  %v846 = vmul.f32 %v782, %v782
  %v847 = vmul.f32 %v783, %v783
  %v848 = vmul.f32 %v784, %v784
  %v849 = vmul.f32 %v785, %v785
  %v850 = vmul.f32 %v786, %v786
  %v851 = vmul.f32 %v787, %v787
  %v852 = vmul.f32 %v788, %v788
  %v853 = vmul.f32 %v789, %v789
  %v854 = vmul.f32 %v790, %v790
  %v855 = vadd.f32 %v791, %v792
  %v856 = vadd.f32 %v855, %v793
  %v857 = vadd.f32 %v856, %v794
  %v858 = vadd.f32 %v857, %v795
  %v859 = vadd.f32 %v858, %v796
  %v860 = vadd.f32 %v859, %v797
  %v861 = vadd.f32 %v860, %v798
  %v862 = vadd.f32 %v861, %v799
  %v863 = vadd.f32 %v862, %v800
  %v864 = vadd.f32 %v863, %v801
  %v865 = vadd.f32 %v864, %v802
  %v866 = vadd.f32 %v865, %v803
  %v867 = vadd.f32 %v866, %v804
  %v868 = vadd.f32 %v867, %v805
  %v869 = vadd.f32 %v868, %v806
  %v870 = vadd.f32 %v869, %v807
  %v871 = vadd.f32 %v870, %v808
  %v872 = vadd.f32 %v871, %v809
  %v873 = vadd.f32 %v872, %v810
  %v874 = vadd.f32 %v873, %v811
  %v875 = vadd.f32 %v874, %v812
  %v876 = vadd.f32 %v875, %v813
  %v877 = vadd.f32 %v876, %v814
  %v878 = vadd.f32 %v877, %v815
  %v879 = vadd.f32 %v878, %v816
  %v880 = vadd.f32 %v879, %v817
  %v881 = vadd.f32 %v880, %v818
  %v882 = vadd.f32 %v881, %v819
  %v883 = vadd.f32 %v882, %v820
  %v884 = vadd.f32 %v883, %v821
  %v885 = vadd.f32 %v884, %v822
  %v886 = vadd.f32 %v885, %v823
  %v887 = vadd.f32 %v886, %v824
  %v888 = vadd.f32 %v887, %v825
  %v889 = vadd.f32 %v888, %v826
  %v890 = vadd.f32 %v889, %v827
  %v891 = vadd.f32 %v890, %v828
  %v892 = vadd.f32 %v891, %v829
  %v893 = vadd.f32 %v892, %v830
  %v894 = vadd.f32 %v893, %v831
  %v895 = vadd.f32 %v894, %v832
  %v896 = vadd.f32 %v895, %v833
  %v897 = vadd.f32 %v896, %v834
  %v898 = vadd.f32 %v897, %v835
  %v899 = vadd.f32 %v898, %v836
  %v900 = vadd.f32 %v899, %v837
  %v901 = vadd.f32 %v900, %v838
  %v902 = vadd.f32 %v901, %v839
  %v903 = vadd.f32 %v902, %v840
  %v904 = vadd.f32 %v903, %v841
  %v905 = vadd.f32 %v904, %v842
  %v906 = vadd.f32 %v905, %v843
  %v907 = vadd.f32 %v906, %v844
  %v908 = vadd.f32 %v907, %v845
  %v909 = vadd.f32 %v908, %v846
  %v910 = vadd.f32 %v909, %v847
  %v911 = vadd.f32 %v910, %v848
  %v912 = vadd.f32 %v911, %v849
  %v913 = vadd.f32 %v912, %v850
  %v914 = vadd.f32 %v913, %v851
  %v915 = vadd.f32 %v914, %v852
  %v916 = vadd.f32 %v915, %v853
  %v917 = vadd.f32 %v916, %v854
  %v918 = vrot.slane %v917, 4
  %v919 = vadd.f32 %v917, %v918
  %v920 = vrot.slane %v919, 2
  %v921 = vadd.f32 %v919, %v920
  %v922 = vrot.slane %v921, 1
  %v923 = vadd.f32 %v921, %v922
  %v924 = vmul.f32 %v923, %v725
  %v925 = vadd.f32 %v924, 1e-05
  %v926 = vrsqrt.pop %v925
  %v927 = vmul.f32 %v727, %v926
  %v928 = vmul.f32 %v728, %v926
  %v929 = vmul.f32 %v729, %v926
  %v930 = vmul.f32 %v730, %v926
  %v931 = vmul.f32 %v731, %v926
  %v932 = vmul.f32 %v732, %v926
  %v933 = vmul.f32 %v733, %v926
  %v934 = vmul.f32 %v734, %v926
  %v935 = vmul.f32 %v735, %v926
  %v936 = vmul.f32 %v736, %v926
  %v937 = vmul.f32 %v737, %v926
  %v938 = vmul.f32 %v738, %v926
  %v939 = vmul.f32 %v739, %v926
  %v940 = vmul.f32 %v740, %v926
  %v941 = vmul.f32 %v741, %v926
  %v942 = vmul.f32 %v742, %v926
  %v943 = vmul.f32 %v743, %v926
  %v944 = vmul.f32 %v744, %v926
  %v945 = vmul.f32 %v745, %v926
  %v946 = vmul.f32 %v746, %v926
  %v947 = vmul.f32 %v747, %v926
  %v948 = vmul.f32 %v748, %v926
  %v949 = vmul.f32 %v749, %v926
  %v950 = vmul.f32 %v750, %v926
  %v951 = vmul.f32 %v751, %v926
  %v952 = vmul.f32 %v752, %v926
  %v953 = vmul.f32 %v753, %v926
  %v954 = vmul.f32 %v754, %v926
  %v955 = vmul.f32 %v755, %v926
  %v956 = vmul.f32 %v756, %v926
  %v957 = vmul.f32 %v757, %v926
  %v958 = vmul.f32 %v758, %v926
  %v959 = vmul.f32 %v759, %v926
  %v960 = vmul.f32 %v760, %v926
  %v961 = vmul.f32 %v761, %v926
  %v962 = vmul.f32 %v762, %v926
  %v963 = vmul.f32 %v763, %v926
  %v964 = vmul.f32 %v764, %v926
  %v965 = vmul.f32 %v765, %v926
  %v966 = vmul.f32 %v766, %v926
  %v967 = vmul.f32 %v767, %v926
  %v968 = vmul.f32 %v768, %v926
  %v969 = vmul.f32 %v769, %v926
  %v970 = vmul.f32 %v770, %v926
  %v971 = vmul.f32 %v771, %v926
  %v972 = vmul.f32 %v772, %v926
  %v973 = vmul.f32 %v773, %v926
  %v974 = vmul.f32 %v774, %v926
  %v975 = vmul.f32 %v775, %v926
  %v976 = vmul.f32 %v776, %v926
  %v977 = vmul.f32 %v777, %v926
  %v978 = vmul.f32 %v778, %v926
  %v979 = vmul.f32 %v779, %v926
  %v980 = vmul.f32 %v780, %v926
  %v981 = vmul.f32 %v781, %v926
  %v982 = vmul.f32 %v782, %v926
  %v983 = vmul.f32 %v783, %v926
  %v984 = vmul.f32 %v784, %v926
  %v985 = vmul.f32 %v785, %v926
  %v986 = vmul.f32 %v786, %v926
  %v987 = vmul.f32 %v787, %v926
  %v988 = vmul.f32 %v788, %v926
  %v989 = vmul.f32 %v789, %v926
  %v990 = vmul.f32 %v790, %v926
  %v992 = vlaneseq
  %v993 = vshrl.u32 %v992, 7
  %v994 = vsub.s32 0, %v993
  %v995 = vrot.slane %v654, %v994
  %v997 = vmul.f32 %v927, %v995
  %v998 = vmul.f32 %v928, %v995
  %v999 = vmul.f32 %v929, %v995
  %v1000 = vmul.f32 %v930, %v995
  %v1001 = vmul.f32 %v931, %v995
  %v1002 = vmul.f32 %v932, %v995
  %v1003 = vmul.f32 %v933, %v995
  %v1004 = vmul.f32 %v934, %v995
  %v1005 = vmul.f32 %v935, %v995
  %v1006 = vmul.f32 %v936, %v995
  %v1007 = vmul.f32 %v937, %v995
  %v1008 = vmul.f32 %v938, %v995
  %v1009 = vmul.f32 %v939, %v995
  %v1010 = vmul.f32 %v940, %v995
  %v1011 = vmul.f32 %v941, %v995
  %v1012 = vmul.f32 %v942, %v995
  %v1013 = vmul.f32 %v943, %v995
  %v1014 = vmul.f32 %v944, %v995
  %v1015 = vmul.f32 %v945, %v995
  %v1016 = vmul.f32 %v946, %v995
  %v1017 = vmul.f32 %v947, %v995
  %v1018 = vmul.f32 %v948, %v995
  %v1019 = vmul.f32 %v949, %v995
  %v1020 = vmul.f32 %v950, %v995
  %v1021 = vmul.f32 %v951, %v995
  %v1022 = vmul.f32 %v952, %v995
  %v1023 = vmul.f32 %v953, %v995
  %v1024 = vmul.f32 %v954, %v995
  %v1025 = vmul.f32 %v955, %v995
  %v1026 = vmul.f32 %v956, %v995
  %v1027 = vmul.f32 %v957, %v995
  %v1028 = vmul.f32 %v958, %v995
  %v1029 = vmul.f32 %v959, %v995
  %v1030 = vmul.f32 %v960, %v995
  %v1031 = vmul.f32 %v961, %v995
  %v1032 = vmul.f32 %v962, %v995
  %v1033 = vmul.f32 %v963, %v995
  %v1034 = vmul.f32 %v964, %v995
  %v1035 = vmul.f32 %v965, %v995
  %v1036 = vmul.f32 %v966, %v995
  %v1037 = vmul.f32 %v967, %v995
  %v1038 = vmul.f32 %v968, %v995
  %v1039 = vmul.f32 %v969, %v995
  %v1040 = vmul.f32 %v970, %v995
  %v1041 = vmul.f32 %v971, %v995
  %v1042 = vmul.f32 %v972, %v995
  %v1043 = vmul.f32 %v973, %v995
  %v1044 = vmul.f32 %v974, %v995
  %v1045 = vmul.f32 %v975, %v995
  %v1046 = vmul.f32 %v976, %v995
  %v1047 = vmul.f32 %v977, %v995
  %v1048 = vmul.f32 %v978, %v995
  %v1049 = vmul.f32 %v979, %v995
  %v1050 = vmul.f32 %v980, %v995
  %v1051 = vmul.f32 %v981, %v995
  %v1052 = vmul.f32 %v982, %v995
  %v1053 = vmul.f32 %v983, %v995
  %v1054 = vmul.f32 %v984, %v995
  %v1055 = vmul.f32 %v985, %v995
  %v1056 = vmul.f32 %v986, %v995
  %v1057 = vmul.f32 %v987, %v995
  %v1058 = vmul.f32 %v988, %v995
  %v1059 = vmul.f32 %v989, %v995
  %v1060 = vmul.f32 %v990, %v995
  %v1062 = vlaneseq
  %v1063 = vshrl.u32 %v1062, 7
  %v1064 = vsub.s32 0, %v1063
  %v1065 = vrot.slane %v655, %v1064
  %v1067 = vadd.f32 %v997, %v1065
  %v1068 = vadd.f32 %v998, %v1065
  %v1069 = vadd.f32 %v999, %v1065
  %v1070 = vadd.f32 %v1000, %v1065
  %v1071 = vadd.f32 %v1001, %v1065
  %v1072 = vadd.f32 %v1002, %v1065
  %v1073 = vadd.f32 %v1003, %v1065
  %v1074 = vadd.f32 %v1004, %v1065
  %v1075 = vadd.f32 %v1005, %v1065
  %v1076 = vadd.f32 %v1006, %v1065
  %v1077 = vadd.f32 %v1007, %v1065
  %v1078 = vadd.f32 %v1008, %v1065
  %v1079 = vadd.f32 %v1009, %v1065
  %v1080 = vadd.f32 %v1010, %v1065
  %v1081 = vadd.f32 %v1011, %v1065
  %v1082 = vadd.f32 %v1012, %v1065
  %v1083 = vadd.f32 %v1013, %v1065
  %v1084 = vadd.f32 %v1014, %v1065
  %v1085 = vadd.f32 %v1015, %v1065
  %v1086 = vadd.f32 %v1016, %v1065
  %v1087 = vadd.f32 %v1017, %v1065
  %v1088 = vadd.f32 %v1018, %v1065
  %v1089 = vadd.f32 %v1019, %v1065
  %v1090 = vadd.f32 %v1020, %v1065
  %v1091 = vadd.f32 %v1021, %v1065
  %v1092 = vadd.f32 %v1022, %v1065
  %v1093 = vadd.f32 %v1023, %v1065
  %v1094 = vadd.f32 %v1024, %v1065
  %v1095 = vadd.f32 %v1025, %v1065
  %v1096 = vadd.f32 %v1026, %v1065
  %v1097 = vadd.f32 %v1027, %v1065
  %v1098 = vadd.f32 %v1028, %v1065
  %v1099 = vadd.f32 %v1029, %v1065
  %v1100 = vadd.f32 %v1030, %v1065
  %v1101 = vadd.f32 %v1031, %v1065
  %v1102 = vadd.f32 %v1032, %v1065
  %v1103 = vadd.f32 %v1033, %v1065
  %v1104 = vadd.f32 %v1034, %v1065
  %v1105 = vadd.f32 %v1035, %v1065
  %v1106 = vadd.f32 %v1036, %v1065
  %v1107 = vadd.f32 %v1037, %v1065
  %v1108 = vadd.f32 %v1038, %v1065
  %v1109 = vadd.f32 %v1039, %v1065
  %v1110 = vadd.f32 %v1040, %v1065
  %v1111 = vadd.f32 %v1041, %v1065
  %v1112 = vadd.f32 %v1042, %v1065
  %v1113 = vadd.f32 %v1043, %v1065
  %v1114 = vadd.f32 %v1044, %v1065
  %v1115 = vadd.f32 %v1045, %v1065
  %v1116 = vadd.f32 %v1046, %v1065
  %v1117 = vadd.f32 %v1047, %v1065
  %v1118 = vadd.f32 %v1048, %v1065
  %v1119 = vadd.f32 %v1049, %v1065
  %v1120 = vadd.f32 %v1050, %v1065
  %v1121 = vadd.f32 %v1051, %v1065
  %v1122 = vadd.f32 %v1052, %v1065
  %v1123 = vadd.f32 %v1053, %v1065
  %v1124 = vadd.f32 %v1054, %v1065
  %v1125 = vadd.f32 %v1055, %v1065
  %v1126 = vadd.f32 %v1056, %v1065
  %v1127 = vadd.f32 %v1057, %v1065
  %v1128 = vadd.f32 %v1058, %v1065
  %v1129 = vadd.f32 %v1059, %v1065
  %v1130 = vadd.f32 %v1060, %v1065
  %v1131 = vmax.f32 %v1067, 0.0
  %v1132 = vmax.f32 %v1068, 0.0
  %v1133 = vmax.f32 %v1069, 0.0
  %v1134 = vmax.f32 %v1070, 0.0
  %v1135 = vmax.f32 %v1071, 0.0
  %v1136 = vmax.f32 %v1072, 0.0
  %v1137 = vmax.f32 %v1073, 0.0
  %v1138 = vmax.f32 %v1074, 0.0
  %v1139 = vmax.f32 %v1075, 0.0
  %v1140 = vmax.f32 %v1076, 0.0
  %v1141 = vmax.f32 %v1077, 0.0
  %v1142 = vmax.f32 %v1078, 0.0
  %v1143 = vmax.f32 %v1079, 0.0
  %v1144 = vmax.f32 %v1080, 0.0
  %v1145 = vmax.f32 %v1081, 0.0
  %v1146 = vmax.f32 %v1082, 0.0
  %v1147 = vmax.f32 %v1083, 0.0
  %v1148 = vmax.f32 %v1084, 0.0
  %v1149 = vmax.f32 %v1085, 0.0
  %v1150 = vmax.f32 %v1086, 0.0
  %v1151 = vmax.f32 %v1087, 0.0
  %v1152 = vmax.f32 %v1088, 0.0
  %v1153 = vmax.f32 %v1089, 0.0
  %v1154 = vmax.f32 %v1090, 0.0
  %v1155 = vmax.f32 %v1091, 0.0
  %v1156 = vmax.f32 %v1092, 0.0
  %v1157 = vmax.f32 %v1093, 0.0
  %v1158 = vmax.f32 %v1094, 0.0
  %v1159 = vmax.f32 %v1095, 0.0
  %v1160 = vmax.f32 %v1096, 0.0
  %v1161 = vmax.f32 %v1097, 0.0
  %v1162 = vmax.f32 %v1098, 0.0
  %v1163 = vmax.f32 %v1099, 0.0
  %v1164 = vmax.f32 %v1100, 0.0
  %v1165 = vmax.f32 %v1101, 0.0
  %v1166 = vmax.f32 %v1102, 0.0
  %v1167 = vmax.f32 %v1103, 0.0
  %v1168 = vmax.f32 %v1104, 0.0
  %v1169 = vmax.f32 %v1105, 0.0
  %v1170 = vmax.f32 %v1106, 0.0
  %v1171 = vmax.f32 %v1107, 0.0
  %v1172 = vmax.f32 %v1108, 0.0
  %v1173 = vmax.f32 %v1109, 0.0
  %v1174 = vmax.f32 %v1110, 0.0
  %v1175 = vmax.f32 %v1111, 0.0
  %v1176 = vmax.f32 %v1112, 0.0
  %v1177 = vmax.f32 %v1113, 0.0
  %v1178 = vmax.f32 %v1114, 0.0
  %v1179 = vmax.f32 %v1115, 0.0
  %v1180 = vmax.f32 %v1116, 0.0
  %v1181 = vmax.f32 %v1117, 0.0
  %v1182 = vmax.f32 %v1118, 0.0
  %v1183 = vmax.f32 %v1119, 0.0
  %v1184 = vmax.f32 %v1120, 0.0
  %v1185 = vmax.f32 %v1121, 0.0
  %v1186 = vmax.f32 %v1122, 0.0
  %v1187 = vmax.f32 %v1123, 0.0
  %v1188 = vmax.f32 %v1124, 0.0
  %v1189 = vmax.f32 %v1125, 0.0
  %v1190 = vmax.f32 %v1126, 0.0
  %v1191 = vmax.f32 %v1127, 0.0
  %v1192 = vmax.f32 %v1128, 0.0
  %v1193 = vmax.f32 %v1129, 0.0
  %v1194 = vmax.f32 %v1130, 0.0
  %1195 = vst [vmem:[#allocation2] sm:$0xff] 0
  %1196 = vst [vmem:[#allocation2 + $0x8] sm:$0xff] 0
  %1197 = vst [vmem:[#allocation2 + $0x120] sm:$0xff] 0
  %1198 = vst [vmem:[#allocation2 + $0x128] sm:$0xff] 0
  %s1199 = scalar_lea.vmem [#allocation2], 272
  %1200 = vst [vmem:[%s1199] sm:$0xff] 0
  %1201 = vst [vmem:[%s1199 + $0x8] sm:$0xff] 0
  %1202 = vst [vmem:[%s1199 + $0x120] sm:$0xff] 0
  %1203 = vst [vmem:[%s1199 + $0x128] sm:$0xff] 0
  %s1204 = scalar_lea.vmem [#allocation2], 16
  %1205 = vst [vmem:[%s1204] sm:$0xf] 0
  %1206 = vst [vmem:[%s1204 + $0x10] sm:$0xf] 0
  %1207 = vst [vmem:[%s1204 + $0x20] sm:$0xf] 0
  %1208 = vst [vmem:[%s1204 + $0x30] sm:$0xf] 0
  %1209 = vst [vmem:[%s1204 + $0x40] sm:$0xf] 0
  %1210 = vst [vmem:[%s1204 + $0x50] sm:$0xf] 0
  %1211 = vst [vmem:[%s1204 + $0x60] sm:$0xf] 0
  %1212 = vst [vmem:[%s1204 + $0x70] sm:$0xf] 0
  %1213 = vst [vmem:[%s1204 + $0x80] sm:$0xf] 0
  %1214 = vst [vmem:[%s1204 + $0x90] sm:$0xf] 0
  %1215 = vst [vmem:[%s1204 + $0xa0] sm:$0xf] 0
  %1216 = vst [vmem:[%s1204 + $0xb0] sm:$0xf] 0
  %1217 = vst [vmem:[%s1204 + $0xc0] sm:$0xf] 0
  %1218 = vst [vmem:[%s1204 + $0xd0] sm:$0xf] 0
  %1219 = vst [vmem:[%s1204 + $0xe0] sm:$0xf] 0
  %1220 = vst [vmem:[%s1204 + $0xf0] sm:$0xf] 0
  %1221 = vst [vmem:[%s1204 + $0x120] sm:$0xf] 0
  %1222 = vst [vmem:[%s1204 + $0x130] sm:$0xf] 0
  %1223 = vst [vmem:[%s1204 + $0x140] sm:$0xf] 0
  %1224 = vst [vmem:[%s1204 + $0x150] sm:$0xf] 0
  %1225 = vst [vmem:[%s1204 + $0x160] sm:$0xf] 0
  %1226 = vst [vmem:[%s1204 + $0x170] sm:$0xf] 0
  %1227 = vst [vmem:[%s1204 + $0x180] sm:$0xf] 0
  %1228 = vst [vmem:[%s1204 + $0x190] sm:$0xf] 0
  %1229 = vst [vmem:[%s1204 + $0x1a0] sm:$0xf] 0
  %1230 = vst [vmem:[%s1204 + $0x1b0] sm:$0xf] 0
  %1231 = vst [vmem:[%s1204 + $0x1c0] sm:$0xf] 0
  %1232 = vst [vmem:[%s1204 + $0x1d0] sm:$0xf] 0
  %1233 = vst [vmem:[%s1204 + $0x1e0] sm:$0xf] 0
  %1234 = vst [vmem:[%s1204 + $0x1f0] sm:$0xf] 0
  %1235 = vst [vmem:[%s1204 + $0x200] sm:$0xf] 0
  %1236 = vst [vmem:[%s1204 + $0x210] sm:$0xf] 0
  %1237 = vst [vmem:[%s1204 + $0x8] sm:$0xf0] 0
  %1238 = vst [vmem:[%s1204 + $0x18] sm:$0xf0] 0
  %1239 = vst [vmem:[%s1204 + $0x28] sm:$0xf0] 0
  %1240 = vst [vmem:[%s1204 + $0x38] sm:$0xf0] 0
  %1241 = vst [vmem:[%s1204 + $0x48] sm:$0xf0] 0
  %1242 = vst [vmem:[%s1204 + $0x58] sm:$0xf0] 0
  %1243 = vst [vmem:[%s1204 + $0x68] sm:$0xf0] 0
  %1244 = vst [vmem:[%s1204 + $0x78] sm:$0xf0] 0
  %1245 = vst [vmem:[%s1204 + $0x88] sm:$0xf0] 0
  %1246 = vst [vmem:[%s1204 + $0x98] sm:$0xf0] 0
  %1247 = vst [vmem:[%s1204 + $0xa8] sm:$0xf0] 0
  %1248 = vst [vmem:[%s1204 + $0xb8] sm:$0xf0] 0
  %1249 = vst [vmem:[%s1204 + $0xc8] sm:$0xf0] 0
  %1250 = vst [vmem:[%s1204 + $0xd8] sm:$0xf0] 0
  %1251 = vst [vmem:[%s1204 + $0xe8] sm:$0xf0] 0
  %1252 = vst [vmem:[%s1204 + $0xf8] sm:$0xf0] 0
  %1253 = vst [vmem:[%s1204 + $0x128] sm:$0xf0] 0
  %1254 = vst [vmem:[%s1204 + $0x138] sm:$0xf0] 0
  %1255 = vst [vmem:[%s1204 + $0x148] sm:$0xf0] 0
  %1256 = vst [vmem:[%s1204 + $0x158] sm:$0xf0] 0
  %1257 = vst [vmem:[%s1204 + $0x168] sm:$0xf0] 0
  %1258 = vst [vmem:[%s1204 + $0x178] sm:$0xf0] 0
  %1259 = vst [vmem:[%s1204 + $0x188] sm:$0xf0] 0
  %1260 = vst [vmem:[%s1204 + $0x198] sm:$0xf0] 0
  %1261 = vst [vmem:[%s1204 + $0x1a8] sm:$0xf0] 0
  %1262 = vst [vmem:[%s1204 + $0x1b8] sm:$0xf0] 0
  %1263 = vst [vmem:[%s1204 + $0x1c8] sm:$0xf0] 0
  %1264 = vst [vmem:[%s1204 + $0x1d8] sm:$0xf0] 0
  %1265 = vst [vmem:[%s1204 + $0x1e8] sm:$0xf0] 0
  %1266 = vst [vmem:[%s1204 + $0x1f8] sm:$0xf0] 0
  %1267 = vst [vmem:[%s1204 + $0x208] sm:$0xf0] 0
  %1268 = vst [vmem:[%s1204 + $0x218] sm:$0xf0] 0
  %v1269 = vpack.c.bf16 %v1132, %v1131
  %v1270 = vpack.c.bf16 %v1134, %v1133
  %v1271 = vpack.c.bf16 %v1136, %v1135
  %v1272 = vpack.c.bf16 %v1138, %v1137
  %v1273 = vpack.c.bf16 %v1140, %v1139
  %v1274 = vpack.c.bf16 %v1142, %v1141
  %v1275 = vpack.c.bf16 %v1144, %v1143
  %v1276 = vpack.c.bf16 %v1146, %v1145
  %v1277 = vpack.c.bf16 %v1148, %v1147
  %v1278 = vpack.c.bf16 %v1150, %v1149
  %v1279 = vpack.c.bf16 %v1152, %v1151
  %v1280 = vpack.c.bf16 %v1154, %v1153
  %v1281 = vpack.c.bf16 %v1156, %v1155
  %v1282 = vpack.c.bf16 %v1158, %v1157
  %v1283 = vpack.c.bf16 %v1160, %v1159
  %v1284 = vpack.c.bf16 %v1162, %v1161
  %v1285 = vpack.c.bf16 %v1164, %v1163
  %v1286 = vpack.c.bf16 %v1166, %v1165
  %v1287 = vpack.c.bf16 %v1168, %v1167
  %v1288 = vpack.c.bf16 %v1170, %v1169
  %v1289 = vpack.c.bf16 %v1172, %v1171
  %v1290 = vpack.c.bf16 %v1174, %v1173
  %v1291 = vpack.c.bf16 %v1176, %v1175
  %v1292 = vpack.c.bf16 %v1178, %v1177
  %v1293 = vpack.c.bf16 %v1180, %v1179
  %v1294 = vpack.c.bf16 %v1182, %v1181
  %v1295 = vpack.c.bf16 %v1184, %v1183
  %v1296 = vpack.c.bf16 %v1186, %v1185
  %v1297 = vpack.c.bf16 %v1188, %v1187
  %v1298 = vpack.c.bf16 %v1190, %v1189
  %v1299 = vpack.c.bf16 %v1192, %v1191
  %v1300 = vpack.c.bf16 %v1194, %v1193
  %v1333 = vrot.slane %v1269, 4
  %v1334 = vrot.slane %v1270, 4
  %v1335 = vrot.slane %v1271, 4
  %v1336 = vrot.slane %v1272, 4
  %v1337 = vrot.slane %v1273, 4
  %v1338 = vrot.slane %v1274, 4
  %v1339 = vrot.slane %v1275, 4
  %v1340 = vrot.slane %v1276, 4
  %v1341 = vrot.slane %v1277, 4
  %v1342 = vrot.slane %v1278, 4
  %v1343 = vrot.slane %v1279, 4
  %v1344 = vrot.slane %v1280, 4
  %v1345 = vrot.slane %v1281, 4
  %v1346 = vrot.slane %v1282, 4
  %v1347 = vrot.slane %v1283, 4
  %v1348 = vrot.slane %v1284, 4
  %v1349 = vrot.slane %v1285, 4
  %v1350 = vrot.slane %v1286, 4
  %v1351 = vrot.slane %v1287, 4
  %v1352 = vrot.slane %v1288, 4
  %v1353 = vrot.slane %v1289, 4
  %v1354 = vrot.slane %v1290, 4
  %v1355 = vrot.slane %v1291, 4
  %v1356 = vrot.slane %v1292, 4
  %v1357 = vrot.slane %v1293, 4
  %v1358 = vrot.slane %v1294, 4
  %v1359 = vrot.slane %v1295, 4
  %v1360 = vrot.slane %v1296, 4
  %v1361 = vrot.slane %v1297, 4
  %v1362 = vrot.slane %v1298, 4
  %v1363 = vrot.slane %v1299, 4
  %v1364 = vrot.slane %v1300, 4
  %1397 = vst [vmem:[%s1204] sm:$0xf0] %v1333
  %1398 = vst [vmem:[%s1204 + $0x8] sm:$0xf] %v1333
  %1399 = vst [vmem:[%s1204 + $0x10] sm:$0xf0] %v1334
  %1400 = vst [vmem:[%s1204 + $0x18] sm:$0xf] %v1334
  %1401 = vst [vmem:[%s1204 + $0x20] sm:$0xf0] %v1335
  %1402 = vst [vmem:[%s1204 + $0x28] sm:$0xf] %v1335
  %1403 = vst [vmem:[%s1204 + $0x30] sm:$0xf0] %v1336
  %1404 = vst [vmem:[%s1204 + $0x38] sm:$0xf] %v1336
  %1405 = vst [vmem:[%s1204 + $0x40] sm:$0xf0] %v1337
  %1406 = vst [vmem:[%s1204 + $0x48] sm:$0xf] %v1337
  %1407 = vst [vmem:[%s1204 + $0x50] sm:$0xf0] %v1338
  %1408 = vst [vmem:[%s1204 + $0x58] sm:$0xf] %v1338
  %1409 = vst [vmem:[%s1204 + $0x60] sm:$0xf0] %v1339
  %1410 = vst [vmem:[%s1204 + $0x68] sm:$0xf] %v1339
  %1411 = vst [vmem:[%s1204 + $0x70] sm:$0xf0] %v1340
  %1412 = vst [vmem:[%s1204 + $0x78] sm:$0xf] %v1340
  %1413 = vst [vmem:[%s1204 + $0x80] sm:$0xf0] %v1341
  %1414 = vst [vmem:[%s1204 + $0x88] sm:$0xf] %v1341
  %1415 = vst [vmem:[%s1204 + $0x90] sm:$0xf0] %v1342
  %1416 = vst [vmem:[%s1204 + $0x98] sm:$0xf] %v1342
  %1417 = vst [vmem:[%s1204 + $0xa0] sm:$0xf0] %v1343
  %1418 = vst [vmem:[%s1204 + $0xa8] sm:$0xf] %v1343
  %1419 = vst [vmem:[%s1204 + $0xb0] sm:$0xf0] %v1344
  %1420 = vst [vmem:[%s1204 + $0xb8] sm:$0xf] %v1344
  %1421 = vst [vmem:[%s1204 + $0xc0] sm:$0xf0] %v1345
  %1422 = vst [vmem:[%s1204 + $0xc8] sm:$0xf] %v1345
  %1423 = vst [vmem:[%s1204 + $0xd0] sm:$0xf0] %v1346
  %1424 = vst [vmem:[%s1204 + $0xd8] sm:$0xf] %v1346
  %1425 = vst [vmem:[%s1204 + $0xe0] sm:$0xf0] %v1347
  %1426 = vst [vmem:[%s1204 + $0xe8] sm:$0xf] %v1347
  %1427 = vst [vmem:[%s1204 + $0xf0] sm:$0xf0] %v1348
  %1428 = vst [vmem:[%s1204 + $0xf8] sm:$0xf] %v1348
  %1429 = vst [vmem:[%s1204 + $0x120] sm:$0xf0] %v1349
  %1430 = vst [vmem:[%s1204 + $0x128] sm:$0xf] %v1349
  %1431 = vst [vmem:[%s1204 + $0x130] sm:$0xf0] %v1350
  %1432 = vst [vmem:[%s1204 + $0x138] sm:$0xf] %v1350
  %1433 = vst [vmem:[%s1204 + $0x140] sm:$0xf0] %v1351
  %1434 = vst [vmem:[%s1204 + $0x148] sm:$0xf] %v1351
  %1435 = vst [vmem:[%s1204 + $0x150] sm:$0xf0] %v1352
  %1436 = vst [vmem:[%s1204 + $0x158] sm:$0xf] %v1352
  %1437 = vst [vmem:[%s1204 + $0x160] sm:$0xf0] %v1353
  %1438 = vst [vmem:[%s1204 + $0x168] sm:$0xf] %v1353
  %1439 = vst [vmem:[%s1204 + $0x170] sm:$0xf0] %v1354
  %1440 = vst [vmem:[%s1204 + $0x178] sm:$0xf] %v1354
  %1441 = vst [vmem:[%s1204 + $0x180] sm:$0xf0] %v1355
  %1442 = vst [vmem:[%s1204 + $0x188] sm:$0xf] %v1355
  %1443 = vst [vmem:[%s1204 + $0x190] sm:$0xf0] %v1356
  %1444 = vst [vmem:[%s1204 + $0x198] sm:$0xf] %v1356
  %1445 = vst [vmem:[%s1204 + $0x1a0] sm:$0xf0] %v1357
  %1446 = vst [vmem:[%s1204 + $0x1a8] sm:$0xf] %v1357
  %1447 = vst [vmem:[%s1204 + $0x1b0] sm:$0xf0] %v1358
  %1448 = vst [vmem:[%s1204 + $0x1b8] sm:$0xf] %v1358
  %1449 = vst [vmem:[%s1204 + $0x1c0] sm:$0xf0] %v1359
  %1450 = vst [vmem:[%s1204 + $0x1c8] sm:$0xf] %v1359
  %1451 = vst [vmem:[%s1204 + $0x1d0] sm:$0xf0] %v1360
  %1452 = vst [vmem:[%s1204 + $0x1d8] sm:$0xf] %v1360
  %1453 = vst [vmem:[%s1204 + $0x1e0] sm:$0xf0] %v1361
  %1454 = vst [vmem:[%s1204 + $0x1e8] sm:$0xf] %v1361
  %1455 = vst [vmem:[%s1204 + $0x1f0] sm:$0xf0] %v1362
  %1456 = vst [vmem:[%s1204 + $0x1f8] sm:$0xf] %v1362
  %1457 = vst [vmem:[%s1204 + $0x200] sm:$0xf0] %v1363
  %1458 = vst [vmem:[%s1204 + $0x208] sm:$0xf] %v1363
  %1459 = vst [vmem:[%s1204 + $0x210] sm:$0xf0] %v1364
  %1460 = vst [vmem:[%s1204 + $0x218] sm:$0xf] %v1364
  %v1461 = vld [vmem:[#allocation2] sm:$0xf8]
  %v1462 = vld [vmem:[#allocation2 + $0x8] sm:$0xf]
  %v1463 = vld [vmem:[#allocation2 + $0x10] sm:$0xf8]
  %v1464 = vld [vmem:[#allocation2 + $0x18] sm:$0xf]
  %v1465 = vld [vmem:[#allocation2 + $0x20] sm:$0xf8]
  %v1466 = vld [vmem:[#allocation2 + $0x28] sm:$0xf]
  %v1467 = vld [vmem:[#allocation2 + $0x30] sm:$0xf8]
  %v1468 = vld [vmem:[#allocation2 + $0x38] sm:$0xf]
  %v1469 = vld [vmem:[#allocation2 + $0x40] sm:$0xf8]
  %v1470 = vld [vmem:[#allocation2 + $0x48] sm:$0xf]
  %v1471 = vld [vmem:[#allocation2 + $0x50] sm:$0xf8]
  %v1472 = vld [vmem:[#allocation2 + $0x58] sm:$0xf]
  %v1473 = vld [vmem:[#allocation2 + $0x60] sm:$0xf8]
  %v1474 = vld [vmem:[#allocation2 + $0x68] sm:$0xf]
  %v1475 = vld [vmem:[#allocation2 + $0x70] sm:$0xf8]
  %v1476 = vld [vmem:[#allocation2 + $0x78] sm:$0xf]
  %v1477 = vld [vmem:[#allocation2 + $0x80] sm:$0xf8]
  %v1478 = vld [vmem:[#allocation2 + $0x88] sm:$0xf]
  %v1479 = vld [vmem:[#allocation2 + $0x90] sm:$0xf8]
  %v1480 = vld [vmem:[#allocation2 + $0x98] sm:$0xf]
  %v1481 = vld [vmem:[#allocation2 + $0xa0] sm:$0xf8]
  %v1482 = vld [vmem:[#allocation2 + $0xa8] sm:$0xf]
  %v1483 = vld [vmem:[#allocation2 + $0xb0] sm:$0xf8]
  %v1484 = vld [vmem:[#allocation2 + $0xb8] sm:$0xf]
  %v1485 = vld [vmem:[#allocation2 + $0xc0] sm:$0xf8]
  %v1486 = vld [vmem:[#allocation2 + $0xc8] sm:$0xf]
  %v1487 = vld [vmem:[#allocation2 + $0xd0] sm:$0xf8]
  %v1488 = vld [vmem:[#allocation2 + $0xd8] sm:$0xf]
  %v1489 = vld [vmem:[#allocation2 + $0xe0] sm:$0xf8]
  %v1490 = vld [vmem:[#allocation2 + $0xe8] sm:$0xf]
  %v1491 = vld [vmem:[#allocation2 + $0xf0] sm:$0xf8]
  %v1492 = vld [vmem:[#allocation2 + $0xf8] sm:$0xf]
  %v1493 = vld [vmem:[#allocation2 + $0x120] sm:$0xf8]
  %v1494 = vld [vmem:[#allocation2 + $0x128] sm:$0xf]
  %v1495 = vld [vmem:[#allocation2 + $0x130] sm:$0xf8]
  %v1496 = vld [vmem:[#allocation2 + $0x138] sm:$0xf]
  %v1497 = vld [vmem:[#allocation2 + $0x140] sm:$0xf8]
  %v1498 = vld [vmem:[#allocation2 + $0x148] sm:$0xf]
  %v1499 = vld [vmem:[#allocation2 + $0x150] sm:$0xf8]
  %v1500 = vld [vmem:[#allocation2 + $0x158] sm:$0xf]
  %v1501 = vld [vmem:[#allocation2 + $0x160] sm:$0xf8]
  %v1502 = vld [vmem:[#allocation2 + $0x168] sm:$0xf]
  %v1503 = vld [vmem:[#allocation2 + $0x170] sm:$0xf8]
  %v1504 = vld [vmem:[#allocation2 + $0x178] sm:$0xf]
  %v1505 = vld [vmem:[#allocation2 + $0x180] sm:$0xf8]
  %v1506 = vld [vmem:[#allocation2 + $0x188] sm:$0xf]
  %v1507 = vld [vmem:[#allocation2 + $0x190] sm:$0xf8]
  %v1508 = vld [vmem:[#allocation2 + $0x198] sm:$0xf]
  %v1509 = vld [vmem:[#allocation2 + $0x1a0] sm:$0xf8]
  %v1510 = vld [vmem:[#allocation2 + $0x1a8] sm:$0xf]
  %v1511 = vld [vmem:[#allocation2 + $0x1b0] sm:$0xf8]
  %v1512 = vld [vmem:[#allocation2 + $0x1b8] sm:$0xf]
  %v1513 = vld [vmem:[#allocation2 + $0x1c0] sm:$0xf8]
  %v1514 = vld [vmem:[#allocation2 + $0x1c8] sm:$0xf]
  %v1515 = vld [vmem:[#allocation2 + $0x1d0] sm:$0xf8]
  %v1516 = vld [vmem:[#allocation2 + $0x1d8] sm:$0xf]
  %v1517 = vld [vmem:[#allocation2 + $0x1e0] sm:$0xf8]
  %v1518 = vld [vmem:[#allocation2 + $0x1e8] sm:$0xf]
  %v1519 = vld [vmem:[#allocation2 + $0x1f0] sm:$0xf8]
  %v1520 = vld [vmem:[#allocation2 + $0x1f8] sm:$0xf]
  %v1521 = vld [vmem:[#allocation2 + $0x200] sm:$0xf8]
  %v1522 = vld [vmem:[#allocation2 + $0x208] sm:$0xf]
  %v1523 = vld [vmem:[#allocation2 + $0x210] sm:$0xf8]
  %v1524 = vld [vmem:[#allocation2 + $0x218] sm:$0xf]
  %vm1525 = vsmask.f32 4352
  %v1527 = vshrl.u32 %v1461, 16
  %v1529 = vrot.slane %v1527, 3
  %v1530 = vshll.u32 %v1461, 16
  %v1532 = vrot.slane %v1530, 4
  %v1533 = vor.u32 %v1529, %v1532
  %v1535 = vshrl.u32 %v1462, 16
  %v1537 = vrot.slane %v1535, 3
  %v1538 = vshll.u32 %v1462, 16
  %v1540 = vrot.slane %v1538, 4
  %v1541 = vor.u32 %v1537, %v1540
  %v1542 = vsel %vm1525, %v1533, %v1541
  %v1544 = vshrl.u32 %v1463, 16
  %v1546 = vrot.slane %v1544, 3
  %v1547 = vshll.u32 %v1463, 16
  %v1549 = vrot.slane %v1547, 4
  %v1550 = vor.u32 %v1546, %v1549
  %v1552 = vshrl.u32 %v1464, 16
  %v1554 = vrot.slane %v1552, 3
  %v1555 = vshll.u32 %v1464, 16
  %v1557 = vrot.slane %v1555, 4
  %v1558 = vor.u32 %v1554, %v1557
  %v1559 = vsel %vm1525, %v1550, %v1558
  %v1561 = vshrl.u32 %v1465, 16
  %v1563 = vrot.slane %v1561, 3
  %v1564 = vshll.u32 %v1465, 16
  %v1566 = vrot.slane %v1564, 4
  %v1567 = vor.u32 %v1563, %v1566
  %v1569 = vshrl.u32 %v1466, 16
  %v1571 = vrot.slane %v1569, 3
  %v1572 = vshll.u32 %v1466, 16
  %v1574 = vrot.slane %v1572, 4
  %v1575 = vor.u32 %v1571, %v1574
  %v1576 = vsel %vm1525, %v1567, %v1575
  %v1578 = vshrl.u32 %v1467, 16
  %v1580 = vrot.slane %v1578, 3
  %v1581 = vshll.u32 %v1467, 16
  %v1583 = vrot.slane %v1581, 4
  %v1584 = vor.u32 %v1580, %v1583
  %v1586 = vshrl.u32 %v1468, 16
  %v1588 = vrot.slane %v1586, 3
  %v1589 = vshll.u32 %v1468, 16
  %v1591 = vrot.slane %v1589, 4
  %v1592 = vor.u32 %v1588, %v1591
  %v1593 = vsel %vm1525, %v1584, %v1592
  %v1595 = vshrl.u32 %v1469, 16
  %v1597 = vrot.slane %v1595, 3
  %v1598 = vshll.u32 %v1469, 16
  %v1600 = vrot.slane %v1598, 4
  %v1601 = vor.u32 %v1597, %v1600
  %v1603 = vshrl.u32 %v1470, 16
  %v1605 = vrot.slane %v1603, 3
  %v1606 = vshll.u32 %v1470, 16
  %v1608 = vrot.slane %v1606, 4
  %v1609 = vor.u32 %v1605, %v1608
  %v1610 = vsel %vm1525, %v1601, %v1609
  %v1612 = vshrl.u32 %v1471, 16
  %v1614 = vrot.slane %v1612, 3
  %v1615 = vshll.u32 %v1471, 16
  %v1617 = vrot.slane %v1615, 4
  %v1618 = vor.u32 %v1614, %v1617
  %v1620 = vshrl.u32 %v1472, 16
  %v1622 = vrot.slane %v1620, 3
  %v1623 = vshll.u32 %v1472, 16
  %v1625 = vrot.slane %v1623, 4
  %v1626 = vor.u32 %v1622, %v1625
  %v1627 = vsel %vm1525, %v1618, %v1626
  %v1629 = vshrl.u32 %v1473, 16
  %v1631 = vrot.slane %v1629, 3
  %v1632 = vshll.u32 %v1473, 16
  %v1634 = vrot.slane %v1632, 4
  %v1635 = vor.u32 %v1631, %v1634
  %v1637 = vshrl.u32 %v1474, 16
  %v1639 = vrot.slane %v1637, 3
  %v1640 = vshll.u32 %v1474, 16
  %v1642 = vrot.slane %v1640, 4
  %v1643 = vor.u32 %v1639, %v1642
  %v1644 = vsel %vm1525, %v1635, %v1643
  %v1646 = vshrl.u32 %v1475, 16
  %v1648 = vrot.slane %v1646, 3
  %v1649 = vshll.u32 %v1475, 16
  %v1651 = vrot.slane %v1649, 4
  %v1652 = vor.u32 %v1648, %v1651
  %v1654 = vshrl.u32 %v1476, 16
  %v1656 = vrot.slane %v1654, 3
  %v1657 = vshll.u32 %v1476, 16
  %v1659 = vrot.slane %v1657, 4
  %v1660 = vor.u32 %v1656, %v1659
  %v1661 = vsel %vm1525, %v1652, %v1660
  %v1663 = vshrl.u32 %v1477, 16
  %v1665 = vrot.slane %v1663, 3
  %v1666 = vshll.u32 %v1477, 16
  %v1668 = vrot.slane %v1666, 4
  %v1669 = vor.u32 %v1665, %v1668
  %v1671 = vshrl.u32 %v1478, 16
  %v1673 = vrot.slane %v1671, 3
  %v1674 = vshll.u32 %v1478, 16
  %v1676 = vrot.slane %v1674, 4
  %v1677 = vor.u32 %v1673, %v1676
  %v1678 = vsel %vm1525, %v1669, %v1677
  %v1680 = vshrl.u32 %v1479, 16
  %v1682 = vrot.slane %v1680, 3
  %v1683 = vshll.u32 %v1479, 16
  %v1685 = vrot.slane %v1683, 4
  %v1686 = vor.u32 %v1682, %v1685
  %v1688 = vshrl.u32 %v1480, 16
  %v1690 = vrot.slane %v1688, 3
  %v1691 = vshll.u32 %v1480, 16
  %v1693 = vrot.slane %v1691, 4
  %v1694 = vor.u32 %v1690, %v1693
  %v1695 = vsel %vm1525, %v1686, %v1694
  %v1697 = vshrl.u32 %v1481, 16
  %v1699 = vrot.slane %v1697, 3
  %v1700 = vshll.u32 %v1481, 16
  %v1702 = vrot.slane %v1700, 4
  %v1703 = vor.u32 %v1699, %v1702
  %v1705 = vshrl.u32 %v1482, 16
  %v1707 = vrot.slane %v1705, 3
  %v1708 = vshll.u32 %v1482, 16
  %v1710 = vrot.slane %v1708, 4
  %v1711 = vor.u32 %v1707, %v1710
  %v1712 = vsel %vm1525, %v1703, %v1711
  %v1714 = vshrl.u32 %v1483, 16
  %v1716 = vrot.slane %v1714, 3
  %v1717 = vshll.u32 %v1483, 16
  %v1719 = vrot.slane %v1717, 4
  %v1720 = vor.u32 %v1716, %v1719
  %v1722 = vshrl.u32 %v1484, 16
  %v1724 = vrot.slane %v1722, 3
  %v1725 = vshll.u32 %v1484, 16
  %v1727 = vrot.slane %v1725, 4
  %v1728 = vor.u32 %v1724, %v1727
  %v1729 = vsel %vm1525, %v1720, %v1728
  %v1731 = vshrl.u32 %v1485, 16
  %v1733 = vrot.slane %v1731, 3
  %v1734 = vshll.u32 %v1485, 16
  %v1736 = vrot.slane %v1734, 4
  %v1737 = vor.u32 %v1733, %v1736
  %v1739 = vshrl.u32 %v1486, 16
  %v1741 = vrot.slane %v1739, 3
  %v1742 = vshll.u32 %v1486, 16
  %v1744 = vrot.slane %v1742, 4
  %v1745 = vor.u32 %v1741, %v1744
  %v1746 = vsel %vm1525, %v1737, %v1745
  %v1748 = vshrl.u32 %v1487, 16
  %v1750 = vrot.slane %v1748, 3
  %v1751 = vshll.u32 %v1487, 16
  %v1753 = vrot.slane %v1751, 4
  %v1754 = vor.u32 %v1750, %v1753
  %v1756 = vshrl.u32 %v1488, 16
  %v1758 = vrot.slane %v1756, 3
  %v1759 = vshll.u32 %v1488, 16
  %v1761 = vrot.slane %v1759, 4
  %v1762 = vor.u32 %v1758, %v1761
  %v1763 = vsel %vm1525, %v1754, %v1762
  %v1765 = vshrl.u32 %v1489, 16
  %v1767 = vrot.slane %v1765, 3
  %v1768 = vshll.u32 %v1489, 16
  %v1770 = vrot.slane %v1768, 4
  %v1771 = vor.u32 %v1767, %v1770
  %v1773 = vshrl.u32 %v1490, 16
  %v1775 = vrot.slane %v1773, 3
  %v1776 = vshll.u32 %v1490, 16
  %v1778 = vrot.slane %v1776, 4
  %v1779 = vor.u32 %v1775, %v1778
  %v1780 = vsel %vm1525, %v1771, %v1779
  %v1782 = vshrl.u32 %v1491, 16
  %v1784 = vrot.slane %v1782, 3
  %v1785 = vshll.u32 %v1491, 16
  %v1787 = vrot.slane %v1785, 4
  %v1788 = vor.u32 %v1784, %v1787
  %v1790 = vshrl.u32 %v1492, 16
  %v1792 = vrot.slane %v1790, 3
  %v1793 = vshll.u32 %v1492, 16
  %v1795 = vrot.slane %v1793, 4
  %v1796 = vor.u32 %v1792, %v1795
  %v1797 = vsel %vm1525, %v1788, %v1796
  %v1799 = vshrl.u32 %v1493, 16
  %v1801 = vrot.slane %v1799, 3
  %v1802 = vshll.u32 %v1493, 16
  %v1804 = vrot.slane %v1802, 4
  %v1805 = vor.u32 %v1801, %v1804
  %v1807 = vshrl.u32 %v1494, 16
  %v1809 = vrot.slane %v1807, 3
  %v1810 = vshll.u32 %v1494, 16
  %v1812 = vrot.slane %v1810, 4
  %v1813 = vor.u32 %v1809, %v1812
  %v1814 = vsel %vm1525, %v1805, %v1813
  %v1816 = vshrl.u32 %v1495, 16
  %v1818 = vrot.slane %v1816, 3
  %v1819 = vshll.u32 %v1495, 16
  %v1821 = vrot.slane %v1819, 4
  %v1822 = vor.u32 %v1818, %v1821
  %v1824 = vshrl.u32 %v1496, 16
  %v1826 = vrot.slane %v1824, 3
  %v1827 = vshll.u32 %v1496, 16
  %v1829 = vrot.slane %v1827, 4
  %v1830 = vor.u32 %v1826, %v1829
  %v1831 = vsel %vm1525, %v1822, %v1830
  %v1833 = vshrl.u32 %v1497, 16
  %v1835 = vrot.slane %v1833, 3
  %v1836 = vshll.u32 %v1497, 16
  %v1838 = vrot.slane %v1836, 4
  %v1839 = vor.u32 %v1835, %v1838
  %v1841 = vshrl.u32 %v1498, 16
  %v1843 = vrot.slane %v1841, 3
  %v1844 = vshll.u32 %v1498, 16
  %v1846 = vrot.slane %v1844, 4
  %v1847 = vor.u32 %v1843, %v1846
  %v1848 = vsel %vm1525, %v1839, %v1847
  %v1850 = vshrl.u32 %v1499, 16
  %v1852 = vrot.slane %v1850, 3
  %v1853 = vshll.u32 %v1499, 16
  %v1855 = vrot.slane %v1853, 4
  %v1856 = vor.u32 %v1852, %v1855
  %v1858 = vshrl.u32 %v1500, 16
  %v1860 = vrot.slane %v1858, 3
  %v1861 = vshll.u32 %v1500, 16
  %v1863 = vrot.slane %v1861, 4
  %v1864 = vor.u32 %v1860, %v1863
  %v1865 = vsel %vm1525, %v1856, %v1864
  %v1867 = vshrl.u32 %v1501, 16
  %v1869 = vrot.slane %v1867, 3
  %v1870 = vshll.u32 %v1501, 16
  %v1872 = vrot.slane %v1870, 4
  %v1873 = vor.u32 %v1869, %v1872
  %v1875 = vshrl.u32 %v1502, 16
  %v1877 = vrot.slane %v1875, 3
  %v1878 = vshll.u32 %v1502, 16
  %v1880 = vrot.slane %v1878, 4
  %v1881 = vor.u32 %v1877, %v1880
  %v1882 = vsel %vm1525, %v1873, %v1881
  %v1884 = vshrl.u32 %v1503, 16
  %v1886 = vrot.slane %v1884, 3
  %v1887 = vshll.u32 %v1503, 16
  %v1889 = vrot.slane %v1887, 4
  %v1890 = vor.u32 %v1886, %v1889
  %v1892 = vshrl.u32 %v1504, 16
  %v1894 = vrot.slane %v1892, 3
  %v1895 = vshll.u32 %v1504, 16
  %v1897 = vrot.slane %v1895, 4
  %v1898 = vor.u32 %v1894, %v1897
  %v1899 = vsel %vm1525, %v1890, %v1898
  %v1901 = vshrl.u32 %v1505, 16
  %v1903 = vrot.slane %v1901, 3
  %v1904 = vshll.u32 %v1505, 16
  %v1906 = vrot.slane %v1904, 4
  %v1907 = vor.u32 %v1903, %v1906
  %v1909 = vshrl.u32 %v1506, 16
  %v1911 = vrot.slane %v1909, 3
  %v1912 = vshll.u32 %v1506, 16
  %v1914 = vrot.slane %v1912, 4
  %v1915 = vor.u32 %v1911, %v1914
  %v1916 = vsel %vm1525, %v1907, %v1915
  %v1918 = vshrl.u32 %v1507, 16
  %v1920 = vrot.slane %v1918, 3
  %v1921 = vshll.u32 %v1507, 16
  %v1923 = vrot.slane %v1921, 4
  %v1924 = vor.u32 %v1920, %v1923
  %v1926 = vshrl.u32 %v1508, 16
  %v1928 = vrot.slane %v1926, 3
  %v1929 = vshll.u32 %v1508, 16
  %v1931 = vrot.slane %v1929, 4
  %v1932 = vor.u32 %v1928, %v1931
  %v1933 = vsel %vm1525, %v1924, %v1932
  %v1935 = vshrl.u32 %v1509, 16
  %v1937 = vrot.slane %v1935, 3
  %v1938 = vshll.u32 %v1509, 16
  %v1940 = vrot.slane %v1938, 4
  %v1941 = vor.u32 %v1937, %v1940
  %v1943 = vshrl.u32 %v1510, 16
  %v1945 = vrot.slane %v1943, 3
  %v1946 = vshll.u32 %v1510, 16
  %v1948 = vrot.slane %v1946, 4
  %v1949 = vor.u32 %v1945, %v1948
  %v1950 = vsel %vm1525, %v1941, %v1949
  %v1952 = vshrl.u32 %v1511, 16
  %v1954 = vrot.slane %v1952, 3
  %v1955 = vshll.u32 %v1511, 16
  %v1957 = vrot.slane %v1955, 4
  %v1958 = vor.u32 %v1954, %v1957
  %v1960 = vshrl.u32 %v1512, 16
  %v1962 = vrot.slane %v1960, 3
  %v1963 = vshll.u32 %v1512, 16
  %v1965 = vrot.slane %v1963, 4
  %v1966 = vor.u32 %v1962, %v1965
  %v1967 = vsel %vm1525, %v1958, %v1966
  %v1969 = vshrl.u32 %v1513, 16
  %v1971 = vrot.slane %v1969, 3
  %v1972 = vshll.u32 %v1513, 16
  %v1974 = vrot.slane %v1972, 4
  %v1975 = vor.u32 %v1971, %v1974
  %v1977 = vshrl.u32 %v1514, 16
  %v1979 = vrot.slane %v1977, 3
  %v1980 = vshll.u32 %v1514, 16
  %v1982 = vrot.slane %v1980, 4
  %v1983 = vor.u32 %v1979, %v1982
  %v1984 = vsel %vm1525, %v1975, %v1983
  %v1986 = vshrl.u32 %v1515, 16
  %v1988 = vrot.slane %v1986, 3
  %v1989 = vshll.u32 %v1515, 16
  %v1991 = vrot.slane %v1989, 4
  %v1992 = vor.u32 %v1988, %v1991
  %v1994 = vshrl.u32 %v1516, 16
  %v1996 = vrot.slane %v1994, 3
  %v1997 = vshll.u32 %v1516, 16
  %v1999 = vrot.slane %v1997, 4
  %v2000 = vor.u32 %v1996, %v1999
  %v2001 = vsel %vm1525, %v1992, %v2000
  %v2003 = vshrl.u32 %v1517, 16
  %v2005 = vrot.slane %v2003, 3
  %v2006 = vshll.u32 %v1517, 16
  %v2008 = vrot.slane %v2006, 4
  %v2009 = vor.u32 %v2005, %v2008
  %v2011 = vshrl.u32 %v1518, 16
  %v2013 = vrot.slane %v2011, 3
  %v2014 = vshll.u32 %v1518, 16
  %v2016 = vrot.slane %v2014, 4
  %v2017 = vor.u32 %v2013, %v2016
  %v2018 = vsel %vm1525, %v2009, %v2017
  %v2020 = vshrl.u32 %v1519, 16
  %v2022 = vrot.slane %v2020, 3
  %v2023 = vshll.u32 %v1519, 16
  %v2025 = vrot.slane %v2023, 4
  %v2026 = vor.u32 %v2022, %v2025
  %v2028 = vshrl.u32 %v1520, 16
  %v2030 = vrot.slane %v2028, 3
  %v2031 = vshll.u32 %v1520, 16
  %v2033 = vrot.slane %v2031, 4
  %v2034 = vor.u32 %v2030, %v2033
  %v2035 = vsel %vm1525, %v2026, %v2034
  %v2037 = vshrl.u32 %v1521, 16
  %v2039 = vrot.slane %v2037, 3
  %v2040 = vshll.u32 %v1521, 16
  %v2042 = vrot.slane %v2040, 4
  %v2043 = vor.u32 %v2039, %v2042
  %v2045 = vshrl.u32 %v1522, 16
  %v2047 = vrot.slane %v2045, 3
  %v2048 = vshll.u32 %v1522, 16
  %v2050 = vrot.slane %v2048, 4
  %v2051 = vor.u32 %v2047, %v2050
  %v2052 = vsel %vm1525, %v2043, %v2051
  %v2054 = vshrl.u32 %v1523, 16
  %v2056 = vrot.slane %v2054, 3
  %v2057 = vshll.u32 %v1523, 16
  %v2059 = vrot.slane %v2057, 4
  %v2060 = vor.u32 %v2056, %v2059
  %v2062 = vshrl.u32 %v1524, 16
  %v2064 = vrot.slane %v2062, 3
  %v2065 = vshll.u32 %v1524, 16
  %v2067 = vrot.slane %v2065, 4
  %v2068 = vor.u32 %v2064, %v2067
  %v2069 = vsel %vm1525, %v2060, %v2068
  %2102 = vst [vmem:[#allocation3] sm:$0xff] %v1542
  %2103 = vst [vmem:[#allocation3 + $0x48] sm:$0xff] %v1559
  %2104 = vst [vmem:[#allocation3 + $0x90] sm:$0xff] %v1576
  %2105 = vst [vmem:[#allocation3 + $0xd8] sm:$0xff] %v1593
  %2106 = vst [vmem:[#allocation3 + $0x120] sm:$0xff] %v1610
  %2107 = vst [vmem:[#allocation3 + $0x168] sm:$0xff] %v1627
  %2108 = vst [vmem:[#allocation3 + $0x1b0] sm:$0xff] %v1644
  %2109 = vst [vmem:[#allocation3 + $0x1f8] sm:$0xff] %v1661
  %2110 = vst [vmem:[#allocation3 + $0x240] sm:$0xff] %v1678
  %2111 = vst [vmem:[#allocation3 + $0x288] sm:$0xff] %v1695
  %2112 = vst [vmem:[#allocation3 + $0x2d0] sm:$0xff] %v1712
  %2113 = vst [vmem:[#allocation3 + $0x318] sm:$0xff] %v1729
  %2114 = vst [vmem:[#allocation3 + $0x360] sm:$0xff] %v1746
  %2115 = vst [vmem:[#allocation3 + $0x3a8] sm:$0xff] %v1763
  %2116 = vst [vmem:[#allocation3 + $0x3f0] sm:$0xff] %v1780
  %2117 = vst [vmem:[#allocation3 + $0x438] sm:$0xff] %v1797
  %2118 = vst [vmem:[#allocation3 + $0x480] sm:$0xff] %v1814
  %2119 = vst [vmem:[#allocation3 + $0x4c8] sm:$0xff] %v1831
  %2120 = vst [vmem:[#allocation3 + $0x510] sm:$0xff] %v1848
  %2121 = vst [vmem:[#allocation3 + $0x558] sm:$0xff] %v1865
  %2122 = vst [vmem:[#allocation3 + $0x5a0] sm:$0xff] %v1882
  %2123 = vst [vmem:[#allocation3 + $0x5e8] sm:$0xff] %v1899
  %2124 = vst [vmem:[#allocation3 + $0x630] sm:$0xff] %v1916
  %2125 = vst [vmem:[#allocation3 + $0x678] sm:$0xff] %v1933
  %2126 = vst [vmem:[#allocation3 + $0x6c0] sm:$0xff] %v1950
  %2127 = vst [vmem:[#allocation3 + $0x708] sm:$0xff] %v1967
  %2128 = vst [vmem:[#allocation3 + $0x750] sm:$0xff] %v1984
  %2129 = vst [vmem:[#allocation3 + $0x798] sm:$0xff] %v2001
  %2130 = vst [vmem:[#allocation3 + $0x7e0] sm:$0xff] %v2018
  %2131 = vst [vmem:[#allocation3 + $0x828] sm:$0xff] %v2035
  %2132 = vst [vmem:[#allocation3 + $0x870] sm:$0xff] %v2052
  %2133 = vst [vmem:[#allocation3 + $0x8b8] sm:$0xff] %v2069
  %v2134 = vld [vmem:[#allocation2] sm:$0xf0]
  %v2135 = vld [vmem:[#allocation2 + $0x8] sm:$0xf]
  %v2136 = vld [vmem:[#allocation2 + $0x10] sm:$0xf0]
  %v2137 = vld [vmem:[#allocation2 + $0x18] sm:$0xf]
  %v2138 = vld [vmem:[#allocation2 + $0x20] sm:$0xf0]
  %v2139 = vld [vmem:[#allocation2 + $0x28] sm:$0xf]
  %v2140 = vld [vmem:[#allocation2 + $0x30] sm:$0xf0]
  %v2141 = vld [vmem:[#allocation2 + $0x38] sm:$0xf]
  %v2142 = vld [vmem:[#allocation2 + $0x40] sm:$0xf0]
  %v2143 = vld [vmem:[#allocation2 + $0x48] sm:$0xf]
  %v2144 = vld [vmem:[#allocation2 + $0x50] sm:$0xf0]
  %v2145 = vld [vmem:[#allocation2 + $0x58] sm:$0xf]
  %v2146 = vld [vmem:[#allocation2 + $0x60] sm:$0xf0]
  %v2147 = vld [vmem:[#allocation2 + $0x68] sm:$0xf]
  %v2148 = vld [vmem:[#allocation2 + $0x70] sm:$0xf0]
  %v2149 = vld [vmem:[#allocation2 + $0x78] sm:$0xf]
  %v2150 = vld [vmem:[#allocation2 + $0x80] sm:$0xf0]
  %v2151 = vld [vmem:[#allocation2 + $0x88] sm:$0xf]
  %v2152 = vld [vmem:[#allocation2 + $0x90] sm:$0xf0]
  %v2153 = vld [vmem:[#allocation2 + $0x98] sm:$0xf]
  %v2154 = vld [vmem:[#allocation2 + $0xa0] sm:$0xf0]
  %v2155 = vld [vmem:[#allocation2 + $0xa8] sm:$0xf]
  %v2156 = vld [vmem:[#allocation2 + $0xb0] sm:$0xf0]
  %v2157 = vld [vmem:[#allocation2 + $0xb8] sm:$0xf]
  %v2158 = vld [vmem:[#allocation2 + $0xc0] sm:$0xf0]
  %v2159 = vld [vmem:[#allocation2 + $0xc8] sm:$0xf]
  %v2160 = vld [vmem:[#allocation2 + $0xd0] sm:$0xf0]
  %v2161 = vld [vmem:[#allocation2 + $0xd8] sm:$0xf]
  %v2162 = vld [vmem:[#allocation2 + $0xe0] sm:$0xf0]
  %v2163 = vld [vmem:[#allocation2 + $0xe8] sm:$0xf]
  %v2164 = vld [vmem:[#allocation2 + $0xf0] sm:$0xf0]
  %v2165 = vld [vmem:[#allocation2 + $0xf8] sm:$0xf]
  %v2166 = vld [vmem:[#allocation2 + $0x120] sm:$0xf0]
  %v2167 = vld [vmem:[#allocation2 + $0x128] sm:$0xf]
  %v2168 = vld [vmem:[#allocation2 + $0x130] sm:$0xf0]
  %v2169 = vld [vmem:[#allocation2 + $0x138] sm:$0xf]
  %v2170 = vld [vmem:[#allocation2 + $0x140] sm:$0xf0]
  %v2171 = vld [vmem:[#allocation2 + $0x148] sm:$0xf]
  %v2172 = vld [vmem:[#allocation2 + $0x150] sm:$0xf0]
  %v2173 = vld [vmem:[#allocation2 + $0x158] sm:$0xf]
  %v2174 = vld [vmem:[#allocation2 + $0x160] sm:$0xf0]
  %v2175 = vld [vmem:[#allocation2 + $0x168] sm:$0xf]
  %v2176 = vld [vmem:[#allocation2 + $0x170] sm:$0xf0]
  %v2177 = vld [vmem:[#allocation2 + $0x178] sm:$0xf]
  %v2178 = vld [vmem:[#allocation2 + $0x180] sm:$0xf0]
  %v2179 = vld [vmem:[#allocation2 + $0x188] sm:$0xf]
  %v2180 = vld [vmem:[#allocation2 + $0x190] sm:$0xf0]
  %v2181 = vld [vmem:[#allocation2 + $0x198] sm:$0xf]
  %v2182 = vld [vmem:[#allocation2 + $0x1a0] sm:$0xf0]
  %v2183 = vld [vmem:[#allocation2 + $0x1a8] sm:$0xf]
  %v2184 = vld [vmem:[#allocation2 + $0x1b0] sm:$0xf0]
  %v2185 = vld [vmem:[#allocation2 + $0x1b8] sm:$0xf]
  %v2186 = vld [vmem:[#allocation2 + $0x1c0] sm:$0xf0]
  %v2187 = vld [vmem:[#allocation2 + $0x1c8] sm:$0xf]
  %v2188 = vld [vmem:[#allocation2 + $0x1d0] sm:$0xf0]
  %v2189 = vld [vmem:[#allocation2 + $0x1d8] sm:$0xf]
  %v2190 = vld [vmem:[#allocation2 + $0x1e0] sm:$0xf0]
  %v2191 = vld [vmem:[#allocation2 + $0x1e8] sm:$0xf]
  %v2192 = vld [vmem:[#allocation2 + $0x1f0] sm:$0xf0]
  %v2193 = vld [vmem:[#allocation2 + $0x1f8] sm:$0xf]
  %v2194 = vld [vmem:[#allocation2 + $0x200] sm:$0xf0]
  %v2195 = vld [vmem:[#allocation2 + $0x208] sm:$0xf]
  %v2196 = vld [vmem:[#allocation2 + $0x210] sm:$0xf0]
  %v2197 = vld [vmem:[#allocation2 + $0x218] sm:$0xf]
  %vm2262 = vcmask 1043456
  %v2263 = vrot.slane %v2134, 4
  %v2264 = vrot.slane %v2135, 4
  %v2265 = vsel %vm2262, %v2263, %v2264
  %v2266 = vrot.slane %v2136, 4
  %v2267 = vrot.slane %v2137, 4
  %v2268 = vsel %vm2262, %v2266, %v2267
  %v2269 = vrot.slane %v2138, 4
  %v2270 = vrot.slane %v2139, 4
  %v2271 = vsel %vm2262, %v2269, %v2270
  %v2272 = vrot.slane %v2140, 4
  %v2273 = vrot.slane %v2141, 4
  %v2274 = vsel %vm2262, %v2272, %v2273
  %v2275 = vrot.slane %v2142, 4
  %v2276 = vrot.slane %v2143, 4
  %v2277 = vsel %vm2262, %v2275, %v2276
  %v2278 = vrot.slane %v2144, 4
  %v2279 = vrot.slane %v2145, 4
  %v2280 = vsel %vm2262, %v2278, %v2279
  %v2281 = vrot.slane %v2146, 4
  %v2282 = vrot.slane %v2147, 4
  %v2283 = vsel %vm2262, %v2281, %v2282
  %v2284 = vrot.slane %v2148, 4
  %v2285 = vrot.slane %v2149, 4
  %v2286 = vsel %vm2262, %v2284, %v2285
  %v2287 = vrot.slane %v2150, 4
  %v2288 = vrot.slane %v2151, 4
  %v2289 = vsel %vm2262, %v2287, %v2288
  %v2290 = vrot.slane %v2152, 4
  %v2291 = vrot.slane %v2153, 4
  %v2292 = vsel %vm2262, %v2290, %v2291
  %v2293 = vrot.slane %v2154, 4
  %v2294 = vrot.slane %v2155, 4
  %v2295 = vsel %vm2262, %v2293, %v2294
  %v2296 = vrot.slane %v2156, 4
  %v2297 = vrot.slane %v2157, 4
  %v2298 = vsel %vm2262, %v2296, %v2297
  %v2299 = vrot.slane %v2158, 4
  %v2300 = vrot.slane %v2159, 4
  %v2301 = vsel %vm2262, %v2299, %v2300
  %v2302 = vrot.slane %v2160, 4
  %v2303 = vrot.slane %v2161, 4
  %v2304 = vsel %vm2262, %v2302, %v2303
  %v2305 = vrot.slane %v2162, 4
  %v2306 = vrot.slane %v2163, 4
  %v2307 = vsel %vm2262, %v2305, %v2306
  %v2308 = vrot.slane %v2164, 4
  %v2309 = vrot.slane %v2165, 4
  %v2310 = vsel %vm2262, %v2308, %v2309
  %v2311 = vrot.slane %v2166, 4
  %v2312 = vrot.slane %v2167, 4
  %v2313 = vsel %vm2262, %v2311, %v2312
  %v2314 = vrot.slane %v2168, 4
  %v2315 = vrot.slane %v2169, 4
  %v2316 = vsel %vm2262, %v2314, %v2315
  %v2317 = vrot.slane %v2170, 4
  %v2318 = vrot.slane %v2171, 4
  %v2319 = vsel %vm2262, %v2317, %v2318
  %v2320 = vrot.slane %v2172, 4
  %v2321 = vrot.slane %v2173, 4
  %v2322 = vsel %vm2262, %v2320, %v2321
  %v2323 = vrot.slane %v2174, 4
  %v2324 = vrot.slane %v2175, 4
  %v2325 = vsel %vm2262, %v2323, %v2324
  %v2326 = vrot.slane %v2176, 4
  %v2327 = vrot.slane %v2177, 4
  %v2328 = vsel %vm2262, %v2326, %v2327
  %v2329 = vrot.slane %v2178, 4
  %v2330 = vrot.slane %v2179, 4
  %v2331 = vsel %vm2262, %v2329, %v2330
  %v2332 = vrot.slane %v2180, 4
  %v2333 = vrot.slane %v2181, 4
  %v2334 = vsel %vm2262, %v2332, %v2333
  %v2335 = vrot.slane %v2182, 4
  %v2336 = vrot.slane %v2183, 4
  %v2337 = vsel %vm2262, %v2335, %v2336
  %v2338 = vrot.slane %v2184, 4
  %v2339 = vrot.slane %v2185, 4
  %v2340 = vsel %vm2262, %v2338, %v2339
  %v2341 = vrot.slane %v2186, 4
  %v2342 = vrot.slane %v2187, 4
  %v2343 = vsel %vm2262, %v2341, %v2342
  %v2344 = vrot.slane %v2188, 4
  %v2345 = vrot.slane %v2189, 4
  %v2346 = vsel %vm2262, %v2344, %v2345
  %v2347 = vrot.slane %v2190, 4
  %v2348 = vrot.slane %v2191, 4
  %v2349 = vsel %vm2262, %v2347, %v2348
  %v2350 = vrot.slane %v2192, 4
  %v2351 = vrot.slane %v2193, 4
  %v2352 = vsel %vm2262, %v2350, %v2351
  %v2353 = vrot.slane %v2194, 4
  %v2354 = vrot.slane %v2195, 4
  %v2355 = vsel %vm2262, %v2353, %v2354
  %v2356 = vrot.slane %v2196, 4
  %v2357 = vrot.slane %v2197, 4
  %v2358 = vsel %vm2262, %v2356, %v2357
  %2391 = vst [vmem:[#allocation3 + $0x8] sm:$0xff] %v2265
  %2392 = vst [vmem:[#allocation3 + $0x50] sm:$0xff] %v2268
  %2393 = vst [vmem:[#allocation3 + $0x98] sm:$0xff] %v2271
  %2394 = vst [vmem:[#allocation3 + $0xe0] sm:$0xff] %v2274
  %2395 = vst [vmem:[#allocation3 + $0x128] sm:$0xff] %v2277
  %2396 = vst [vmem:[#allocation3 + $0x170] sm:$0xff] %v2280
  %2397 = vst [vmem:[#allocation3 + $0x1b8] sm:$0xff] %v2283
  %2398 = vst [vmem:[#allocation3 + $0x200] sm:$0xff] %v2286
  %2399 = vst [vmem:[#allocation3 + $0x248] sm:$0xff] %v2289
  %2400 = vst [vmem:[#allocation3 + $0x290] sm:$0xff] %v2292
  %2401 = vst [vmem:[#allocation3 + $0x2d8] sm:$0xff] %v2295
  %2402 = vst [vmem:[#allocation3 + $0x320] sm:$0xff] %v2298
  %2403 = vst [vmem:[#allocation3 + $0x368] sm:$0xff] %v2301
  %2404 = vst [vmem:[#allocation3 + $0x3b0] sm:$0xff] %v2304
  %2405 = vst [vmem:[#allocation3 + $0x3f8] sm:$0xff] %v2307
  %2406 = vst [vmem:[#allocation3 + $0x440] sm:$0xff] %v2310
  %2407 = vst [vmem:[#allocation3 + $0x488] sm:$0xff] %v2313
  %2408 = vst [vmem:[#allocation3 + $0x4d0] sm:$0xff] %v2316
  %2409 = vst [vmem:[#allocation3 + $0x518] sm:$0xff] %v2319
  %2410 = vst [vmem:[#allocation3 + $0x560] sm:$0xff] %v2322
  %2411 = vst [vmem:[#allocation3 + $0x5a8] sm:$0xff] %v2325
  %2412 = vst [vmem:[#allocation3 + $0x5f0] sm:$0xff] %v2328
  %2413 = vst [vmem:[#allocation3 + $0x638] sm:$0xff] %v2331
  %2414 = vst [vmem:[#allocation3 + $0x680] sm:$0xff] %v2334
  %2415 = vst [vmem:[#allocation3 + $0x6c8] sm:$0xff] %v2337
  %2416 = vst [vmem:[#allocation3 + $0x710] sm:$0xff] %v2340
  %2417 = vst [vmem:[#allocation3 + $0x758] sm:$0xff] %v2343
  %2418 = vst [vmem:[#allocation3 + $0x7a0] sm:$0xff] %v2346
  %2419 = vst [vmem:[#allocation3 + $0x7e8] sm:$0xff] %v2349
  %2420 = vst [vmem:[#allocation3 + $0x830] sm:$0xff] %v2352
  %2421 = vst [vmem:[#allocation3 + $0x878] sm:$0xff] %v2355
  %2422 = vst [vmem:[#allocation3 + $0x8c0] sm:$0xff] %v2358
  %v2423 = vld [vmem:[#allocation2] sm:$0xf0]
  %v2424 = vld [vmem:[#allocation2 + $0x8] sm:$0x1f]
  %v2425 = vld [vmem:[#allocation2 + $0x10] sm:$0xf0]
  %v2426 = vld [vmem:[#allocation2 + $0x18] sm:$0x1f]
  %v2427 = vld [vmem:[#allocation2 + $0x20] sm:$0xf0]
  %v2428 = vld [vmem:[#allocation2 + $0x28] sm:$0x1f]
  %v2429 = vld [vmem:[#allocation2 + $0x30] sm:$0xf0]
  %v2430 = vld [vmem:[#allocation2 + $0x38] sm:$0x1f]
  %v2431 = vld [vmem:[#allocation2 + $0x40] sm:$0xf0]
  %v2432 = vld [vmem:[#allocation2 + $0x48] sm:$0x1f]
  %v2433 = vld [vmem:[#allocation2 + $0x50] sm:$0xf0]
  %v2434 = vld [vmem:[#allocation2 + $0x58] sm:$0x1f]
  %v2435 = vld [vmem:[#allocation2 + $0x60] sm:$0xf0]
  %v2436 = vld [vmem:[#allocation2 + $0x68] sm:$0x1f]
  %v2437 = vld [vmem:[#allocation2 + $0x70] sm:$0xf0]
  %v2438 = vld [vmem:[#allocation2 + $0x78] sm:$0x1f]
  %v2439 = vld [vmem:[#allocation2 + $0x80] sm:$0xf0]
  %v2440 = vld [vmem:[#allocation2 + $0x88] sm:$0x1f]
  %v2441 = vld [vmem:[#allocation2 + $0x90] sm:$0xf0]
  %v2442 = vld [vmem:[#allocation2 + $0x98] sm:$0x1f]
  %v2443 = vld [vmem:[#allocation2 + $0xa0] sm:$0xf0]
  %v2444 = vld [vmem:[#allocation2 + $0xa8] sm:$0x1f]
  %v2445 = vld [vmem:[#allocation2 + $0xb0] sm:$0xf0]
  %v2446 = vld [vmem:[#allocation2 + $0xb8] sm:$0x1f]
  %v2447 = vld [vmem:[#allocation2 + $0xc0] sm:$0xf0]
  %v2448 = vld [vmem:[#allocation2 + $0xc8] sm:$0x1f]
  %v2449 = vld [vmem:[#allocation2 + $0xd0] sm:$0xf0]
  %v2450 = vld [vmem:[#allocation2 + $0xd8] sm:$0x1f]
  %v2451 = vld [vmem:[#allocation2 + $0xe0] sm:$0xf0]
  %v2452 = vld [vmem:[#allocation2 + $0xe8] sm:$0x1f]
  %v2453 = vld [vmem:[#allocation2 + $0xf0] sm:$0xf0]
  %v2454 = vld [vmem:[#allocation2 + $0xf8] sm:$0x1f]
  %v2455 = vld [vmem:[#allocation2 + $0x120] sm:$0xf0]
  %v2456 = vld [vmem:[#allocation2 + $0x128] sm:$0x1f]
  %v2457 = vld [vmem:[#allocation2 + $0x130] sm:$0xf0]
  %v2458 = vld [vmem:[#allocation2 + $0x138] sm:$0x1f]
  %v2459 = vld [vmem:[#allocation2 + $0x140] sm:$0xf0]
  %v2460 = vld [vmem:[#allocation2 + $0x148] sm:$0x1f]
  %v2461 = vld [vmem:[#allocation2 + $0x150] sm:$0xf0]
  %v2462 = vld [vmem:[#allocation2 + $0x158] sm:$0x1f]
  %v2463 = vld [vmem:[#allocation2 + $0x160] sm:$0xf0]
  %v2464 = vld [vmem:[#allocation2 + $0x168] sm:$0x1f]
  %v2465 = vld [vmem:[#allocation2 + $0x170] sm:$0xf0]
  %v2466 = vld [vmem:[#allocation2 + $0x178] sm:$0x1f]
  %v2467 = vld [vmem:[#allocation2 + $0x180] sm:$0xf0]
  %v2468 = vld [vmem:[#allocation2 + $0x188] sm:$0x1f]
  %v2469 = vld [vmem:[#allocation2 + $0x190] sm:$0xf0]
  %v2470 = vld [vmem:[#allocation2 + $0x198] sm:$0x1f]
  %v2471 = vld [vmem:[#allocation2 + $0x1a0] sm:$0xf0]
  %v2472 = vld [vmem:[#allocation2 + $0x1a8] sm:$0x1f]
  %v2473 = vld [vmem:[#allocation2 + $0x1b0] sm:$0xf0]
  %v2474 = vld [vmem:[#allocation2 + $0x1b8] sm:$0x1f]
  %v2475 = vld [vmem:[#allocation2 + $0x1c0] sm:$0xf0]
  %v2476 = vld [vmem:[#allocation2 + $0x1c8] sm:$0x1f]
  %v2477 = vld [vmem:[#allocation2 + $0x1d0] sm:$0xf0]
  %v2478 = vld [vmem:[#allocation2 + $0x1d8] sm:$0x1f]
  %v2479 = vld [vmem:[#allocation2 + $0x1e0] sm:$0xf0]
  %v2480 = vld [vmem:[#allocation2 + $0x1e8] sm:$0x1f]
  %v2481 = vld [vmem:[#allocation2 + $0x1f0] sm:$0xf0]
  %v2482 = vld [vmem:[#allocation2 + $0x1f8] sm:$0x1f]
  %v2483 = vld [vmem:[#allocation2 + $0x200] sm:$0xf0]
  %v2484 = vld [vmem:[#allocation2 + $0x208] sm:$0x1f]
  %v2485 = vld [vmem:[#allocation2 + $0x210] sm:$0xf0]
  %v2486 = vld [vmem:[#allocation2 + $0x218] sm:$0x1f]
  %vm2487 = vsmask.f32 3328
  %v2489 = vshrl.u32 %v2423, 16
  %v2491 = vrot.slane %v2489, 4
  %v2492 = vshll.u32 %v2423, 16
  %v2494 = vrot.slane %v2492, 5
  %v2495 = vor.u32 %v2491, %v2494
  %v2497 = vshrl.u32 %v2424, 16
  %v2499 = vrot.slane %v2497, 4
  %v2500 = vshll.u32 %v2424, 16
  %v2502 = vrot.slane %v2500, 5
  %v2503 = vor.u32 %v2499, %v2502
  %v2504 = vsel %vm2487, %v2495, %v2503
  %v2506 = vshrl.u32 %v2425, 16
  %v2508 = vrot.slane %v2506, 4
  %v2509 = vshll.u32 %v2425, 16
  %v2511 = vrot.slane %v2509, 5
  %v2512 = vor.u32 %v2508, %v2511
  %v2514 = vshrl.u32 %v2426, 16
  %v2516 = vrot.slane %v2514, 4
  %v2517 = vshll.u32 %v2426, 16
  %v2519 = vrot.slane %v2517, 5
  %v2520 = vor.u32 %v2516, %v2519
  %v2521 = vsel %vm2487, %v2512, %v2520
  %v2523 = vshrl.u32 %v2427, 16
  %v2525 = vrot.slane %v2523, 4
  %v2526 = vshll.u32 %v2427, 16
  %v2528 = vrot.slane %v2526, 5
  %v2529 = vor.u32 %v2525, %v2528
  %v2531 = vshrl.u32 %v2428, 16
  %v2533 = vrot.slane %v2531, 4
  %v2534 = vshll.u32 %v2428, 16
  %v2536 = vrot.slane %v2534, 5
  %v2537 = vor.u32 %v2533, %v2536
  %v2538 = vsel %vm2487, %v2529, %v2537
  %v2540 = vshrl.u32 %v2429, 16
  %v2542 = vrot.slane %v2540, 4
  %v2543 = vshll.u32 %v2429, 16
  %v2545 = vrot.slane %v2543, 5
  %v2546 = vor.u32 %v2542, %v2545
  %v2548 = vshrl.u32 %v2430, 16
  %v2550 = vrot.slane %v2548, 4
  %v2551 = vshll.u32 %v2430, 16
  %v2553 = vrot.slane %v2551, 5
  %v2554 = vor.u32 %v2550, %v2553
  %v2555 = vsel %vm2487, %v2546, %v2554
  %v2557 = vshrl.u32 %v2431, 16
  %v2559 = vrot.slane %v2557, 4
  %v2560 = vshll.u32 %v2431, 16
  %v2562 = vrot.slane %v2560, 5
  %v2563 = vor.u32 %v2559, %v2562
  %v2565 = vshrl.u32 %v2432, 16
  %v2567 = vrot.slane %v2565, 4
  %v2568 = vshll.u32 %v2432, 16
  %v2570 = vrot.slane %v2568, 5
  %v2571 = vor.u32 %v2567, %v2570
  %v2572 = vsel %vm2487, %v2563, %v2571
  %v2574 = vshrl.u32 %v2433, 16
  %v2576 = vrot.slane %v2574, 4
  %v2577 = vshll.u32 %v2433, 16
  %v2579 = vrot.slane %v2577, 5
  %v2580 = vor.u32 %v2576, %v2579
  %v2582 = vshrl.u32 %v2434, 16
  %v2584 = vrot.slane %v2582, 4
  %v2585 = vshll.u32 %v2434, 16
  %v2587 = vrot.slane %v2585, 5
  %v2588 = vor.u32 %v2584, %v2587
  %v2589 = vsel %vm2487, %v2580, %v2588
  %v2591 = vshrl.u32 %v2435, 16
  %v2593 = vrot.slane %v2591, 4
  %v2594 = vshll.u32 %v2435, 16
  %v2596 = vrot.slane %v2594, 5
  %v2597 = vor.u32 %v2593, %v2596
  %v2599 = vshrl.u32 %v2436, 16
  %v2601 = vrot.slane %v2599, 4
  %v2602 = vshll.u32 %v2436, 16
  %v2604 = vrot.slane %v2602, 5
  %v2605 = vor.u32 %v2601, %v2604
  %v2606 = vsel %vm2487, %v2597, %v2605
  %v2608 = vshrl.u32 %v2437, 16
  %v2610 = vrot.slane %v2608, 4
  %v2611 = vshll.u32 %v2437, 16
  %v2613 = vrot.slane %v2611, 5
  %v2614 = vor.u32 %v2610, %v2613
  %v2616 = vshrl.u32 %v2438, 16
  %v2618 = vrot.slane %v2616, 4
  %v2619 = vshll.u32 %v2438, 16
  %v2621 = vrot.slane %v2619, 5
  %v2622 = vor.u32 %v2618, %v2621
  %v2623 = vsel %vm2487, %v2614, %v2622
  %v2625 = vshrl.u32 %v2439, 16
  %v2627 = vrot.slane %v2625, 4
  %v2628 = vshll.u32 %v2439, 16
  %v2630 = vrot.slane %v2628, 5
  %v2631 = vor.u32 %v2627, %v2630
  %v2633 = vshrl.u32 %v2440, 16
  %v2635 = vrot.slane %v2633, 4
  %v2636 = vshll.u32 %v2440, 16
  %v2638 = vrot.slane %v2636, 5
  %v2639 = vor.u32 %v2635, %v2638
  %v2640 = vsel %vm2487, %v2631, %v2639
  %v2642 = vshrl.u32 %v2441, 16
  %v2644 = vrot.slane %v2642, 4
  %v2645 = vshll.u32 %v2441, 16
  %v2647 = vrot.slane %v2645, 5
  %v2648 = vor.u32 %v2644, %v2647
  %v2650 = vshrl.u32 %v2442, 16
  %v2652 = vrot.slane %v2650, 4
  %v2653 = vshll.u32 %v2442, 16
  %v2655 = vrot.slane %v2653, 5
  %v2656 = vor.u32 %v2652, %v2655
  %v2657 = vsel %vm2487, %v2648, %v2656
  %v2659 = vshrl.u32 %v2443, 16
  %v2661 = vrot.slane %v2659, 4
  %v2662 = vshll.u32 %v2443, 16
  %v2664 = vrot.slane %v2662, 5
  %v2665 = vor.u32 %v2661, %v2664
  %v2667 = vshrl.u32 %v2444, 16
  %v2669 = vrot.slane %v2667, 4
  %v2670 = vshll.u32 %v2444, 16
  %v2672 = vrot.slane %v2670, 5
  %v2673 = vor.u32 %v2669, %v2672
  %v2674 = vsel %vm2487, %v2665, %v2673
  %v2676 = vshrl.u32 %v2445, 16
  %v2678 = vrot.slane %v2676, 4
  %v2679 = vshll.u32 %v2445, 16
  %v2681 = vrot.slane %v2679, 5
  %v2682 = vor.u32 %v2678, %v2681
  %v2684 = vshrl.u32 %v2446, 16
  %v2686 = vrot.slane %v2684, 4
  %v2687 = vshll.u32 %v2446, 16
  %v2689 = vrot.slane %v2687, 5
  %v2690 = vor.u32 %v2686, %v2689
  %v2691 = vsel %vm2487, %v2682, %v2690
  %v2693 = vshrl.u32 %v2447, 16
  %v2695 = vrot.slane %v2693, 4
  %v2696 = vshll.u32 %v2447, 16
  %v2698 = vrot.slane %v2696, 5
  %v2699 = vor.u32 %v2695, %v2698
  %v2701 = vshrl.u32 %v2448, 16
  %v2703 = vrot.slane %v2701, 4
  %v2704 = vshll.u32 %v2448, 16
  %v2706 = vrot.slane %v2704, 5
  %v2707 = vor.u32 %v2703, %v2706
  %v2708 = vsel %vm2487, %v2699, %v2707
  %v2710 = vshrl.u32 %v2449, 16
  %v2712 = vrot.slane %v2710, 4
  %v2713 = vshll.u32 %v2449, 16
  %v2715 = vrot.slane %v2713, 5
  %v2716 = vor.u32 %v2712, %v2715
  %v2718 = vshrl.u32 %v2450, 16
  %v2720 = vrot.slane %v2718, 4
  %v2721 = vshll.u32 %v2450, 16
  %v2723 = vrot.slane %v2721, 5
  %v2724 = vor.u32 %v2720, %v2723
  %v2725 = vsel %vm2487, %v2716, %v2724
  %v2727 = vshrl.u32 %v2451, 16
  %v2729 = vrot.slane %v2727, 4
  %v2730 = vshll.u32 %v2451, 16
  %v2732 = vrot.slane %v2730, 5
  %v2733 = vor.u32 %v2729, %v2732
  %v2735 = vshrl.u32 %v2452, 16
  %v2737 = vrot.slane %v2735, 4
  %v2738 = vshll.u32 %v2452, 16
  %v2740 = vrot.slane %v2738, 5
  %v2741 = vor.u32 %v2737, %v2740
  %v2742 = vsel %vm2487, %v2733, %v2741
  %v2744 = vshrl.u32 %v2453, 16
  %v2746 = vrot.slane %v2744, 4
  %v2747 = vshll.u32 %v2453, 16
  %v2749 = vrot.slane %v2747, 5
  %v2750 = vor.u32 %v2746, %v2749
  %v2752 = vshrl.u32 %v2454, 16
  %v2754 = vrot.slane %v2752, 4
  %v2755 = vshll.u32 %v2454, 16
  %v2757 = vrot.slane %v2755, 5
  %v2758 = vor.u32 %v2754, %v2757
  %v2759 = vsel %vm2487, %v2750, %v2758
  %v2761 = vshrl.u32 %v2455, 16
  %v2763 = vrot.slane %v2761, 4
  %v2764 = vshll.u32 %v2455, 16
  %v2766 = vrot.slane %v2764, 5
  %v2767 = vor.u32 %v2763, %v2766
  %v2769 = vshrl.u32 %v2456, 16
  %v2771 = vrot.slane %v2769, 4
  %v2772 = vshll.u32 %v2456, 16
  %v2774 = vrot.slane %v2772, 5
  %v2775 = vor.u32 %v2771, %v2774
  %v2776 = vsel %vm2487, %v2767, %v2775
  %v2778 = vshrl.u32 %v2457, 16
  %v2780 = vrot.slane %v2778, 4
  %v2781 = vshll.u32 %v2457, 16
  %v2783 = vrot.slane %v2781, 5
  %v2784 = vor.u32 %v2780, %v2783
  %v2786 = vshrl.u32 %v2458, 16
  %v2788 = vrot.slane %v2786, 4
  %v2789 = vshll.u32 %v2458, 16
  %v2791 = vrot.slane %v2789, 5
  %v2792 = vor.u32 %v2788, %v2791
  %v2793 = vsel %vm2487, %v2784, %v2792
  %v2795 = vshrl.u32 %v2459, 16
  %v2797 = vrot.slane %v2795, 4
  %v2798 = vshll.u32 %v2459, 16
  %v2800 = vrot.slane %v2798, 5
  %v2801 = vor.u32 %v2797, %v2800
  %v2803 = vshrl.u32 %v2460, 16
  %v2805 = vrot.slane %v2803, 4
  %v2806 = vshll.u32 %v2460, 16
  %v2808 = vrot.slane %v2806, 5
  %v2809 = vor.u32 %v2805, %v2808
  %v2810 = vsel %vm2487, %v2801, %v2809
  %v2812 = vshrl.u32 %v2461, 16
  %v2814 = vrot.slane %v2812, 4
  %v2815 = vshll.u32 %v2461, 16
  %v2817 = vrot.slane %v2815, 5
  %v2818 = vor.u32 %v2814, %v2817
  %v2820 = vshrl.u32 %v2462, 16
  %v2822 = vrot.slane %v2820, 4
  %v2823 = vshll.u32 %v2462, 16
  %v2825 = vrot.slane %v2823, 5
  %v2826 = vor.u32 %v2822, %v2825
  %v2827 = vsel %vm2487, %v2818, %v2826
  %v2829 = vshrl.u32 %v2463, 16
  %v2831 = vrot.slane %v2829, 4
  %v2832 = vshll.u32 %v2463, 16
  %v2834 = vrot.slane %v2832, 5
  %v2835 = vor.u32 %v2831, %v2834
  %v2837 = vshrl.u32 %v2464, 16
  %v2839 = vrot.slane %v2837, 4
  %v2840 = vshll.u32 %v2464, 16
  %v2842 = vrot.slane %v2840, 5
  %v2843 = vor.u32 %v2839, %v2842
  %v2844 = vsel %vm2487, %v2835, %v2843
  %v2846 = vshrl.u32 %v2465, 16
  %v2848 = vrot.slane %v2846, 4
  %v2849 = vshll.u32 %v2465, 16
  %v2851 = vrot.slane %v2849, 5
  %v2852 = vor.u32 %v2848, %v2851
  %v2854 = vshrl.u32 %v2466, 16
  %v2856 = vrot.slane %v2854, 4
  %v2857 = vshll.u32 %v2466, 16
  %v2859 = vrot.slane %v2857, 5
  %v2860 = vor.u32 %v2856, %v2859
  %v2861 = vsel %vm2487, %v2852, %v2860
  %v2863 = vshrl.u32 %v2467, 16
  %v2865 = vrot.slane %v2863, 4
  %v2866 = vshll.u32 %v2467, 16
  %v2868 = vrot.slane %v2866, 5
  %v2869 = vor.u32 %v2865, %v2868
  %v2871 = vshrl.u32 %v2468, 16
  %v2873 = vrot.slane %v2871, 4
  %v2874 = vshll.u32 %v2468, 16
  %v2876 = vrot.slane %v2874, 5
  %v2877 = vor.u32 %v2873, %v2876
  %v2878 = vsel %vm2487, %v2869, %v2877
  %v2880 = vshrl.u32 %v2469, 16
  %v2882 = vrot.slane %v2880, 4
  %v2883 = vshll.u32 %v2469, 16
  %v2885 = vrot.slane %v2883, 5
  %v2886 = vor.u32 %v2882, %v2885
  %v2888 = vshrl.u32 %v2470, 16
  %v2890 = vrot.slane %v2888, 4
  %v2891 = vshll.u32 %v2470, 16
  %v2893 = vrot.slane %v2891, 5
  %v2894 = vor.u32 %v2890, %v2893
  %v2895 = vsel %vm2487, %v2886, %v2894
  %v2897 = vshrl.u32 %v2471, 16
  %v2899 = vrot.slane %v2897, 4
  %v2900 = vshll.u32 %v2471, 16
  %v2902 = vrot.slane %v2900, 5
  %v2903 = vor.u32 %v2899, %v2902
  %v2905 = vshrl.u32 %v2472, 16
  %v2907 = vrot.slane %v2905, 4
  %v2908 = vshll.u32 %v2472, 16
  %v2910 = vrot.slane %v2908, 5
  %v2911 = vor.u32 %v2907, %v2910
  %v2912 = vsel %vm2487, %v2903, %v2911
  %v2914 = vshrl.u32 %v2473, 16
  %v2916 = vrot.slane %v2914, 4
  %v2917 = vshll.u32 %v2473, 16
  %v2919 = vrot.slane %v2917, 5
  %v2920 = vor.u32 %v2916, %v2919
  %v2922 = vshrl.u32 %v2474, 16
  %v2924 = vrot.slane %v2922, 4
  %v2925 = vshll.u32 %v2474, 16
  %v2927 = vrot.slane %v2925, 5
  %v2928 = vor.u32 %v2924, %v2927
  %v2929 = vsel %vm2487, %v2920, %v2928
  %v2931 = vshrl.u32 %v2475, 16
  %v2933 = vrot.slane %v2931, 4
  %v2934 = vshll.u32 %v2475, 16
  %v2936 = vrot.slane %v2934, 5
  %v2937 = vor.u32 %v2933, %v2936
  %v2939 = vshrl.u32 %v2476, 16
  %v2941 = vrot.slane %v2939, 4
  %v2942 = vshll.u32 %v2476, 16
  %v2944 = vrot.slane %v2942, 5
  %v2945 = vor.u32 %v2941, %v2944
  %v2946 = vsel %vm2487, %v2937, %v2945
  %v2948 = vshrl.u32 %v2477, 16
  %v2950 = vrot.slane %v2948, 4
  %v2951 = vshll.u32 %v2477, 16
  %v2953 = vrot.slane %v2951, 5
  %v2954 = vor.u32 %v2950, %v2953
  %v2956 = vshrl.u32 %v2478, 16
  %v2958 = vrot.slane %v2956, 4
  %v2959 = vshll.u32 %v2478, 16
  %v2961 = vrot.slane %v2959, 5
  %v2962 = vor.u32 %v2958, %v2961
  %v2963 = vsel %vm2487, %v2954, %v2962
  %v2965 = vshrl.u32 %v2479, 16
  %v2967 = vrot.slane %v2965, 4
  %v2968 = vshll.u32 %v2479, 16
  %v2970 = vrot.slane %v2968, 5
  %v2971 = vor.u32 %v2967, %v2970
  %v2973 = vshrl.u32 %v2480, 16
  %v2975 = vrot.slane %v2973, 4
  %v2976 = vshll.u32 %v2480, 16
  %v2978 = vrot.slane %v2976, 5
  %v2979 = vor.u32 %v2975, %v2978
  %v2980 = vsel %vm2487, %v2971, %v2979
  %v2982 = vshrl.u32 %v2481, 16
  %v2984 = vrot.slane %v2982, 4
  %v2985 = vshll.u32 %v2481, 16
  %v2987 = vrot.slane %v2985, 5
  %v2988 = vor.u32 %v2984, %v2987
  %v2990 = vshrl.u32 %v2482, 16
  %v2992 = vrot.slane %v2990, 4
  %v2993 = vshll.u32 %v2482, 16
  %v2995 = vrot.slane %v2993, 5
  %v2996 = vor.u32 %v2992, %v2995
  %v2997 = vsel %vm2487, %v2988, %v2996
  %v2999 = vshrl.u32 %v2483, 16
  %v3001 = vrot.slane %v2999, 4
  %v3002 = vshll.u32 %v2483, 16
  %v3004 = vrot.slane %v3002, 5
  %v3005 = vor.u32 %v3001, %v3004
  %v3007 = vshrl.u32 %v2484, 16
  %v3009 = vrot.slane %v3007, 4
  %v3010 = vshll.u32 %v2484, 16
  %v3012 = vrot.slane %v3010, 5
  %v3013 = vor.u32 %v3009, %v3012
  %v3014 = vsel %vm2487, %v3005, %v3013
  %v3016 = vshrl.u32 %v2485, 16
  %v3018 = vrot.slane %v3016, 4
  %v3019 = vshll.u32 %v2485, 16
  %v3021 = vrot.slane %v3019, 5
  %v3022 = vor.u32 %v3018, %v3021
  %v3024 = vshrl.u32 %v2486, 16
  %v3026 = vrot.slane %v3024, 4
  %v3027 = vshll.u32 %v2486, 16
  %v3029 = vrot.slane %v3027, 5
  %v3030 = vor.u32 %v3026, %v3029
  %v3031 = vsel %vm2487, %v3022, %v3030
  %3064 = vst [vmem:[#allocation3 + $0x10] sm:$0xff] %v2504
  %3065 = vst [vmem:[#allocation3 + $0x58] sm:$0xff] %v2521
  %3066 = vst [vmem:[#allocation3 + $0xa0] sm:$0xff] %v2538
  %3067 = vst [vmem:[#allocation3 + $0xe8] sm:$0xff] %v2555
  %3068 = vst [vmem:[#allocation3 + $0x130] sm:$0xff] %v2572
  %3069 = vst [vmem:[#allocation3 + $0x178] sm:$0xff] %v2589
  %3070 = vst [vmem:[#allocation3 + $0x1c0] sm:$0xff] %v2606
  %3071 = vst [vmem:[#allocation3 + $0x208] sm:$0xff] %v2623
  %3072 = vst [vmem:[#allocation3 + $0x250] sm:$0xff] %v2640
  %3073 = vst [vmem:[#allocation3 + $0x298] sm:$0xff] %v2657
  %3074 = vst [vmem:[#allocation3 + $0x2e0] sm:$0xff] %v2674
  %3075 = vst [vmem:[#allocation3 + $0x328] sm:$0xff] %v2691
  %3076 = vst [vmem:[#allocation3 + $0x370] sm:$0xff] %v2708
  %3077 = vst [vmem:[#allocation3 + $0x3b8] sm:$0xff] %v2725
  %3078 = vst [vmem:[#allocation3 + $0x400] sm:$0xff] %v2742
  %3079 = vst [vmem:[#allocation3 + $0x448] sm:$0xff] %v2759
  %3080 = vst [vmem:[#allocation3 + $0x490] sm:$0xff] %v2776
  %3081 = vst [vmem:[#allocation3 + $0x4d8] sm:$0xff] %v2793
  %3082 = vst [vmem:[#allocation3 + $0x520] sm:$0xff] %v2810
  %3083 = vst [vmem:[#allocation3 + $0x568] sm:$0xff] %v2827
  %3084 = vst [vmem:[#allocation3 + $0x5b0] sm:$0xff] %v2844
  %3085 = vst [vmem:[#allocation3 + $0x5f8] sm:$0xff] %v2861
  %3086 = vst [vmem:[#allocation3 + $0x640] sm:$0xff] %v2878
  %3087 = vst [vmem:[#allocation3 + $0x688] sm:$0xff] %v2895
  %3088 = vst [vmem:[#allocation3 + $0x6d0] sm:$0xff] %v2912
  %3089 = vst [vmem:[#allocation3 + $0x718] sm:$0xff] %v2929
  %3090 = vst [vmem:[#allocation3 + $0x760] sm:$0xff] %v2946
  %3091 = vst [vmem:[#allocation3 + $0x7a8] sm:$0xff] %v2963
  %3092 = vst [vmem:[#allocation3 + $0x7f0] sm:$0xff] %v2980
  %3093 = vst [vmem:[#allocation3 + $0x838] sm:$0xff] %v2997
  %3094 = vst [vmem:[#allocation3 + $0x880] sm:$0xff] %v3014
  %3095 = vst [vmem:[#allocation3 + $0x8c8] sm:$0xff] %v3031
  %v3096 = vld [vmem:[%s1204] sm:$0xf8]
  %v3097 = vld [vmem:[%s1204 + $0x8] sm:$0xf]
  %v3098 = vld [vmem:[%s1204 + $0x10] sm:$0xf8]
  %v3099 = vld [vmem:[%s1204 + $0x18] sm:$0xf]
  %v3100 = vld [vmem:[%s1204 + $0x20] sm:$0xf8]
  %v3101 = vld [vmem:[%s1204 + $0x28] sm:$0xf]
  %v3102 = vld [vmem:[%s1204 + $0x30] sm:$0xf8]
  %v3103 = vld [vmem:[%s1204 + $0x38] sm:$0xf]
  %v3104 = vld [vmem:[%s1204 + $0x40] sm:$0xf8]
  %v3105 = vld [vmem:[%s1204 + $0x48] sm:$0xf]
  %v3106 = vld [vmem:[%s1204 + $0x50] sm:$0xf8]
  %v3107 = vld [vmem:[%s1204 + $0x58] sm:$0xf]
  %v3108 = vld [vmem:[%s1204 + $0x60] sm:$0xf8]
  %v3109 = vld [vmem:[%s1204 + $0x68] sm:$0xf]
  %v3110 = vld [vmem:[%s1204 + $0x70] sm:$0xf8]
  %v3111 = vld [vmem:[%s1204 + $0x78] sm:$0xf]
  %v3112 = vld [vmem:[%s1204 + $0x80] sm:$0xf8]
  %v3113 = vld [vmem:[%s1204 + $0x88] sm:$0xf]
  %v3114 = vld [vmem:[%s1204 + $0x90] sm:$0xf8]
  %v3115 = vld [vmem:[%s1204 + $0x98] sm:$0xf]
  %v3116 = vld [vmem:[%s1204 + $0xa0] sm:$0xf8]
  %v3117 = vld [vmem:[%s1204 + $0xa8] sm:$0xf]
  %v3118 = vld [vmem:[%s1204 + $0xb0] sm:$0xf8]
  %v3119 = vld [vmem:[%s1204 + $0xb8] sm:$0xf]
  %v3120 = vld [vmem:[%s1204 + $0xc0] sm:$0xf8]
  %v3121 = vld [vmem:[%s1204 + $0xc8] sm:$0xf]
  %v3122 = vld [vmem:[%s1204 + $0xd0] sm:$0xf8]
  %v3123 = vld [vmem:[%s1204 + $0xd8] sm:$0xf]
  %v3124 = vld [vmem:[%s1204 + $0xe0] sm:$0xf8]
  %v3125 = vld [vmem:[%s1204 + $0xe8] sm:$0xf]
  %v3126 = vld [vmem:[%s1204 + $0xf0] sm:$0xf8]
  %v3127 = vld [vmem:[%s1204 + $0xf8] sm:$0xf]
  %v3128 = vld [vmem:[%s1204 + $0x120] sm:$0xf8]
  %v3129 = vld [vmem:[%s1204 + $0x128] sm:$0xf]
  %v3130 = vld [vmem:[%s1204 + $0x130] sm:$0xf8]
  %v3131 = vld [vmem:[%s1204 + $0x138] sm:$0xf]
  %v3132 = vld [vmem:[%s1204 + $0x140] sm:$0xf8]
  %v3133 = vld [vmem:[%s1204 + $0x148] sm:$0xf]
  %v3134 = vld [vmem:[%s1204 + $0x150] sm:$0xf8]
  %v3135 = vld [vmem:[%s1204 + $0x158] sm:$0xf]
  %v3136 = vld [vmem:[%s1204 + $0x160] sm:$0xf8]
  %v3137 = vld [vmem:[%s1204 + $0x168] sm:$0xf]
  %v3138 = vld [vmem:[%s1204 + $0x170] sm:$0xf8]
  %v3139 = vld [vmem:[%s1204 + $0x178] sm:$0xf]
  %v3140 = vld [vmem:[%s1204 + $0x180] sm:$0xf8]
  %v3141 = vld [vmem:[%s1204 + $0x188] sm:$0xf]
  %v3142 = vld [vmem:[%s1204 + $0x190] sm:$0xf8]
  %v3143 = vld [vmem:[%s1204 + $0x198] sm:$0xf]
  %v3144 = vld [vmem:[%s1204 + $0x1a0] sm:$0xf8]
  %v3145 = vld [vmem:[%s1204 + $0x1a8] sm:$0xf]
  %v3146 = vld [vmem:[%s1204 + $0x1b0] sm:$0xf8]
  %v3147 = vld [vmem:[%s1204 + $0x1b8] sm:$0xf]
  %v3148 = vld [vmem:[%s1204 + $0x1c0] sm:$0xf8]
  %v3149 = vld [vmem:[%s1204 + $0x1c8] sm:$0xf]
  %v3150 = vld [vmem:[%s1204 + $0x1d0] sm:$0xf8]
  %v3151 = vld [vmem:[%s1204 + $0x1d8] sm:$0xf]
  %v3152 = vld [vmem:[%s1204 + $0x1e0] sm:$0xf8]
  %v3153 = vld [vmem:[%s1204 + $0x1e8] sm:$0xf]
  %v3154 = vld [vmem:[%s1204 + $0x1f0] sm:$0xf8]
  %v3155 = vld [vmem:[%s1204 + $0x1f8] sm:$0xf]
  %v3156 = vld [vmem:[%s1204 + $0x200] sm:$0xf8]
  %v3157 = vld [vmem:[%s1204 + $0x208] sm:$0xf]
  %v3158 = vld [vmem:[%s1204 + $0x210] sm:$0xf8]
  %v3159 = vld [vmem:[%s1204 + $0x218] sm:$0xf]
  %v3161 = vshrl.u32 %v3096, 16
  %v3163 = vrot.slane %v3161, 3
  %v3164 = vshll.u32 %v3096, 16
  %v3166 = vrot.slane %v3164, 4
  %v3167 = vor.u32 %v3163, %v3166
  %v3169 = vshrl.u32 %v3097, 16
  %v3171 = vrot.slane %v3169, 3
  %v3172 = vshll.u32 %v3097, 16
  %v3174 = vrot.slane %v3172, 4
  %v3175 = vor.u32 %v3171, %v3174
  %v3176 = vsel %vm1525, %v3167, %v3175
  %v3178 = vshrl.u32 %v3098, 16
  %v3180 = vrot.slane %v3178, 3
  %v3181 = vshll.u32 %v3098, 16
  %v3183 = vrot.slane %v3181, 4
  %v3184 = vor.u32 %v3180, %v3183
  %v3186 = vshrl.u32 %v3099, 16
  %v3188 = vrot.slane %v3186, 3
  %v3189 = vshll.u32 %v3099, 16
  %v3191 = vrot.slane %v3189, 4
  %v3192 = vor.u32 %v3188, %v3191
  %v3193 = vsel %vm1525, %v3184, %v3192
  %v3195 = vshrl.u32 %v3100, 16
  %v3197 = vrot.slane %v3195, 3
  %v3198 = vshll.u32 %v3100, 16
  %v3200 = vrot.slane %v3198, 4
  %v3201 = vor.u32 %v3197, %v3200
  %v3203 = vshrl.u32 %v3101, 16
  %v3205 = vrot.slane %v3203, 3
  %v3206 = vshll.u32 %v3101, 16
  %v3208 = vrot.slane %v3206, 4
  %v3209 = vor.u32 %v3205, %v3208
  %v3210 = vsel %vm1525, %v3201, %v3209
  %v3212 = vshrl.u32 %v3102, 16
  %v3214 = vrot.slane %v3212, 3
  %v3215 = vshll.u32 %v3102, 16
  %v3217 = vrot.slane %v3215, 4
  %v3218 = vor.u32 %v3214, %v3217
  %v3220 = vshrl.u32 %v3103, 16
  %v3222 = vrot.slane %v3220, 3
  %v3223 = vshll.u32 %v3103, 16
  %v3225 = vrot.slane %v3223, 4
  %v3226 = vor.u32 %v3222, %v3225
  %v3227 = vsel %vm1525, %v3218, %v3226
  %v3229 = vshrl.u32 %v3104, 16
  %v3231 = vrot.slane %v3229, 3
  %v3232 = vshll.u32 %v3104, 16
  %v3234 = vrot.slane %v3232, 4
  %v3235 = vor.u32 %v3231, %v3234
  %v3237 = vshrl.u32 %v3105, 16
  %v3239 = vrot.slane %v3237, 3
  %v3240 = vshll.u32 %v3105, 16
  %v3242 = vrot.slane %v3240, 4
  %v3243 = vor.u32 %v3239, %v3242
  %v3244 = vsel %vm1525, %v3235, %v3243
  %v3246 = vshrl.u32 %v3106, 16
  %v3248 = vrot.slane %v3246, 3
  %v3249 = vshll.u32 %v3106, 16
  %v3251 = vrot.slane %v3249, 4
  %v3252 = vor.u32 %v3248, %v3251
  %v3254 = vshrl.u32 %v3107, 16
  %v3256 = vrot.slane %v3254, 3
  %v3257 = vshll.u32 %v3107, 16
  %v3259 = vrot.slane %v3257, 4
  %v3260 = vor.u32 %v3256, %v3259
  %v3261 = vsel %vm1525, %v3252, %v3260
  %v3263 = vshrl.u32 %v3108, 16
  %v3265 = vrot.slane %v3263, 3
  %v3266 = vshll.u32 %v3108, 16
  %v3268 = vrot.slane %v3266, 4
  %v3269 = vor.u32 %v3265, %v3268
  %v3271 = vshrl.u32 %v3109, 16
  %v3273 = vrot.slane %v3271, 3
  %v3274 = vshll.u32 %v3109, 16
  %v3276 = vrot.slane %v3274, 4
  %v3277 = vor.u32 %v3273, %v3276
  %v3278 = vsel %vm1525, %v3269, %v3277
  %v3280 = vshrl.u32 %v3110, 16
  %v3282 = vrot.slane %v3280, 3
  %v3283 = vshll.u32 %v3110, 16
  %v3285 = vrot.slane %v3283, 4
  %v3286 = vor.u32 %v3282, %v3285
  %v3288 = vshrl.u32 %v3111, 16
  %v3290 = vrot.slane %v3288, 3
  %v3291 = vshll.u32 %v3111, 16
  %v3293 = vrot.slane %v3291, 4
  %v3294 = vor.u32 %v3290, %v3293
  %v3295 = vsel %vm1525, %v3286, %v3294
  %v3297 = vshrl.u32 %v3112, 16
  %v3299 = vrot.slane %v3297, 3
  %v3300 = vshll.u32 %v3112, 16
  %v3302 = vrot.slane %v3300, 4
  %v3303 = vor.u32 %v3299, %v3302
  %v3305 = vshrl.u32 %v3113, 16
  %v3307 = vrot.slane %v3305, 3
  %v3308 = vshll.u32 %v3113, 16
  %v3310 = vrot.slane %v3308, 4
  %v3311 = vor.u32 %v3307, %v3310
  %v3312 = vsel %vm1525, %v3303, %v3311
  %v3314 = vshrl.u32 %v3114, 16
  %v3316 = vrot.slane %v3314, 3
  %v3317 = vshll.u32 %v3114, 16
  %v3319 = vrot.slane %v3317, 4
  %v3320 = vor.u32 %v3316, %v3319
  %v3322 = vshrl.u32 %v3115, 16
  %v3324 = vrot.slane %v3322, 3
  %v3325 = vshll.u32 %v3115, 16
  %v3327 = vrot.slane %v3325, 4
  %v3328 = vor.u32 %v3324, %v3327
  %v3329 = vsel %vm1525, %v3320, %v3328
  %v3331 = vshrl.u32 %v3116, 16
  %v3333 = vrot.slane %v3331, 3
  %v3334 = vshll.u32 %v3116, 16
  %v3336 = vrot.slane %v3334, 4
  %v3337 = vor.u32 %v3333, %v3336
  %v3339 = vshrl.u32 %v3117, 16
  %v3341 = vrot.slane %v3339, 3
  %v3342 = vshll.u32 %v3117, 16
  %v3344 = vrot.slane %v3342, 4
  %v3345 = vor.u32 %v3341, %v3344
  %v3346 = vsel %vm1525, %v3337, %v3345
  %v3348 = vshrl.u32 %v3118, 16
  %v3350 = vrot.slane %v3348, 3
  %v3351 = vshll.u32 %v3118, 16
  %v3353 = vrot.slane %v3351, 4
  %v3354 = vor.u32 %v3350, %v3353
  %v3356 = vshrl.u32 %v3119, 16
  %v3358 = vrot.slane %v3356, 3
  %v3359 = vshll.u32 %v3119, 16
  %v3361 = vrot.slane %v3359, 4
  %v3362 = vor.u32 %v3358, %v3361
  %v3363 = vsel %vm1525, %v3354, %v3362
  %v3365 = vshrl.u32 %v3120, 16
  %v3367 = vrot.slane %v3365, 3
  %v3368 = vshll.u32 %v3120, 16
  %v3370 = vrot.slane %v3368, 4
  %v3371 = vor.u32 %v3367, %v3370
  %v3373 = vshrl.u32 %v3121, 16
  %v3375 = vrot.slane %v3373, 3
  %v3376 = vshll.u32 %v3121, 16
  %v3378 = vrot.slane %v3376, 4
  %v3379 = vor.u32 %v3375, %v3378
  %v3380 = vsel %vm1525, %v3371, %v3379
  %v3382 = vshrl.u32 %v3122, 16
  %v3384 = vrot.slane %v3382, 3
  %v3385 = vshll.u32 %v3122, 16
  %v3387 = vrot.slane %v3385, 4
  %v3388 = vor.u32 %v3384, %v3387
  %v3390 = vshrl.u32 %v3123, 16
  %v3392 = vrot.slane %v3390, 3
  %v3393 = vshll.u32 %v3123, 16
  %v3395 = vrot.slane %v3393, 4
  %v3396 = vor.u32 %v3392, %v3395
  %v3397 = vsel %vm1525, %v3388, %v3396
  %v3399 = vshrl.u32 %v3124, 16
  %v3401 = vrot.slane %v3399, 3
  %v3402 = vshll.u32 %v3124, 16
  %v3404 = vrot.slane %v3402, 4
  %v3405 = vor.u32 %v3401, %v3404
  %v3407 = vshrl.u32 %v3125, 16
  %v3409 = vrot.slane %v3407, 3
  %v3410 = vshll.u32 %v3125, 16
  %v3412 = vrot.slane %v3410, 4
  %v3413 = vor.u32 %v3409, %v3412
  %v3414 = vsel %vm1525, %v3405, %v3413
  %v3416 = vshrl.u32 %v3126, 16
  %v3418 = vrot.slane %v3416, 3
  %v3419 = vshll.u32 %v3126, 16
  %v3421 = vrot.slane %v3419, 4
  %v3422 = vor.u32 %v3418, %v3421
  %v3424 = vshrl.u32 %v3127, 16
  %v3426 = vrot.slane %v3424, 3
  %v3427 = vshll.u32 %v3127, 16
  %v3429 = vrot.slane %v3427, 4
  %v3430 = vor.u32 %v3426, %v3429
  %v3431 = vsel %vm1525, %v3422, %v3430
  %v3433 = vshrl.u32 %v3128, 16
  %v3435 = vrot.slane %v3433, 3
  %v3436 = vshll.u32 %v3128, 16
  %v3438 = vrot.slane %v3436, 4
  %v3439 = vor.u32 %v3435, %v3438
  %v3441 = vshrl.u32 %v3129, 16
  %v3443 = vrot.slane %v3441, 3
  %v3444 = vshll.u32 %v3129, 16
  %v3446 = vrot.slane %v3444, 4
  %v3447 = vor.u32 %v3443, %v3446
  %v3448 = vsel %vm1525, %v3439, %v3447
  %v3450 = vshrl.u32 %v3130, 16
  %v3452 = vrot.slane %v3450, 3
  %v3453 = vshll.u32 %v3130, 16
  %v3455 = vrot.slane %v3453, 4
  %v3456 = vor.u32 %v3452, %v3455
  %v3458 = vshrl.u32 %v3131, 16
  %v3460 = vrot.slane %v3458, 3
  %v3461 = vshll.u32 %v3131, 16
  %v3463 = vrot.slane %v3461, 4
  %v3464 = vor.u32 %v3460, %v3463
  %v3465 = vsel %vm1525, %v3456, %v3464
  %v3467 = vshrl.u32 %v3132, 16
  %v3469 = vrot.slane %v3467, 3
  %v3470 = vshll.u32 %v3132, 16
  %v3472 = vrot.slane %v3470, 4
  %v3473 = vor.u32 %v3469, %v3472
  %v3475 = vshrl.u32 %v3133, 16
  %v3477 = vrot.slane %v3475, 3
  %v3478 = vshll.u32 %v3133, 16
  %v3480 = vrot.slane %v3478, 4
  %v3481 = vor.u32 %v3477, %v3480
  %v3482 = vsel %vm1525, %v3473, %v3481
  %v3484 = vshrl.u32 %v3134, 16
  %v3486 = vrot.slane %v3484, 3
  %v3487 = vshll.u32 %v3134, 16
  %v3489 = vrot.slane %v3487, 4
  %v3490 = vor.u32 %v3486, %v3489
  %v3492 = vshrl.u32 %v3135, 16
  %v3494 = vrot.slane %v3492, 3
  %v3495 = vshll.u32 %v3135, 16
  %v3497 = vrot.slane %v3495, 4
  %v3498 = vor.u32 %v3494, %v3497
  %v3499 = vsel %vm1525, %v3490, %v3498
  %v3501 = vshrl.u32 %v3136, 16
  %v3503 = vrot.slane %v3501, 3
  %v3504 = vshll.u32 %v3136, 16
  %v3506 = vrot.slane %v3504, 4
  %v3507 = vor.u32 %v3503, %v3506
  %v3509 = vshrl.u32 %v3137, 16
  %v3511 = vrot.slane %v3509, 3
  %v3512 = vshll.u32 %v3137, 16
  %v3514 = vrot.slane %v3512, 4
  %v3515 = vor.u32 %v3511, %v3514
  %v3516 = vsel %vm1525, %v3507, %v3515
  %v3518 = vshrl.u32 %v3138, 16
  %v3520 = vrot.slane %v3518, 3
  %v3521 = vshll.u32 %v3138, 16
  %v3523 = vrot.slane %v3521, 4
  %v3524 = vor.u32 %v3520, %v3523
  %v3526 = vshrl.u32 %v3139, 16
  %v3528 = vrot.slane %v3526, 3
  %v3529 = vshll.u32 %v3139, 16
  %v3531 = vrot.slane %v3529, 4
  %v3532 = vor.u32 %v3528, %v3531
  %v3533 = vsel %vm1525, %v3524, %v3532
  %v3535 = vshrl.u32 %v3140, 16
  %v3537 = vrot.slane %v3535, 3
  %v3538 = vshll.u32 %v3140, 16
  %v3540 = vrot.slane %v3538, 4
  %v3541 = vor.u32 %v3537, %v3540
  %v3543 = vshrl.u32 %v3141, 16
  %v3545 = vrot.slane %v3543, 3
  %v3546 = vshll.u32 %v3141, 16
  %v3548 = vrot.slane %v3546, 4
  %v3549 = vor.u32 %v3545, %v3548
  %v3550 = vsel %vm1525, %v3541, %v3549
  %v3552 = vshrl.u32 %v3142, 16
  %v3554 = vrot.slane %v3552, 3
  %v3555 = vshll.u32 %v3142, 16
  %v3557 = vrot.slane %v3555, 4
  %v3558 = vor.u32 %v3554, %v3557
  %v3560 = vshrl.u32 %v3143, 16
  %v3562 = vrot.slane %v3560, 3
  %v3563 = vshll.u32 %v3143, 16
  %v3565 = vrot.slane %v3563, 4
  %v3566 = vor.u32 %v3562, %v3565
  %v3567 = vsel %vm1525, %v3558, %v3566
  %v3569 = vshrl.u32 %v3144, 16
  %v3571 = vrot.slane %v3569, 3
  %v3572 = vshll.u32 %v3144, 16
  %v3574 = vrot.slane %v3572, 4
  %v3575 = vor.u32 %v3571, %v3574
  %v3577 = vshrl.u32 %v3145, 16
  %v3579 = vrot.slane %v3577, 3
  %v3580 = vshll.u32 %v3145, 16
  %v3582 = vrot.slane %v3580, 4
  %v3583 = vor.u32 %v3579, %v3582
  %v3584 = vsel %vm1525, %v3575, %v3583
  %v3586 = vshrl.u32 %v3146, 16
  %v3588 = vrot.slane %v3586, 3
  %v3589 = vshll.u32 %v3146, 16
  %v3591 = vrot.slane %v3589, 4
  %v3592 = vor.u32 %v3588, %v3591
  %v3594 = vshrl.u32 %v3147, 16
  %v3596 = vrot.slane %v3594, 3
  %v3597 = vshll.u32 %v3147, 16
  %v3599 = vrot.slane %v3597, 4
  %v3600 = vor.u32 %v3596, %v3599
  %v3601 = vsel %vm1525, %v3592, %v3600
  %v3603 = vshrl.u32 %v3148, 16
  %v3605 = vrot.slane %v3603, 3
  %v3606 = vshll.u32 %v3148, 16
  %v3608 = vrot.slane %v3606, 4
  %v3609 = vor.u32 %v3605, %v3608
  %v3611 = vshrl.u32 %v3149, 16
  %v3613 = vrot.slane %v3611, 3
  %v3614 = vshll.u32 %v3149, 16
  %v3616 = vrot.slane %v3614, 4
  %v3617 = vor.u32 %v3613, %v3616
  %v3618 = vsel %vm1525, %v3609, %v3617
  %v3620 = vshrl.u32 %v3150, 16
  %v3622 = vrot.slane %v3620, 3
  %v3623 = vshll.u32 %v3150, 16
  %v3625 = vrot.slane %v3623, 4
  %v3626 = vor.u32 %v3622, %v3625
  %v3628 = vshrl.u32 %v3151, 16
  %v3630 = vrot.slane %v3628, 3
  %v3631 = vshll.u32 %v3151, 16
  %v3633 = vrot.slane %v3631, 4
  %v3634 = vor.u32 %v3630, %v3633
  %v3635 = vsel %vm1525, %v3626, %v3634
  %v3637 = vshrl.u32 %v3152, 16
  %v3639 = vrot.slane %v3637, 3
  %v3640 = vshll.u32 %v3152, 16
  %v3642 = vrot.slane %v3640, 4
  %v3643 = vor.u32 %v3639, %v3642
  %v3645 = vshrl.u32 %v3153, 16
  %v3647 = vrot.slane %v3645, 3
  %v3648 = vshll.u32 %v3153, 16
  %v3650 = vrot.slane %v3648, 4
  %v3651 = vor.u32 %v3647, %v3650
  %v3652 = vsel %vm1525, %v3643, %v3651
  %v3654 = vshrl.u32 %v3154, 16
  %v3656 = vrot.slane %v3654, 3
  %v3657 = vshll.u32 %v3154, 16
  %v3659 = vrot.slane %v3657, 4
  %v3660 = vor.u32 %v3656, %v3659
  %v3662 = vshrl.u32 %v3155, 16
  %v3664 = vrot.slane %v3662, 3
  %v3665 = vshll.u32 %v3155, 16
  %v3667 = vrot.slane %v3665, 4
  %v3668 = vor.u32 %v3664, %v3667
  %v3669 = vsel %vm1525, %v3660, %v3668
  %v3671 = vshrl.u32 %v3156, 16
  %v3673 = vrot.slane %v3671, 3
  %v3674 = vshll.u32 %v3156, 16
  %v3676 = vrot.slane %v3674, 4
  %v3677 = vor.u32 %v3673, %v3676
  %v3679 = vshrl.u32 %v3157, 16
  %v3681 = vrot.slane %v3679, 3
  %v3682 = vshll.u32 %v3157, 16
  %v3684 = vrot.slane %v3682, 4
  %v3685 = vor.u32 %v3681, %v3684
  %v3686 = vsel %vm1525, %v3677, %v3685
  %v3688 = vshrl.u32 %v3158, 16
  %v3690 = vrot.slane %v3688, 3
  %v3691 = vshll.u32 %v3158, 16
  %v3693 = vrot.slane %v3691, 4
  %v3694 = vor.u32 %v3690, %v3693
  %v3696 = vshrl.u32 %v3159, 16
  %v3698 = vrot.slane %v3696, 3
  %v3699 = vshll.u32 %v3159, 16
  %v3701 = vrot.slane %v3699, 4
  %v3702 = vor.u32 %v3698, %v3701
  %v3703 = vsel %vm1525, %v3694, %v3702
  %3736 = vst [vmem:[#allocation3 + $0x18] sm:$0xff] %v3176
  %3737 = vst [vmem:[#allocation3 + $0x60] sm:$0xff] %v3193
  %3738 = vst [vmem:[#allocation3 + $0xa8] sm:$0xff] %v3210
  %3739 = vst [vmem:[#allocation3 + $0xf0] sm:$0xff] %v3227
  %3740 = vst [vmem:[#allocation3 + $0x138] sm:$0xff] %v3244
  %3741 = vst [vmem:[#allocation3 + $0x180] sm:$0xff] %v3261
  %3742 = vst [vmem:[#allocation3 + $0x1c8] sm:$0xff] %v3278
  %3743 = vst [vmem:[#allocation3 + $0x210] sm:$0xff] %v3295
  %3744 = vst [vmem:[#allocation3 + $0x258] sm:$0xff] %v3312
  %3745 = vst [vmem:[#allocation3 + $0x2a0] sm:$0xff] %v3329
  %3746 = vst [vmem:[#allocation3 + $0x2e8] sm:$0xff] %v3346
  %3747 = vst [vmem:[#allocation3 + $0x330] sm:$0xff] %v3363
  %3748 = vst [vmem:[#allocation3 + $0x378] sm:$0xff] %v3380
  %3749 = vst [vmem:[#allocation3 + $0x3c0] sm:$0xff] %v3397
  %3750 = vst [vmem:[#allocation3 + $0x408] sm:$0xff] %v3414
  %3751 = vst [vmem:[#allocation3 + $0x450] sm:$0xff] %v3431
  %3752 = vst [vmem:[#allocation3 + $0x498] sm:$0xff] %v3448
  %3753 = vst [vmem:[#allocation3 + $0x4e0] sm:$0xff] %v3465
  %3754 = vst [vmem:[#allocation3 + $0x528] sm:$0xff] %v3482
  %3755 = vst [vmem:[#allocation3 + $0x570] sm:$0xff] %v3499
  %3756 = vst [vmem:[#allocation3 + $0x5b8] sm:$0xff] %v3516
  %3757 = vst [vmem:[#allocation3 + $0x600] sm:$0xff] %v3533
  %3758 = vst [vmem:[#allocation3 + $0x648] sm:$0xff] %v3550
  %3759 = vst [vmem:[#allocation3 + $0x690] sm:$0xff] %v3567
  %3760 = vst [vmem:[#allocation3 + $0x6d8] sm:$0xff] %v3584
  %3761 = vst [vmem:[#allocation3 + $0x720] sm:$0xff] %v3601
  %3762 = vst [vmem:[#allocation3 + $0x768] sm:$0xff] %v3618
  %3763 = vst [vmem:[#allocation3 + $0x7b0] sm:$0xff] %v3635
  %3764 = vst [vmem:[#allocation3 + $0x7f8] sm:$0xff] %v3652
  %3765 = vst [vmem:[#allocation3 + $0x840] sm:$0xff] %v3669
  %3766 = vst [vmem:[#allocation3 + $0x888] sm:$0xff] %v3686
  %3767 = vst [vmem:[#allocation3 + $0x8d0] sm:$0xff] %v3703
  %v3768 = vld [vmem:[%s1204] sm:$0xf0]
  %v3769 = vld [vmem:[%s1204 + $0x8] sm:$0xf]
  %v3770 = vld [vmem:[%s1204 + $0x10] sm:$0xf0]
  %v3771 = vld [vmem:[%s1204 + $0x18] sm:$0xf]
  %v3772 = vld [vmem:[%s1204 + $0x20] sm:$0xf0]
  %v3773 = vld [vmem:[%s1204 + $0x28] sm:$0xf]
  %v3774 = vld [vmem:[%s1204 + $0x30] sm:$0xf0]
  %v3775 = vld [vmem:[%s1204 + $0x38] sm:$0xf]
  %v3776 = vld [vmem:[%s1204 + $0x40] sm:$0xf0]
  %v3777 = vld [vmem:[%s1204 + $0x48] sm:$0xf]
  %v3778 = vld [vmem:[%s1204 + $0x50] sm:$0xf0]
  %v3779 = vld [vmem:[%s1204 + $0x58] sm:$0xf]
  %v3780 = vld [vmem:[%s1204 + $0x60] sm:$0xf0]
  %v3781 = vld [vmem:[%s1204 + $0x68] sm:$0xf]
  %v3782 = vld [vmem:[%s1204 + $0x70] sm:$0xf0]
  %v3783 = vld [vmem:[%s1204 + $0x78] sm:$0xf]
  %v3784 = vld [vmem:[%s1204 + $0x80] sm:$0xf0]
  %v3785 = vld [vmem:[%s1204 + $0x88] sm:$0xf]
  %v3786 = vld [vmem:[%s1204 + $0x90] sm:$0xf0]
  %v3787 = vld [vmem:[%s1204 + $0x98] sm:$0xf]
  %v3788 = vld [vmem:[%s1204 + $0xa0] sm:$0xf0]
  %v3789 = vld [vmem:[%s1204 + $0xa8] sm:$0xf]
  %v3790 = vld [vmem:[%s1204 + $0xb0] sm:$0xf0]
  %v3791 = vld [vmem:[%s1204 + $0xb8] sm:$0xf]
  %v3792 = vld [vmem:[%s1204 + $0xc0] sm:$0xf0]
  %v3793 = vld [vmem:[%s1204 + $0xc8] sm:$0xf]
  %v3794 = vld [vmem:[%s1204 + $0xd0] sm:$0xf0]
  %v3795 = vld [vmem:[%s1204 + $0xd8] sm:$0xf]
  %v3796 = vld [vmem:[%s1204 + $0xe0] sm:$0xf0]
  %v3797 = vld [vmem:[%s1204 + $0xe8] sm:$0xf]
  %v3798 = vld [vmem:[%s1204 + $0xf0] sm:$0xf0]
  %v3799 = vld [vmem:[%s1204 + $0xf8] sm:$0xf]
  %v3800 = vld [vmem:[%s1204 + $0x120] sm:$0xf0]
  %v3801 = vld [vmem:[%s1204 + $0x128] sm:$0xf]
  %v3802 = vld [vmem:[%s1204 + $0x130] sm:$0xf0]
  %v3803 = vld [vmem:[%s1204 + $0x138] sm:$0xf]
  %v3804 = vld [vmem:[%s1204 + $0x140] sm:$0xf0]
  %v3805 = vld [vmem:[%s1204 + $0x148] sm:$0xf]
  %v3806 = vld [vmem:[%s1204 + $0x150] sm:$0xf0]
  %v3807 = vld [vmem:[%s1204 + $0x158] sm:$0xf]
  %v3808 = vld [vmem:[%s1204 + $0x160] sm:$0xf0]
  %v3809 = vld [vmem:[%s1204 + $0x168] sm:$0xf]
  %v3810 = vld [vmem:[%s1204 + $0x170] sm:$0xf0]
  %v3811 = vld [vmem:[%s1204 + $0x178] sm:$0xf]
  %v3812 = vld [vmem:[%s1204 + $0x180] sm:$0xf0]
  %v3813 = vld [vmem:[%s1204 + $0x188] sm:$0xf]
  %v3814 = vld [vmem:[%s1204 + $0x190] sm:$0xf0]
  %v3815 = vld [vmem:[%s1204 + $0x198] sm:$0xf]
  %v3816 = vld [vmem:[%s1204 + $0x1a0] sm:$0xf0]
  %v3817 = vld [vmem:[%s1204 + $0x1a8] sm:$0xf]
  %v3818 = vld [vmem:[%s1204 + $0x1b0] sm:$0xf0]
  %v3819 = vld [vmem:[%s1204 + $0x1b8] sm:$0xf]
  %v3820 = vld [vmem:[%s1204 + $0x1c0] sm:$0xf0]
  %v3821 = vld [vmem:[%s1204 + $0x1c8] sm:$0xf]
  %v3822 = vld [vmem:[%s1204 + $0x1d0] sm:$0xf0]
  %v3823 = vld [vmem:[%s1204 + $0x1d8] sm:$0xf]
  %v3824 = vld [vmem:[%s1204 + $0x1e0] sm:$0xf0]
  %v3825 = vld [vmem:[%s1204 + $0x1e8] sm:$0xf]
  %v3826 = vld [vmem:[%s1204 + $0x1f0] sm:$0xf0]
  %v3827 = vld [vmem:[%s1204 + $0x1f8] sm:$0xf]
  %v3828 = vld [vmem:[%s1204 + $0x200] sm:$0xf0]
  %v3829 = vld [vmem:[%s1204 + $0x208] sm:$0xf]
  %v3830 = vld [vmem:[%s1204 + $0x210] sm:$0xf0]
  %v3831 = vld [vmem:[%s1204 + $0x218] sm:$0xf]
  %v3896 = vrot.slane %v3768, 4
  %v3897 = vrot.slane %v3769, 4
  %v3898 = vsel %vm2262, %v3896, %v3897
  %v3899 = vrot.slane %v3770, 4
  %v3900 = vrot.slane %v3771, 4
  %v3901 = vsel %vm2262, %v3899, %v3900
  %v3902 = vrot.slane %v3772, 4
  %v3903 = vrot.slane %v3773, 4
  %v3904 = vsel %vm2262, %v3902, %v3903
  %v3905 = vrot.slane %v3774, 4
  %v3906 = vrot.slane %v3775, 4
  %v3907 = vsel %vm2262, %v3905, %v3906
  %v3908 = vrot.slane %v3776, 4
  %v3909 = vrot.slane %v3777, 4
  %v3910 = vsel %vm2262, %v3908, %v3909
  %v3911 = vrot.slane %v3778, 4
  %v3912 = vrot.slane %v3779, 4
  %v3913 = vsel %vm2262, %v3911, %v3912
  %v3914 = vrot.slane %v3780, 4
  %v3915 = vrot.slane %v3781, 4
  %v3916 = vsel %vm2262, %v3914, %v3915
  %v3917 = vrot.slane %v3782, 4
  %v3918 = vrot.slane %v3783, 4
  %v3919 = vsel %vm2262, %v3917, %v3918
  %v3920 = vrot.slane %v3784, 4
  %v3921 = vrot.slane %v3785, 4
  %v3922 = vsel %vm2262, %v3920, %v3921
  %v3923 = vrot.slane %v3786, 4
  %v3924 = vrot.slane %v3787, 4
  %v3925 = vsel %vm2262, %v3923, %v3924
  %v3926 = vrot.slane %v3788, 4
  %v3927 = vrot.slane %v3789, 4
  %v3928 = vsel %vm2262, %v3926, %v3927
  %v3929 = vrot.slane %v3790, 4
  %v3930 = vrot.slane %v3791, 4
  %v3931 = vsel %vm2262, %v3929, %v3930
  %v3932 = vrot.slane %v3792, 4
  %v3933 = vrot.slane %v3793, 4
  %v3934 = vsel %vm2262, %v3932, %v3933
  %v3935 = vrot.slane %v3794, 4
  %v3936 = vrot.slane %v3795, 4
  %v3937 = vsel %vm2262, %v3935, %v3936
  %v3938 = vrot.slane %v3796, 4
  %v3939 = vrot.slane %v3797, 4
  %v3940 = vsel %vm2262, %v3938, %v3939
  %v3941 = vrot.slane %v3798, 4
  %v3942 = vrot.slane %v3799, 4
  %v3943 = vsel %vm2262, %v3941, %v3942
  %v3944 = vrot.slane %v3800, 4
  %v3945 = vrot.slane %v3801, 4
  %v3946 = vsel %vm2262, %v3944, %v3945
  %v3947 = vrot.slane %v3802, 4
  %v3948 = vrot.slane %v3803, 4
  %v3949 = vsel %vm2262, %v3947, %v3948
  %v3950 = vrot.slane %v3804, 4
  %v3951 = vrot.slane %v3805, 4
  %v3952 = vsel %vm2262, %v3950, %v3951
  %v3953 = vrot.slane %v3806, 4
  %v3954 = vrot.slane %v3807, 4
  %v3955 = vsel %vm2262, %v3953, %v3954
  %v3956 = vrot.slane %v3808, 4
  %v3957 = vrot.slane %v3809, 4
  %v3958 = vsel %vm2262, %v3956, %v3957
  %v3959 = vrot.slane %v3810, 4
  %v3960 = vrot.slane %v3811, 4
  %v3961 = vsel %vm2262, %v3959, %v3960
  %v3962 = vrot.slane %v3812, 4
  %v3963 = vrot.slane %v3813, 4
  %v3964 = vsel %vm2262, %v3962, %v3963
  %v3965 = vrot.slane %v3814, 4
  %v3966 = vrot.slane %v3815, 4
  %v3967 = vsel %vm2262, %v3965, %v3966
  %v3968 = vrot.slane %v3816, 4
  %v3969 = vrot.slane %v3817, 4
  %v3970 = vsel %vm2262, %v3968, %v3969
  %v3971 = vrot.slane %v3818, 4
  %v3972 = vrot.slane %v3819, 4
  %v3973 = vsel %vm2262, %v3971, %v3972
  %v3974 = vrot.slane %v3820, 4
  %v3975 = vrot.slane %v3821, 4
  %v3976 = vsel %vm2262, %v3974, %v3975
  %v3977 = vrot.slane %v3822, 4
  %v3978 = vrot.slane %v3823, 4
  %v3979 = vsel %vm2262, %v3977, %v3978
  %v3980 = vrot.slane %v3824, 4
  %v3981 = vrot.slane %v3825, 4
  %v3982 = vsel %vm2262, %v3980, %v3981
  %v3983 = vrot.slane %v3826, 4
  %v3984 = vrot.slane %v3827, 4
  %v3985 = vsel %vm2262, %v3983, %v3984
  %v3986 = vrot.slane %v3828, 4
  %v3987 = vrot.slane %v3829, 4
  %v3988 = vsel %vm2262, %v3986, %v3987
  %v3989 = vrot.slane %v3830, 4
  %v3990 = vrot.slane %v3831, 4
  %v3991 = vsel %vm2262, %v3989, %v3990
  %4024 = vst [vmem:[#allocation3 + $0x20] sm:$0xff] %v3898
  %4025 = vst [vmem:[#allocation3 + $0x68] sm:$0xff] %v3901
  %4026 = vst [vmem:[#allocation3 + $0xb0] sm:$0xff] %v3904
  %4027 = vst [vmem:[#allocation3 + $0xf8] sm:$0xff] %v3907
  %4028 = vst [vmem:[#allocation3 + $0x140] sm:$0xff] %v3910
  %4029 = vst [vmem:[#allocation3 + $0x188] sm:$0xff] %v3913
  %4030 = vst [vmem:[#allocation3 + $0x1d0] sm:$0xff] %v3916
  %4031 = vst [vmem:[#allocation3 + $0x218] sm:$0xff] %v3919
  %4032 = vst [vmem:[#allocation3 + $0x260] sm:$0xff] %v3922
  %4033 = vst [vmem:[#allocation3 + $0x2a8] sm:$0xff] %v3925
  %4034 = vst [vmem:[#allocation3 + $0x2f0] sm:$0xff] %v3928
  %4035 = vst [vmem:[#allocation3 + $0x338] sm:$0xff] %v3931
  %4036 = vst [vmem:[#allocation3 + $0x380] sm:$0xff] %v3934
  %4037 = vst [vmem:[#allocation3 + $0x3c8] sm:$0xff] %v3937
  %4038 = vst [vmem:[#allocation3 + $0x410] sm:$0xff] %v3940
  %4039 = vst [vmem:[#allocation3 + $0x458] sm:$0xff] %v3943
  %4040 = vst [vmem:[#allocation3 + $0x4a0] sm:$0xff] %v3946
  %4041 = vst [vmem:[#allocation3 + $0x4e8] sm:$0xff] %v3949
  %4042 = vst [vmem:[#allocation3 + $0x530] sm:$0xff] %v3952
  %4043 = vst [vmem:[#allocation3 + $0x578] sm:$0xff] %v3955
  %4044 = vst [vmem:[#allocation3 + $0x5c0] sm:$0xff] %v3958
  %4045 = vst [vmem:[#allocation3 + $0x608] sm:$0xff] %v3961
  %4046 = vst [vmem:[#allocation3 + $0x650] sm:$0xff] %v3964
  %4047 = vst [vmem:[#allocation3 + $0x698] sm:$0xff] %v3967
  %4048 = vst [vmem:[#allocation3 + $0x6e0] sm:$0xff] %v3970
  %4049 = vst [vmem:[#allocation3 + $0x728] sm:$0xff] %v3973
  %4050 = vst [vmem:[#allocation3 + $0x770] sm:$0xff] %v3976
  %4051 = vst [vmem:[#allocation3 + $0x7b8] sm:$0xff] %v3979
  %4052 = vst [vmem:[#allocation3 + $0x800] sm:$0xff] %v3982
  %4053 = vst [vmem:[#allocation3 + $0x848] sm:$0xff] %v3985
  %4054 = vst [vmem:[#allocation3 + $0x890] sm:$0xff] %v3988
  %4055 = vst [vmem:[#allocation3 + $0x8d8] sm:$0xff] %v3991
  %v4056 = vld [vmem:[%s1204] sm:$0xf0]
  %v4057 = vld [vmem:[%s1204 + $0x8] sm:$0x1f]
  %v4058 = vld [vmem:[%s1204 + $0x10] sm:$0xf0]
  %v4059 = vld [vmem:[%s1204 + $0x18] sm:$0x1f]
  %v4060 = vld [vmem:[%s1204 + $0x20] sm:$0xf0]
  %v4061 = vld [vmem:[%s1204 + $0x28] sm:$0x1f]
  %v4062 = vld [vmem:[%s1204 + $0x30] sm:$0xf0]
  %v4063 = vld [vmem:[%s1204 + $0x38] sm:$0x1f]
  %v4064 = vld [vmem:[%s1204 + $0x40] sm:$0xf0]
  %v4065 = vld [vmem:[%s1204 + $0x48] sm:$0x1f]
  %v4066 = vld [vmem:[%s1204 + $0x50] sm:$0xf0]
  %v4067 = vld [vmem:[%s1204 + $0x58] sm:$0x1f]
  %v4068 = vld [vmem:[%s1204 + $0x60] sm:$0xf0]
  %v4069 = vld [vmem:[%s1204 + $0x68] sm:$0x1f]
  %v4070 = vld [vmem:[%s1204 + $0x70] sm:$0xf0]
  %v4071 = vld [vmem:[%s1204 + $0x78] sm:$0x1f]
  %v4072 = vld [vmem:[%s1204 + $0x80] sm:$0xf0]
  %v4073 = vld [vmem:[%s1204 + $0x88] sm:$0x1f]
  %v4074 = vld [vmem:[%s1204 + $0x90] sm:$0xf0]
  %v4075 = vld [vmem:[%s1204 + $0x98] sm:$0x1f]
  %v4076 = vld [vmem:[%s1204 + $0xa0] sm:$0xf0]
  %v4077 = vld [vmem:[%s1204 + $0xa8] sm:$0x1f]
  %v4078 = vld [vmem:[%s1204 + $0xb0] sm:$0xf0]
  %v4079 = vld [vmem:[%s1204 + $0xb8] sm:$0x1f]
  %v4080 = vld [vmem:[%s1204 + $0xc0] sm:$0xf0]
  %v4081 = vld [vmem:[%s1204 + $0xc8] sm:$0x1f]
  %v4082 = vld [vmem:[%s1204 + $0xd0] sm:$0xf0]
  %v4083 = vld [vmem:[%s1204 + $0xd8] sm:$0x1f]
  %v4084 = vld [vmem:[%s1204 + $0xe0] sm:$0xf0]
  %v4085 = vld [vmem:[%s1204 + $0xe8] sm:$0x1f]
  %v4086 = vld [vmem:[%s1204 + $0xf0] sm:$0xf0]
  %v4087 = vld [vmem:[%s1204 + $0xf8] sm:$0x1f]
  %v4088 = vld [vmem:[%s1204 + $0x120] sm:$0xf0]
  %v4089 = vld [vmem:[%s1204 + $0x128] sm:$0x1f]
  %v4090 = vld [vmem:[%s1204 + $0x130] sm:$0xf0]
  %v4091 = vld [vmem:[%s1204 + $0x138] sm:$0x1f]
  %v4092 = vld [vmem:[%s1204 + $0x140] sm:$0xf0]
  %v4093 = vld [vmem:[%s1204 + $0x148] sm:$0x1f]
  %v4094 = vld [vmem:[%s1204 + $0x150] sm:$0xf0]
  %v4095 = vld [vmem:[%s1204 + $0x158] sm:$0x1f]
  %v4096 = vld [vmem:[%s1204 + $0x160] sm:$0xf0]
  %v4097 = vld [vmem:[%s1204 + $0x168] sm:$0x1f]
  %v4098 = vld [vmem:[%s1204 + $0x170] sm:$0xf0]
  %v4099 = vld [vmem:[%s1204 + $0x178] sm:$0x1f]
  %v4100 = vld [vmem:[%s1204 + $0x180] sm:$0xf0]
  %v4101 = vld [vmem:[%s1204 + $0x188] sm:$0x1f]
  %v4102 = vld [vmem:[%s1204 + $0x190] sm:$0xf0]
  %v4103 = vld [vmem:[%s1204 + $0x198] sm:$0x1f]
  %v4104 = vld [vmem:[%s1204 + $0x1a0] sm:$0xf0]
  %v4105 = vld [vmem:[%s1204 + $0x1a8] sm:$0x1f]
  %v4106 = vld [vmem:[%s1204 + $0x1b0] sm:$0xf0]
  %v4107 = vld [vmem:[%s1204 + $0x1b8] sm:$0x1f]
  %v4108 = vld [vmem:[%s1204 + $0x1c0] sm:$0xf0]
  %v4109 = vld [vmem:[%s1204 + $0x1c8] sm:$0x1f]
  %v4110 = vld [vmem:[%s1204 + $0x1d0] sm:$0xf0]
  %v4111 = vld [vmem:[%s1204 + $0x1d8] sm:$0x1f]
  %v4112 = vld [vmem:[%s1204 + $0x1e0] sm:$0xf0]
  %v4113 = vld [vmem:[%s1204 + $0x1e8] sm:$0x1f]
  %v4114 = vld [vmem:[%s1204 + $0x1f0] sm:$0xf0]
  %v4115 = vld [vmem:[%s1204 + $0x1f8] sm:$0x1f]
  %v4116 = vld [vmem:[%s1204 + $0x200] sm:$0xf0]
  %v4117 = vld [vmem:[%s1204 + $0x208] sm:$0x1f]
  %v4118 = vld [vmem:[%s1204 + $0x210] sm:$0xf0]
  %v4119 = vld [vmem:[%s1204 + $0x218] sm:$0x1f]
  %v4121 = vshrl.u32 %v4056, 16
  %v4123 = vrot.slane %v4121, 4
  %v4124 = vshll.u32 %v4056, 16
  %v4126 = vrot.slane %v4124, 5
  %v4127 = vor.u32 %v4123, %v4126
  %v4129 = vshrl.u32 %v4057, 16
  %v4131 = vrot.slane %v4129, 4
  %v4132 = vshll.u32 %v4057, 16
  %v4134 = vrot.slane %v4132, 5
  %v4135 = vor.u32 %v4131, %v4134
  %v4136 = vsel %vm2487, %v4127, %v4135
  %v4138 = vshrl.u32 %v4058, 16
  %v4140 = vrot.slane %v4138, 4
  %v4141 = vshll.u32 %v4058, 16
  %v4143 = vrot.slane %v4141, 5
  %v4144 = vor.u32 %v4140, %v4143
  %v4146 = vshrl.u32 %v4059, 16
  %v4148 = vrot.slane %v4146, 4
  %v4149 = vshll.u32 %v4059, 16
  %v4151 = vrot.slane %v4149, 5
  %v4152 = vor.u32 %v4148, %v4151
  %v4153 = vsel %vm2487, %v4144, %v4152
  %v4155 = vshrl.u32 %v4060, 16
  %v4157 = vrot.slane %v4155, 4
  %v4158 = vshll.u32 %v4060, 16
  %v4160 = vrot.slane %v4158, 5
  %v4161 = vor.u32 %v4157, %v4160
  %v4163 = vshrl.u32 %v4061, 16
  %v4165 = vrot.slane %v4163, 4
  %v4166 = vshll.u32 %v4061, 16
  %v4168 = vrot.slane %v4166, 5
  %v4169 = vor.u32 %v4165, %v4168
  %v4170 = vsel %vm2487, %v4161, %v4169
  %v4172 = vshrl.u32 %v4062, 16
  %v4174 = vrot.slane %v4172, 4
  %v4175 = vshll.u32 %v4062, 16
  %v4177 = vrot.slane %v4175, 5
  %v4178 = vor.u32 %v4174, %v4177
  %v4180 = vshrl.u32 %v4063, 16
  %v4182 = vrot.slane %v4180, 4
  %v4183 = vshll.u32 %v4063, 16
  %v4185 = vrot.slane %v4183, 5
  %v4186 = vor.u32 %v4182, %v4185
  %v4187 = vsel %vm2487, %v4178, %v4186
  %v4189 = vshrl.u32 %v4064, 16
  %v4191 = vrot.slane %v4189, 4
  %v4192 = vshll.u32 %v4064, 16
  %v4194 = vrot.slane %v4192, 5
  %v4195 = vor.u32 %v4191, %v4194
  %v4197 = vshrl.u32 %v4065, 16
  %v4199 = vrot.slane %v4197, 4
  %v4200 = vshll.u32 %v4065, 16
  %v4202 = vrot.slane %v4200, 5
  %v4203 = vor.u32 %v4199, %v4202
  %v4204 = vsel %vm2487, %v4195, %v4203
  %v4206 = vshrl.u32 %v4066, 16
  %v4208 = vrot.slane %v4206, 4
  %v4209 = vshll.u32 %v4066, 16
  %v4211 = vrot.slane %v4209, 5
  %v4212 = vor.u32 %v4208, %v4211
  %v4214 = vshrl.u32 %v4067, 16
  %v4216 = vrot.slane %v4214, 4
  %v4217 = vshll.u32 %v4067, 16
  %v4219 = vrot.slane %v4217, 5
  %v4220 = vor.u32 %v4216, %v4219
  %v4221 = vsel %vm2487, %v4212, %v4220
  %v4223 = vshrl.u32 %v4068, 16
  %v4225 = vrot.slane %v4223, 4
  %v4226 = vshll.u32 %v4068, 16
  %v4228 = vrot.slane %v4226, 5
  %v4229 = vor.u32 %v4225, %v4228
  %v4231 = vshrl.u32 %v4069, 16
  %v4233 = vrot.slane %v4231, 4
  %v4234 = vshll.u32 %v4069, 16
  %v4236 = vrot.slane %v4234, 5
  %v4237 = vor.u32 %v4233, %v4236
  %v4238 = vsel %vm2487, %v4229, %v4237
  %v4240 = vshrl.u32 %v4070, 16
  %v4242 = vrot.slane %v4240, 4
  %v4243 = vshll.u32 %v4070, 16
  %v4245 = vrot.slane %v4243, 5
  %v4246 = vor.u32 %v4242, %v4245
  %v4248 = vshrl.u32 %v4071, 16
  %v4250 = vrot.slane %v4248, 4
  %v4251 = vshll.u32 %v4071, 16
  %v4253 = vrot.slane %v4251, 5
  %v4254 = vor.u32 %v4250, %v4253
  %v4255 = vsel %vm2487, %v4246, %v4254
  %v4257 = vshrl.u32 %v4072, 16
  %v4259 = vrot.slane %v4257, 4
  %v4260 = vshll.u32 %v4072, 16
  %v4262 = vrot.slane %v4260, 5
  %v4263 = vor.u32 %v4259, %v4262
  %v4265 = vshrl.u32 %v4073, 16
  %v4267 = vrot.slane %v4265, 4
  %v4268 = vshll.u32 %v4073, 16
  %v4270 = vrot.slane %v4268, 5
  %v4271 = vor.u32 %v4267, %v4270
  %v4272 = vsel %vm2487, %v4263, %v4271
  %v4274 = vshrl.u32 %v4074, 16
  %v4276 = vrot.slane %v4274, 4
  %v4277 = vshll.u32 %v4074, 16
  %v4279 = vrot.slane %v4277, 5
  %v4280 = vor.u32 %v4276, %v4279
  %v4282 = vshrl.u32 %v4075, 16
  %v4284 = vrot.slane %v4282, 4
  %v4285 = vshll.u32 %v4075, 16
  %v4287 = vrot.slane %v4285, 5
  %v4288 = vor.u32 %v4284, %v4287
  %v4289 = vsel %vm2487, %v4280, %v4288
  %v4291 = vshrl.u32 %v4076, 16
  %v4293 = vrot.slane %v4291, 4
  %v4294 = vshll.u32 %v4076, 16
  %v4296 = vrot.slane %v4294, 5
  %v4297 = vor.u32 %v4293, %v4296
  %v4299 = vshrl.u32 %v4077, 16
  %v4301 = vrot.slane %v4299, 4
  %v4302 = vshll.u32 %v4077, 16
  %v4304 = vrot.slane %v4302, 5
  %v4305 = vor.u32 %v4301, %v4304
  %v4306 = vsel %vm2487, %v4297, %v4305
  %v4308 = vshrl.u32 %v4078, 16
  %v4310 = vrot.slane %v4308, 4
  %v4311 = vshll.u32 %v4078, 16
  %v4313 = vrot.slane %v4311, 5
  %v4314 = vor.u32 %v4310, %v4313
  %v4316 = vshrl.u32 %v4079, 16
  %v4318 = vrot.slane %v4316, 4
  %v4319 = vshll.u32 %v4079, 16
  %v4321 = vrot.slane %v4319, 5
  %v4322 = vor.u32 %v4318, %v4321
  %v4323 = vsel %vm2487, %v4314, %v4322
  %v4325 = vshrl.u32 %v4080, 16
  %v4327 = vrot.slane %v4325, 4
  %v4328 = vshll.u32 %v4080, 16
  %v4330 = vrot.slane %v4328, 5
  %v4331 = vor.u32 %v4327, %v4330
  %v4333 = vshrl.u32 %v4081, 16
  %v4335 = vrot.slane %v4333, 4
  %v4336 = vshll.u32 %v4081, 16
  %v4338 = vrot.slane %v4336, 5
  %v4339 = vor.u32 %v4335, %v4338
  %v4340 = vsel %vm2487, %v4331, %v4339
  %v4342 = vshrl.u32 %v4082, 16
  %v4344 = vrot.slane %v4342, 4
  %v4345 = vshll.u32 %v4082, 16
  %v4347 = vrot.slane %v4345, 5
  %v4348 = vor.u32 %v4344, %v4347
  %v4350 = vshrl.u32 %v4083, 16
  %v4352 = vrot.slane %v4350, 4
  %v4353 = vshll.u32 %v4083, 16
  %v4355 = vrot.slane %v4353, 5
  %v4356 = vor.u32 %v4352, %v4355
  %v4357 = vsel %vm2487, %v4348, %v4356
  %v4359 = vshrl.u32 %v4084, 16
  %v4361 = vrot.slane %v4359, 4
  %v4362 = vshll.u32 %v4084, 16
  %v4364 = vrot.slane %v4362, 5
  %v4365 = vor.u32 %v4361, %v4364
  %v4367 = vshrl.u32 %v4085, 16
  %v4369 = vrot.slane %v4367, 4
  %v4370 = vshll.u32 %v4085, 16
  %v4372 = vrot.slane %v4370, 5
  %v4373 = vor.u32 %v4369, %v4372
  %v4374 = vsel %vm2487, %v4365, %v4373
  %v4376 = vshrl.u32 %v4086, 16
  %v4378 = vrot.slane %v4376, 4
  %v4379 = vshll.u32 %v4086, 16
  %v4381 = vrot.slane %v4379, 5
  %v4382 = vor.u32 %v4378, %v4381
  %v4384 = vshrl.u32 %v4087, 16
  %v4386 = vrot.slane %v4384, 4
  %v4387 = vshll.u32 %v4087, 16
  %v4389 = vrot.slane %v4387, 5
  %v4390 = vor.u32 %v4386, %v4389
  %v4391 = vsel %vm2487, %v4382, %v4390
  %v4393 = vshrl.u32 %v4088, 16
  %v4395 = vrot.slane %v4393, 4
  %v4396 = vshll.u32 %v4088, 16
  %v4398 = vrot.slane %v4396, 5
  %v4399 = vor.u32 %v4395, %v4398
  %v4401 = vshrl.u32 %v4089, 16
  %v4403 = vrot.slane %v4401, 4
  %v4404 = vshll.u32 %v4089, 16
  %v4406 = vrot.slane %v4404, 5
  %v4407 = vor.u32 %v4403, %v4406
  %v4408 = vsel %vm2487, %v4399, %v4407
  %v4410 = vshrl.u32 %v4090, 16
  %v4412 = vrot.slane %v4410, 4
  %v4413 = vshll.u32 %v4090, 16
  %v4415 = vrot.slane %v4413, 5
  %v4416 = vor.u32 %v4412, %v4415
  %v4418 = vshrl.u32 %v4091, 16
  %v4420 = vrot.slane %v4418, 4
  %v4421 = vshll.u32 %v4091, 16
  %v4423 = vrot.slane %v4421, 5
  %v4424 = vor.u32 %v4420, %v4423
  %v4425 = vsel %vm2487, %v4416, %v4424
  %v4427 = vshrl.u32 %v4092, 16
  %v4429 = vrot.slane %v4427, 4
  %v4430 = vshll.u32 %v4092, 16
  %v4432 = vrot.slane %v4430, 5
  %v4433 = vor.u32 %v4429, %v4432
  %v4435 = vshrl.u32 %v4093, 16
  %v4437 = vrot.slane %v4435, 4
  %v4438 = vshll.u32 %v4093, 16
  %v4440 = vrot.slane %v4438, 5
  %v4441 = vor.u32 %v4437, %v4440
  %v4442 = vsel %vm2487, %v4433, %v4441
  %v4444 = vshrl.u32 %v4094, 16
  %v4446 = vrot.slane %v4444, 4
  %v4447 = vshll.u32 %v4094, 16
  %v4449 = vrot.slane %v4447, 5
  %v4450 = vor.u32 %v4446, %v4449
  %v4452 = vshrl.u32 %v4095, 16
  %v4454 = vrot.slane %v4452, 4
  %v4455 = vshll.u32 %v4095, 16
  %v4457 = vrot.slane %v4455, 5
  %v4458 = vor.u32 %v4454, %v4457
  %v4459 = vsel %vm2487, %v4450, %v4458
  %v4461 = vshrl.u32 %v4096, 16
  %v4463 = vrot.slane %v4461, 4
  %v4464 = vshll.u32 %v4096, 16
  %v4466 = vrot.slane %v4464, 5
  %v4467 = vor.u32 %v4463, %v4466
  %v4469 = vshrl.u32 %v4097, 16
  %v4471 = vrot.slane %v4469, 4
  %v4472 = vshll.u32 %v4097, 16
  %v4474 = vrot.slane %v4472, 5
  %v4475 = vor.u32 %v4471, %v4474
  %v4476 = vsel %vm2487, %v4467, %v4475
  %v4478 = vshrl.u32 %v4098, 16
  %v4480 = vrot.slane %v4478, 4
  %v4481 = vshll.u32 %v4098, 16
  %v4483 = vrot.slane %v4481, 5
  %v4484 = vor.u32 %v4480, %v4483
  %v4486 = vshrl.u32 %v4099, 16
  %v4488 = vrot.slane %v4486, 4
  %v4489 = vshll.u32 %v4099, 16
  %v4491 = vrot.slane %v4489, 5
  %v4492 = vor.u32 %v4488, %v4491
  %v4493 = vsel %vm2487, %v4484, %v4492
  %v4495 = vshrl.u32 %v4100, 16
  %v4497 = vrot.slane %v4495, 4
  %v4498 = vshll.u32 %v4100, 16
  %v4500 = vrot.slane %v4498, 5
  %v4501 = vor.u32 %v4497, %v4500
  %v4503 = vshrl.u32 %v4101, 16
  %v4505 = vrot.slane %v4503, 4
  %v4506 = vshll.u32 %v4101, 16
  %v4508 = vrot.slane %v4506, 5
  %v4509 = vor.u32 %v4505, %v4508
  %v4510 = vsel %vm2487, %v4501, %v4509
  %v4512 = vshrl.u32 %v4102, 16
  %v4514 = vrot.slane %v4512, 4
  %v4515 = vshll.u32 %v4102, 16
  %v4517 = vrot.slane %v4515, 5
  %v4518 = vor.u32 %v4514, %v4517
  %v4520 = vshrl.u32 %v4103, 16
  %v4522 = vrot.slane %v4520, 4
  %v4523 = vshll.u32 %v4103, 16
  %v4525 = vrot.slane %v4523, 5
  %v4526 = vor.u32 %v4522, %v4525
  %v4527 = vsel %vm2487, %v4518, %v4526
  %v4529 = vshrl.u32 %v4104, 16
  %v4531 = vrot.slane %v4529, 4
  %v4532 = vshll.u32 %v4104, 16
  %v4534 = vrot.slane %v4532, 5
  %v4535 = vor.u32 %v4531, %v4534
  %v4537 = vshrl.u32 %v4105, 16
  %v4539 = vrot.slane %v4537, 4
  %v4540 = vshll.u32 %v4105, 16
  %v4542 = vrot.slane %v4540, 5
  %v4543 = vor.u32 %v4539, %v4542
  %v4544 = vsel %vm2487, %v4535, %v4543
  %v4546 = vshrl.u32 %v4106, 16
  %v4548 = vrot.slane %v4546, 4
  %v4549 = vshll.u32 %v4106, 16
  %v4551 = vrot.slane %v4549, 5
  %v4552 = vor.u32 %v4548, %v4551
  %v4554 = vshrl.u32 %v4107, 16
  %v4556 = vrot.slane %v4554, 4
  %v4557 = vshll.u32 %v4107, 16
  %v4559 = vrot.slane %v4557, 5
  %v4560 = vor.u32 %v4556, %v4559
  %v4561 = vsel %vm2487, %v4552, %v4560
  %v4563 = vshrl.u32 %v4108, 16
  %v4565 = vrot.slane %v4563, 4
  %v4566 = vshll.u32 %v4108, 16
  %v4568 = vrot.slane %v4566, 5
  %v4569 = vor.u32 %v4565, %v4568
  %v4571 = vshrl.u32 %v4109, 16
  %v4573 = vrot.slane %v4571, 4
  %v4574 = vshll.u32 %v4109, 16
  %v4576 = vrot.slane %v4574, 5
  %v4577 = vor.u32 %v4573, %v4576
  %v4578 = vsel %vm2487, %v4569, %v4577
  %v4580 = vshrl.u32 %v4110, 16
  %v4582 = vrot.slane %v4580, 4
  %v4583 = vshll.u32 %v4110, 16
  %v4585 = vrot.slane %v4583, 5
  %v4586 = vor.u32 %v4582, %v4585
  %v4588 = vshrl.u32 %v4111, 16
  %v4590 = vrot.slane %v4588, 4
  %v4591 = vshll.u32 %v4111, 16
  %v4593 = vrot.slane %v4591, 5
  %v4594 = vor.u32 %v4590, %v4593
  %v4595 = vsel %vm2487, %v4586, %v4594
  %v4597 = vshrl.u32 %v4112, 16
  %v4599 = vrot.slane %v4597, 4
  %v4600 = vshll.u32 %v4112, 16
  %v4602 = vrot.slane %v4600, 5
  %v4603 = vor.u32 %v4599, %v4602
  %v4605 = vshrl.u32 %v4113, 16
  %v4607 = vrot.slane %v4605, 4
  %v4608 = vshll.u32 %v4113, 16
  %v4610 = vrot.slane %v4608, 5
  %v4611 = vor.u32 %v4607, %v4610
  %v4612 = vsel %vm2487, %v4603, %v4611
  %v4614 = vshrl.u32 %v4114, 16
  %v4616 = vrot.slane %v4614, 4
  %v4617 = vshll.u32 %v4114, 16
  %v4619 = vrot.slane %v4617, 5
  %v4620 = vor.u32 %v4616, %v4619
  %v4622 = vshrl.u32 %v4115, 16
  %v4624 = vrot.slane %v4622, 4
  %v4625 = vshll.u32 %v4115, 16
  %v4627 = vrot.slane %v4625, 5
  %v4628 = vor.u32 %v4624, %v4627
  %v4629 = vsel %vm2487, %v4620, %v4628
  %v4631 = vshrl.u32 %v4116, 16
  %v4633 = vrot.slane %v4631, 4
  %v4634 = vshll.u32 %v4116, 16
  %v4636 = vrot.slane %v4634, 5
  %v4637 = vor.u32 %v4633, %v4636
  %v4639 = vshrl.u32 %v4117, 16
  %v4641 = vrot.slane %v4639, 4
  %v4642 = vshll.u32 %v4117, 16
  %v4644 = vrot.slane %v4642, 5
  %v4645 = vor.u32 %v4641, %v4644
  %v4646 = vsel %vm2487, %v4637, %v4645
  %v4648 = vshrl.u32 %v4118, 16
  %v4650 = vrot.slane %v4648, 4
  %v4651 = vshll.u32 %v4118, 16
  %v4653 = vrot.slane %v4651, 5
  %v4654 = vor.u32 %v4650, %v4653
  %v4656 = vshrl.u32 %v4119, 16
  %v4658 = vrot.slane %v4656, 4
  %v4659 = vshll.u32 %v4119, 16
  %v4661 = vrot.slane %v4659, 5
  %v4662 = vor.u32 %v4658, %v4661
  %v4663 = vsel %vm2487, %v4654, %v4662
  %4696 = vst [vmem:[#allocation3 + $0x28] sm:$0xff] %v4136
  %4697 = vst [vmem:[#allocation3 + $0x70] sm:$0xff] %v4153
  %4698 = vst [vmem:[#allocation3 + $0xb8] sm:$0xff] %v4170
  %4699 = vst [vmem:[#allocation3 + $0x100] sm:$0xff] %v4187
  %4700 = vst [vmem:[#allocation3 + $0x148] sm:$0xff] %v4204
  %4701 = vst [vmem:[#allocation3 + $0x190] sm:$0xff] %v4221
  %4702 = vst [vmem:[#allocation3 + $0x1d8] sm:$0xff] %v4238
  %4703 = vst [vmem:[#allocation3 + $0x220] sm:$0xff] %v4255
  %4704 = vst [vmem:[#allocation3 + $0x268] sm:$0xff] %v4272
  %4705 = vst [vmem:[#allocation3 + $0x2b0] sm:$0xff] %v4289
  %4706 = vst [vmem:[#allocation3 + $0x2f8] sm:$0xff] %v4306
  %4707 = vst [vmem:[#allocation3 + $0x340] sm:$0xff] %v4323
  %4708 = vst [vmem:[#allocation3 + $0x388] sm:$0xff] %v4340
  %4709 = vst [vmem:[#allocation3 + $0x3d0] sm:$0xff] %v4357
  %4710 = vst [vmem:[#allocation3 + $0x418] sm:$0xff] %v4374
  %4711 = vst [vmem:[#allocation3 + $0x460] sm:$0xff] %v4391
  %4712 = vst [vmem:[#allocation3 + $0x4a8] sm:$0xff] %v4408
  %4713 = vst [vmem:[#allocation3 + $0x4f0] sm:$0xff] %v4425
  %4714 = vst [vmem:[#allocation3 + $0x538] sm:$0xff] %v4442
  %4715 = vst [vmem:[#allocation3 + $0x580] sm:$0xff] %v4459
  %4716 = vst [vmem:[#allocation3 + $0x5c8] sm:$0xff] %v4476
  %4717 = vst [vmem:[#allocation3 + $0x610] sm:$0xff] %v4493
  %4718 = vst [vmem:[#allocation3 + $0x658] sm:$0xff] %v4510
  %4719 = vst [vmem:[#allocation3 + $0x6a0] sm:$0xff] %v4527
  %4720 = vst [vmem:[#allocation3 + $0x6e8] sm:$0xff] %v4544
  %4721 = vst [vmem:[#allocation3 + $0x730] sm:$0xff] %v4561
  %4722 = vst [vmem:[#allocation3 + $0x778] sm:$0xff] %v4578
  %4723 = vst [vmem:[#allocation3 + $0x7c0] sm:$0xff] %v4595
  %4724 = vst [vmem:[#allocation3 + $0x808] sm:$0xff] %v4612
  %4725 = vst [vmem:[#allocation3 + $0x850] sm:$0xff] %v4629
  %4726 = vst [vmem:[#allocation3 + $0x898] sm:$0xff] %v4646
  %4727 = vst [vmem:[#allocation3 + $0x8e0] sm:$0xff] %v4663
  %s4728 = scalar_lea.vmem [#allocation2], 32
  %v4729 = vld [vmem:[%s4728] sm:$0xf8]
  %v4730 = vld [vmem:[%s4728 + $0x8] sm:$0xf]
  %v4731 = vld [vmem:[%s4728 + $0x10] sm:$0xf8]
  %v4732 = vld [vmem:[%s4728 + $0x18] sm:$0xf]
  %v4733 = vld [vmem:[%s4728 + $0x20] sm:$0xf8]
  %v4734 = vld [vmem:[%s4728 + $0x28] sm:$0xf]
  %v4735 = vld [vmem:[%s4728 + $0x30] sm:$0xf8]
  %v4736 = vld [vmem:[%s4728 + $0x38] sm:$0xf]
  %v4737 = vld [vmem:[%s4728 + $0x40] sm:$0xf8]
  %v4738 = vld [vmem:[%s4728 + $0x48] sm:$0xf]
  %v4739 = vld [vmem:[%s4728 + $0x50] sm:$0xf8]
  %v4740 = vld [vmem:[%s4728 + $0x58] sm:$0xf]
  %v4741 = vld [vmem:[%s4728 + $0x60] sm:$0xf8]
  %v4742 = vld [vmem:[%s4728 + $0x68] sm:$0xf]
  %v4743 = vld [vmem:[%s4728 + $0x70] sm:$0xf8]
  %v4744 = vld [vmem:[%s4728 + $0x78] sm:$0xf]
  %v4745 = vld [vmem:[%s4728 + $0x80] sm:$0xf8]
  %v4746 = vld [vmem:[%s4728 + $0x88] sm:$0xf]
  %v4747 = vld [vmem:[%s4728 + $0x90] sm:$0xf8]
  %v4748 = vld [vmem:[%s4728 + $0x98] sm:$0xf]
  %v4749 = vld [vmem:[%s4728 + $0xa0] sm:$0xf8]
  %v4750 = vld [vmem:[%s4728 + $0xa8] sm:$0xf]
  %v4751 = vld [vmem:[%s4728 + $0xb0] sm:$0xf8]
  %v4752 = vld [vmem:[%s4728 + $0xb8] sm:$0xf]
  %v4753 = vld [vmem:[%s4728 + $0xc0] sm:$0xf8]
  %v4754 = vld [vmem:[%s4728 + $0xc8] sm:$0xf]
  %v4755 = vld [vmem:[%s4728 + $0xd0] sm:$0xf8]
  %v4756 = vld [vmem:[%s4728 + $0xd8] sm:$0xf]
  %v4757 = vld [vmem:[%s4728 + $0xe0] sm:$0xf8]
  %v4758 = vld [vmem:[%s4728 + $0xe8] sm:$0xf]
  %v4759 = vld [vmem:[%s4728 + $0xf0] sm:$0xf8]
  %v4760 = vld [vmem:[%s4728 + $0xf8] sm:$0xf]
  %v4761 = vld [vmem:[%s4728 + $0x120] sm:$0xf8]
  %v4762 = vld [vmem:[%s4728 + $0x128] sm:$0xf]
  %v4763 = vld [vmem:[%s4728 + $0x130] sm:$0xf8]
  %v4764 = vld [vmem:[%s4728 + $0x138] sm:$0xf]
  %v4765 = vld [vmem:[%s4728 + $0x140] sm:$0xf8]
  %v4766 = vld [vmem:[%s4728 + $0x148] sm:$0xf]
  %v4767 = vld [vmem:[%s4728 + $0x150] sm:$0xf8]
  %v4768 = vld [vmem:[%s4728 + $0x158] sm:$0xf]
  %v4769 = vld [vmem:[%s4728 + $0x160] sm:$0xf8]
  %v4770 = vld [vmem:[%s4728 + $0x168] sm:$0xf]
  %v4771 = vld [vmem:[%s4728 + $0x170] sm:$0xf8]
  %v4772 = vld [vmem:[%s4728 + $0x178] sm:$0xf]
  %v4773 = vld [vmem:[%s4728 + $0x180] sm:$0xf8]
  %v4774 = vld [vmem:[%s4728 + $0x188] sm:$0xf]
  %v4775 = vld [vmem:[%s4728 + $0x190] sm:$0xf8]
  %v4776 = vld [vmem:[%s4728 + $0x198] sm:$0xf]
  %v4777 = vld [vmem:[%s4728 + $0x1a0] sm:$0xf8]
  %v4778 = vld [vmem:[%s4728 + $0x1a8] sm:$0xf]
  %v4779 = vld [vmem:[%s4728 + $0x1b0] sm:$0xf8]
  %v4780 = vld [vmem:[%s4728 + $0x1b8] sm:$0xf]
  %v4781 = vld [vmem:[%s4728 + $0x1c0] sm:$0xf8]
  %v4782 = vld [vmem:[%s4728 + $0x1c8] sm:$0xf]
  %v4783 = vld [vmem:[%s4728 + $0x1d0] sm:$0xf8]
  %v4784 = vld [vmem:[%s4728 + $0x1d8] sm:$0xf]
  %v4785 = vld [vmem:[%s4728 + $0x1e0] sm:$0xf8]
  %v4786 = vld [vmem:[%s4728 + $0x1e8] sm:$0xf]
  %v4787 = vld [vmem:[%s4728 + $0x1f0] sm:$0xf8]
  %v4788 = vld [vmem:[%s4728 + $0x1f8] sm:$0xf]
  %v4789 = vld [vmem:[%s4728 + $0x200] sm:$0xf8]
  %v4790 = vld [vmem:[%s4728 + $0x208] sm:$0xf]
  %v4791 = vld [vmem:[%s4728 + $0x210] sm:$0xf8]
  %v4792 = vld [vmem:[%s4728 + $0x218] sm:$0xf]
  %v4794 = vshrl.u32 %v4729, 16
  %v4796 = vrot.slane %v4794, 3
  %v4797 = vshll.u32 %v4729, 16
  %v4799 = vrot.slane %v4797, 4
  %v4800 = vor.u32 %v4796, %v4799
  %v4802 = vshrl.u32 %v4730, 16
  %v4804 = vrot.slane %v4802, 3
  %v4805 = vshll.u32 %v4730, 16
  %v4807 = vrot.slane %v4805, 4
  %v4808 = vor.u32 %v4804, %v4807
  %v4809 = vsel %vm1525, %v4800, %v4808
  %v4811 = vshrl.u32 %v4731, 16
  %v4813 = vrot.slane %v4811, 3
  %v4814 = vshll.u32 %v4731, 16
  %v4816 = vrot.slane %v4814, 4
  %v4817 = vor.u32 %v4813, %v4816
  %v4819 = vshrl.u32 %v4732, 16
  %v4821 = vrot.slane %v4819, 3
  %v4822 = vshll.u32 %v4732, 16
  %v4824 = vrot.slane %v4822, 4
  %v4825 = vor.u32 %v4821, %v4824
  %v4826 = vsel %vm1525, %v4817, %v4825
  %v4828 = vshrl.u32 %v4733, 16
  %v4830 = vrot.slane %v4828, 3
  %v4831 = vshll.u32 %v4733, 16
  %v4833 = vrot.slane %v4831, 4
  %v4834 = vor.u32 %v4830, %v4833
  %v4836 = vshrl.u32 %v4734, 16
  %v4838 = vrot.slane %v4836, 3
  %v4839 = vshll.u32 %v4734, 16
  %v4841 = vrot.slane %v4839, 4
  %v4842 = vor.u32 %v4838, %v4841
  %v4843 = vsel %vm1525, %v4834, %v4842
  %v4845 = vshrl.u32 %v4735, 16
  %v4847 = vrot.slane %v4845, 3
  %v4848 = vshll.u32 %v4735, 16
  %v4850 = vrot.slane %v4848, 4
  %v4851 = vor.u32 %v4847, %v4850
  %v4853 = vshrl.u32 %v4736, 16
  %v4855 = vrot.slane %v4853, 3
  %v4856 = vshll.u32 %v4736, 16
  %v4858 = vrot.slane %v4856, 4
  %v4859 = vor.u32 %v4855, %v4858
  %v4860 = vsel %vm1525, %v4851, %v4859
  %v4862 = vshrl.u32 %v4737, 16
  %v4864 = vrot.slane %v4862, 3
  %v4865 = vshll.u32 %v4737, 16
  %v4867 = vrot.slane %v4865, 4
  %v4868 = vor.u32 %v4864, %v4867
  %v4870 = vshrl.u32 %v4738, 16
  %v4872 = vrot.slane %v4870, 3
  %v4873 = vshll.u32 %v4738, 16
  %v4875 = vrot.slane %v4873, 4
  %v4876 = vor.u32 %v4872, %v4875
  %v4877 = vsel %vm1525, %v4868, %v4876
  %v4879 = vshrl.u32 %v4739, 16
  %v4881 = vrot.slane %v4879, 3
  %v4882 = vshll.u32 %v4739, 16
  %v4884 = vrot.slane %v4882, 4
  %v4885 = vor.u32 %v4881, %v4884
  %v4887 = vshrl.u32 %v4740, 16
  %v4889 = vrot.slane %v4887, 3
  %v4890 = vshll.u32 %v4740, 16
  %v4892 = vrot.slane %v4890, 4
  %v4893 = vor.u32 %v4889, %v4892
  %v4894 = vsel %vm1525, %v4885, %v4893
  %v4896 = vshrl.u32 %v4741, 16
  %v4898 = vrot.slane %v4896, 3
  %v4899 = vshll.u32 %v4741, 16
  %v4901 = vrot.slane %v4899, 4
  %v4902 = vor.u32 %v4898, %v4901
  %v4904 = vshrl.u32 %v4742, 16
  %v4906 = vrot.slane %v4904, 3
  %v4907 = vshll.u32 %v4742, 16
  %v4909 = vrot.slane %v4907, 4
  %v4910 = vor.u32 %v4906, %v4909
  %v4911 = vsel %vm1525, %v4902, %v4910
  %v4913 = vshrl.u32 %v4743, 16
  %v4915 = vrot.slane %v4913, 3
  %v4916 = vshll.u32 %v4743, 16
  %v4918 = vrot.slane %v4916, 4
  %v4919 = vor.u32 %v4915, %v4918
  %v4921 = vshrl.u32 %v4744, 16
  %v4923 = vrot.slane %v4921, 3
  %v4924 = vshll.u32 %v4744, 16
  %v4926 = vrot.slane %v4924, 4
  %v4927 = vor.u32 %v4923, %v4926
  %v4928 = vsel %vm1525, %v4919, %v4927
  %v4930 = vshrl.u32 %v4745, 16
  %v4932 = vrot.slane %v4930, 3
  %v4933 = vshll.u32 %v4745, 16
  %v4935 = vrot.slane %v4933, 4
  %v4936 = vor.u32 %v4932, %v4935
  %v4938 = vshrl.u32 %v4746, 16
  %v4940 = vrot.slane %v4938, 3
  %v4941 = vshll.u32 %v4746, 16
  %v4943 = vrot.slane %v4941, 4
  %v4944 = vor.u32 %v4940, %v4943
  %v4945 = vsel %vm1525, %v4936, %v4944
  %v4947 = vshrl.u32 %v4747, 16
  %v4949 = vrot.slane %v4947, 3
  %v4950 = vshll.u32 %v4747, 16
  %v4952 = vrot.slane %v4950, 4
  %v4953 = vor.u32 %v4949, %v4952
  %v4955 = vshrl.u32 %v4748, 16
  %v4957 = vrot.slane %v4955, 3
  %v4958 = vshll.u32 %v4748, 16
  %v4960 = vrot.slane %v4958, 4
  %v4961 = vor.u32 %v4957, %v4960
  %v4962 = vsel %vm1525, %v4953, %v4961
  %v4964 = vshrl.u32 %v4749, 16
  %v4966 = vrot.slane %v4964, 3
  %v4967 = vshll.u32 %v4749, 16
  %v4969 = vrot.slane %v4967, 4
  %v4970 = vor.u32 %v4966, %v4969
  %v4972 = vshrl.u32 %v4750, 16
  %v4974 = vrot.slane %v4972, 3
  %v4975 = vshll.u32 %v4750, 16
  %v4977 = vrot.slane %v4975, 4
  %v4978 = vor.u32 %v4974, %v4977
  %v4979 = vsel %vm1525, %v4970, %v4978
  %v4981 = vshrl.u32 %v4751, 16
  %v4983 = vrot.slane %v4981, 3
  %v4984 = vshll.u32 %v4751, 16
  %v4986 = vrot.slane %v4984, 4
  %v4987 = vor.u32 %v4983, %v4986
  %v4989 = vshrl.u32 %v4752, 16
  %v4991 = vrot.slane %v4989, 3
  %v4992 = vshll.u32 %v4752, 16
  %v4994 = vrot.slane %v4992, 4
  %v4995 = vor.u32 %v4991, %v4994
  %v4996 = vsel %vm1525, %v4987, %v4995
  %v4998 = vshrl.u32 %v4753, 16
  %v5000 = vrot.slane %v4998, 3
  %v5001 = vshll.u32 %v4753, 16
  %v5003 = vrot.slane %v5001, 4
  %v5004 = vor.u32 %v5000, %v5003
  %v5006 = vshrl.u32 %v4754, 16
  %v5008 = vrot.slane %v5006, 3
  %v5009 = vshll.u32 %v4754, 16
  %v5011 = vrot.slane %v5009, 4
  %v5012 = vor.u32 %v5008, %v5011
  %v5013 = vsel %vm1525, %v5004, %v5012
  %v5015 = vshrl.u32 %v4755, 16
  %v5017 = vrot.slane %v5015, 3
  %v5018 = vshll.u32 %v4755, 16
  %v5020 = vrot.slane %v5018, 4
  %v5021 = vor.u32 %v5017, %v5020
  %v5023 = vshrl.u32 %v4756, 16
  %v5025 = vrot.slane %v5023, 3
  %v5026 = vshll.u32 %v4756, 16
  %v5028 = vrot.slane %v5026, 4
  %v5029 = vor.u32 %v5025, %v5028
  %v5030 = vsel %vm1525, %v5021, %v5029
  %v5032 = vshrl.u32 %v4757, 16
  %v5034 = vrot.slane %v5032, 3
  %v5035 = vshll.u32 %v4757, 16
  %v5037 = vrot.slane %v5035, 4
  %v5038 = vor.u32 %v5034, %v5037
  %v5040 = vshrl.u32 %v4758, 16
  %v5042 = vrot.slane %v5040, 3
  %v5043 = vshll.u32 %v4758, 16
  %v5045 = vrot.slane %v5043, 4
  %v5046 = vor.u32 %v5042, %v5045
  %v5047 = vsel %vm1525, %v5038, %v5046
  %v5049 = vshrl.u32 %v4759, 16
  %v5051 = vrot.slane %v5049, 3
  %v5052 = vshll.u32 %v4759, 16
  %v5054 = vrot.slane %v5052, 4
  %v5055 = vor.u32 %v5051, %v5054
  %v5057 = vshrl.u32 %v4760, 16
  %v5059 = vrot.slane %v5057, 3
  %v5060 = vshll.u32 %v4760, 16
  %v5062 = vrot.slane %v5060, 4
  %v5063 = vor.u32 %v5059, %v5062
  %v5064 = vsel %vm1525, %v5055, %v5063
  %v5066 = vshrl.u32 %v4761, 16
  %v5068 = vrot.slane %v5066, 3
  %v5069 = vshll.u32 %v4761, 16
  %v5071 = vrot.slane %v5069, 4
  %v5072 = vor.u32 %v5068, %v5071
  %v5074 = vshrl.u32 %v4762, 16
  %v5076 = vrot.slane %v5074, 3
  %v5077 = vshll.u32 %v4762, 16
  %v5079 = vrot.slane %v5077, 4
  %v5080 = vor.u32 %v5076, %v5079
  %v5081 = vsel %vm1525, %v5072, %v5080
  %v5083 = vshrl.u32 %v4763, 16
  %v5085 = vrot.slane %v5083, 3
  %v5086 = vshll.u32 %v4763, 16
  %v5088 = vrot.slane %v5086, 4
  %v5089 = vor.u32 %v5085, %v5088
  %v5091 = vshrl.u32 %v4764, 16
  %v5093 = vrot.slane %v5091, 3
  %v5094 = vshll.u32 %v4764, 16
  %v5096 = vrot.slane %v5094, 4
  %v5097 = vor.u32 %v5093, %v5096
  %v5098 = vsel %vm1525, %v5089, %v5097
  %v5100 = vshrl.u32 %v4765, 16
  %v5102 = vrot.slane %v5100, 3
  %v5103 = vshll.u32 %v4765, 16
  %v5105 = vrot.slane %v5103, 4
  %v5106 = vor.u32 %v5102, %v5105
  %v5108 = vshrl.u32 %v4766, 16
  %v5110 = vrot.slane %v5108, 3
  %v5111 = vshll.u32 %v4766, 16
  %v5113 = vrot.slane %v5111, 4
  %v5114 = vor.u32 %v5110, %v5113
  %v5115 = vsel %vm1525, %v5106, %v5114
  %v5117 = vshrl.u32 %v4767, 16
  %v5119 = vrot.slane %v5117, 3
  %v5120 = vshll.u32 %v4767, 16
  %v5122 = vrot.slane %v5120, 4
  %v5123 = vor.u32 %v5119, %v5122
  %v5125 = vshrl.u32 %v4768, 16
  %v5127 = vrot.slane %v5125, 3
  %v5128 = vshll.u32 %v4768, 16
  %v5130 = vrot.slane %v5128, 4
  %v5131 = vor.u32 %v5127, %v5130
  %v5132 = vsel %vm1525, %v5123, %v5131
  %v5134 = vshrl.u32 %v4769, 16
  %v5136 = vrot.slane %v5134, 3
  %v5137 = vshll.u32 %v4769, 16
  %v5139 = vrot.slane %v5137, 4
  %v5140 = vor.u32 %v5136, %v5139
  %v5142 = vshrl.u32 %v4770, 16
  %v5144 = vrot.slane %v5142, 3
  %v5145 = vshll.u32 %v4770, 16
  %v5147 = vrot.slane %v5145, 4
  %v5148 = vor.u32 %v5144, %v5147
  %v5149 = vsel %vm1525, %v5140, %v5148
  %v5151 = vshrl.u32 %v4771, 16
  %v5153 = vrot.slane %v5151, 3
  %v5154 = vshll.u32 %v4771, 16
  %v5156 = vrot.slane %v5154, 4
  %v5157 = vor.u32 %v5153, %v5156
  %v5159 = vshrl.u32 %v4772, 16
  %v5161 = vrot.slane %v5159, 3
  %v5162 = vshll.u32 %v4772, 16
  %v5164 = vrot.slane %v5162, 4
  %v5165 = vor.u32 %v5161, %v5164
  %v5166 = vsel %vm1525, %v5157, %v5165
  %v5168 = vshrl.u32 %v4773, 16
  %v5170 = vrot.slane %v5168, 3
  %v5171 = vshll.u32 %v4773, 16
  %v5173 = vrot.slane %v5171, 4
  %v5174 = vor.u32 %v5170, %v5173
  %v5176 = vshrl.u32 %v4774, 16
  %v5178 = vrot.slane %v5176, 3
  %v5179 = vshll.u32 %v4774, 16
  %v5181 = vrot.slane %v5179, 4
  %v5182 = vor.u32 %v5178, %v5181
  %v5183 = vsel %vm1525, %v5174, %v5182
  %v5185 = vshrl.u32 %v4775, 16
  %v5187 = vrot.slane %v5185, 3
  %v5188 = vshll.u32 %v4775, 16
  %v5190 = vrot.slane %v5188, 4
  %v5191 = vor.u32 %v5187, %v5190
  %v5193 = vshrl.u32 %v4776, 16
  %v5195 = vrot.slane %v5193, 3
  %v5196 = vshll.u32 %v4776, 16
  %v5198 = vrot.slane %v5196, 4
  %v5199 = vor.u32 %v5195, %v5198
  %v5200 = vsel %vm1525, %v5191, %v5199
  %v5202 = vshrl.u32 %v4777, 16
  %v5204 = vrot.slane %v5202, 3
  %v5205 = vshll.u32 %v4777, 16
  %v5207 = vrot.slane %v5205, 4
  %v5208 = vor.u32 %v5204, %v5207
  %v5210 = vshrl.u32 %v4778, 16
  %v5212 = vrot.slane %v5210, 3
  %v5213 = vshll.u32 %v4778, 16
  %v5215 = vrot.slane %v5213, 4
  %v5216 = vor.u32 %v5212, %v5215
  %v5217 = vsel %vm1525, %v5208, %v5216
  %v5219 = vshrl.u32 %v4779, 16
  %v5221 = vrot.slane %v5219, 3
  %v5222 = vshll.u32 %v4779, 16
  %v5224 = vrot.slane %v5222, 4
  %v5225 = vor.u32 %v5221, %v5224
  %v5227 = vshrl.u32 %v4780, 16
  %v5229 = vrot.slane %v5227, 3
  %v5230 = vshll.u32 %v4780, 16
  %v5232 = vrot.slane %v5230, 4
  %v5233 = vor.u32 %v5229, %v5232
  %v5234 = vsel %vm1525, %v5225, %v5233
  %v5236 = vshrl.u32 %v4781, 16
  %v5238 = vrot.slane %v5236, 3
  %v5239 = vshll.u32 %v4781, 16
  %v5241 = vrot.slane %v5239, 4
  %v5242 = vor.u32 %v5238, %v5241
  %v5244 = vshrl.u32 %v4782, 16
  %v5246 = vrot.slane %v5244, 3
  %v5247 = vshll.u32 %v4782, 16
  %v5249 = vrot.slane %v5247, 4
  %v5250 = vor.u32 %v5246, %v5249
  %v5251 = vsel %vm1525, %v5242, %v5250
  %v5253 = vshrl.u32 %v4783, 16
  %v5255 = vrot.slane %v5253, 3
  %v5256 = vshll.u32 %v4783, 16
  %v5258 = vrot.slane %v5256, 4
  %v5259 = vor.u32 %v5255, %v5258
  %v5261 = vshrl.u32 %v4784, 16
  %v5263 = vrot.slane %v5261, 3
  %v5264 = vshll.u32 %v4784, 16
  %v5266 = vrot.slane %v5264, 4
  %v5267 = vor.u32 %v5263, %v5266
  %v5268 = vsel %vm1525, %v5259, %v5267
  %v5270 = vshrl.u32 %v4785, 16
  %v5272 = vrot.slane %v5270, 3
  %v5273 = vshll.u32 %v4785, 16
  %v5275 = vrot.slane %v5273, 4
  %v5276 = vor.u32 %v5272, %v5275
  %v5278 = vshrl.u32 %v4786, 16
  %v5280 = vrot.slane %v5278, 3
  %v5281 = vshll.u32 %v4786, 16
  %v5283 = vrot.slane %v5281, 4
  %v5284 = vor.u32 %v5280, %v5283
  %v5285 = vsel %vm1525, %v5276, %v5284
  %v5287 = vshrl.u32 %v4787, 16
  %v5289 = vrot.slane %v5287, 3
  %v5290 = vshll.u32 %v4787, 16
  %v5292 = vrot.slane %v5290, 4
  %v5293 = vor.u32 %v5289, %v5292
  %v5295 = vshrl.u32 %v4788, 16
  %v5297 = vrot.slane %v5295, 3
  %v5298 = vshll.u32 %v4788, 16
  %v5300 = vrot.slane %v5298, 4
  %v5301 = vor.u32 %v5297, %v5300
  %v5302 = vsel %vm1525, %v5293, %v5301
  %v5304 = vshrl.u32 %v4789, 16
  %v5306 = vrot.slane %v5304, 3
  %v5307 = vshll.u32 %v4789, 16
  %v5309 = vrot.slane %v5307, 4
  %v5310 = vor.u32 %v5306, %v5309
  %v5312 = vshrl.u32 %v4790, 16
  %v5314 = vrot.slane %v5312, 3
  %v5315 = vshll.u32 %v4790, 16
  %v5317 = vrot.slane %v5315, 4
  %v5318 = vor.u32 %v5314, %v5317
  %v5319 = vsel %vm1525, %v5310, %v5318
  %v5321 = vshrl.u32 %v4791, 16
  %v5323 = vrot.slane %v5321, 3
  %v5324 = vshll.u32 %v4791, 16
  %v5326 = vrot.slane %v5324, 4
  %v5327 = vor.u32 %v5323, %v5326
  %v5329 = vshrl.u32 %v4792, 16
  %v5331 = vrot.slane %v5329, 3
  %v5332 = vshll.u32 %v4792, 16
  %v5334 = vrot.slane %v5332, 4
  %v5335 = vor.u32 %v5331, %v5334
  %v5336 = vsel %vm1525, %v5327, %v5335
  %5369 = vst [vmem:[#allocation3 + $0x30] sm:$0xff] %v4809
  %5370 = vst [vmem:[#allocation3 + $0x78] sm:$0xff] %v4826
  %5371 = vst [vmem:[#allocation3 + $0xc0] sm:$0xff] %v4843
  %5372 = vst [vmem:[#allocation3 + $0x108] sm:$0xff] %v4860
  %5373 = vst [vmem:[#allocation3 + $0x150] sm:$0xff] %v4877
  %5374 = vst [vmem:[#allocation3 + $0x198] sm:$0xff] %v4894
  %5375 = vst [vmem:[#allocation3 + $0x1e0] sm:$0xff] %v4911
  %5376 = vst [vmem:[#allocation3 + $0x228] sm:$0xff] %v4928
  %5377 = vst [vmem:[#allocation3 + $0x270] sm:$0xff] %v4945
  %5378 = vst [vmem:[#allocation3 + $0x2b8] sm:$0xff] %v4962
  %5379 = vst [vmem:[#allocation3 + $0x300] sm:$0xff] %v4979
  %5380 = vst [vmem:[#allocation3 + $0x348] sm:$0xff] %v4996
  %5381 = vst [vmem:[#allocation3 + $0x390] sm:$0xff] %v5013
  %5382 = vst [vmem:[#allocation3 + $0x3d8] sm:$0xff] %v5030
  %5383 = vst [vmem:[#allocation3 + $0x420] sm:$0xff] %v5047
  %5384 = vst [vmem:[#allocation3 + $0x468] sm:$0xff] %v5064
  %5385 = vst [vmem:[#allocation3 + $0x4b0] sm:$0xff] %v5081
  %5386 = vst [vmem:[#allocation3 + $0x4f8] sm:$0xff] %v5098
  %5387 = vst [vmem:[#allocation3 + $0x540] sm:$0xff] %v5115
  %5388 = vst [vmem:[#allocation3 + $0x588] sm:$0xff] %v5132
  %5389 = vst [vmem:[#allocation3 + $0x5d0] sm:$0xff] %v5149
  %5390 = vst [vmem:[#allocation3 + $0x618] sm:$0xff] %v5166
  %5391 = vst [vmem:[#allocation3 + $0x660] sm:$0xff] %v5183
  %5392 = vst [vmem:[#allocation3 + $0x6a8] sm:$0xff] %v5200
  %5393 = vst [vmem:[#allocation3 + $0x6f0] sm:$0xff] %v5217
  %5394 = vst [vmem:[#allocation3 + $0x738] sm:$0xff] %v5234
  %5395 = vst [vmem:[#allocation3 + $0x780] sm:$0xff] %v5251
  %5396 = vst [vmem:[#allocation3 + $0x7c8] sm:$0xff] %v5268
  %5397 = vst [vmem:[#allocation3 + $0x810] sm:$0xff] %v5285
  %5398 = vst [vmem:[#allocation3 + $0x858] sm:$0xff] %v5302
  %5399 = vst [vmem:[#allocation3 + $0x8a0] sm:$0xff] %v5319
  %5400 = vst [vmem:[#allocation3 + $0x8e8] sm:$0xff] %v5336
  %v5401 = vld [vmem:[%s4728] sm:$0xf0]
  %v5402 = vld [vmem:[%s4728 + $0x8] sm:$0xf]
  %v5403 = vld [vmem:[%s4728 + $0x10] sm:$0xf0]
  %v5404 = vld [vmem:[%s4728 + $0x18] sm:$0xf]
  %v5405 = vld [vmem:[%s4728 + $0x20] sm:$0xf0]
  %v5406 = vld [vmem:[%s4728 + $0x28] sm:$0xf]
  %v5407 = vld [vmem:[%s4728 + $0x30] sm:$0xf0]
  %v5408 = vld [vmem:[%s4728 + $0x38] sm:$0xf]
  %v5409 = vld [vmem:[%s4728 + $0x40] sm:$0xf0]
  %v5410 = vld [vmem:[%s4728 + $0x48] sm:$0xf]
  %v5411 = vld [vmem:[%s4728 + $0x50] sm:$0xf0]
  %v5412 = vld [vmem:[%s4728 + $0x58] sm:$0xf]
  %v5413 = vld [vmem:[%s4728 + $0x60] sm:$0xf0]
  %v5414 = vld [vmem:[%s4728 + $0x68] sm:$0xf]
  %v5415 = vld [vmem:[%s4728 + $0x70] sm:$0xf0]
  %v5416 = vld [vmem:[%s4728 + $0x78] sm:$0xf]
  %v5417 = vld [vmem:[%s4728 + $0x80] sm:$0xf0]
  %v5418 = vld [vmem:[%s4728 + $0x88] sm:$0xf]
  %v5419 = vld [vmem:[%s4728 + $0x90] sm:$0xf0]
  %v5420 = vld [vmem:[%s4728 + $0x98] sm:$0xf]
  %v5421 = vld [vmem:[%s4728 + $0xa0] sm:$0xf0]
  %v5422 = vld [vmem:[%s4728 + $0xa8] sm:$0xf]
  %v5423 = vld [vmem:[%s4728 + $0xb0] sm:$0xf0]
  %v5424 = vld [vmem:[%s4728 + $0xb8] sm:$0xf]
  %v5425 = vld [vmem:[%s4728 + $0xc0] sm:$0xf0]
  %v5426 = vld [vmem:[%s4728 + $0xc8] sm:$0xf]
  %v5427 = vld [vmem:[%s4728 + $0xd0] sm:$0xf0]
  %v5428 = vld [vmem:[%s4728 + $0xd8] sm:$0xf]
  %v5429 = vld [vmem:[%s4728 + $0xe0] sm:$0xf0]
  %v5430 = vld [vmem:[%s4728 + $0xe8] sm:$0xf]
  %v5431 = vld [vmem:[%s4728 + $0xf0] sm:$0xf0]
  %v5432 = vld [vmem:[%s4728 + $0xf8] sm:$0xf]
  %v5433 = vld [vmem:[%s4728 + $0x120] sm:$0xf0]
  %v5434 = vld [vmem:[%s4728 + $0x128] sm:$0xf]
  %v5435 = vld [vmem:[%s4728 + $0x130] sm:$0xf0]
  %v5436 = vld [vmem:[%s4728 + $0x138] sm:$0xf]
  %v5437 = vld [vmem:[%s4728 + $0x140] sm:$0xf0]
  %v5438 = vld [vmem:[%s4728 + $0x148] sm:$0xf]
  %v5439 = vld [vmem:[%s4728 + $0x150] sm:$0xf0]
  %v5440 = vld [vmem:[%s4728 + $0x158] sm:$0xf]
  %v5441 = vld [vmem:[%s4728 + $0x160] sm:$0xf0]
  %v5442 = vld [vmem:[%s4728 + $0x168] sm:$0xf]
  %v5443 = vld [vmem:[%s4728 + $0x170] sm:$0xf0]
  %v5444 = vld [vmem:[%s4728 + $0x178] sm:$0xf]
  %v5445 = vld [vmem:[%s4728 + $0x180] sm:$0xf0]
  %v5446 = vld [vmem:[%s4728 + $0x188] sm:$0xf]
  %v5447 = vld [vmem:[%s4728 + $0x190] sm:$0xf0]
  %v5448 = vld [vmem:[%s4728 + $0x198] sm:$0xf]
  %v5449 = vld [vmem:[%s4728 + $0x1a0] sm:$0xf0]
  %v5450 = vld [vmem:[%s4728 + $0x1a8] sm:$0xf]
  %v5451 = vld [vmem:[%s4728 + $0x1b0] sm:$0xf0]
  %v5452 = vld [vmem:[%s4728 + $0x1b8] sm:$0xf]
  %v5453 = vld [vmem:[%s4728 + $0x1c0] sm:$0xf0]
  %v5454 = vld [vmem:[%s4728 + $0x1c8] sm:$0xf]
  %v5455 = vld [vmem:[%s4728 + $0x1d0] sm:$0xf0]
  %v5456 = vld [vmem:[%s4728 + $0x1d8] sm:$0xf]
  %v5457 = vld [vmem:[%s4728 + $0x1e0] sm:$0xf0]
  %v5458 = vld [vmem:[%s4728 + $0x1e8] sm:$0xf]
  %v5459 = vld [vmem:[%s4728 + $0x1f0] sm:$0xf0]
  %v5460 = vld [vmem:[%s4728 + $0x1f8] sm:$0xf]
  %v5461 = vld [vmem:[%s4728 + $0x200] sm:$0xf0]
  %v5462 = vld [vmem:[%s4728 + $0x208] sm:$0xf]
  %v5463 = vld [vmem:[%s4728 + $0x210] sm:$0xf0]
  %v5464 = vld [vmem:[%s4728 + $0x218] sm:$0xf]
  %v5529 = vrot.slane %v5401, 4
  %v5530 = vrot.slane %v5402, 4
  %v5531 = vsel %vm2262, %v5529, %v5530
  %v5532 = vrot.slane %v5403, 4
  %v5533 = vrot.slane %v5404, 4
  %v5534 = vsel %vm2262, %v5532, %v5533
  %v5535 = vrot.slane %v5405, 4
  %v5536 = vrot.slane %v5406, 4
  %v5537 = vsel %vm2262, %v5535, %v5536
  %v5538 = vrot.slane %v5407, 4
  %v5539 = vrot.slane %v5408, 4
  %v5540 = vsel %vm2262, %v5538, %v5539
  %v5541 = vrot.slane %v5409, 4
  %v5542 = vrot.slane %v5410, 4
  %v5543 = vsel %vm2262, %v5541, %v5542
  %v5544 = vrot.slane %v5411, 4
  %v5545 = vrot.slane %v5412, 4
  %v5546 = vsel %vm2262, %v5544, %v5545
  %v5547 = vrot.slane %v5413, 4
  %v5548 = vrot.slane %v5414, 4
  %v5549 = vsel %vm2262, %v5547, %v5548
  %v5550 = vrot.slane %v5415, 4
  %v5551 = vrot.slane %v5416, 4
  %v5552 = vsel %vm2262, %v5550, %v5551
  %v5553 = vrot.slane %v5417, 4
  %v5554 = vrot.slane %v5418, 4
  %v5555 = vsel %vm2262, %v5553, %v5554
  %v5556 = vrot.slane %v5419, 4
  %v5557 = vrot.slane %v5420, 4
  %v5558 = vsel %vm2262, %v5556, %v5557
  %v5559 = vrot.slane %v5421, 4
  %v5560 = vrot.slane %v5422, 4
  %v5561 = vsel %vm2262, %v5559, %v5560
  %v5562 = vrot.slane %v5423, 4
  %v5563 = vrot.slane %v5424, 4
  %v5564 = vsel %vm2262, %v5562, %v5563
  %v5565 = vrot.slane %v5425, 4
  %v5566 = vrot.slane %v5426, 4
  %v5567 = vsel %vm2262, %v5565, %v5566
  %v5568 = vrot.slane %v5427, 4
  %v5569 = vrot.slane %v5428, 4
  %v5570 = vsel %vm2262, %v5568, %v5569
  %v5571 = vrot.slane %v5429, 4
  %v5572 = vrot.slane %v5430, 4
  %v5573 = vsel %vm2262, %v5571, %v5572
  %v5574 = vrot.slane %v5431, 4
  %v5575 = vrot.slane %v5432, 4
  %v5576 = vsel %vm2262, %v5574, %v5575
  %v5577 = vrot.slane %v5433, 4
  %v5578 = vrot.slane %v5434, 4
  %v5579 = vsel %vm2262, %v5577, %v5578
  %v5580 = vrot.slane %v5435, 4
  %v5581 = vrot.slane %v5436, 4
  %v5582 = vsel %vm2262, %v5580, %v5581
  %v5583 = vrot.slane %v5437, 4
  %v5584 = vrot.slane %v5438, 4
  %v5585 = vsel %vm2262, %v5583, %v5584
  %v5586 = vrot.slane %v5439, 4
  %v5587 = vrot.slane %v5440, 4
  %v5588 = vsel %vm2262, %v5586, %v5587
  %v5589 = vrot.slane %v5441, 4
  %v5590 = vrot.slane %v5442, 4
  %v5591 = vsel %vm2262, %v5589, %v5590
  %v5592 = vrot.slane %v5443, 4
  %v5593 = vrot.slane %v5444, 4
  %v5594 = vsel %vm2262, %v5592, %v5593
  %v5595 = vrot.slane %v5445, 4
  %v5596 = vrot.slane %v5446, 4
  %v5597 = vsel %vm2262, %v5595, %v5596
  %v5598 = vrot.slane %v5447, 4
  %v5599 = vrot.slane %v5448, 4
  %v5600 = vsel %vm2262, %v5598, %v5599
  %v5601 = vrot.slane %v5449, 4
  %v5602 = vrot.slane %v5450, 4
  %v5603 = vsel %vm2262, %v5601, %v5602
  %v5604 = vrot.slane %v5451, 4
  %v5605 = vrot.slane %v5452, 4
  %v5606 = vsel %vm2262, %v5604, %v5605
  %v5607 = vrot.slane %v5453, 4
  %v5608 = vrot.slane %v5454, 4
  %v5609 = vsel %vm2262, %v5607, %v5608
  %v5610 = vrot.slane %v5455, 4
  %v5611 = vrot.slane %v5456, 4
  %v5612 = vsel %vm2262, %v5610, %v5611
  %v5613 = vrot.slane %v5457, 4
  %v5614 = vrot.slane %v5458, 4
  %v5615 = vsel %vm2262, %v5613, %v5614
  %v5616 = vrot.slane %v5459, 4
  %v5617 = vrot.slane %v5460, 4
  %v5618 = vsel %vm2262, %v5616, %v5617
  %v5619 = vrot.slane %v5461, 4
  %v5620 = vrot.slane %v5462, 4
  %v5621 = vsel %vm2262, %v5619, %v5620
  %v5622 = vrot.slane %v5463, 4
  %v5623 = vrot.slane %v5464, 4
  %v5624 = vsel %vm2262, %v5622, %v5623
  %5657 = vst [vmem:[#allocation3 + $0x38] sm:$0xff] %v5531
  %5658 = vst [vmem:[#allocation3 + $0x80] sm:$0xff] %v5534
  %5659 = vst [vmem:[#allocation3 + $0xc8] sm:$0xff] %v5537
  %5660 = vst [vmem:[#allocation3 + $0x110] sm:$0xff] %v5540
  %5661 = vst [vmem:[#allocation3 + $0x158] sm:$0xff] %v5543
  %5662 = vst [vmem:[#allocation3 + $0x1a0] sm:$0xff] %v5546
  %5663 = vst [vmem:[#allocation3 + $0x1e8] sm:$0xff] %v5549
  %5664 = vst [vmem:[#allocation3 + $0x230] sm:$0xff] %v5552
  %5665 = vst [vmem:[#allocation3 + $0x278] sm:$0xff] %v5555
  %5666 = vst [vmem:[#allocation3 + $0x2c0] sm:$0xff] %v5558
  %5667 = vst [vmem:[#allocation3 + $0x308] sm:$0xff] %v5561
  %5668 = vst [vmem:[#allocation3 + $0x350] sm:$0xff] %v5564
  %5669 = vst [vmem:[#allocation3 + $0x398] sm:$0xff] %v5567
  %5670 = vst [vmem:[#allocation3 + $0x3e0] sm:$0xff] %v5570
  %5671 = vst [vmem:[#allocation3 + $0x428] sm:$0xff] %v5573
  %5672 = vst [vmem:[#allocation3 + $0x470] sm:$0xff] %v5576
  %5673 = vst [vmem:[#allocation3 + $0x4b8] sm:$0xff] %v5579
  %5674 = vst [vmem:[#allocation3 + $0x500] sm:$0xff] %v5582
  %5675 = vst [vmem:[#allocation3 + $0x548] sm:$0xff] %v5585
  %5676 = vst [vmem:[#allocation3 + $0x590] sm:$0xff] %v5588
  %5677 = vst [vmem:[#allocation3 + $0x5d8] sm:$0xff] %v5591
  %5678 = vst [vmem:[#allocation3 + $0x620] sm:$0xff] %v5594
  %5679 = vst [vmem:[#allocation3 + $0x668] sm:$0xff] %v5597
  %5680 = vst [vmem:[#allocation3 + $0x6b0] sm:$0xff] %v5600
  %5681 = vst [vmem:[#allocation3 + $0x6f8] sm:$0xff] %v5603
  %5682 = vst [vmem:[#allocation3 + $0x740] sm:$0xff] %v5606
  %5683 = vst [vmem:[#allocation3 + $0x788] sm:$0xff] %v5609
  %5684 = vst [vmem:[#allocation3 + $0x7d0] sm:$0xff] %v5612
  %5685 = vst [vmem:[#allocation3 + $0x818] sm:$0xff] %v5615
  %5686 = vst [vmem:[#allocation3 + $0x860] sm:$0xff] %v5618
  %5687 = vst [vmem:[#allocation3 + $0x8a8] sm:$0xff] %v5621
  %5688 = vst [vmem:[#allocation3 + $0x8f0] sm:$0xff] %v5624
  %v5689 = vld [vmem:[%s4728] sm:$0xf0]
  %v5690 = vld [vmem:[%s4728 + $0x8] sm:$0x1f]
  %v5691 = vld [vmem:[%s4728 + $0x10] sm:$0xf0]
  %v5692 = vld [vmem:[%s4728 + $0x18] sm:$0x1f]
  %v5693 = vld [vmem:[%s4728 + $0x20] sm:$0xf0]
  %v5694 = vld [vmem:[%s4728 + $0x28] sm:$0x1f]
  %v5695 = vld [vmem:[%s4728 + $0x30] sm:$0xf0]
  %v5696 = vld [vmem:[%s4728 + $0x38] sm:$0x1f]
  %v5697 = vld [vmem:[%s4728 + $0x40] sm:$0xf0]
  %v5698 = vld [vmem:[%s4728 + $0x48] sm:$0x1f]
  %v5699 = vld [vmem:[%s4728 + $0x50] sm:$0xf0]
  %v5700 = vld [vmem:[%s4728 + $0x58] sm:$0x1f]
  %v5701 = vld [vmem:[%s4728 + $0x60] sm:$0xf0]
  %v5702 = vld [vmem:[%s4728 + $0x68] sm:$0x1f]
  %v5703 = vld [vmem:[%s4728 + $0x70] sm:$0xf0]
  %v5704 = vld [vmem:[%s4728 + $0x78] sm:$0x1f]
  %v5705 = vld [vmem:[%s4728 + $0x80] sm:$0xf0]
  %v5706 = vld [vmem:[%s4728 + $0x88] sm:$0x1f]
  %v5707 = vld [vmem:[%s4728 + $0x90] sm:$0xf0]
  %v5708 = vld [vmem:[%s4728 + $0x98] sm:$0x1f]
  %v5709 = vld [vmem:[%s4728 + $0xa0] sm:$0xf0]
  %v5710 = vld [vmem:[%s4728 + $0xa8] sm:$0x1f]
  %v5711 = vld [vmem:[%s4728 + $0xb0] sm:$0xf0]
  %v5712 = vld [vmem:[%s4728 + $0xb8] sm:$0x1f]
  %v5713 = vld [vmem:[%s4728 + $0xc0] sm:$0xf0]
  %v5714 = vld [vmem:[%s4728 + $0xc8] sm:$0x1f]
  %v5715 = vld [vmem:[%s4728 + $0xd0] sm:$0xf0]
  %v5716 = vld [vmem:[%s4728 + $0xd8] sm:$0x1f]
  %v5717 = vld [vmem:[%s4728 + $0xe0] sm:$0xf0]
  %v5718 = vld [vmem:[%s4728 + $0xe8] sm:$0x1f]
  %v5719 = vld [vmem:[%s4728 + $0xf0] sm:$0xf0]
  %v5720 = vld [vmem:[%s4728 + $0xf8] sm:$0x1f]
  %v5721 = vld [vmem:[%s4728 + $0x120] sm:$0xf0]
  %v5722 = vld [vmem:[%s4728 + $0x128] sm:$0x1f]
  %v5723 = vld [vmem:[%s4728 + $0x130] sm:$0xf0]
  %v5724 = vld [vmem:[%s4728 + $0x138] sm:$0x1f]
  %v5725 = vld [vmem:[%s4728 + $0x140] sm:$0xf0]
  %v5726 = vld [vmem:[%s4728 + $0x148] sm:$0x1f]
  %v5727 = vld [vmem:[%s4728 + $0x150] sm:$0xf0]
  %v5728 = vld [vmem:[%s4728 + $0x158] sm:$0x1f]
  %v5729 = vld [vmem:[%s4728 + $0x160] sm:$0xf0]
  %v5730 = vld [vmem:[%s4728 + $0x168] sm:$0x1f]
  %v5731 = vld [vmem:[%s4728 + $0x170] sm:$0xf0]
  %v5732 = vld [vmem:[%s4728 + $0x178] sm:$0x1f]
  %v5733 = vld [vmem:[%s4728 + $0x180] sm:$0xf0]
  %v5734 = vld [vmem:[%s4728 + $0x188] sm:$0x1f]
  %v5735 = vld [vmem:[%s4728 + $0x190] sm:$0xf0]
  %v5736 = vld [vmem:[%s4728 + $0x198] sm:$0x1f]
  %v5737 = vld [vmem:[%s4728 + $0x1a0] sm:$0xf0]
  %v5738 = vld [vmem:[%s4728 + $0x1a8] sm:$0x1f]
  %v5739 = vld [vmem:[%s4728 + $0x1b0] sm:$0xf0]
  %v5740 = vld [vmem:[%s4728 + $0x1b8] sm:$0x1f]
  %v5741 = vld [vmem:[%s4728 + $0x1c0] sm:$0xf0]
  %v5742 = vld [vmem:[%s4728 + $0x1c8] sm:$0x1f]
  %v5743 = vld [vmem:[%s4728 + $0x1d0] sm:$0xf0]
  %v5744 = vld [vmem:[%s4728 + $0x1d8] sm:$0x1f]
  %v5745 = vld [vmem:[%s4728 + $0x1e0] sm:$0xf0]
  %v5746 = vld [vmem:[%s4728 + $0x1e8] sm:$0x1f]
  %v5747 = vld [vmem:[%s4728 + $0x1f0] sm:$0xf0]
  %v5748 = vld [vmem:[%s4728 + $0x1f8] sm:$0x1f]
  %v5749 = vld [vmem:[%s4728 + $0x200] sm:$0xf0]
  %v5750 = vld [vmem:[%s4728 + $0x208] sm:$0x1f]
  %v5751 = vld [vmem:[%s4728 + $0x210] sm:$0xf0]
  %v5752 = vld [vmem:[%s4728 + $0x218] sm:$0x1f]
  %v5754 = vshrl.u32 %v5689, 16
  %v5756 = vrot.slane %v5754, 4
  %v5757 = vshll.u32 %v5689, 16
  %v5759 = vrot.slane %v5757, 5
  %v5760 = vor.u32 %v5756, %v5759
  %v5762 = vshrl.u32 %v5690, 16
  %v5764 = vrot.slane %v5762, 4
  %v5765 = vshll.u32 %v5690, 16
  %v5767 = vrot.slane %v5765, 5
  %v5768 = vor.u32 %v5764, %v5767
  %v5769 = vsel %vm2487, %v5760, %v5768
  %v5771 = vshrl.u32 %v5691, 16
  %v5773 = vrot.slane %v5771, 4
  %v5774 = vshll.u32 %v5691, 16
  %v5776 = vrot.slane %v5774, 5
  %v5777 = vor.u32 %v5773, %v5776
  %v5779 = vshrl.u32 %v5692, 16
  %v5781 = vrot.slane %v5779, 4
  %v5782 = vshll.u32 %v5692, 16
  %v5784 = vrot.slane %v5782, 5
  %v5785 = vor.u32 %v5781, %v5784
  %v5786 = vsel %vm2487, %v5777, %v5785
  %v5788 = vshrl.u32 %v5693, 16
  %v5790 = vrot.slane %v5788, 4
  %v5791 = vshll.u32 %v5693, 16
  %v5793 = vrot.slane %v5791, 5
  %v5794 = vor.u32 %v5790, %v5793
  %v5796 = vshrl.u32 %v5694, 16
  %v5798 = vrot.slane %v5796, 4
  %v5799 = vshll.u32 %v5694, 16
  %v5801 = vrot.slane %v5799, 5
  %v5802 = vor.u32 %v5798, %v5801
  %v5803 = vsel %vm2487, %v5794, %v5802
  %v5805 = vshrl.u32 %v5695, 16
  %v5807 = vrot.slane %v5805, 4
  %v5808 = vshll.u32 %v5695, 16
  %v5810 = vrot.slane %v5808, 5
  %v5811 = vor.u32 %v5807, %v5810
  %v5813 = vshrl.u32 %v5696, 16
  %v5815 = vrot.slane %v5813, 4
  %v5816 = vshll.u32 %v5696, 16
  %v5818 = vrot.slane %v5816, 5
  %v5819 = vor.u32 %v5815, %v5818
  %v5820 = vsel %vm2487, %v5811, %v5819
  %v5822 = vshrl.u32 %v5697, 16
  %v5824 = vrot.slane %v5822, 4
  %v5825 = vshll.u32 %v5697, 16
  %v5827 = vrot.slane %v5825, 5
  %v5828 = vor.u32 %v5824, %v5827
  %v5830 = vshrl.u32 %v5698, 16
  %v5832 = vrot.slane %v5830, 4
  %v5833 = vshll.u32 %v5698, 16
  %v5835 = vrot.slane %v5833, 5
  %v5836 = vor.u32 %v5832, %v5835
  %v5837 = vsel %vm2487, %v5828, %v5836
  %v5839 = vshrl.u32 %v5699, 16
  %v5841 = vrot.slane %v5839, 4
  %v5842 = vshll.u32 %v5699, 16
  %v5844 = vrot.slane %v5842, 5
  %v5845 = vor.u32 %v5841, %v5844
  %v5847 = vshrl.u32 %v5700, 16
  %v5849 = vrot.slane %v5847, 4
  %v5850 = vshll.u32 %v5700, 16
  %v5852 = vrot.slane %v5850, 5
  %v5853 = vor.u32 %v5849, %v5852
  %v5854 = vsel %vm2487, %v5845, %v5853
  %v5856 = vshrl.u32 %v5701, 16
  %v5858 = vrot.slane %v5856, 4
  %v5859 = vshll.u32 %v5701, 16
  %v5861 = vrot.slane %v5859, 5
  %v5862 = vor.u32 %v5858, %v5861
  %v5864 = vshrl.u32 %v5702, 16
  %v5866 = vrot.slane %v5864, 4
  %v5867 = vshll.u32 %v5702, 16
  %v5869 = vrot.slane %v5867, 5
  %v5870 = vor.u32 %v5866, %v5869
  %v5871 = vsel %vm2487, %v5862, %v5870
  %v5873 = vshrl.u32 %v5703, 16
  %v5875 = vrot.slane %v5873, 4
  %v5876 = vshll.u32 %v5703, 16
  %v5878 = vrot.slane %v5876, 5
  %v5879 = vor.u32 %v5875, %v5878
  %v5881 = vshrl.u32 %v5704, 16
  %v5883 = vrot.slane %v5881, 4
  %v5884 = vshll.u32 %v5704, 16
  %v5886 = vrot.slane %v5884, 5
  %v5887 = vor.u32 %v5883, %v5886
  %v5888 = vsel %vm2487, %v5879, %v5887
  %v5890 = vshrl.u32 %v5705, 16
  %v5892 = vrot.slane %v5890, 4
  %v5893 = vshll.u32 %v5705, 16
  %v5895 = vrot.slane %v5893, 5
  %v5896 = vor.u32 %v5892, %v5895
  %v5898 = vshrl.u32 %v5706, 16
  %v5900 = vrot.slane %v5898, 4
  %v5901 = vshll.u32 %v5706, 16
  %v5903 = vrot.slane %v5901, 5
  %v5904 = vor.u32 %v5900, %v5903
  %v5905 = vsel %vm2487, %v5896, %v5904
  %v5907 = vshrl.u32 %v5707, 16
  %v5909 = vrot.slane %v5907, 4
  %v5910 = vshll.u32 %v5707, 16
  %v5912 = vrot.slane %v5910, 5
  %v5913 = vor.u32 %v5909, %v5912
  %v5915 = vshrl.u32 %v5708, 16
  %v5917 = vrot.slane %v5915, 4
  %v5918 = vshll.u32 %v5708, 16
  %v5920 = vrot.slane %v5918, 5
  %v5921 = vor.u32 %v5917, %v5920
  %v5922 = vsel %vm2487, %v5913, %v5921
  %v5924 = vshrl.u32 %v5709, 16
  %v5926 = vrot.slane %v5924, 4
  %v5927 = vshll.u32 %v5709, 16
  %v5929 = vrot.slane %v5927, 5
  %v5930 = vor.u32 %v5926, %v5929
  %v5932 = vshrl.u32 %v5710, 16
  %v5934 = vrot.slane %v5932, 4
  %v5935 = vshll.u32 %v5710, 16
  %v5937 = vrot.slane %v5935, 5
  %v5938 = vor.u32 %v5934, %v5937
  %v5939 = vsel %vm2487, %v5930, %v5938
  %v5941 = vshrl.u32 %v5711, 16
  %v5943 = vrot.slane %v5941, 4
  %v5944 = vshll.u32 %v5711, 16
  %v5946 = vrot.slane %v5944, 5
  %v5947 = vor.u32 %v5943, %v5946
  %v5949 = vshrl.u32 %v5712, 16
  %v5951 = vrot.slane %v5949, 4
  %v5952 = vshll.u32 %v5712, 16
  %v5954 = vrot.slane %v5952, 5
  %v5955 = vor.u32 %v5951, %v5954
  %v5956 = vsel %vm2487, %v5947, %v5955
  %v5958 = vshrl.u32 %v5713, 16
  %v5960 = vrot.slane %v5958, 4
  %v5961 = vshll.u32 %v5713, 16
  %v5963 = vrot.slane %v5961, 5
  %v5964 = vor.u32 %v5960, %v5963
  %v5966 = vshrl.u32 %v5714, 16
  %v5968 = vrot.slane %v5966, 4
  %v5969 = vshll.u32 %v5714, 16
  %v5971 = vrot.slane %v5969, 5
  %v5972 = vor.u32 %v5968, %v5971
  %v5973 = vsel %vm2487, %v5964, %v5972
  %v5975 = vshrl.u32 %v5715, 16
  %v5977 = vrot.slane %v5975, 4
  %v5978 = vshll.u32 %v5715, 16
  %v5980 = vrot.slane %v5978, 5
  %v5981 = vor.u32 %v5977, %v5980
  %v5983 = vshrl.u32 %v5716, 16
  %v5985 = vrot.slane %v5983, 4
  %v5986 = vshll.u32 %v5716, 16
  %v5988 = vrot.slane %v5986, 5
  %v5989 = vor.u32 %v5985, %v5988
  %v5990 = vsel %vm2487, %v5981, %v5989
  %v5992 = vshrl.u32 %v5717, 16
  %v5994 = vrot.slane %v5992, 4
  %v5995 = vshll.u32 %v5717, 16
  %v5997 = vrot.slane %v5995, 5
  %v5998 = vor.u32 %v5994, %v5997
  %v6000 = vshrl.u32 %v5718, 16
  %v6002 = vrot.slane %v6000, 4
  %v6003 = vshll.u32 %v5718, 16
  %v6005 = vrot.slane %v6003, 5
  %v6006 = vor.u32 %v6002, %v6005
  %v6007 = vsel %vm2487, %v5998, %v6006
  %v6009 = vshrl.u32 %v5719, 16
  %v6011 = vrot.slane %v6009, 4
  %v6012 = vshll.u32 %v5719, 16
  %v6014 = vrot.slane %v6012, 5
  %v6015 = vor.u32 %v6011, %v6014
  %v6017 = vshrl.u32 %v5720, 16
  %v6019 = vrot.slane %v6017, 4
  %v6020 = vshll.u32 %v5720, 16
  %v6022 = vrot.slane %v6020, 5
  %v6023 = vor.u32 %v6019, %v6022
  %v6024 = vsel %vm2487, %v6015, %v6023
  %v6026 = vshrl.u32 %v5721, 16
  %v6028 = vrot.slane %v6026, 4
  %v6029 = vshll.u32 %v5721, 16
  %v6031 = vrot.slane %v6029, 5
  %v6032 = vor.u32 %v6028, %v6031
  %v6034 = vshrl.u32 %v5722, 16
  %v6036 = vrot.slane %v6034, 4
  %v6037 = vshll.u32 %v5722, 16
  %v6039 = vrot.slane %v6037, 5
  %v6040 = vor.u32 %v6036, %v6039
  %v6041 = vsel %vm2487, %v6032, %v6040
  %v6043 = vshrl.u32 %v5723, 16
  %v6045 = vrot.slane %v6043, 4
  %v6046 = vshll.u32 %v5723, 16
  %v6048 = vrot.slane %v6046, 5
  %v6049 = vor.u32 %v6045, %v6048
  %v6051 = vshrl.u32 %v5724, 16
  %v6053 = vrot.slane %v6051, 4
  %v6054 = vshll.u32 %v5724, 16
  %v6056 = vrot.slane %v6054, 5
  %v6057 = vor.u32 %v6053, %v6056
  %v6058 = vsel %vm2487, %v6049, %v6057
  %v6060 = vshrl.u32 %v5725, 16
  %v6062 = vrot.slane %v6060, 4
  %v6063 = vshll.u32 %v5725, 16
  %v6065 = vrot.slane %v6063, 5
  %v6066 = vor.u32 %v6062, %v6065
  %v6068 = vshrl.u32 %v5726, 16
  %v6070 = vrot.slane %v6068, 4
  %v6071 = vshll.u32 %v5726, 16
  %v6073 = vrot.slane %v6071, 5
  %v6074 = vor.u32 %v6070, %v6073
  %v6075 = vsel %vm2487, %v6066, %v6074
  %v6077 = vshrl.u32 %v5727, 16
  %v6079 = vrot.slane %v6077, 4
  %v6080 = vshll.u32 %v5727, 16
  %v6082 = vrot.slane %v6080, 5
  %v6083 = vor.u32 %v6079, %v6082
  %v6085 = vshrl.u32 %v5728, 16
  %v6087 = vrot.slane %v6085, 4
  %v6088 = vshll.u32 %v5728, 16
  %v6090 = vrot.slane %v6088, 5
  %v6091 = vor.u32 %v6087, %v6090
  %v6092 = vsel %vm2487, %v6083, %v6091
  %v6094 = vshrl.u32 %v5729, 16
  %v6096 = vrot.slane %v6094, 4
  %v6097 = vshll.u32 %v5729, 16
  %v6099 = vrot.slane %v6097, 5
  %v6100 = vor.u32 %v6096, %v6099
  %v6102 = vshrl.u32 %v5730, 16
  %v6104 = vrot.slane %v6102, 4
  %v6105 = vshll.u32 %v5730, 16
  %v6107 = vrot.slane %v6105, 5
  %v6108 = vor.u32 %v6104, %v6107
  %v6109 = vsel %vm2487, %v6100, %v6108
  %v6111 = vshrl.u32 %v5731, 16
  %v6113 = vrot.slane %v6111, 4
  %v6114 = vshll.u32 %v5731, 16
  %v6116 = vrot.slane %v6114, 5
  %v6117 = vor.u32 %v6113, %v6116
  %v6119 = vshrl.u32 %v5732, 16
  %v6121 = vrot.slane %v6119, 4
  %v6122 = vshll.u32 %v5732, 16
  %v6124 = vrot.slane %v6122, 5
  %v6125 = vor.u32 %v6121, %v6124
  %v6126 = vsel %vm2487, %v6117, %v6125
  %v6128 = vshrl.u32 %v5733, 16
  %v6130 = vrot.slane %v6128, 4
  %v6131 = vshll.u32 %v5733, 16
  %v6133 = vrot.slane %v6131, 5
  %v6134 = vor.u32 %v6130, %v6133
  %v6136 = vshrl.u32 %v5734, 16
  %v6138 = vrot.slane %v6136, 4
  %v6139 = vshll.u32 %v5734, 16
  %v6141 = vrot.slane %v6139, 5
  %v6142 = vor.u32 %v6138, %v6141
  %v6143 = vsel %vm2487, %v6134, %v6142
  %v6145 = vshrl.u32 %v5735, 16
  %v6147 = vrot.slane %v6145, 4
  %v6148 = vshll.u32 %v5735, 16
  %v6150 = vrot.slane %v6148, 5
  %v6151 = vor.u32 %v6147, %v6150
  %v6153 = vshrl.u32 %v5736, 16
  %v6155 = vrot.slane %v6153, 4
  %v6156 = vshll.u32 %v5736, 16
  %v6158 = vrot.slane %v6156, 5
  %v6159 = vor.u32 %v6155, %v6158
  %v6160 = vsel %vm2487, %v6151, %v6159
  %v6162 = vshrl.u32 %v5737, 16
  %v6164 = vrot.slane %v6162, 4
  %v6165 = vshll.u32 %v5737, 16
  %v6167 = vrot.slane %v6165, 5
  %v6168 = vor.u32 %v6164, %v6167
  %v6170 = vshrl.u32 %v5738, 16
  %v6172 = vrot.slane %v6170, 4
  %v6173 = vshll.u32 %v5738, 16
  %v6175 = vrot.slane %v6173, 5
  %v6176 = vor.u32 %v6172, %v6175
  %v6177 = vsel %vm2487, %v6168, %v6176
  %v6179 = vshrl.u32 %v5739, 16
  %v6181 = vrot.slane %v6179, 4
  %v6182 = vshll.u32 %v5739, 16
  %v6184 = vrot.slane %v6182, 5
  %v6185 = vor.u32 %v6181, %v6184
  %v6187 = vshrl.u32 %v5740, 16
  %v6189 = vrot.slane %v6187, 4
  %v6190 = vshll.u32 %v5740, 16
  %v6192 = vrot.slane %v6190, 5
  %v6193 = vor.u32 %v6189, %v6192
  %v6194 = vsel %vm2487, %v6185, %v6193
  %v6196 = vshrl.u32 %v5741, 16
  %v6198 = vrot.slane %v6196, 4
  %v6199 = vshll.u32 %v5741, 16
  %v6201 = vrot.slane %v6199, 5
  %v6202 = vor.u32 %v6198, %v6201
  %v6204 = vshrl.u32 %v5742, 16
  %v6206 = vrot.slane %v6204, 4
  %v6207 = vshll.u32 %v5742, 16
  %v6209 = vrot.slane %v6207, 5
  %v6210 = vor.u32 %v6206, %v6209
  %v6211 = vsel %vm2487, %v6202, %v6210
  %v6213 = vshrl.u32 %v5743, 16
  %v6215 = vrot.slane %v6213, 4
  %v6216 = vshll.u32 %v5743, 16
  %v6218 = vrot.slane %v6216, 5
  %v6219 = vor.u32 %v6215, %v6218
  %v6221 = vshrl.u32 %v5744, 16
  %v6223 = vrot.slane %v6221, 4
  %v6224 = vshll.u32 %v5744, 16
  %v6226 = vrot.slane %v6224, 5
  %v6227 = vor.u32 %v6223, %v6226
  %v6228 = vsel %vm2487, %v6219, %v6227
  %v6230 = vshrl.u32 %v5745, 16
  %v6232 = vrot.slane %v6230, 4
  %v6233 = vshll.u32 %v5745, 16
  %v6235 = vrot.slane %v6233, 5
  %v6236 = vor.u32 %v6232, %v6235
  %v6238 = vshrl.u32 %v5746, 16
  %v6240 = vrot.slane %v6238, 4
  %v6241 = vshll.u32 %v5746, 16
  %v6243 = vrot.slane %v6241, 5
  %v6244 = vor.u32 %v6240, %v6243
  %v6245 = vsel %vm2487, %v6236, %v6244
  %v6247 = vshrl.u32 %v5747, 16
  %v6249 = vrot.slane %v6247, 4
  %v6250 = vshll.u32 %v5747, 16
  %v6252 = vrot.slane %v6250, 5
  %v6253 = vor.u32 %v6249, %v6252
  %v6255 = vshrl.u32 %v5748, 16
  %v6257 = vrot.slane %v6255, 4
  %v6258 = vshll.u32 %v5748, 16
  %v6260 = vrot.slane %v6258, 5
  %v6261 = vor.u32 %v6257, %v6260
  %v6262 = vsel %vm2487, %v6253, %v6261
  %v6264 = vshrl.u32 %v5749, 16
  %v6266 = vrot.slane %v6264, 4
  %v6267 = vshll.u32 %v5749, 16
  %v6269 = vrot.slane %v6267, 5
  %v6270 = vor.u32 %v6266, %v6269
  %v6272 = vshrl.u32 %v5750, 16
  %v6274 = vrot.slane %v6272, 4
  %v6275 = vshll.u32 %v5750, 16
  %v6277 = vrot.slane %v6275, 5
  %v6278 = vor.u32 %v6274, %v6277
  %v6279 = vsel %vm2487, %v6270, %v6278
  %v6281 = vshrl.u32 %v5751, 16
  %v6283 = vrot.slane %v6281, 4
  %v6284 = vshll.u32 %v5751, 16
  %v6286 = vrot.slane %v6284, 5
  %v6287 = vor.u32 %v6283, %v6286
  %v6289 = vshrl.u32 %v5752, 16
  %v6291 = vrot.slane %v6289, 4
  %v6292 = vshll.u32 %v5752, 16
  %v6294 = vrot.slane %v6292, 5
  %v6295 = vor.u32 %v6291, %v6294
  %v6296 = vsel %vm2487, %v6287, %v6295
  %6329 = vst [vmem:[#allocation3 + $0x40] sm:$0xff] %v5769
  %6330 = vst [vmem:[#allocation3 + $0x88] sm:$0xff] %v5786
  %6331 = vst [vmem:[#allocation3 + $0xd0] sm:$0xff] %v5803
  %6332 = vst [vmem:[#allocation3 + $0x118] sm:$0xff] %v5820
  %6333 = vst [vmem:[#allocation3 + $0x160] sm:$0xff] %v5837
  %6334 = vst [vmem:[#allocation3 + $0x1a8] sm:$0xff] %v5854
  %6335 = vst [vmem:[#allocation3 + $0x1f0] sm:$0xff] %v5871
  %6336 = vst [vmem:[#allocation3 + $0x238] sm:$0xff] %v5888
  %6337 = vst [vmem:[#allocation3 + $0x280] sm:$0xff] %v5905
  %6338 = vst [vmem:[#allocation3 + $0x2c8] sm:$0xff] %v5922
  %6339 = vst [vmem:[#allocation3 + $0x310] sm:$0xff] %v5939
  %6340 = vst [vmem:[#allocation3 + $0x358] sm:$0xff] %v5956
  %6341 = vst [vmem:[#allocation3 + $0x3a0] sm:$0xff] %v5973
  %6342 = vst [vmem:[#allocation3 + $0x3e8] sm:$0xff] %v5990
  %6343 = vst [vmem:[#allocation3 + $0x430] sm:$0xff] %v6007
  %6344 = vst [vmem:[#allocation3 + $0x478] sm:$0xff] %v6024
  %6345 = vst [vmem:[#allocation3 + $0x4c0] sm:$0xff] %v6041
  %6346 = vst [vmem:[#allocation3 + $0x508] sm:$0xff] %v6058
  %6347 = vst [vmem:[#allocation3 + $0x550] sm:$0xff] %v6075
  %6348 = vst [vmem:[#allocation3 + $0x598] sm:$0xff] %v6092
  %6349 = vst [vmem:[#allocation3 + $0x5e0] sm:$0xff] %v6109
  %6350 = vst [vmem:[#allocation3 + $0x628] sm:$0xff] %v6126
  %6351 = vst [vmem:[#allocation3 + $0x670] sm:$0xff] %v6143
  %6352 = vst [vmem:[#allocation3 + $0x6b8] sm:$0xff] %v6160
  %6353 = vst [vmem:[#allocation3 + $0x700] sm:$0xff] %v6177
  %6354 = vst [vmem:[#allocation3 + $0x748] sm:$0xff] %v6194
  %6355 = vst [vmem:[#allocation3 + $0x790] sm:$0xff] %v6211
  %6356 = vst [vmem:[#allocation3 + $0x7d8] sm:$0xff] %v6228
  %6357 = vst [vmem:[#allocation3 + $0x820] sm:$0xff] %v6245
  %6358 = vst [vmem:[#allocation3 + $0x868] sm:$0xff] %v6262
  %6359 = vst [vmem:[#allocation3 + $0x8b0] sm:$0xff] %v6279
  %6360 = vst [vmem:[#allocation3 + $0x8f8] sm:$0xff] %v6296
  %v6361 = vld [vmem:[#allocation3] sm:$0xff]
  %v6362 = vld [vmem:[#allocation3 + $0x8] sm:$0xff]
  %v6363 = vld [vmem:[#allocation3 + $0x10] sm:$0xff]
  %v6364 = vld [vmem:[#allocation3 + $0x18] sm:$0xff]
  %v6365 = vld [vmem:[#allocation3 + $0x20] sm:$0xff]
  %v6366 = vld [vmem:[#allocation3 + $0x28] sm:$0xff]
  %v6367 = vld [vmem:[#allocation3 + $0x30] sm:$0xff]
  %v6368 = vld [vmem:[#allocation3 + $0x38] sm:$0xff]
  %v6369 = vld [vmem:[#allocation3 + $0x40] sm:$0xff]
  %v6370 = vld [vmem:[#allocation3 + $0x48] sm:$0xff]
  %v6371 = vld [vmem:[#allocation3 + $0x50] sm:$0xff]
  %v6372 = vld [vmem:[#allocation3 + $0x58] sm:$0xff]
  %v6373 = vld [vmem:[#allocation3 + $0x60] sm:$0xff]
  %v6374 = vld [vmem:[#allocation3 + $0x68] sm:$0xff]
  %v6375 = vld [vmem:[#allocation3 + $0x70] sm:$0xff]
  %v6376 = vld [vmem:[#allocation3 + $0x78] sm:$0xff]
  %v6377 = vld [vmem:[#allocation3 + $0x80] sm:$0xff]
  %v6378 = vld [vmem:[#allocation3 + $0x88] sm:$0xff]
  %v6379 = vld [vmem:[#allocation3 + $0x90] sm:$0xff]
  %v6380 = vld [vmem:[#allocation3 + $0x98] sm:$0xff]
  %v6381 = vld [vmem:[#allocation3 + $0xa0] sm:$0xff]
  %v6382 = vld [vmem:[#allocation3 + $0xa8] sm:$0xff]
  %v6383 = vld [vmem:[#allocation3 + $0xb0] sm:$0xff]
  %v6384 = vld [vmem:[#allocation3 + $0xb8] sm:$0xff]
  %v6385 = vld [vmem:[#allocation3 + $0xc0] sm:$0xff]
  %v6386 = vld [vmem:[#allocation3 + $0xc8] sm:$0xff]
  %v6387 = vld [vmem:[#allocation3 + $0xd0] sm:$0xff]
  %v6388 = vld [vmem:[#allocation3 + $0xd8] sm:$0xff]
  %v6389 = vld [vmem:[#allocation3 + $0xe0] sm:$0xff]
  %v6390 = vld [vmem:[#allocation3 + $0xe8] sm:$0xff]
  %v6391 = vld [vmem:[#allocation3 + $0xf0] sm:$0xff]
  %v6392 = vld [vmem:[#allocation3 + $0xf8] sm:$0xff]
  %v6393 = vld [vmem:[#allocation3 + $0x100] sm:$0xff]
  %v6394 = vld [vmem:[#allocation3 + $0x108] sm:$0xff]
  %v6395 = vld [vmem:[#allocation3 + $0x110] sm:$0xff]
  %v6396 = vld [vmem:[#allocation3 + $0x118] sm:$0xff]
  %v6397 = vld [vmem:[#allocation3 + $0x120] sm:$0xff]
  %v6398 = vld [vmem:[#allocation3 + $0x128] sm:$0xff]
  %v6399 = vld [vmem:[#allocation3 + $0x130] sm:$0xff]
  %v6400 = vld [vmem:[#allocation3 + $0x138] sm:$0xff]
  %v6401 = vld [vmem:[#allocation3 + $0x140] sm:$0xff]
  %v6402 = vld [vmem:[#allocation3 + $0x148] sm:$0xff]
  %v6403 = vld [vmem:[#allocation3 + $0x150] sm:$0xff]
  %v6404 = vld [vmem:[#allocation3 + $0x158] sm:$0xff]
  %v6405 = vld [vmem:[#allocation3 + $0x160] sm:$0xff]
  %v6406 = vld [vmem:[#allocation3 + $0x168] sm:$0xff]
  %v6407 = vld [vmem:[#allocation3 + $0x170] sm:$0xff]
  %v6408 = vld [vmem:[#allocation3 + $0x178] sm:$0xff]
  %v6409 = vld [vmem:[#allocation3 + $0x180] sm:$0xff]
  %v6410 = vld [vmem:[#allocation3 + $0x188] sm:$0xff]
  %v6411 = vld [vmem:[#allocation3 + $0x190] sm:$0xff]
  %v6412 = vld [vmem:[#allocation3 + $0x198] sm:$0xff]
  %v6413 = vld [vmem:[#allocation3 + $0x1a0] sm:$0xff]
  %v6414 = vld [vmem:[#allocation3 + $0x1a8] sm:$0xff]
  %v6415 = vld [vmem:[#allocation3 + $0x1b0] sm:$0xff]
  %v6416 = vld [vmem:[#allocation3 + $0x1b8] sm:$0xff]
  %v6417 = vld [vmem:[#allocation3 + $0x1c0] sm:$0xff]
  %v6418 = vld [vmem:[#allocation3 + $0x1c8] sm:$0xff]
  %v6419 = vld [vmem:[#allocation3 + $0x1d0] sm:$0xff]
  %v6420 = vld [vmem:[#allocation3 + $0x1d8] sm:$0xff]
  %v6421 = vld [vmem:[#allocation3 + $0x1e0] sm:$0xff]
  %v6422 = vld [vmem:[#allocation3 + $0x1e8] sm:$0xff]
  %v6423 = vld [vmem:[#allocation3 + $0x1f0] sm:$0xff]
  %v6424 = vld [vmem:[#allocation3 + $0x1f8] sm:$0xff]
  %v6425 = vld [vmem:[#allocation3 + $0x200] sm:$0xff]
  %v6426 = vld [vmem:[#allocation3 + $0x208] sm:$0xff]
  %v6427 = vld [vmem:[#allocation3 + $0x210] sm:$0xff]
  %v6428 = vld [vmem:[#allocation3 + $0x218] sm:$0xff]
  %v6429 = vld [vmem:[#allocation3 + $0x220] sm:$0xff]
  %v6430 = vld [vmem:[#allocation3 + $0x228] sm:$0xff]
  %v6431 = vld [vmem:[#allocation3 + $0x230] sm:$0xff]
  %v6432 = vld [vmem:[#allocation3 + $0x238] sm:$0xff]
  %v6433 = vld [vmem:[#allocation3 + $0x240] sm:$0xff]
  %v6434 = vld [vmem:[#allocation3 + $0x248] sm:$0xff]
  %v6435 = vld [vmem:[#allocation3 + $0x250] sm:$0xff]
  %v6436 = vld [vmem:[#allocation3 + $0x258] sm:$0xff]
  %v6437 = vld [vmem:[#allocation3 + $0x260] sm:$0xff]
  %v6438 = vld [vmem:[#allocation3 + $0x268] sm:$0xff]
  %v6439 = vld [vmem:[#allocation3 + $0x270] sm:$0xff]
  %v6440 = vld [vmem:[#allocation3 + $0x278] sm:$0xff]
  %v6441 = vld [vmem:[#allocation3 + $0x280] sm:$0xff]
  %v6442 = vld [vmem:[#allocation3 + $0x288] sm:$0xff]
  %v6443 = vld [vmem:[#allocation3 + $0x290] sm:$0xff]
  %v6444 = vld [vmem:[#allocation3 + $0x298] sm:$0xff]
  %v6445 = vld [vmem:[#allocation3 + $0x2a0] sm:$0xff]
  %v6446 = vld [vmem:[#allocation3 + $0x2a8] sm:$0xff]
  %v6447 = vld [vmem:[#allocation3 + $0x2b0] sm:$0xff]
  %v6448 = vld [vmem:[#allocation3 + $0x2b8] sm:$0xff]
  %v6449 = vld [vmem:[#allocation3 + $0x2c0] sm:$0xff]
  %v6450 = vld [vmem:[#allocation3 + $0x2c8] sm:$0xff]
  %v6451 = vld [vmem:[#allocation3 + $0x2d0] sm:$0xff]
  %v6452 = vld [vmem:[#allocation3 + $0x2d8] sm:$0xff]
  %v6453 = vld [vmem:[#allocation3 + $0x2e0] sm:$0xff]
  %v6454 = vld [vmem:[#allocation3 + $0x2e8] sm:$0xff]
  %v6455 = vld [vmem:[#allocation3 + $0x2f0] sm:$0xff]
  %v6456 = vld [vmem:[#allocation3 + $0x2f8] sm:$0xff]
  %v6457 = vld [vmem:[#allocation3 + $0x300] sm:$0xff]
  %v6458 = vld [vmem:[#allocation3 + $0x308] sm:$0xff]
  %v6459 = vld [vmem:[#allocation3 + $0x310] sm:$0xff]
  %v6460 = vld [vmem:[#allocation3 + $0x318] sm:$0xff]
  %v6461 = vld [vmem:[#allocation3 + $0x320] sm:$0xff]
  %v6462 = vld [vmem:[#allocation3 + $0x328] sm:$0xff]
  %v6463 = vld [vmem:[#allocation3 + $0x330] sm:$0xff]
  %v6464 = vld [vmem:[#allocation3 + $0x338] sm:$0xff]
  %v6465 = vld [vmem:[#allocation3 + $0x340] sm:$0xff]
  %v6466 = vld [vmem:[#allocation3 + $0x348] sm:$0xff]
  %v6467 = vld [vmem:[#allocation3 + $0x350] sm:$0xff]
  %v6468 = vld [vmem:[#allocation3 + $0x358] sm:$0xff]
  %v6469 = vld [vmem:[#allocation3 + $0x360] sm:$0xff]
  %v6470 = vld [vmem:[#allocation3 + $0x368] sm:$0xff]
  %v6471 = vld [vmem:[#allocation3 + $0x370] sm:$0xff]
  %v6472 = vld [vmem:[#allocation3 + $0x378] sm:$0xff]
  %v6473 = vld [vmem:[#allocation3 + $0x380] sm:$0xff]
  %v6474 = vld [vmem:[#allocation3 + $0x388] sm:$0xff]
  %v6475 = vld [vmem:[#allocation3 + $0x390] sm:$0xff]
  %v6476 = vld [vmem:[#allocation3 + $0x398] sm:$0xff]
  %v6477 = vld [vmem:[#allocation3 + $0x3a0] sm:$0xff]
  %v6478 = vld [vmem:[#allocation3 + $0x3a8] sm:$0xff]
  %v6479 = vld [vmem:[#allocation3 + $0x3b0] sm:$0xff]
  %v6480 = vld [vmem:[#allocation3 + $0x3b8] sm:$0xff]
  %v6481 = vld [vmem:[#allocation3 + $0x3c0] sm:$0xff]
  %v6482 = vld [vmem:[#allocation3 + $0x3c8] sm:$0xff]
  %v6483 = vld [vmem:[#allocation3 + $0x3d0] sm:$0xff]
  %v6484 = vld [vmem:[#allocation3 + $0x3d8] sm:$0xff]
  %v6485 = vld [vmem:[#allocation3 + $0x3e0] sm:$0xff]
  %v6486 = vld [vmem:[#allocation3 + $0x3e8] sm:$0xff]
  %v6487 = vld [vmem:[#allocation3 + $0x3f0] sm:$0xff]
  %v6488 = vld [vmem:[#allocation3 + $0x3f8] sm:$0xff]
  %v6489 = vld [vmem:[#allocation3 + $0x400] sm:$0xff]
  %v6490 = vld [vmem:[#allocation3 + $0x408] sm:$0xff]
  %v6491 = vld [vmem:[#allocation3 + $0x410] sm:$0xff]
  %v6492 = vld [vmem:[#allocation3 + $0x418] sm:$0xff]
  %v6493 = vld [vmem:[#allocation3 + $0x420] sm:$0xff]
  %v6494 = vld [vmem:[#allocation3 + $0x428] sm:$0xff]
  %v6495 = vld [vmem:[#allocation3 + $0x430] sm:$0xff]
  %v6496 = vld [vmem:[#allocation3 + $0x438] sm:$0xff]
  %v6497 = vld [vmem:[#allocation3 + $0x440] sm:$0xff]
  %v6498 = vld [vmem:[#allocation3 + $0x448] sm:$0xff]
  %v6499 = vld [vmem:[#allocation3 + $0x450] sm:$0xff]
  %v6500 = vld [vmem:[#allocation3 + $0x458] sm:$0xff]
  %v6501 = vld [vmem:[#allocation3 + $0x460] sm:$0xff]
  %v6502 = vld [vmem:[#allocation3 + $0x468] sm:$0xff]
  %v6503 = vld [vmem:[#allocation3 + $0x470] sm:$0xff]
  %v6504 = vld [vmem:[#allocation3 + $0x478] sm:$0xff]
  %v6505 = vld [vmem:[#allocation3 + $0x480] sm:$0xff]
  %v6506 = vld [vmem:[#allocation3 + $0x488] sm:$0xff]
  %v6507 = vld [vmem:[#allocation3 + $0x490] sm:$0xff]
  %v6508 = vld [vmem:[#allocation3 + $0x498] sm:$0xff]
  %v6509 = vld [vmem:[#allocation3 + $0x4a0] sm:$0xff]
  %v6510 = vld [vmem:[#allocation3 + $0x4a8] sm:$0xff]
  %v6511 = vld [vmem:[#allocation3 + $0x4b0] sm:$0xff]
  %v6512 = vld [vmem:[#allocation3 + $0x4b8] sm:$0xff]
  %v6513 = vld [vmem:[#allocation3 + $0x4c0] sm:$0xff]
  %v6514 = vld [vmem:[#allocation3 + $0x4c8] sm:$0xff]
  %v6515 = vld [vmem:[#allocation3 + $0x4d0] sm:$0xff]
  %v6516 = vld [vmem:[#allocation3 + $0x4d8] sm:$0xff]
  %v6517 = vld [vmem:[#allocation3 + $0x4e0] sm:$0xff]
  %v6518 = vld [vmem:[#allocation3 + $0x4e8] sm:$0xff]
  %v6519 = vld [vmem:[#allocation3 + $0x4f0] sm:$0xff]
  %v6520 = vld [vmem:[#allocation3 + $0x4f8] sm:$0xff]
  %v6521 = vld [vmem:[#allocation3 + $0x500] sm:$0xff]
  %v6522 = vld [vmem:[#allocation3 + $0x508] sm:$0xff]
  %v6523 = vld [vmem:[#allocation3 + $0x510] sm:$0xff]
  %v6524 = vld [vmem:[#allocation3 + $0x518] sm:$0xff]
  %v6525 = vld [vmem:[#allocation3 + $0x520] sm:$0xff]
  %v6526 = vld [vmem:[#allocation3 + $0x528] sm:$0xff]
  %v6527 = vld [vmem:[#allocation3 + $0x530] sm:$0xff]
  %v6528 = vld [vmem:[#allocation3 + $0x538] sm:$0xff]
  %v6529 = vld [vmem:[#allocation3 + $0x540] sm:$0xff]
  %v6530 = vld [vmem:[#allocation3 + $0x548] sm:$0xff]
  %v6531 = vld [vmem:[#allocation3 + $0x550] sm:$0xff]
  %v6532 = vld [vmem:[#allocation3 + $0x558] sm:$0xff]
  %v6533 = vld [vmem:[#allocation3 + $0x560] sm:$0xff]
  %v6534 = vld [vmem:[#allocation3 + $0x568] sm:$0xff]
  %v6535 = vld [vmem:[#allocation3 + $0x570] sm:$0xff]
  %v6536 = vld [vmem:[#allocation3 + $0x578] sm:$0xff]
  %v6537 = vld [vmem:[#allocation3 + $0x580] sm:$0xff]
  %v6538 = vld [vmem:[#allocation3 + $0x588] sm:$0xff]
  %v6539 = vld [vmem:[#allocation3 + $0x590] sm:$0xff]
  %v6540 = vld [vmem:[#allocation3 + $0x598] sm:$0xff]
  %v6541 = vld [vmem:[#allocation3 + $0x5a0] sm:$0xff]
  %v6542 = vld [vmem:[#allocation3 + $0x5a8] sm:$0xff]
  %v6543 = vld [vmem:[#allocation3 + $0x5b0] sm:$0xff]
  %v6544 = vld [vmem:[#allocation3 + $0x5b8] sm:$0xff]
  %v6545 = vld [vmem:[#allocation3 + $0x5c0] sm:$0xff]
  %v6546 = vld [vmem:[#allocation3 + $0x5c8] sm:$0xff]
  %v6547 = vld [vmem:[#allocation3 + $0x5d0] sm:$0xff]
  %v6548 = vld [vmem:[#allocation3 + $0x5d8] sm:$0xff]
  %v6549 = vld [vmem:[#allocation3 + $0x5e0] sm:$0xff]
  %v6550 = vld [vmem:[#allocation3 + $0x5e8] sm:$0xff]
  %v6551 = vld [vmem:[#allocation3 + $0x5f0] sm:$0xff]
  %v6552 = vld [vmem:[#allocation3 + $0x5f8] sm:$0xff]
  %v6553 = vld [vmem:[#allocation3 + $0x600] sm:$0xff]
  %v6554 = vld [vmem:[#allocation3 + $0x608] sm:$0xff]
  %v6555 = vld [vmem:[#allocation3 + $0x610] sm:$0xff]
  %v6556 = vld [vmem:[#allocation3 + $0x618] sm:$0xff]
  %v6557 = vld [vmem:[#allocation3 + $0x620] sm:$0xff]
  %v6558 = vld [vmem:[#allocation3 + $0x628] sm:$0xff]
  %v6559 = vld [vmem:[#allocation3 + $0x630] sm:$0xff]
  %v6560 = vld [vmem:[#allocation3 + $0x638] sm:$0xff]
  %v6561 = vld [vmem:[#allocation3 + $0x640] sm:$0xff]
  %v6562 = vld [vmem:[#allocation3 + $0x648] sm:$0xff]
  %v6563 = vld [vmem:[#allocation3 + $0x650] sm:$0xff]
  %v6564 = vld [vmem:[#allocation3 + $0x658] sm:$0xff]
  %v6565 = vld [vmem:[#allocation3 + $0x660] sm:$0xff]
  %v6566 = vld [vmem:[#allocation3 + $0x668] sm:$0xff]
  %v6567 = vld [vmem:[#allocation3 + $0x670] sm:$0xff]
  %v6568 = vld [vmem:[#allocation3 + $0x678] sm:$0xff]
  %v6569 = vld [vmem:[#allocation3 + $0x680] sm:$0xff]
  %v6570 = vld [vmem:[#allocation3 + $0x688] sm:$0xff]
  %v6571 = vld [vmem:[#allocation3 + $0x690] sm:$0xff]
  %v6572 = vld [vmem:[#allocation3 + $0x698] sm:$0xff]
  %v6573 = vld [vmem:[#allocation3 + $0x6a0] sm:$0xff]
  %v6574 = vld [vmem:[#allocation3 + $0x6a8] sm:$0xff]
  %v6575 = vld [vmem:[#allocation3 + $0x6b0] sm:$0xff]
  %v6576 = vld [vmem:[#allocation3 + $0x6b8] sm:$0xff]
  %v6577 = vld [vmem:[#allocation3 + $0x6c0] sm:$0xff]
  %v6578 = vld [vmem:[#allocation3 + $0x6c8] sm:$0xff]
  %v6579 = vld [vmem:[#allocation3 + $0x6d0] sm:$0xff]
  %v6580 = vld [vmem:[#allocation3 + $0x6d8] sm:$0xff]
  %v6581 = vld [vmem:[#allocation3 + $0x6e0] sm:$0xff]
  %v6582 = vld [vmem:[#allocation3 + $0x6e8] sm:$0xff]
  %v6583 = vld [vmem:[#allocation3 + $0x6f0] sm:$0xff]
  %v6584 = vld [vmem:[#allocation3 + $0x6f8] sm:$0xff]
  %v6585 = vld [vmem:[#allocation3 + $0x700] sm:$0xff]
  %v6586 = vld [vmem:[#allocation3 + $0x708] sm:$0xff]
  %v6587 = vld [vmem:[#allocation3 + $0x710] sm:$0xff]
  %v6588 = vld [vmem:[#allocation3 + $0x718] sm:$0xff]
  %v6589 = vld [vmem:[#allocation3 + $0x720] sm:$0xff]
  %v6590 = vld [vmem:[#allocation3 + $0x728] sm:$0xff]
  %v6591 = vld [vmem:[#allocation3 + $0x730] sm:$0xff]
  %v6592 = vld [vmem:[#allocation3 + $0x738] sm:$0xff]
  %v6593 = vld [vmem:[#allocation3 + $0x740] sm:$0xff]
  %v6594 = vld [vmem:[#allocation3 + $0x748] sm:$0xff]
  %v6595 = vld [vmem:[#allocation3 + $0x750] sm:$0xff]
  %v6596 = vld [vmem:[#allocation3 + $0x758] sm:$0xff]
  %v6597 = vld [vmem:[#allocation3 + $0x760] sm:$0xff]
  %v6598 = vld [vmem:[#allocation3 + $0x768] sm:$0xff]
  %v6599 = vld [vmem:[#allocation3 + $0x770] sm:$0xff]
  %v6600 = vld [vmem:[#allocation3 + $0x778] sm:$0xff]
  %v6601 = vld [vmem:[#allocation3 + $0x780] sm:$0xff]
  %v6602 = vld [vmem:[#allocation3 + $0x788] sm:$0xff]
  %v6603 = vld [vmem:[#allocation3 + $0x790] sm:$0xff]
  %v6604 = vld [vmem:[#allocation3 + $0x798] sm:$0xff]
  %v6605 = vld [vmem:[#allocation3 + $0x7a0] sm:$0xff]
  %v6606 = vld [vmem:[#allocation3 + $0x7a8] sm:$0xff]
  %v6607 = vld [vmem:[#allocation3 + $0x7b0] sm:$0xff]
  %v6608 = vld [vmem:[#allocation3 + $0x7b8] sm:$0xff]
  %v6609 = vld [vmem:[#allocation3 + $0x7c0] sm:$0xff]
  %v6610 = vld [vmem:[#allocation3 + $0x7c8] sm:$0xff]
  %v6611 = vld [vmem:[#allocation3 + $0x7d0] sm:$0xff]
  %v6612 = vld [vmem:[#allocation3 + $0x7d8] sm:$0xff]
  %v6613 = vld [vmem:[#allocation3 + $0x7e0] sm:$0xff]
  %v6614 = vld [vmem:[#allocation3 + $0x7e8] sm:$0xff]
  %v6615 = vld [vmem:[#allocation3 + $0x7f0] sm:$0xff]
  %v6616 = vld [vmem:[#allocation3 + $0x7f8] sm:$0xff]
  %v6617 = vld [vmem:[#allocation3 + $0x800] sm:$0xff]
  %v6618 = vld [vmem:[#allocation3 + $0x808] sm:$0xff]
  %v6619 = vld [vmem:[#allocation3 + $0x810] sm:$0xff]
  %v6620 = vld [vmem:[#allocation3 + $0x818] sm:$0xff]
  %v6621 = vld [vmem:[#allocation3 + $0x820] sm:$0xff]
  %v6622 = vld [vmem:[#allocation3 + $0x828] sm:$0xff]
  %v6623 = vld [vmem:[#allocation3 + $0x830] sm:$0xff]
  %v6624 = vld [vmem:[#allocation3 + $0x838] sm:$0xff]
  %v6625 = vld [vmem:[#allocation3 + $0x840] sm:$0xff]
  %v6626 = vld [vmem:[#allocation3 + $0x848] sm:$0xff]
  %v6627 = vld [vmem:[#allocation3 + $0x850] sm:$0xff]
  %v6628 = vld [vmem:[#allocation3 + $0x858] sm:$0xff]
  %v6629 = vld [vmem:[#allocation3 + $0x860] sm:$0xff]
  %v6630 = vld [vmem:[#allocation3 + $0x868] sm:$0xff]
  %v6631 = vld [vmem:[#allocation3 + $0x870] sm:$0xff]
  %v6632 = vld [vmem:[#allocation3 + $0x878] sm:$0xff]
  %v6633 = vld [vmem:[#allocation3 + $0x880] sm:$0xff]
  %v6634 = vld [vmem:[#allocation3 + $0x888] sm:$0xff]
  %v6635 = vld [vmem:[#allocation3 + $0x890] sm:$0xff]
  %v6636 = vld [vmem:[#allocation3 + $0x898] sm:$0xff]
  %v6637 = vld [vmem:[#allocation3 + $0x8a0] sm:$0xff]
  %v6638 = vld [vmem:[#allocation3 + $0x8a8] sm:$0xff]
  %v6639 = vld [vmem:[#allocation3 + $0x8b0] sm:$0xff]
  %v6640 = vld [vmem:[#allocation3 + $0x8b8] sm:$0xff]
  %v6641 = vld [vmem:[#allocation3 + $0x8c0] sm:$0xff]
  %v6642 = vld [vmem:[#allocation3 + $0x8c8] sm:$0xff]
  %v6643 = vld [vmem:[#allocation3 + $0x8d0] sm:$0xff]
  %v6644 = vld [vmem:[#allocation3 + $0x8d8] sm:$0xff]
  %v6645 = vld [vmem:[#allocation3 + $0x8e0] sm:$0xff]
  %v6646 = vld [vmem:[#allocation3 + $0x8e8] sm:$0xff]
  %v6647 = vld [vmem:[#allocation3 + $0x8f0] sm:$0xff]
  %v6648 = vld [vmem:[#allocation3 + $0x8f8] sm:$0xff]
  %v6649 = vld [vmem:[%s4] sm:$0xf]
  %v6650 = vld [vmem:[%s4 + $0x4] sm:$0xf]
  %v6651 = vld [vmem:[%s4 + $0x8] sm:$0xf]
  %v6652 = vld [vmem:[%s4 + $0xc] sm:$0xf]
  %v6653 = vld [vmem:[%s4 + $0x10] sm:$0xf]
  %v6654 = vld [vmem:[%s4 + $0x14] sm:$0xf]
  %v6655 = vld [vmem:[%s4 + $0x18] sm:$0xf]
  %v6656 = vld [vmem:[%s4 + $0x1c] sm:$0xf]
  %v6657 = vld [vmem:[%s4 + $0x20] sm:$0xf]
  %v6658 = vld [vmem:[%s4 + $0x24] sm:$0xf]
  %v6659 = vld [vmem:[%s4 + $0x28] sm:$0xf]
  %v6660 = vld [vmem:[%s4 + $0x2c] sm:$0xf]
  %v6661 = vld [vmem:[%s4 + $0x30] sm:$0xf]
  %v6662 = vld [vmem:[%s4 + $0x34] sm:$0xf]
  %v6663 = vld [vmem:[%s4 + $0x38] sm:$0xf]
  %v6664 = vld [vmem:[%s4 + $0x3c] sm:$0xf]
  %v6665 = vld [vmem:[%s4 + $0x40] sm:$0xf]
  %v6666 = vld [vmem:[%s4 + $0x44] sm:$0xf]
  %v6667 = vld [vmem:[%s4 + $0x48] sm:$0xf]
  %v6668 = vld [vmem:[%s4 + $0x4c] sm:$0xf]
  %v6669 = vld [vmem:[%s4 + $0x50] sm:$0xf]
  %v6670 = vld [vmem:[%s4 + $0x54] sm:$0xf]
  %v6671 = vld [vmem:[%s4 + $0x58] sm:$0xf]
  %v6672 = vld [vmem:[%s4 + $0x5c] sm:$0xf]
  %v6673 = vld [vmem:[%s4 + $0x60] sm:$0xf]
  %v6674 = vld [vmem:[%s4 + $0x64] sm:$0xf]
  %v6675 = vld [vmem:[%s4 + $0x68] sm:$0xf]
  %v6676 = vld [vmem:[%s4 + $0x6c] sm:$0xf]
  %v6677 = vld [vmem:[%s4 + $0x70] sm:$0xf]
  %v6678 = vld [vmem:[%s4 + $0x74] sm:$0xf]
  %v6679 = vld [vmem:[%s4 + $0x78] sm:$0xf]
  %v6680 = vld [vmem:[%s4 + $0x7c] sm:$0xf]
  %v6681 = vld [vmem:[%s4 + $0x80] sm:$0xf]
  %v6682 = vld [vmem:[%s4 + $0x84] sm:$0xf]
  %v6683 = vld [vmem:[%s4 + $0x88] sm:$0xf]
  %v6684 = vld [vmem:[%s4 + $0x8c] sm:$0xf]
  %v6685 = vld [vmem:[%s4 + $0x90] sm:$0xf]
  %v6686 = vld [vmem:[%s4 + $0x94] sm:$0xf]
  %v6687 = vld [vmem:[%s4 + $0x98] sm:$0xf]
  %v6688 = vld [vmem:[%s4 + $0x9c] sm:$0xf]
  %v6689 = vld [vmem:[%s4 + $0xa0] sm:$0xf]
  %v6690 = vld [vmem:[%s4 + $0xa4] sm:$0xf]
  %v6691 = vld [vmem:[%s4 + $0xa8] sm:$0xf]
  %v6692 = vld [vmem:[%s4 + $0xac] sm:$0xf]
  %v6693 = vld [vmem:[%s4 + $0xb0] sm:$0xf]
  %v6694 = vld [vmem:[%s4 + $0xb4] sm:$0xf]
  %v6695 = vld [vmem:[%s4 + $0xb8] sm:$0xf]
  %v6696 = vld [vmem:[%s4 + $0xbc] sm:$0xf]
  %v6697 = vld [vmem:[%s4 + $0xc0] sm:$0xf]
  %v6698 = vld [vmem:[%s4 + $0xc4] sm:$0xf]
  %v6699 = vld [vmem:[%s4 + $0xc8] sm:$0xf]
  %v6700 = vld [vmem:[%s4 + $0xcc] sm:$0xf]
  %v6701 = vld [vmem:[%s4 + $0xd0] sm:$0xf]
  %v6702 = vld [vmem:[%s4 + $0xd4] sm:$0xf]
  %v6703 = vld [vmem:[%s4 + $0xd8] sm:$0xf]
  %v6704 = vld [vmem:[%s4 + $0xdc] sm:$0xf]
  %v6705 = vld [vmem:[%s4 + $0xe0] sm:$0xf]
  %v6706 = vld [vmem:[%s4 + $0xe4] sm:$0xf]
  %v6707 = vld [vmem:[%s4 + $0xe8] sm:$0xf]
  %v6708 = vld [vmem:[%s4 + $0xec] sm:$0xf]
  %v6709 = vld [vmem:[%s4 + $0xf0] sm:$0xf]
  %v6710 = vld [vmem:[%s4 + $0xf4] sm:$0xf]
  %v6711 = vld [vmem:[%s4 + $0xf8] sm:$0xf]
  %v6712 = vld [vmem:[%s4 + $0xfc] sm:$0xf]
  %v6713 = vld [vmem:[%s4 + $0x100] sm:$0xf]
  %v6714 = vld [vmem:[%s4 + $0x104] sm:$0xf]
  %v6715 = vld [vmem:[%s4 + $0x108] sm:$0xf]
  %v6716 = vld [vmem:[%s4 + $0x10c] sm:$0xf]
  %v6717 = vld [vmem:[%s4 + $0x110] sm:$0xf]
  %v6718 = vld [vmem:[%s4 + $0x114] sm:$0xf]
  %v6719 = vld [vmem:[%s4 + $0x118] sm:$0xf]
  %v6720 = vld [vmem:[%s4 + $0x11c] sm:$0xf]
  %v6721 = vld [vmem:[%s4 + $0x120] sm:$0xf]
  %v6722 = vld [vmem:[%s4 + $0x124] sm:$0xf]
  %v6723 = vld [vmem:[%s4 + $0x128] sm:$0xf]
  %v6724 = vld [vmem:[%s4 + $0x12c] sm:$0xf]
  %v6725 = vld [vmem:[%s4 + $0x130] sm:$0xf]
  %v6726 = vld [vmem:[%s4 + $0x134] sm:$0xf]
  %v6727 = vld [vmem:[%s4 + $0x138] sm:$0xf]
  %v6728 = vld [vmem:[%s4 + $0x13c] sm:$0xf]
  %v6729 = vld [vmem:[%s4 + $0x140] sm:$0xf]
  %v6730 = vld [vmem:[%s4 + $0x144] sm:$0xf]
  %v6731 = vld [vmem:[%s4 + $0x148] sm:$0xf]
  %v6732 = vld [vmem:[%s4 + $0x14c] sm:$0xf]
  %v6733 = vld [vmem:[%s4 + $0x150] sm:$0xf]
  %v6734 = vld [vmem:[%s4 + $0x154] sm:$0xf]
  %v6735 = vld [vmem:[%s4 + $0x158] sm:$0xf]
  %v6736 = vld [vmem:[%s4 + $0x15c] sm:$0xf]
  %v6737 = vld [vmem:[%s4 + $0x160] sm:$0xf]
  %v6738 = vld [vmem:[%s4 + $0x164] sm:$0xf]
  %v6739 = vld [vmem:[%s4 + $0x168] sm:$0xf]
  %v6740 = vld [vmem:[%s4 + $0x16c] sm:$0xf]
  %v6741 = vld [vmem:[%s4 + $0x170] sm:$0xf]
  %v6742 = vld [vmem:[%s4 + $0x174] sm:$0xf]
  %v6743 = vld [vmem:[%s4 + $0x178] sm:$0xf]
  %v6744 = vld [vmem:[%s4 + $0x17c] sm:$0xf]
  %v6745 = vld [vmem:[%s4 + $0x180] sm:$0xf]
  %v6746 = vld [vmem:[%s4 + $0x184] sm:$0xf]
  %v6747 = vld [vmem:[%s4 + $0x188] sm:$0xf]
  %v6748 = vld [vmem:[%s4 + $0x18c] sm:$0xf]
  %v6749 = vld [vmem:[%s4 + $0x190] sm:$0xf]
  %v6750 = vld [vmem:[%s4 + $0x194] sm:$0xf]
  %v6751 = vld [vmem:[%s4 + $0x198] sm:$0xf]
  %v6752 = vld [vmem:[%s4 + $0x19c] sm:$0xf]
  %v6753 = vld [vmem:[%s4 + $0x1a0] sm:$0xf]
  %v6754 = vld [vmem:[%s4 + $0x1a4] sm:$0xf]
  %v6755 = vld [vmem:[%s4 + $0x1a8] sm:$0xf]
  %v6756 = vld [vmem:[%s4 + $0x1ac] sm:$0xf]
  %v6757 = vld [vmem:[%s4 + $0x1b0] sm:$0xf]
  %v6758 = vld [vmem:[%s4 + $0x1b4] sm:$0xf]
  %v6759 = vld [vmem:[%s4 + $0x1b8] sm:$0xf]
  %v6760 = vld [vmem:[%s4 + $0x1bc] sm:$0xf]
  %v6761 = vld [vmem:[%s4 + $0x1c0] sm:$0xf]
  %v6762 = vld [vmem:[%s4 + $0x1c4] sm:$0xf]
  %v6763 = vld [vmem:[%s4 + $0x1c8] sm:$0xf]
  %v6764 = vld [vmem:[%s4 + $0x1cc] sm:$0xf]
  %v6765 = vld [vmem:[%s4 + $0x1d0] sm:$0xf]
  %v6766 = vld [vmem:[%s4 + $0x1d4] sm:$0xf]
  %v6767 = vld [vmem:[%s4 + $0x1d8] sm:$0xf]
  %v6768 = vld [vmem:[%s4 + $0x1dc] sm:$0xf]
  %v6769 = vld [vmem:[%s4 + $0x1e0] sm:$0xf]
  %v6770 = vld [vmem:[%s4 + $0x1e4] sm:$0xf]
  %v6771 = vld [vmem:[%s4 + $0x1e8] sm:$0xf]
  %v6772 = vld [vmem:[%s4 + $0x1ec] sm:$0xf]
  %v6773 = vld [vmem:[%s4 + $0x1f0] sm:$0xf]
  %v6774 = vld [vmem:[%s4 + $0x1f4] sm:$0xf]
  %v6775 = vld [vmem:[%s4 + $0x1f8] sm:$0xf]
  %v6776 = vld [vmem:[%s4 + $0x1fc] sm:$0xf]
  %v6777 = vld [vmem:[%s4 + $0x200] sm:$0xf]
  %v6778 = vld [vmem:[%s4 + $0x204] sm:$0xf]
  %v6779 = vld [vmem:[%s4 + $0x208] sm:$0xf]
  %v6780 = vld [vmem:[%s4 + $0x20c] sm:$0xf]
  %v6781 = vld [vmem:[%s4 + $0x210] sm:$0xf]
  %v6782 = vld [vmem:[%s4 + $0x214] sm:$0xf]
  %v6783 = vld [vmem:[%s4 + $0x218] sm:$0xf]
  %v6784 = vld [vmem:[%s4 + $0x21c] sm:$0xf]
  %v6785 = vld [vmem:[%s4 + $0x220] sm:$0xf]
  %v6786 = vld [vmem:[%s4 + $0x224] sm:$0xf]
  %v6787 = vld [vmem:[%s4 + $0x228] sm:$0xf]
  %v6788 = vld [vmem:[%s4 + $0x22c] sm:$0xf]
  %v6789 = vld [vmem:[%s4 + $0x230] sm:$0xf]
  %v6790 = vld [vmem:[%s4 + $0x234] sm:$0xf]
  %v6791 = vld [vmem:[%s4 + $0x238] sm:$0xf]
  %v6792 = vld [vmem:[%s4 + $0x23c] sm:$0xf]
  %v6937 = vunpack.c.l.b16 %v6649
  %v6938 = vunpack.c.l.b16 %v6650
  %v6939 = vunpack.c.l.b16 %v6651
  %v6940 = vunpack.c.l.b16 %v6652
  %v6941 = vunpack.c.l.b16 %v6653
  %v6942 = vunpack.c.l.b16 %v6654
  %v6943 = vunpack.c.l.b16 %v6655
  %v6944 = vunpack.c.l.b16 %v6656
  %v6945 = vunpack.c.l.b16 %v6657
  %v6946 = vunpack.c.l.b16 %v6658
  %v6947 = vunpack.c.l.b16 %v6659
  %v6948 = vunpack.c.l.b16 %v6660
  %v6949 = vunpack.c.l.b16 %v6661
  %v6950 = vunpack.c.l.b16 %v6662
  %v6951 = vunpack.c.l.b16 %v6663
  %v6952 = vunpack.c.l.b16 %v6664
  %v6953 = vunpack.c.l.b16 %v6665
  %v6954 = vunpack.c.l.b16 %v6666
  %v6955 = vunpack.c.l.b16 %v6667
  %v6956 = vunpack.c.l.b16 %v6668
  %v6957 = vunpack.c.l.b16 %v6669
  %v6958 = vunpack.c.l.b16 %v6670
  %v6959 = vunpack.c.l.b16 %v6671
  %v6960 = vunpack.c.l.b16 %v6672
  %v6961 = vunpack.c.l.b16 %v6673
  %v6962 = vunpack.c.l.b16 %v6674
  %v6963 = vunpack.c.l.b16 %v6675
  %v6964 = vunpack.c.l.b16 %v6676
  %v6965 = vunpack.c.l.b16 %v6677
  %v6966 = vunpack.c.l.b16 %v6678
  %v6967 = vunpack.c.l.b16 %v6679
  %v6968 = vunpack.c.l.b16 %v6680
  %v6969 = vunpack.c.l.b16 %v6681
  %v6970 = vunpack.c.l.b16 %v6682
  %v6971 = vunpack.c.l.b16 %v6683
  %v6972 = vunpack.c.l.b16 %v6684
  %v6973 = vunpack.c.l.b16 %v6685
  %v6974 = vunpack.c.l.b16 %v6686
  %v6975 = vunpack.c.l.b16 %v6687
  %v6976 = vunpack.c.l.b16 %v6688
  %v6977 = vunpack.c.l.b16 %v6689
  %v6978 = vunpack.c.l.b16 %v6690
  %v6979 = vunpack.c.l.b16 %v6691
  %v6980 = vunpack.c.l.b16 %v6692
  %v6981 = vunpack.c.l.b16 %v6693
  %v6982 = vunpack.c.l.b16 %v6694
  %v6983 = vunpack.c.l.b16 %v6695
  %v6984 = vunpack.c.l.b16 %v6696
  %v6985 = vunpack.c.l.b16 %v6697
  %v6986 = vunpack.c.l.b16 %v6698
  %v6987 = vunpack.c.l.b16 %v6699
  %v6988 = vunpack.c.l.b16 %v6700
  %v6989 = vunpack.c.l.b16 %v6701
  %v6990 = vunpack.c.l.b16 %v6702
  %v6991 = vunpack.c.l.b16 %v6703
  %v6992 = vunpack.c.l.b16 %v6704
  %v6993 = vunpack.c.l.b16 %v6705
  %v6994 = vunpack.c.l.b16 %v6706
  %v6995 = vunpack.c.l.b16 %v6707
  %v6996 = vunpack.c.l.b16 %v6708
  %v6997 = vunpack.c.l.b16 %v6709
  %v6998 = vunpack.c.l.b16 %v6710
  %v6999 = vunpack.c.l.b16 %v6711
  %v7000 = vunpack.c.l.b16 %v6712
  %v7001 = vunpack.c.l.b16 %v6713
  %v7002 = vunpack.c.l.b16 %v6714
  %v7003 = vunpack.c.l.b16 %v6715
  %v7004 = vunpack.c.l.b16 %v6716
  %v7005 = vunpack.c.l.b16 %v6717
  %v7006 = vunpack.c.l.b16 %v6718
  %v7007 = vunpack.c.l.b16 %v6719
  %v7008 = vunpack.c.l.b16 %v6720
  %v7009 = vunpack.c.l.b16 %v6721
  %v7010 = vunpack.c.l.b16 %v6722
  %v7011 = vunpack.c.l.b16 %v6723
  %v7012 = vunpack.c.l.b16 %v6724
  %v7013 = vunpack.c.l.b16 %v6725
  %v7014 = vunpack.c.l.b16 %v6726
  %v7015 = vunpack.c.l.b16 %v6727
  %v7016 = vunpack.c.l.b16 %v6728
  %v7017 = vunpack.c.l.b16 %v6729
  %v7018 = vunpack.c.l.b16 %v6730
  %v7019 = vunpack.c.l.b16 %v6731
  %v7020 = vunpack.c.l.b16 %v6732
  %v7021 = vunpack.c.l.b16 %v6733
  %v7022 = vunpack.c.l.b16 %v6734
  %v7023 = vunpack.c.l.b16 %v6735
  %v7024 = vunpack.c.l.b16 %v6736
  %v7025 = vunpack.c.l.b16 %v6737
  %v7026 = vunpack.c.l.b16 %v6738
  %v7027 = vunpack.c.l.b16 %v6739
  %v7028 = vunpack.c.l.b16 %v6740
  %v7029 = vunpack.c.l.b16 %v6741
  %v7030 = vunpack.c.l.b16 %v6742
  %v7031 = vunpack.c.l.b16 %v6743
  %v7032 = vunpack.c.l.b16 %v6744
  %v7033 = vunpack.c.l.b16 %v6745
  %v7034 = vunpack.c.l.b16 %v6746
  %v7035 = vunpack.c.l.b16 %v6747
  %v7036 = vunpack.c.l.b16 %v6748
  %v7037 = vunpack.c.l.b16 %v6749
  %v7038 = vunpack.c.l.b16 %v6750
  %v7039 = vunpack.c.l.b16 %v6751
  %v7040 = vunpack.c.l.b16 %v6752
  %v7041 = vunpack.c.l.b16 %v6753
  %v7042 = vunpack.c.l.b16 %v6754
  %v7043 = vunpack.c.l.b16 %v6755
  %v7044 = vunpack.c.l.b16 %v6756
  %v7045 = vunpack.c.l.b16 %v6757
  %v7046 = vunpack.c.l.b16 %v6758
  %v7047 = vunpack.c.l.b16 %v6759
  %v7048 = vunpack.c.l.b16 %v6760
  %v7049 = vunpack.c.l.b16 %v6761
  %v7050 = vunpack.c.l.b16 %v6762
  %v7051 = vunpack.c.l.b16 %v6763
  %v7052 = vunpack.c.l.b16 %v6764
  %v7053 = vunpack.c.l.b16 %v6765
  %v7054 = vunpack.c.l.b16 %v6766
  %v7055 = vunpack.c.l.b16 %v6767
  %v7056 = vunpack.c.l.b16 %v6768
  %v7057 = vunpack.c.l.b16 %v6769
  %v7058 = vunpack.c.l.b16 %v6770
  %v7059 = vunpack.c.l.b16 %v6771
  %v7060 = vunpack.c.l.b16 %v6772
  %v7061 = vunpack.c.l.b16 %v6773
  %v7062 = vunpack.c.l.b16 %v6774
  %v7063 = vunpack.c.l.b16 %v6775
  %v7064 = vunpack.c.l.b16 %v6776
  %v7065 = vunpack.c.l.b16 %v6777
  %v7066 = vunpack.c.l.b16 %v6778
  %v7067 = vunpack.c.l.b16 %v6779
  %v7068 = vunpack.c.l.b16 %v6780
  %v7069 = vunpack.c.l.b16 %v6781
  %v7070 = vunpack.c.l.b16 %v6782
  %v7071 = vunpack.c.l.b16 %v6783
  %v7072 = vunpack.c.l.b16 %v6784
  %v7073 = vunpack.c.l.b16 %v6785
  %v7074 = vunpack.c.l.b16 %v6786
  %v7075 = vunpack.c.l.b16 %v6787
  %v7076 = vunpack.c.l.b16 %v6788
  %v7077 = vunpack.c.l.b16 %v6789
  %v7078 = vunpack.c.l.b16 %v6790
  %v7079 = vunpack.c.l.b16 %v6791
  %v7080 = vunpack.c.l.b16 %v6792
  %v7081 = vpack.c.b16 %v6938, %v6937
  %v7082 = vpack.c.b16 %v6940, %v6939
  %v7083 = vpack.c.b16 %v6942, %v6941
  %v7084 = vpack.c.b16 %v6944, %v6943
  %v7085 = vpack.c.b16 %v6946, %v6945
  %v7086 = vpack.c.b16 %v6948, %v6947
  %v7087 = vpack.c.b16 %v6950, %v6949
  %v7088 = vpack.c.b16 %v6952, %v6951
  %v7089 = vpack.c.b16 %v6954, %v6953
  %v7090 = vpack.c.b16 %v6956, %v6955
  %v7091 = vpack.c.b16 %v6958, %v6957
  %v7092 = vpack.c.b16 %v6960, %v6959
  %v7093 = vpack.c.b16 %v6962, %v6961
  %v7094 = vpack.c.b16 %v6964, %v6963
  %v7095 = vpack.c.b16 %v6966, %v6965
  %v7096 = vpack.c.b16 %v6968, %v6967
  %v7097 = vpack.c.b16 %v6970, %v6969
  %v7098 = vpack.c.b16 %v6972, %v6971
  %v7099 = vpack.c.b16 %v6974, %v6973
  %v7100 = vpack.c.b16 %v6976, %v6975
  %v7101 = vpack.c.b16 %v6978, %v6977
  %v7102 = vpack.c.b16 %v6980, %v6979
  %v7103 = vpack.c.b16 %v6982, %v6981
  %v7104 = vpack.c.b16 %v6984, %v6983
  %v7105 = vpack.c.b16 %v6986, %v6985
  %v7106 = vpack.c.b16 %v6988, %v6987
  %v7107 = vpack.c.b16 %v6990, %v6989
  %v7108 = vpack.c.b16 %v6992, %v6991
  %v7109 = vpack.c.b16 %v6994, %v6993
  %v7110 = vpack.c.b16 %v6996, %v6995
  %v7111 = vpack.c.b16 %v6998, %v6997
  %v7112 = vpack.c.b16 %v7000, %v6999
  %v7113 = vpack.c.b16 %v7002, %v7001
  %v7114 = vpack.c.b16 %v7004, %v7003
  %v7115 = vpack.c.b16 %v7006, %v7005
  %v7116 = vpack.c.b16 %v7008, %v7007
  %v7117 = vpack.c.b16 %v7010, %v7009
  %v7118 = vpack.c.b16 %v7012, %v7011
  %v7119 = vpack.c.b16 %v7014, %v7013
  %v7120 = vpack.c.b16 %v7016, %v7015
  %v7121 = vpack.c.b16 %v7018, %v7017
  %v7122 = vpack.c.b16 %v7020, %v7019
  %v7123 = vpack.c.b16 %v7022, %v7021
  %v7124 = vpack.c.b16 %v7024, %v7023
  %v7125 = vpack.c.b16 %v7026, %v7025
  %v7126 = vpack.c.b16 %v7028, %v7027
  %v7127 = vpack.c.b16 %v7030, %v7029
  %v7128 = vpack.c.b16 %v7032, %v7031
  %v7129 = vpack.c.b16 %v7034, %v7033
  %v7130 = vpack.c.b16 %v7036, %v7035
  %v7131 = vpack.c.b16 %v7038, %v7037
  %v7132 = vpack.c.b16 %v7040, %v7039
  %v7133 = vpack.c.b16 %v7042, %v7041
  %v7134 = vpack.c.b16 %v7044, %v7043
  %v7135 = vpack.c.b16 %v7046, %v7045
  %v7136 = vpack.c.b16 %v7048, %v7047
  %v7137 = vpack.c.b16 %v7050, %v7049
  %v7138 = vpack.c.b16 %v7052, %v7051
  %v7139 = vpack.c.b16 %v7054, %v7053
  %v7140 = vpack.c.b16 %v7056, %v7055
  %v7141 = vpack.c.b16 %v7058, %v7057
  %v7142 = vpack.c.b16 %v7060, %v7059
  %v7143 = vpack.c.b16 %v7062, %v7061
  %v7144 = vpack.c.b16 %v7064, %v7063
  %v7145 = vpack.c.b16 %v7066, %v7065
  %v7146 = vpack.c.b16 %v7068, %v7067
  %v7147 = vpack.c.b16 %v7070, %v7069
  %v7148 = vpack.c.b16 %v7072, %v7071
  %v7149 = vpack.c.b16 %v7074, %v7073
  %v7150 = vpack.c.b16 %v7076, %v7075
  %v7151 = vpack.c.b16 %v7078, %v7077
  %v7152 = vpack.c.b16 %v7080, %v7079
  %7225 = vmatprep.subr.bf16.mxu0 0
  %7226 = vmatpush1.bf16.msra.mxu0 %v7081
  %7227 = vmatprep.subr.bf16.mxu0 0
  %7228 = vmatpush1.bf16.msra.mxu0 %v7082
  %7229 = vmatprep.subr.bf16.mxu0 0
  %7230 = vmatpush1.bf16.msra.mxu0 %v7083
  %7231 = vmatprep.subr.bf16.mxu0 0
  %7232 = vmatpush1.bf16.msra.mxu0 %v7084
  %7233 = vmatprep.subr.bf16.mxu0 0
  %7234 = vmatpush1.bf16.msra.mxu0 %v7085
  %7235 = vmatprep.subr.bf16.mxu0 0
  %7236 = vmatpush1.bf16.msra.mxu0 %v7086
  %7237 = vmatprep.subr.bf16.mxu0 0
  %7238 = vmatpush1.bf16.msra.mxu0 %v7087
  %7239 = vmatprep.subr.bf16.mxu0 0
  %7240 = vmatpush1.bf16.msra.mxu0 %v7088
  %7241 = vmatprep.subr.bf16.mxu0 0
  %7242 = vmatpush1.bf16.msra.mxu0 %v7089
  %7243 = vmatprep.subr.bf16.mxu0 0
  %7244 = vmatpush1.bf16.msra.mxu0 %v7090
  %7245 = vmatprep.subr.bf16.mxu0 0
  %7246 = vmatpush1.bf16.msra.mxu0 %v7091
  %7247 = vmatprep.subr.bf16.mxu0 0
  %7248 = vmatpush1.bf16.msra.mxu0 %v7092
  %7249 = vmatprep.subr.bf16.mxu0 0
  %7250 = vmatpush1.bf16.msra.mxu0 %v7093
  %7251 = vmatprep.subr.bf16.mxu0 0
  %7252 = vmatpush1.bf16.msra.mxu0 %v7094
  %7253 = vmatprep.subr.bf16.mxu0 0
  %7254 = vmatpush1.bf16.msra.mxu0 %v7095
  %7255 = vmatprep.subr.bf16.mxu0 0
  %7256 = vmatpush1.bf16.msra.mxu0 %v7096
  %7257 = vmatprep.mubr.bf16.mxu0 %v6362
  %7258 = vmatmul.mubr.bf16.gmra.mrb[0].mxu0 %v6361
  %v7259 = vpop.f32.mrb[0].mxu0
  %v7260 = vadd.f32 0.0, %v7259
  %v7261 = vpop.f32.mrb[0].mxu0
  %v7262 = vpop.f32.mrb[0].mxu0
  %v7263 = vadd.f32 0.0, %v7262
  %v7264 = vpop.f32.mrb[0].mxu0
  %7265 = vmatprep.mubr.bf16.mxu0 %v6371
  %7266 = vmatmul.mubr.bf16.gmra.mrb[0].mxu0 %v6370
  %v7267 = vpop.f32.mrb[0].mxu0
  %v7268 = vadd.f32 0.0, %v7267
  %v7269 = vpop.f32.mrb[0].mxu0
  %v7270 = vpop.f32.mrb[0].mxu0
  %v7271 = vadd.f32 0.0, %v7270
  %v7272 = vpop.f32.mrb[0].mxu0
  %7273 = vmatprep.mubr.bf16.mxu0 %v6380
  %7274 = vmatmul.mubr.bf16.gmra.mrb[0].mxu0 %v6379
  %v7275 = vpop.f32.mrb[0].mxu0
  %v7276 = vadd.f32 0.0, %v7275
  %v7277 = vpop.f32.mrb[0].mxu0
  %v7278 = vpop.f32.mrb[0].mxu0
  %v7279 = vadd.f32 0.0, %v7278
  %v7280 = vpop.f32.mrb[0].mxu0
  %7281 = vmatprep.mubr.bf16.mxu0 %v6389
  %7282 = vmatmul.mubr.bf16.gmra.mrb[0].mxu0 %v6388
  %v7283 = vpop.f32.mrb[0].mxu0
  %v7284 = vadd.f32 0.0, %v7283
  %v7285 = vpop.f32.mrb[0].mxu0
  %v7286 = vpop.f32.mrb[0].mxu0
  %v7287 = vadd.f32 0.0, %v7286
  %v7288 = vpop.f32.mrb[0].mxu0
  %7289 = vmatprep.mubr.bf16.mxu0 %v6398
  %7290 = vmatmul.mubr.bf16.gmra.mrb[0].mxu0 %v6397
  %v7291 = vpop.f32.mrb[0].mxu0
  %v7292 = vadd.f32 0.0, %v7291
  %v7293 = vpop.f32.mrb[0].mxu0
  %v7294 = vpop.f32.mrb[0].mxu0
  %v7295 = vadd.f32 0.0, %v7294
  %v7296 = vpop.f32.mrb[0].mxu0
  %7297 = vmatprep.mubr.bf16.mxu0 %v6407
  %7298 = vmatmul.mubr.bf16.gmra.mrb[0].mxu0 %v6406
  %v7299 = vpop.f32.mrb[0].mxu0
  %v7300 = vadd.f32 0.0, %v7299
  %v7301 = vpop.f32.mrb[0].mxu0
  %v7302 = vpop.f32.mrb[0].mxu0
  %v7303 = vadd.f32 0.0, %v7302
  %v7304 = vpop.f32.mrb[0].mxu0
  %7305 = vmatprep.mubr.bf16.mxu0 %v6416
  %7306 = vmatmul.mubr.bf16.gmra.mrb[0].mxu0 %v6415
  %v7307 = vpop.f32.mrb[0].mxu0
  %v7308 = vadd.f32 0.0, %v7307
  %v7309 = vpop.f32.mrb[0].mxu0
  %v7310 = vpop.f32.mrb[0].mxu0
  %v7311 = vadd.f32 0.0, %v7310
  %v7312 = vpop.f32.mrb[0].mxu0
  %7313 = vmatprep.mubr.bf16.mxu0 %v6425
  %7314 = vmatmul.mubr.bf16.gmra.mrb[0].mxu0 %v6424
  %v7315 = vpop.f32.mrb[0].mxu0
  %v7316 = vadd.f32 0.0, %v7315
  %v7317 = vpop.f32.mrb[0].mxu0
  %v7318 = vpop.f32.mrb[0].mxu0
  %v7319 = vadd.f32 0.0, %v7318
  %v7320 = vpop.f32.mrb[0].mxu0
  %7321 = vmatprep.mubr.bf16.mxu0 %v6434
  %7322 = vmatmul.mubr.bf16.gmra.mrb[0].mxu0 %v6433
  %v7323 = vpop.f32.mrb[0].mxu0
  %v7324 = vadd.f32 0.0, %v7323
  %v7325 = vpop.f32.mrb[0].mxu0
  %v7326 = vpop.f32.mrb[0].mxu0
  %v7327 = vadd.f32 0.0, %v7326
  %v7328 = vpop.f32.mrb[0].mxu0
  %7329 = vmatprep.mubr.bf16.mxu0 %v6443
  %7330 = vmatmul.mubr.bf16.gmra.mrb[0].mxu0 %v6442
  %v7331 = vpop.f32.mrb[0].mxu0
  %v7332 = vadd.f32 0.0, %v7331
  %v7333 = vpop.f32.mrb[0].mxu0
  %v7334 = vpop.f32.mrb[0].mxu0
  %v7335 = vadd.f32 0.0, %v7334
  %v7336 = vpop.f32.mrb[0].mxu0
  %7337 = vmatprep.mubr.bf16.mxu0 %v6452
  %7338 = vmatmul.mubr.bf16.gmra.mrb[0].mxu0 %v6451
  %v7339 = vpop.f32.mrb[0].mxu0
  %v7340 = vadd.f32 0.0, %v7339
  %v7341 = vpop.f32.mrb[0].mxu0
  %v7342 = vpop.f32.mrb[0].mxu0
  %v7343 = vadd.f32 0.0, %v7342
  %v7344 = vpop.f32.mrb[0].mxu0
  %7345 = vmatprep.mubr.bf16.mxu0 %v6461
  %7346 = vmatmul.mubr.bf16.gmra.mrb[0].mxu0 %v6460
  %v7347 = vpop.f32.mrb[0].mxu0
  %v7348 = vadd.f32 0.0, %v7347
  %v7349 = vpop.f32.mrb[0].mxu0
  %v7350 = vpop.f32.mrb[0].mxu0
  %v7351 = vadd.f32 0.0, %v7350
  %v7352 = vpop.f32.mrb[0].mxu0
  %7353 = vmatprep.mubr.bf16.mxu0 %v6470
  %7354 = vmatmul.mubr.bf16.gmra.mrb[0].mxu0 %v6469
  %v7355 = vpop.f32.mrb[0].mxu0
  %v7356 = vadd.f32 0.0, %v7355
  %v7357 = vpop.f32.mrb[0].mxu0
  %v7358 = vpop.f32.mrb[0].mxu0
  %v7359 = vadd.f32 0.0, %v7358
  %v7360 = vpop.f32.mrb[0].mxu0
  %7361 = vmatprep.mubr.bf16.mxu0 %v6479
  %7362 = vmatmul.mubr.bf16.gmra.mrb[0].mxu0 %v6478
  %v7363 = vpop.f32.mrb[0].mxu0
  %v7364 = vadd.f32 0.0, %v7363
  %v7365 = vpop.f32.mrb[0].mxu0
  %v7366 = vpop.f32.mrb[0].mxu0
  %v7367 = vadd.f32 0.0, %v7366
  %v7368 = vpop.f32.mrb[0].mxu0
  %7369 = vmatprep.mubr.bf16.mxu0 %v6488
  %7370 = vmatmul.mubr.bf16.gmra.mrb[0].mxu0 %v6487
  %v7371 = vpop.f32.mrb[0].mxu0
  %v7372 = vadd.f32 0.0, %v7371
  %v7373 = vpop.f32.mrb[0].mxu0
  %v7374 = vpop.f32.mrb[0].mxu0
  %v7375 = vadd.f32 0.0, %v7374
  %v7376 = vpop.f32.mrb[0].mxu0
  %7377 = vmatprep.mubr.bf16.mxu0 %v6497
  %7378 = vmatmul.mubr.bf16.gmra.mrb[0].mxu0 %v6496
  %v7379 = vpop.f32.mrb[0].mxu0
  %v7380 = vadd.f32 0.0, %v7379
  %v7381 = vpop.f32.mrb[0].mxu0
  %v7382 = vpop.f32.mrb[0].mxu0
  %v7383 = vadd.f32 0.0, %v7382
  %v7384 = vpop.f32.mrb[0].mxu0
  %7385 = vmatprep.mubr.bf16.mxu0 %v6506
  %7386 = vmatmul.mubr.bf16.gmra.mrb[0].mxu0 %v6505
  %v7387 = vpop.f32.mrb[0].mxu0
  %v7388 = vadd.f32 0.0, %v7387
  %v7389 = vpop.f32.mrb[0].mxu0
  %v7390 = vpop.f32.mrb[0].mxu0
  %v7391 = vadd.f32 0.0, %v7390
  %v7392 = vpop.f32.mrb[0].mxu0
  %7393 = vmatprep.mubr.bf16.mxu0 %v6515
  %7394 = vmatmul.mubr.bf16.gmra.mrb[0].mxu0 %v6514
  %v7395 = vpop.f32.mrb[0].mxu0
  %v7396 = vadd.f32 0.0, %v7395
  %v7397 = vpop.f32.mrb[0].mxu0
  %v7398 = vpop.f32.mrb[0].mxu0
  %v7399 = vadd.f32 0.0, %v7398
  %v7400 = vpop.f32.mrb[0].mxu0
  %7401 = vmatprep.mubr.bf16.mxu0 %v6524
  %7402 = vmatmul.mubr.bf16.gmra.mrb[0].mxu0 %v6523
  %v7403 = vpop.f32.mrb[0].mxu0
  %v7404 = vadd.f32 0.0, %v7403
  %v7405 = vpop.f32.mrb[0].mxu0
  %v7406 = vpop.f32.mrb[0].mxu0
  %v7407 = vadd.f32 0.0, %v7406
  %v7408 = vpop.f32.mrb[0].mxu0
  %7409 = vmatprep.mubr.bf16.mxu0 %v6533
  %7410 = vmatmul.mubr.bf16.gmra.mrb[0].mxu0 %v6532
  %v7411 = vpop.f32.mrb[0].mxu0
  %v7412 = vadd.f32 0.0, %v7411
  %v7413 = vpop.f32.mrb[0].mxu0
  %v7414 = vpop.f32.mrb[0].mxu0
  %v7415 = vadd.f32 0.0, %v7414
  %v7416 = vpop.f32.mrb[0].mxu0
  %7417 = vmatprep.mubr.bf16.mxu0 %v6542
  %7418 = vmatmul.mubr.bf16.gmra.mrb[0].mxu0 %v6541
  %v7419 = vpop.f32.mrb[0].mxu0
  %v7420 = vadd.f32 0.0, %v7419
  %v7421 = vpop.f32.mrb[0].mxu0
  %v7422 = vpop.f32.mrb[0].mxu0
  %v7423 = vadd.f32 0.0, %v7422
  %v7424 = vpop.f32.mrb[0].mxu0
  %7425 = vmatprep.mubr.bf16.mxu0 %v6551
  %7426 = vmatmul.mubr.bf16.gmra.mrb[0].mxu0 %v6550
  %v7427 = vpop.f32.mrb[0].mxu0
  %v7428 = vadd.f32 0.0, %v7427
  %v7429 = vpop.f32.mrb[0].mxu0
  %v7430 = vpop.f32.mrb[0].mxu0
  %v7431 = vadd.f32 0.0, %v7430
  %v7432 = vpop.f32.mrb[0].mxu0
  %7433 = vmatprep.mubr.bf16.mxu0 %v6560
  %7434 = vmatmul.mubr.bf16.gmra.mrb[0].mxu0 %v6559
  %v7435 = vpop.f32.mrb[0].mxu0
  %v7436 = vadd.f32 0.0, %v7435
  %v7437 = vpop.f32.mrb[0].mxu0
  %v7438 = vpop.f32.mrb[0].mxu0
  %v7439 = vadd.f32 0.0, %v7438
  %v7440 = vpop.f32.mrb[0].mxu0
  %7441 = vmatprep.mubr.bf16.mxu0 %v6569
  %7442 = vmatmul.mubr.bf16.gmra.mrb[0].mxu0 %v6568
  %v7443 = vpop.f32.mrb[0].mxu0
  %v7444 = vadd.f32 0.0, %v7443
  %v7445 = vpop.f32.mrb[0].mxu0
  %v7446 = vpop.f32.mrb[0].mxu0
  %v7447 = vadd.f32 0.0, %v7446
  %v7448 = vpop.f32.mrb[0].mxu0
  %7449 = vmatprep.mubr.bf16.mxu0 %v6578
  %7450 = vmatmul.mubr.bf16.gmra.mrb[0].mxu0 %v6577
  %v7451 = vpop.f32.mrb[0].mxu0
  %v7452 = vadd.f32 0.0, %v7451
  %v7453 = vpop.f32.mrb[0].mxu0
  %v7454 = vpop.f32.mrb[0].mxu0
  %v7455 = vadd.f32 0.0, %v7454
  %v7456 = vpop.f32.mrb[0].mxu0
  %7457 = vmatprep.mubr.bf16.mxu0 %v6587
  %7458 = vmatmul.mubr.bf16.gmra.mrb[0].mxu0 %v6586
  %v7459 = vpop.f32.mrb[0].mxu0
  %v7460 = vadd.f32 0.0, %v7459
  %v7461 = vpop.f32.mrb[0].mxu0
  %v7462 = vpop.f32.mrb[0].mxu0
  %v7463 = vadd.f32 0.0, %v7462
  %v7464 = vpop.f32.mrb[0].mxu0
  %7465 = vmatprep.mubr.bf16.mxu0 %v6596
  %7466 = vmatmul.mubr.bf16.gmra.mrb[0].mxu0 %v6595
  %v7467 = vpop.f32.mrb[0].mxu0
  %v7468 = vadd.f32 0.0, %v7467
  %v7469 = vpop.f32.mrb[0].mxu0
  %v7470 = vpop.f32.mrb[0].mxu0
  %v7471 = vadd.f32 0.0, %v7470
  %v7472 = vpop.f32.mrb[0].mxu0
  %7473 = vmatprep.mubr.bf16.mxu0 %v6605
  %7474 = vmatmul.mubr.bf16.gmra.mrb[0].mxu0 %v6604
  %v7475 = vpop.f32.mrb[0].mxu0
  %v7476 = vadd.f32 0.0, %v7475
  %v7477 = vpop.f32.mrb[0].mxu0
  %v7478 = vpop.f32.mrb[0].mxu0
  %v7479 = vadd.f32 0.0, %v7478
  %v7480 = vpop.f32.mrb[0].mxu0
  %7481 = vmatprep.mubr.bf16.mxu0 %v6614
  %7482 = vmatmul.mubr.bf16.gmra.mrb[0].mxu0 %v6613
  %v7483 = vpop.f32.mrb[0].mxu0
  %v7484 = vadd.f32 0.0, %v7483
  %v7485 = vpop.f32.mrb[0].mxu0
  %v7486 = vpop.f32.mrb[0].mxu0
  %v7487 = vadd.f32 0.0, %v7486
  %v7488 = vpop.f32.mrb[0].mxu0
  %7489 = vmatprep.mubr.bf16.mxu0 %v6623
  %7490 = vmatmul.mubr.bf16.gmra.mrb[0].mxu0 %v6622
  %v7491 = vpop.f32.mrb[0].mxu0
  %v7492 = vadd.f32 0.0, %v7491
  %v7493 = vpop.f32.mrb[0].mxu0
  %v7494 = vpop.f32.mrb[0].mxu0
  %v7495 = vadd.f32 0.0, %v7494
  %v7496 = vpop.f32.mrb[0].mxu0
  %7497 = vmatprep.mubr.bf16.mxu0 %v6632
  %7498 = vmatmul.mubr.bf16.gmra.mrb[0].mxu0 %v6631
  %v7499 = vpop.f32.mrb[0].mxu0
  %v7500 = vadd.f32 0.0, %v7499
  %v7501 = vpop.f32.mrb[0].mxu0
  %v7502 = vpop.f32.mrb[0].mxu0
  %v7503 = vadd.f32 0.0, %v7502
  %v7504 = vpop.f32.mrb[0].mxu0
  %7505 = vmatprep.mubr.bf16.mxu0 %v6641
  %7506 = vmatmul.mubr.bf16.gmra.mrb[0].mxu0 %v6640
  %v7507 = vpop.f32.mrb[0].mxu0
  %v7508 = vadd.f32 0.0, %v7507
  %v7509 = vpop.f32.mrb[0].mxu0
  %v7510 = vpop.f32.mrb[0].mxu0
  %v7511 = vadd.f32 0.0, %v7510
  %v7512 = vpop.f32.mrb[0].mxu0
  %7513 = vdwg.mxu0
  %7514 = vmatprep.subr.bf16.mxu0 0
  %7515 = vmatpush1.bf16.msra.mxu0 %v7097
  %7516 = vmatprep.subr.bf16.mxu0 0
  %7517 = vmatpush1.bf16.msra.mxu0 %v7098
  %7518 = vmatprep.subr.bf16.mxu0 0
  %7519 = vmatpush1.bf16.msra.mxu0 %v7099
  %7520 = vmatprep.subr.bf16.mxu0 0
  %7521 = vmatpush1.bf16.msra.mxu0 %v7100
  %7522 = vmatprep.subr.bf16.mxu0 0
  %7523 = vmatpush1.bf16.msra.mxu0 %v7101
  %7524 = vmatprep.subr.bf16.mxu0 0
  %7525 = vmatpush1.bf16.msra.mxu0 %v7102
  %7526 = vmatprep.subr.bf16.mxu0 0
  %7527 = vmatpush1.bf16.msra.mxu0 %v7103
  %7528 = vmatprep.subr.bf16.mxu0 0
  %7529 = vmatpush1.bf16.msra.mxu0 %v7104
  %7530 = vmatprep.subr.bf16.mxu0 0
  %7531 = vmatpush1.bf16.msra.mxu0 %v7105
  %7532 = vmatprep.subr.bf16.mxu0 0
  %7533 = vmatpush1.bf16.msra.mxu0 %v7106
  %7534 = vmatprep.subr.bf16.mxu0 0
  %7535 = vmatpush1.bf16.msra.mxu0 %v7107
  %7536 = vmatprep.subr.bf16.mxu0 0
  %7537 = vmatpush1.bf16.msra.mxu0 %v7108
  %7538 = vmatprep.subr.bf16.mxu0 0
  %7539 = vmatpush1.bf16.msra.mxu0 %v7109
  %7540 = vmatprep.subr.bf16.mxu0 0
  %7541 = vmatpush1.bf16.msra.mxu0 %v7110
  %7542 = vmatprep.subr.bf16.mxu0 0
  %7543 = vmatpush1.bf16.msra.mxu0 %v7111
  %7544 = vmatprep.subr.bf16.mxu0 0
  %7545 = vmatpush1.bf16.msra.mxu0 %v7112
  %7546 = vmatprep.mubr.bf16.mxu0 %v6364
  %7547 = vmatmul.mubr.bf16.gmra.mrb[0].mxu0 %v6363
  %v7548 = vpop.f32.mrb[0].mxu0
  %v7549 = vadd.f32 %v7260, %v7548
  %v7550 = vpop.f32.mrb[0].mxu0
  %v7551 = vpop.f32.mrb[0].mxu0
  %v7552 = vadd.f32 %v7263, %v7551
  %v7553 = vpop.f32.mrb[0].mxu0
  %7554 = vmatprep.mubr.bf16.mxu0 %v6373
  %7555 = vmatmul.mubr.bf16.gmra.mrb[0].mxu0 %v6372
  %v7556 = vpop.f32.mrb[0].mxu0
  %v7557 = vadd.f32 %v7268, %v7556
  %v7558 = vpop.f32.mrb[0].mxu0
  %v7559 = vpop.f32.mrb[0].mxu0
  %v7560 = vadd.f32 %v7271, %v7559
  %v7561 = vpop.f32.mrb[0].mxu0
  %7562 = vmatprep.mubr.bf16.mxu0 %v6382
  %7563 = vmatmul.mubr.bf16.gmra.mrb[0].mxu0 %v6381
  %v7564 = vpop.f32.mrb[0].mxu0
  %v7565 = vadd.f32 %v7276, %v7564
  %v7566 = vpop.f32.mrb[0].mxu0
  %v7567 = vpop.f32.mrb[0].mxu0
  %v7568 = vadd.f32 %v7279, %v7567
  %v7569 = vpop.f32.mrb[0].mxu0
  %7570 = vmatprep.mubr.bf16.mxu0 %v6391
  %7571 = vmatmul.mubr.bf16.gmra.mrb[0].mxu0 %v6390
  %v7572 = vpop.f32.mrb[0].mxu0
  %v7573 = vadd.f32 %v7284, %v7572
  %v7574 = vpop.f32.mrb[0].mxu0
  %v7575 = vpop.f32.mrb[0].mxu0
  %v7576 = vadd.f32 %v7287, %v7575
  %v7577 = vpop.f32.mrb[0].mxu0
  %7578 = vmatprep.mubr.bf16.mxu0 %v6400
  %7579 = vmatmul.mubr.bf16.gmra.mrb[0].mxu0 %v6399
  %v7580 = vpop.f32.mrb[0].mxu0
  %v7581 = vadd.f32 %v7292, %v7580
  %v7582 = vpop.f32.mrb[0].mxu0
  %v7583 = vpop.f32.mrb[0].mxu0
  %v7584 = vadd.f32 %v7295, %v7583
  %v7585 = vpop.f32.mrb[0].mxu0
  %7586 = vmatprep.mubr.bf16.mxu0 %v6409
  %7587 = vmatmul.mubr.bf16.gmra.mrb[0].mxu0 %v6408
  %v7588 = vpop.f32.mrb[0].mxu0
  %v7589 = vadd.f32 %v7300, %v7588
  %v7590 = vpop.f32.mrb[0].mxu0
  %v7591 = vpop.f32.mrb[0].mxu0
  %v7592 = vadd.f32 %v7303, %v7591
  %v7593 = vpop.f32.mrb[0].mxu0
  %7594 = vmatprep.mubr.bf16.mxu0 %v6418
  %7595 = vmatmul.mubr.bf16.gmra.mrb[0].mxu0 %v6417
  %v7596 = vpop.f32.mrb[0].mxu0
  %v7597 = vadd.f32 %v7308, %v7596
  %v7598 = vpop.f32.mrb[0].mxu0
  %v7599 = vpop.f32.mrb[0].mxu0
  %v7600 = vadd.f32 %v7311, %v7599
  %v7601 = vpop.f32.mrb[0].mxu0
  %7602 = vmatprep.mubr.bf16.mxu0 %v6427
  %7603 = vmatmul.mubr.bf16.gmra.mrb[0].mxu0 %v6426
  %v7604 = vpop.f32.mrb[0].mxu0
  %v7605 = vadd.f32 %v7316, %v7604
  %v7606 = vpop.f32.mrb[0].mxu0
  %v7607 = vpop.f32.mrb[0].mxu0
  %v7608 = vadd.f32 %v7319, %v7607
  %v7609 = vpop.f32.mrb[0].mxu0
  %7610 = vmatprep.mubr.bf16.mxu0 %v6436
  %7611 = vmatmul.mubr.bf16.gmra.mrb[0].mxu0 %v6435
  %v7612 = vpop.f32.mrb[0].mxu0
  %v7613 = vadd.f32 %v7324, %v7612
  %v7614 = vpop.f32.mrb[0].mxu0
  %v7615 = vpop.f32.mrb[0].mxu0
  %v7616 = vadd.f32 %v7327, %v7615
  %v7617 = vpop.f32.mrb[0].mxu0
  %7618 = vmatprep.mubr.bf16.mxu0 %v6445
  %7619 = vmatmul.mubr.bf16.gmra.mrb[0].mxu0 %v6444
  %v7620 = vpop.f32.mrb[0].mxu0
  %v7621 = vadd.f32 %v7332, %v7620
  %v7622 = vpop.f32.mrb[0].mxu0
  %v7623 = vpop.f32.mrb[0].mxu0
  %v7624 = vadd.f32 %v7335, %v7623
  %v7625 = vpop.f32.mrb[0].mxu0
  %7626 = vmatprep.mubr.bf16.mxu0 %v6454
  %7627 = vmatmul.mubr.bf16.gmra.mrb[0].mxu0 %v6453
  %v7628 = vpop.f32.mrb[0].mxu0
  %v7629 = vadd.f32 %v7340, %v7628
  %v7630 = vpop.f32.mrb[0].mxu0
  %v7631 = vpop.f32.mrb[0].mxu0
  %v7632 = vadd.f32 %v7343, %v7631
  %v7633 = vpop.f32.mrb[0].mxu0
  %7634 = vmatprep.mubr.bf16.mxu0 %v6463
  %7635 = vmatmul.mubr.bf16.gmra.mrb[0].mxu0 %v6462
  %v7636 = vpop.f32.mrb[0].mxu0
  %v7637 = vadd.f32 %v7348, %v7636
  %v7638 = vpop.f32.mrb[0].mxu0
  %v7639 = vpop.f32.mrb[0].mxu0
  %v7640 = vadd.f32 %v7351, %v7639
  %v7641 = vpop.f32.mrb[0].mxu0
  %7642 = vmatprep.mubr.bf16.mxu0 %v6472
  %7643 = vmatmul.mubr.bf16.gmra.mrb[0].mxu0 %v6471
  %v7644 = vpop.f32.mrb[0].mxu0
  %v7645 = vadd.f32 %v7356, %v7644
  %v7646 = vpop.f32.mrb[0].mxu0
  %v7647 = vpop.f32.mrb[0].mxu0
  %v7648 = vadd.f32 %v7359, %v7647
  %v7649 = vpop.f32.mrb[0].mxu0
  %7650 = vmatprep.mubr.bf16.mxu0 %v6481
  %7651 = vmatmul.mubr.bf16.gmra.mrb[0].mxu0 %v6480
  %v7652 = vpop.f32.mrb[0].mxu0
  %v7653 = vadd.f32 %v7364, %v7652
  %v7654 = vpop.f32.mrb[0].mxu0
  %v7655 = vpop.f32.mrb[0].mxu0
  %v7656 = vadd.f32 %v7367, %v7655
  %v7657 = vpop.f32.mrb[0].mxu0
  %7658 = vmatprep.mubr.bf16.mxu0 %v6490
  %7659 = vmatmul.mubr.bf16.gmra.mrb[0].mxu0 %v6489
  %v7660 = vpop.f32.mrb[0].mxu0
  %v7661 = vadd.f32 %v7372, %v7660
  %v7662 = vpop.f32.mrb[0].mxu0
  %v7663 = vpop.f32.mrb[0].mxu0
  %v7664 = vadd.f32 %v7375, %v7663
  %v7665 = vpop.f32.mrb[0].mxu0
  %7666 = vmatprep.mubr.bf16.mxu0 %v6499
  %7667 = vmatmul.mubr.bf16.gmra.mrb[0].mxu0 %v6498
  %v7668 = vpop.f32.mrb[0].mxu0
  %v7669 = vadd.f32 %v7380, %v7668
  %v7670 = vpop.f32.mrb[0].mxu0
  %v7671 = vpop.f32.mrb[0].mxu0
  %v7672 = vadd.f32 %v7383, %v7671
  %v7673 = vpop.f32.mrb[0].mxu0
  %7674 = vmatprep.mubr.bf16.mxu0 %v6508
  %7675 = vmatmul.mubr.bf16.gmra.mrb[0].mxu0 %v6507
  %v7676 = vpop.f32.mrb[0].mxu0
  %v7677 = vadd.f32 %v7388, %v7676
  %v7678 = vpop.f32.mrb[0].mxu0
  %v7679 = vpop.f32.mrb[0].mxu0
  %v7680 = vadd.f32 %v7391, %v7679
  %v7681 = vpop.f32.mrb[0].mxu0
  %7682 = vmatprep.mubr.bf16.mxu0 %v6517
  %7683 = vmatmul.mubr.bf16.gmra.mrb[0].mxu0 %v6516
  %v7684 = vpop.f32.mrb[0].mxu0
  %v7685 = vadd.f32 %v7396, %v7684
  %v7686 = vpop.f32.mrb[0].mxu0
  %v7687 = vpop.f32.mrb[0].mxu0
  %v7688 = vadd.f32 %v7399, %v7687
  %v7689 = vpop.f32.mrb[0].mxu0
  %7690 = vmatprep.mubr.bf16.mxu0 %v6526
  %7691 = vmatmul.mubr.bf16.gmra.mrb[0].mxu0 %v6525
  %v7692 = vpop.f32.mrb[0].mxu0
  %v7693 = vadd.f32 %v7404, %v7692
  %v7694 = vpop.f32.mrb[0].mxu0
  %v7695 = vpop.f32.mrb[0].mxu0
  %v7696 = vadd.f32 %v7407, %v7695
  %v7697 = vpop.f32.mrb[0].mxu0
  %7698 = vmatprep.mubr.bf16.mxu0 %v6535
  %7699 = vmatmul.mubr.bf16.gmra.mrb[0].mxu0 %v6534
  %v7700 = vpop.f32.mrb[0].mxu0
  %v7701 = vadd.f32 %v7412, %v7700
  %v7702 = vpop.f32.mrb[0].mxu0
  %v7703 = vpop.f32.mrb[0].mxu0
  %v7704 = vadd.f32 %v7415, %v7703
  %v7705 = vpop.f32.mrb[0].mxu0
  %7706 = vmatprep.mubr.bf16.mxu0 %v6544
  %7707 = vmatmul.mubr.bf16.gmra.mrb[0].mxu0 %v6543
  %v7708 = vpop.f32.mrb[0].mxu0
  %v7709 = vadd.f32 %v7420, %v7708
  %v7710 = vpop.f32.mrb[0].mxu0
  %v7711 = vpop.f32.mrb[0].mxu0
  %v7712 = vadd.f32 %v7423, %v7711
  %v7713 = vpop.f32.mrb[0].mxu0
  %7714 = vmatprep.mubr.bf16.mxu0 %v6553
  %7715 = vmatmul.mubr.bf16.gmra.mrb[0].mxu0 %v6552
  %v7716 = vpop.f32.mrb[0].mxu0
  %v7717 = vadd.f32 %v7428, %v7716
  %v7718 = vpop.f32.mrb[0].mxu0
  %v7719 = vpop.f32.mrb[0].mxu0
  %v7720 = vadd.f32 %v7431, %v7719
  %v7721 = vpop.f32.mrb[0].mxu0
  %7722 = vmatprep.mubr.bf16.mxu0 %v6562
  %7723 = vmatmul.mubr.bf16.gmra.mrb[0].mxu0 %v6561
  %v7724 = vpop.f32.mrb[0].mxu0
  %v7725 = vadd.f32 %v7436, %v7724
  %v7726 = vpop.f32.mrb[0].mxu0
  %v7727 = vpop.f32.mrb[0].mxu0
  %v7728 = vadd.f32 %v7439, %v7727
  %v7729 = vpop.f32.mrb[0].mxu0
  %7730 = vmatprep.mubr.bf16.mxu0 %v6571
  %7731 = vmatmul.mubr.bf16.gmra.mrb[0].mxu0 %v6570
  %v7732 = vpop.f32.mrb[0].mxu0
  %v7733 = vadd.f32 %v7444, %v7732
  %v7734 = vpop.f32.mrb[0].mxu0
  %v7735 = vpop.f32.mrb[0].mxu0
  %v7736 = vadd.f32 %v7447, %v7735
  %v7737 = vpop.f32.mrb[0].mxu0
  %7738 = vmatprep.mubr.bf16.mxu0 %v6580
  %7739 = vmatmul.mubr.bf16.gmra.mrb[0].mxu0 %v6579
  %v7740 = vpop.f32.mrb[0].mxu0
  %v7741 = vadd.f32 %v7452, %v7740
  %v7742 = vpop.f32.mrb[0].mxu0
  %v7743 = vpop.f32.mrb[0].mxu0
  %v7744 = vadd.f32 %v7455, %v7743
  %v7745 = vpop.f32.mrb[0].mxu0
  %7746 = vmatprep.mubr.bf16.mxu0 %v6589
  %7747 = vmatmul.mubr.bf16.gmra.mrb[0].mxu0 %v6588
  %v7748 = vpop.f32.mrb[0].mxu0
  %v7749 = vadd.f32 %v7460, %v7748
  %v7750 = vpop.f32.mrb[0].mxu0
  %v7751 = vpop.f32.mrb[0].mxu0
  %v7752 = vadd.f32 %v7463, %v7751
  %v7753 = vpop.f32.mrb[0].mxu0
  %7754 = vmatprep.mubr.bf16.mxu0 %v6598
  %7755 = vmatmul.mubr.bf16.gmra.mrb[0].mxu0 %v6597
  %v7756 = vpop.f32.mrb[0].mxu0
  %v7757 = vadd.f32 %v7468, %v7756
  %v7758 = vpop.f32.mrb[0].mxu0
  %v7759 = vpop.f32.mrb[0].mxu0
  %v7760 = vadd.f32 %v7471, %v7759
  %v7761 = vpop.f32.mrb[0].mxu0
  %7762 = vmatprep.mubr.bf16.mxu0 %v6607
  %7763 = vmatmul.mubr.bf16.gmra.mrb[0].mxu0 %v6606
  %v7764 = vpop.f32.mrb[0].mxu0
  %v7765 = vadd.f32 %v7476, %v7764
  %v7766 = vpop.f32.mrb[0].mxu0
  %v7767 = vpop.f32.mrb[0].mxu0
  %v7768 = vadd.f32 %v7479, %v7767
  %v7769 = vpop.f32.mrb[0].mxu0
  %7770 = vmatprep.mubr.bf16.mxu0 %v6616
  %7771 = vmatmul.mubr.bf16.gmra.mrb[0].mxu0 %v6615
  %v7772 = vpop.f32.mrb[0].mxu0
  %v7773 = vadd.f32 %v7484, %v7772
  %v7774 = vpop.f32.mrb[0].mxu0
  %v7775 = vpop.f32.mrb[0].mxu0
  %v7776 = vadd.f32 %v7487, %v7775
  %v7777 = vpop.f32.mrb[0].mxu0
  %7778 = vmatprep.mubr.bf16.mxu0 %v6625
  %7779 = vmatmul.mubr.bf16.gmra.mrb[0].mxu0 %v6624
  %v7780 = vpop.f32.mrb[0].mxu0
  %v7781 = vadd.f32 %v7492, %v7780
  %v7782 = vpop.f32.mrb[0].mxu0
  %v7783 = vpop.f32.mrb[0].mxu0
  %v7784 = vadd.f32 %v7495, %v7783
  %v7785 = vpop.f32.mrb[0].mxu0
  %7786 = vmatprep.mubr.bf16.mxu0 %v6634
  %7787 = vmatmul.mubr.bf16.gmra.mrb[0].mxu0 %v6633
  %v7788 = vpop.f32.mrb[0].mxu0
  %v7789 = vadd.f32 %v7500, %v7788
  %v7790 = vpop.f32.mrb[0].mxu0
  %v7791 = vpop.f32.mrb[0].mxu0
  %v7792 = vadd.f32 %v7503, %v7791
  %v7793 = vpop.f32.mrb[0].mxu0
  %7794 = vmatprep.mubr.bf16.mxu0 %v6643
  %7795 = vmatmul.mubr.bf16.gmra.mrb[0].mxu0 %v6642
  %v7796 = vpop.f32.mrb[0].mxu0
  %v7797 = vadd.f32 %v7508, %v7796
  %v7798 = vpop.f32.mrb[0].mxu0
  %v7799 = vpop.f32.mrb[0].mxu0
  %v7800 = vadd.f32 %v7511, %v7799
  %v7801 = vpop.f32.mrb[0].mxu0
  %7802 = vdwg.mxu0
  %7803 = vmatprep.subr.bf16.mxu0 0
  %7804 = vmatpush1.bf16.msra.mxu0 %v7113
  %7805 = vmatprep.subr.bf16.mxu0 0
  %7806 = vmatpush1.bf16.msra.mxu0 %v7114
  %7807 = vmatprep.subr.bf16.mxu0 0
  %7808 = vmatpush1.bf16.msra.mxu0 %v7115
  %7809 = vmatprep.subr.bf16.mxu0 0
  %7810 = vmatpush1.bf16.msra.mxu0 %v7116
  %7811 = vmatprep.subr.bf16.mxu0 0
  %7812 = vmatpush1.bf16.msra.mxu0 %v7117
  %7813 = vmatprep.subr.bf16.mxu0 0
  %7814 = vmatpush1.bf16.msra.mxu0 %v7118
  %7815 = vmatprep.subr.bf16.mxu0 0
  %7816 = vmatpush1.bf16.msra.mxu0 %v7119
  %7817 = vmatprep.subr.bf16.mxu0 0
  %7818 = vmatpush1.bf16.msra.mxu0 %v7120
  %7819 = vmatprep.subr.bf16.mxu0 0
  %7820 = vmatpush1.bf16.msra.mxu0 %v7121
  %7821 = vmatprep.subr.bf16.mxu0 0
  %7822 = vmatpush1.bf16.msra.mxu0 %v7122
  %7823 = vmatprep.subr.bf16.mxu0 0
  %7824 = vmatpush1.bf16.msra.mxu0 %v7123
  %7825 = vmatprep.subr.bf16.mxu0 0
  %7826 = vmatpush1.bf16.msra.mxu0 %v7124
  %7827 = vmatprep.subr.bf16.mxu0 0
  %7828 = vmatpush1.bf16.msra.mxu0 %v7125
  %7829 = vmatprep.subr.bf16.mxu0 0
  %7830 = vmatpush1.bf16.msra.mxu0 %v7126
  %7831 = vmatprep.subr.bf16.mxu0 0
  %7832 = vmatpush1.bf16.msra.mxu0 %v7127
  %7833 = vmatprep.subr.bf16.mxu0 0
  %7834 = vmatpush1.bf16.msra.mxu0 %v7128
  %7835 = vmatprep.mubr.bf16.mxu0 %v6366
  %7836 = vmatmul.mubr.bf16.gmra.mrb[0].mxu0 %v6365
  %v7837 = vpop.f32.mrb[0].mxu0
  %v7838 = vadd.f32 %v7549, %v7837
  %v7839 = vpop.f32.mrb[0].mxu0
  %v7840 = vpop.f32.mrb[0].mxu0
  %v7841 = vadd.f32 %v7552, %v7840
  %v7842 = vpop.f32.mrb[0].mxu0
  %7843 = vmatprep.mubr.bf16.mxu0 %v6375
  %7844 = vmatmul.mubr.bf16.gmra.mrb[0].mxu0 %v6374
  %v7845 = vpop.f32.mrb[0].mxu0
  %v7846 = vadd.f32 %v7557, %v7845
  %v7847 = vpop.f32.mrb[0].mxu0
  %v7848 = vpop.f32.mrb[0].mxu0
  %v7849 = vadd.f32 %v7560, %v7848
  %v7850 = vpop.f32.mrb[0].mxu0
  %7851 = vmatprep.mubr.bf16.mxu0 %v6384
  %7852 = vmatmul.mubr.bf16.gmra.mrb[0].mxu0 %v6383
  %v7853 = vpop.f32.mrb[0].mxu0
  %v7854 = vadd.f32 %v7565, %v7853
  %v7855 = vpop.f32.mrb[0].mxu0
  %v7856 = vpop.f32.mrb[0].mxu0
  %v7857 = vadd.f32 %v7568, %v7856
  %v7858 = vpop.f32.mrb[0].mxu0
  %7859 = vmatprep.mubr.bf16.mxu0 %v6393
  %7860 = vmatmul.mubr.bf16.gmra.mrb[0].mxu0 %v6392
  %v7861 = vpop.f32.mrb[0].mxu0
  %v7862 = vadd.f32 %v7573, %v7861
  %v7863 = vpop.f32.mrb[0].mxu0
  %v7864 = vpop.f32.mrb[0].mxu0
  %v7865 = vadd.f32 %v7576, %v7864
  %v7866 = vpop.f32.mrb[0].mxu0
  %7867 = vmatprep.mubr.bf16.mxu0 %v6402
  %7868 = vmatmul.mubr.bf16.gmra.mrb[0].mxu0 %v6401
  %v7869 = vpop.f32.mrb[0].mxu0
  %v7870 = vadd.f32 %v7581, %v7869
  %v7871 = vpop.f32.mrb[0].mxu0
  %v7872 = vpop.f32.mrb[0].mxu0
  %v7873 = vadd.f32 %v7584, %v7872
  %v7874 = vpop.f32.mrb[0].mxu0
  %7875 = vmatprep.mubr.bf16.mxu0 %v6411
  %7876 = vmatmul.mubr.bf16.gmra.mrb[0].mxu0 %v6410
  %v7877 = vpop.f32.mrb[0].mxu0
  %v7878 = vadd.f32 %v7589, %v7877
  %v7879 = vpop.f32.mrb[0].mxu0
  %v7880 = vpop.f32.mrb[0].mxu0
  %v7881 = vadd.f32 %v7592, %v7880
  %v7882 = vpop.f32.mrb[0].mxu0
  %7883 = vmatprep.mubr.bf16.mxu0 %v6420
  %7884 = vmatmul.mubr.bf16.gmra.mrb[0].mxu0 %v6419
  %v7885 = vpop.f32.mrb[0].mxu0
  %v7886 = vadd.f32 %v7597, %v7885
  %v7887 = vpop.f32.mrb[0].mxu0
  %v7888 = vpop.f32.mrb[0].mxu0
  %v7889 = vadd.f32 %v7600, %v7888
  %v7890 = vpop.f32.mrb[0].mxu0
  %7891 = vmatprep.mubr.bf16.mxu0 %v6429
  %7892 = vmatmul.mubr.bf16.gmra.mrb[0].mxu0 %v6428
  %v7893 = vpop.f32.mrb[0].mxu0
  %v7894 = vadd.f32 %v7605, %v7893
  %v7895 = vpop.f32.mrb[0].mxu0
  %v7896 = vpop.f32.mrb[0].mxu0
  %v7897 = vadd.f32 %v7608, %v7896
  %v7898 = vpop.f32.mrb[0].mxu0
  %7899 = vmatprep.mubr.bf16.mxu0 %v6438
  %7900 = vmatmul.mubr.bf16.gmra.mrb[0].mxu0 %v6437
  %v7901 = vpop.f32.mrb[0].mxu0
  %v7902 = vadd.f32 %v7613, %v7901
  %v7903 = vpop.f32.mrb[0].mxu0
  %v7904 = vpop.f32.mrb[0].mxu0
  %v7905 = vadd.f32 %v7616, %v7904
  %v7906 = vpop.f32.mrb[0].mxu0
  %7907 = vmatprep.mubr.bf16.mxu0 %v6447
  %7908 = vmatmul.mubr.bf16.gmra.mrb[0].mxu0 %v6446
  %v7909 = vpop.f32.mrb[0].mxu0
  %v7910 = vadd.f32 %v7621, %v7909
  %v7911 = vpop.f32.mrb[0].mxu0
  %v7912 = vpop.f32.mrb[0].mxu0
  %v7913 = vadd.f32 %v7624, %v7912
  %v7914 = vpop.f32.mrb[0].mxu0
  %7915 = vmatprep.mubr.bf16.mxu0 %v6456
  %7916 = vmatmul.mubr.bf16.gmra.mrb[0].mxu0 %v6455
  %v7917 = vpop.f32.mrb[0].mxu0
  %v7918 = vadd.f32 %v7629, %v7917
  %v7919 = vpop.f32.mrb[0].mxu0
  %v7920 = vpop.f32.mrb[0].mxu0
  %v7921 = vadd.f32 %v7632, %v7920
  %v7922 = vpop.f32.mrb[0].mxu0
  %7923 = vmatprep.mubr.bf16.mxu0 %v6465
  %7924 = vmatmul.mubr.bf16.gmra.mrb[0].mxu0 %v6464
  %v7925 = vpop.f32.mrb[0].mxu0
  %v7926 = vadd.f32 %v7637, %v7925
  %v7927 = vpop.f32.mrb[0].mxu0
  %v7928 = vpop.f32.mrb[0].mxu0
  %v7929 = vadd.f32 %v7640, %v7928
  %v7930 = vpop.f32.mrb[0].mxu0
  %7931 = vmatprep.mubr.bf16.mxu0 %v6474
  %7932 = vmatmul.mubr.bf16.gmra.mrb[0].mxu0 %v6473
  %v7933 = vpop.f32.mrb[0].mxu0
  %v7934 = vadd.f32 %v7645, %v7933
  %v7935 = vpop.f32.mrb[0].mxu0
  %v7936 = vpop.f32.mrb[0].mxu0
  %v7937 = vadd.f32 %v7648, %v7936
  %v7938 = vpop.f32.mrb[0].mxu0
  %7939 = vmatprep.mubr.bf16.mxu0 %v6483
  %7940 = vmatmul.mubr.bf16.gmra.mrb[0].mxu0 %v6482
  %v7941 = vpop.f32.mrb[0].mxu0
  %v7942 = vadd.f32 %v7653, %v7941
  %v7943 = vpop.f32.mrb[0].mxu0
  %v7944 = vpop.f32.mrb[0].mxu0
  %v7945 = vadd.f32 %v7656, %v7944
  %v7946 = vpop.f32.mrb[0].mxu0
  %7947 = vmatprep.mubr.bf16.mxu0 %v6492
  %7948 = vmatmul.mubr.bf16.gmra.mrb[0].mxu0 %v6491
  %v7949 = vpop.f32.mrb[0].mxu0
  %v7950 = vadd.f32 %v7661, %v7949
  %v7951 = vpop.f32.mrb[0].mxu0
  %v7952 = vpop.f32.mrb[0].mxu0
  %v7953 = vadd.f32 %v7664, %v7952
  %v7954 = vpop.f32.mrb[0].mxu0
  %7955 = vmatprep.mubr.bf16.mxu0 %v6501
  %7956 = vmatmul.mubr.bf16.gmra.mrb[0].mxu0 %v6500
  %v7957 = vpop.f32.mrb[0].mxu0
  %v7958 = vadd.f32 %v7669, %v7957
  %v7959 = vpop.f32.mrb[0].mxu0
  %v7960 = vpop.f32.mrb[0].mxu0
  %v7961 = vadd.f32 %v7672, %v7960
  %v7962 = vpop.f32.mrb[0].mxu0
  %7963 = vmatprep.mubr.bf16.mxu0 %v6510
  %7964 = vmatmul.mubr.bf16.gmra.mrb[0].mxu0 %v6509
  %v7965 = vpop.f32.mrb[0].mxu0
  %v7966 = vadd.f32 %v7677, %v7965
  %v7967 = vpop.f32.mrb[0].mxu0
  %v7968 = vpop.f32.mrb[0].mxu0
  %v7969 = vadd.f32 %v7680, %v7968
  %v7970 = vpop.f32.mrb[0].mxu0
  %7971 = vmatprep.mubr.bf16.mxu0 %v6519
  %7972 = vmatmul.mubr.bf16.gmra.mrb[0].mxu0 %v6518
  %v7973 = vpop.f32.mrb[0].mxu0
  %v7974 = vadd.f32 %v7685, %v7973
  %v7975 = vpop.f32.mrb[0].mxu0
  %v7976 = vpop.f32.mrb[0].mxu0
  %v7977 = vadd.f32 %v7688, %v7976
  %v7978 = vpop.f32.mrb[0].mxu0
  %7979 = vmatprep.mubr.bf16.mxu0 %v6528
  %7980 = vmatmul.mubr.bf16.gmra.mrb[0].mxu0 %v6527
  %v7981 = vpop.f32.mrb[0].mxu0
  %v7982 = vadd.f32 %v7693, %v7981
  %v7983 = vpop.f32.mrb[0].mxu0
  %v7984 = vpop.f32.mrb[0].mxu0
  %v7985 = vadd.f32 %v7696, %v7984
  %v7986 = vpop.f32.mrb[0].mxu0
  %7987 = vmatprep.mubr.bf16.mxu0 %v6537
  %7988 = vmatmul.mubr.bf16.gmra.mrb[0].mxu0 %v6536
  %v7989 = vpop.f32.mrb[0].mxu0
  %v7990 = vadd.f32 %v7701, %v7989
  %v7991 = vpop.f32.mrb[0].mxu0
  %v7992 = vpop.f32.mrb[0].mxu0
  %v7993 = vadd.f32 %v7704, %v7992
  %v7994 = vpop.f32.mrb[0].mxu0
  %7995 = vmatprep.mubr.bf16.mxu0 %v6546
  %7996 = vmatmul.mubr.bf16.gmra.mrb[0].mxu0 %v6545
  %v7997 = vpop.f32.mrb[0].mxu0
  %v7998 = vadd.f32 %v7709, %v7997
  %v7999 = vpop.f32.mrb[0].mxu0
  %v8000 = vpop.f32.mrb[0].mxu0
  %v8001 = vadd.f32 %v7712, %v8000
  %v8002 = vpop.f32.mrb[0].mxu0
  %8003 = vmatprep.mubr.bf16.mxu0 %v6555
  %8004 = vmatmul.mubr.bf16.gmra.mrb[0].mxu0 %v6554
  %v8005 = vpop.f32.mrb[0].mxu0
  %v8006 = vadd.f32 %v7717, %v8005
  %v8007 = vpop.f32.mrb[0].mxu0
  %v8008 = vpop.f32.mrb[0].mxu0
  %v8009 = vadd.f32 %v7720, %v8008
  %v8010 = vpop.f32.mrb[0].mxu0
  %8011 = vmatprep.mubr.bf16.mxu0 %v6564
  %8012 = vmatmul.mubr.bf16.gmra.mrb[0].mxu0 %v6563
  %v8013 = vpop.f32.mrb[0].mxu0
  %v8014 = vadd.f32 %v7725, %v8013
  %v8015 = vpop.f32.mrb[0].mxu0
  %v8016 = vpop.f32.mrb[0].mxu0
  %v8017 = vadd.f32 %v7728, %v8016
  %v8018 = vpop.f32.mrb[0].mxu0
  %8019 = vmatprep.mubr.bf16.mxu0 %v6573
  %8020 = vmatmul.mubr.bf16.gmra.mrb[0].mxu0 %v6572
  %v8021 = vpop.f32.mrb[0].mxu0
  %v8022 = vadd.f32 %v7733, %v8021
  %v8023 = vpop.f32.mrb[0].mxu0
  %v8024 = vpop.f32.mrb[0].mxu0
  %v8025 = vadd.f32 %v7736, %v8024
  %v8026 = vpop.f32.mrb[0].mxu0
  %8027 = vmatprep.mubr.bf16.mxu0 %v6582
  %8028 = vmatmul.mubr.bf16.gmra.mrb[0].mxu0 %v6581
  %v8029 = vpop.f32.mrb[0].mxu0
  %v8030 = vadd.f32 %v7741, %v8029
  %v8031 = vpop.f32.mrb[0].mxu0
  %v8032 = vpop.f32.mrb[0].mxu0
  %v8033 = vadd.f32 %v7744, %v8032
  %v8034 = vpop.f32.mrb[0].mxu0
  %8035 = vmatprep.mubr.bf16.mxu0 %v6591
  %8036 = vmatmul.mubr.bf16.gmra.mrb[0].mxu0 %v6590
  %v8037 = vpop.f32.mrb[0].mxu0
  %v8038 = vadd.f32 %v7749, %v8037
  %v8039 = vpop.f32.mrb[0].mxu0
  %v8040 = vpop.f32.mrb[0].mxu0
  %v8041 = vadd.f32 %v7752, %v8040
  %v8042 = vpop.f32.mrb[0].mxu0
  %8043 = vmatprep.mubr.bf16.mxu0 %v6600
  %8044 = vmatmul.mubr.bf16.gmra.mrb[0].mxu0 %v6599
  %v8045 = vpop.f32.mrb[0].mxu0
  %v8046 = vadd.f32 %v7757, %v8045
  %v8047 = vpop.f32.mrb[0].mxu0
  %v8048 = vpop.f32.mrb[0].mxu0
  %v8049 = vadd.f32 %v7760, %v8048
  %v8050 = vpop.f32.mrb[0].mxu0
  %8051 = vmatprep.mubr.bf16.mxu0 %v6609
  %8052 = vmatmul.mubr.bf16.gmra.mrb[0].mxu0 %v6608
  %v8053 = vpop.f32.mrb[0].mxu0
  %v8054 = vadd.f32 %v7765, %v8053
  %v8055 = vpop.f32.mrb[0].mxu0
  %v8056 = vpop.f32.mrb[0].mxu0
  %v8057 = vadd.f32 %v7768, %v8056
  %v8058 = vpop.f32.mrb[0].mxu0
  %8059 = vmatprep.mubr.bf16.mxu0 %v6618
  %8060 = vmatmul.mubr.bf16.gmra.mrb[0].mxu0 %v6617
  %v8061 = vpop.f32.mrb[0].mxu0
  %v8062 = vadd.f32 %v7773, %v8061
  %v8063 = vpop.f32.mrb[0].mxu0
  %v8064 = vpop.f32.mrb[0].mxu0
  %v8065 = vadd.f32 %v7776, %v8064
  %v8066 = vpop.f32.mrb[0].mxu0
  %8067 = vmatprep.mubr.bf16.mxu0 %v6627
  %8068 = vmatmul.mubr.bf16.gmra.mrb[0].mxu0 %v6626
  %v8069 = vpop.f32.mrb[0].mxu0
  %v8070 = vadd.f32 %v7781, %v8069
  %v8071 = vpop.f32.mrb[0].mxu0
  %v8072 = vpop.f32.mrb[0].mxu0
  %v8073 = vadd.f32 %v7784, %v8072
  %v8074 = vpop.f32.mrb[0].mxu0
  %8075 = vmatprep.mubr.bf16.mxu0 %v6636
  %8076 = vmatmul.mubr.bf16.gmra.mrb[0].mxu0 %v6635
  %v8077 = vpop.f32.mrb[0].mxu0
  %v8078 = vadd.f32 %v7789, %v8077
  %v8079 = vpop.f32.mrb[0].mxu0
  %v8080 = vpop.f32.mrb[0].mxu0
  %v8081 = vadd.f32 %v7792, %v8080
  %v8082 = vpop.f32.mrb[0].mxu0
  %8083 = vmatprep.mubr.bf16.mxu0 %v6645
  %8084 = vmatmul.mubr.bf16.gmra.mrb[0].mxu0 %v6644
  %v8085 = vpop.f32.mrb[0].mxu0
  %v8086 = vadd.f32 %v7797, %v8085
  %v8087 = vpop.f32.mrb[0].mxu0
  %v8088 = vpop.f32.mrb[0].mxu0
  %v8089 = vadd.f32 %v7800, %v8088
  %v8090 = vpop.f32.mrb[0].mxu0
  %8091 = vdwg.mxu0
  %8092 = vmatprep.subr.bf16.mxu0 0
  %8093 = vmatpush1.bf16.msra.mxu0 %v7129
  %8094 = vmatprep.subr.bf16.mxu0 0
  %8095 = vmatpush1.bf16.msra.mxu0 %v7130
  %8096 = vmatprep.subr.bf16.mxu0 0
  %8097 = vmatpush1.bf16.msra.mxu0 %v7131
  %8098 = vmatprep.subr.bf16.mxu0 0
  %8099 = vmatpush1.bf16.msra.mxu0 %v7132
  %8100 = vmatprep.subr.bf16.mxu0 0
  %8101 = vmatpush1.bf16.msra.mxu0 %v7133
  %8102 = vmatprep.subr.bf16.mxu0 0
  %8103 = vmatpush1.bf16.msra.mxu0 %v7134
  %8104 = vmatprep.subr.bf16.mxu0 0
  %8105 = vmatpush1.bf16.msra.mxu0 %v7135
  %8106 = vmatprep.subr.bf16.mxu0 0
  %8107 = vmatpush1.bf16.msra.mxu0 %v7136
  %8108 = vmatprep.subr.bf16.mxu0 0
  %8109 = vmatpush1.bf16.msra.mxu0 %v7137
  %8110 = vmatprep.subr.bf16.mxu0 0
  %8111 = vmatpush1.bf16.msra.mxu0 %v7138
  %8112 = vmatprep.subr.bf16.mxu0 0
  %8113 = vmatpush1.bf16.msra.mxu0 %v7139
  %8114 = vmatprep.subr.bf16.mxu0 0
  %8115 = vmatpush1.bf16.msra.mxu0 %v7140
  %8116 = vmatprep.subr.bf16.mxu0 0
  %8117 = vmatpush1.bf16.msra.mxu0 %v7141
  %8118 = vmatprep.subr.bf16.mxu0 0
  %8119 = vmatpush1.bf16.msra.mxu0 %v7142
  %8120 = vmatprep.subr.bf16.mxu0 0
  %8121 = vmatpush1.bf16.msra.mxu0 %v7143
  %8122 = vmatprep.subr.bf16.mxu0 0
  %8123 = vmatpush1.bf16.msra.mxu0 %v7144
  %8124 = vmatprep.mubr.bf16.mxu0 %v6368
  %8125 = vmatmul.mubr.bf16.gmra.mrb[0].mxu0 %v6367
  %v8126 = vpop.f32.mrb[0].mxu0
  %v8127 = vadd.f32 %v7838, %v8126
  %v8128 = vpop.f32.mrb[0].mxu0
  %v8129 = vpop.f32.mrb[0].mxu0
  %v8130 = vadd.f32 %v7841, %v8129
  %v8131 = vpop.f32.mrb[0].mxu0
  %8132 = vmatprep.mubr.bf16.mxu0 %v6377
  %8133 = vmatmul.mubr.bf16.gmra.mrb[0].mxu0 %v6376
  %v8134 = vpop.f32.mrb[0].mxu0
  %v8135 = vadd.f32 %v7846, %v8134
  %v8136 = vpop.f32.mrb[0].mxu0
  %v8137 = vpop.f32.mrb[0].mxu0
  %v8138 = vadd.f32 %v7849, %v8137
  %v8139 = vpop.f32.mrb[0].mxu0
  %8140 = vmatprep.mubr.bf16.mxu0 %v6386
  %8141 = vmatmul.mubr.bf16.gmra.mrb[0].mxu0 %v6385
  %v8142 = vpop.f32.mrb[0].mxu0
  %v8143 = vadd.f32 %v7854, %v8142
  %v8144 = vpop.f32.mrb[0].mxu0
  %v8145 = vpop.f32.mrb[0].mxu0
  %v8146 = vadd.f32 %v7857, %v8145
  %v8147 = vpop.f32.mrb[0].mxu0
  %8148 = vmatprep.mubr.bf16.mxu0 %v6395
  %8149 = vmatmul.mubr.bf16.gmra.mrb[0].mxu0 %v6394
  %v8150 = vpop.f32.mrb[0].mxu0
  %v8151 = vadd.f32 %v7862, %v8150
  %v8152 = vpop.f32.mrb[0].mxu0
  %v8153 = vpop.f32.mrb[0].mxu0
  %v8154 = vadd.f32 %v7865, %v8153
  %v8155 = vpop.f32.mrb[0].mxu0
  %8156 = vmatprep.mubr.bf16.mxu0 %v6404
  %8157 = vmatmul.mubr.bf16.gmra.mrb[0].mxu0 %v6403
  %v8158 = vpop.f32.mrb[0].mxu0
  %v8159 = vadd.f32 %v7870, %v8158
  %v8160 = vpop.f32.mrb[0].mxu0
  %v8161 = vpop.f32.mrb[0].mxu0
  %v8162 = vadd.f32 %v7873, %v8161
  %v8163 = vpop.f32.mrb[0].mxu0
  %8164 = vmatprep.mubr.bf16.mxu0 %v6413
  %8165 = vmatmul.mubr.bf16.gmra.mrb[0].mxu0 %v6412
  %v8166 = vpop.f32.mrb[0].mxu0
  %v8167 = vadd.f32 %v7878, %v8166
  %v8168 = vpop.f32.mrb[0].mxu0
  %v8169 = vpop.f32.mrb[0].mxu0
  %v8170 = vadd.f32 %v7881, %v8169
  %v8171 = vpop.f32.mrb[0].mxu0
  %8172 = vmatprep.mubr.bf16.mxu0 %v6422
  %8173 = vmatmul.mubr.bf16.gmra.mrb[0].mxu0 %v6421
  %v8174 = vpop.f32.mrb[0].mxu0
  %v8175 = vadd.f32 %v7886, %v8174
  %v8176 = vpop.f32.mrb[0].mxu0
  %v8177 = vpop.f32.mrb[0].mxu0
  %v8178 = vadd.f32 %v7889, %v8177
  %v8179 = vpop.f32.mrb[0].mxu0
  %8180 = vmatprep.mubr.bf16.mxu0 %v6431
  %8181 = vmatmul.mubr.bf16.gmra.mrb[0].mxu0 %v6430
  %v8182 = vpop.f32.mrb[0].mxu0
  %v8183 = vadd.f32 %v7894, %v8182
  %v8184 = vpop.f32.mrb[0].mxu0
  %v8185 = vpop.f32.mrb[0].mxu0
  %v8186 = vadd.f32 %v7897, %v8185
  %v8187 = vpop.f32.mrb[0].mxu0
  %8188 = vmatprep.mubr.bf16.mxu0 %v6440
  %8189 = vmatmul.mubr.bf16.gmra.mrb[0].mxu0 %v6439
  %v8190 = vpop.f32.mrb[0].mxu0
  %v8191 = vadd.f32 %v7902, %v8190
  %v8192 = vpop.f32.mrb[0].mxu0
  %v8193 = vpop.f32.mrb[0].mxu0
  %v8194 = vadd.f32 %v7905, %v8193
  %v8195 = vpop.f32.mrb[0].mxu0
  %8196 = vmatprep.mubr.bf16.mxu0 %v6449
  %8197 = vmatmul.mubr.bf16.gmra.mrb[0].mxu0 %v6448
  %v8198 = vpop.f32.mrb[0].mxu0
  %v8199 = vadd.f32 %v7910, %v8198
  %v8200 = vpop.f32.mrb[0].mxu0
  %v8201 = vpop.f32.mrb[0].mxu0
  %v8202 = vadd.f32 %v7913, %v8201
  %v8203 = vpop.f32.mrb[0].mxu0
  %8204 = vmatprep.mubr.bf16.mxu0 %v6458
  %8205 = vmatmul.mubr.bf16.gmra.mrb[0].mxu0 %v6457
  %v8206 = vpop.f32.mrb[0].mxu0
  %v8207 = vadd.f32 %v7918, %v8206
  %v8208 = vpop.f32.mrb[0].mxu0
  %v8209 = vpop.f32.mrb[0].mxu0
  %v8210 = vadd.f32 %v7921, %v8209
  %v8211 = vpop.f32.mrb[0].mxu0
  %8212 = vmatprep.mubr.bf16.mxu0 %v6467
  %8213 = vmatmul.mubr.bf16.gmra.mrb[0].mxu0 %v6466
  %v8214 = vpop.f32.mrb[0].mxu0
  %v8215 = vadd.f32 %v7926, %v8214
  %v8216 = vpop.f32.mrb[0].mxu0
  %v8217 = vpop.f32.mrb[0].mxu0
  %v8218 = vadd.f32 %v7929, %v8217
  %v8219 = vpop.f32.mrb[0].mxu0
  %8220 = vmatprep.mubr.bf16.mxu0 %v6476
  %8221 = vmatmul.mubr.bf16.gmra.mrb[0].mxu0 %v6475
  %v8222 = vpop.f32.mrb[0].mxu0
  %v8223 = vadd.f32 %v7934, %v8222
  %v8224 = vpop.f32.mrb[0].mxu0
  %v8225 = vpop.f32.mrb[0].mxu0
  %v8226 = vadd.f32 %v7937, %v8225
  %v8227 = vpop.f32.mrb[0].mxu0
  %8228 = vmatprep.mubr.bf16.mxu0 %v6485
  %8229 = vmatmul.mubr.bf16.gmra.mrb[0].mxu0 %v6484
  %v8230 = vpop.f32.mrb[0].mxu0
  %v8231 = vadd.f32 %v7942, %v8230
  %v8232 = vpop.f32.mrb[0].mxu0
  %v8233 = vpop.f32.mrb[0].mxu0
  %v8234 = vadd.f32 %v7945, %v8233
  %v8235 = vpop.f32.mrb[0].mxu0
  %8236 = vmatprep.mubr.bf16.mxu0 %v6494
  %8237 = vmatmul.mubr.bf16.gmra.mrb[0].mxu0 %v6493
  %v8238 = vpop.f32.mrb[0].mxu0
  %v8239 = vadd.f32 %v7950, %v8238
  %v8240 = vpop.f32.mrb[0].mxu0
  %v8241 = vpop.f32.mrb[0].mxu0
  %v8242 = vadd.f32 %v7953, %v8241
  %v8243 = vpop.f32.mrb[0].mxu0
  %8244 = vmatprep.mubr.bf16.mxu0 %v6503
  %8245 = vmatmul.mubr.bf16.gmra.mrb[0].mxu0 %v6502
  %v8246 = vpop.f32.mrb[0].mxu0
  %v8247 = vadd.f32 %v7958, %v8246
  %v8248 = vpop.f32.mrb[0].mxu0
  %v8249 = vpop.f32.mrb[0].mxu0
  %v8250 = vadd.f32 %v7961, %v8249
  %v8251 = vpop.f32.mrb[0].mxu0
  %8252 = vmatprep.mubr.bf16.mxu0 %v6512
  %8253 = vmatmul.mubr.bf16.gmra.mrb[0].mxu0 %v6511
  %v8254 = vpop.f32.mrb[0].mxu0
  %v8255 = vadd.f32 %v7966, %v8254
  %v8256 = vpop.f32.mrb[0].mxu0
  %v8257 = vpop.f32.mrb[0].mxu0
  %v8258 = vadd.f32 %v7969, %v8257
  %v8259 = vpop.f32.mrb[0].mxu0
  %8260 = vmatprep.mubr.bf16.mxu0 %v6521
  %8261 = vmatmul.mubr.bf16.gmra.mrb[0].mxu0 %v6520
  %v8262 = vpop.f32.mrb[0].mxu0
  %v8263 = vadd.f32 %v7974, %v8262
  %v8264 = vpop.f32.mrb[0].mxu0
  %v8265 = vpop.f32.mrb[0].mxu0
  %v8266 = vadd.f32 %v7977, %v8265
  %v8267 = vpop.f32.mrb[0].mxu0
  %8268 = vmatprep.mubr.bf16.mxu0 %v6530
  %8269 = vmatmul.mubr.bf16.gmra.mrb[0].mxu0 %v6529
  %v8270 = vpop.f32.mrb[0].mxu0
  %v8271 = vadd.f32 %v7982, %v8270
  %v8272 = vpop.f32.mrb[0].mxu0
  %v8273 = vpop.f32.mrb[0].mxu0
  %v8274 = vadd.f32 %v7985, %v8273
  %v8275 = vpop.f32.mrb[0].mxu0
  %8276 = vmatprep.mubr.bf16.mxu0 %v6539
  %8277 = vmatmul.mubr.bf16.gmra.mrb[0].mxu0 %v6538
  %v8278 = vpop.f32.mrb[0].mxu0
  %v8279 = vadd.f32 %v7990, %v8278
  %v8280 = vpop.f32.mrb[0].mxu0
  %v8281 = vpop.f32.mrb[0].mxu0
  %v8282 = vadd.f32 %v7993, %v8281
  %v8283 = vpop.f32.mrb[0].mxu0
  %8284 = vmatprep.mubr.bf16.mxu0 %v6548
  %8285 = vmatmul.mubr.bf16.gmra.mrb[0].mxu0 %v6547
  %v8286 = vpop.f32.mrb[0].mxu0
  %v8287 = vadd.f32 %v7998, %v8286
  %v8288 = vpop.f32.mrb[0].mxu0
  %v8289 = vpop.f32.mrb[0].mxu0
  %v8290 = vadd.f32 %v8001, %v8289
  %v8291 = vpop.f32.mrb[0].mxu0
  %8292 = vmatprep.mubr.bf16.mxu0 %v6557
  %8293 = vmatmul.mubr.bf16.gmra.mrb[0].mxu0 %v6556
  %v8294 = vpop.f32.mrb[0].mxu0
  %v8295 = vadd.f32 %v8006, %v8294
  %v8296 = vpop.f32.mrb[0].mxu0
  %v8297 = vpop.f32.mrb[0].mxu0
  %v8298 = vadd.f32 %v8009, %v8297
  %v8299 = vpop.f32.mrb[0].mxu0
  %8300 = vmatprep.mubr.bf16.mxu0 %v6566
  %8301 = vmatmul.mubr.bf16.gmra.mrb[0].mxu0 %v6565
  %v8302 = vpop.f32.mrb[0].mxu0
  %v8303 = vadd.f32 %v8014, %v8302
  %v8304 = vpop.f32.mrb[0].mxu0
  %v8305 = vpop.f32.mrb[0].mxu0
  %v8306 = vadd.f32 %v8017, %v8305
  %v8307 = vpop.f32.mrb[0].mxu0
  %8308 = vmatprep.mubr.bf16.mxu0 %v6575
  %8309 = vmatmul.mubr.bf16.gmra.mrb[0].mxu0 %v6574
  %v8310 = vpop.f32.mrb[0].mxu0
  %v8311 = vadd.f32 %v8022, %v8310
  %v8312 = vpop.f32.mrb[0].mxu0
  %v8313 = vpop.f32.mrb[0].mxu0
  %v8314 = vadd.f32 %v8025, %v8313
  %v8315 = vpop.f32.mrb[0].mxu0
  %8316 = vmatprep.mubr.bf16.mxu0 %v6584
  %8317 = vmatmul.mubr.bf16.gmra.mrb[0].mxu0 %v6583
  %v8318 = vpop.f32.mrb[0].mxu0
  %v8319 = vadd.f32 %v8030, %v8318
  %v8320 = vpop.f32.mrb[0].mxu0
  %v8321 = vpop.f32.mrb[0].mxu0
  %v8322 = vadd.f32 %v8033, %v8321
  %v8323 = vpop.f32.mrb[0].mxu0
  %8324 = vmatprep.mubr.bf16.mxu0 %v6593
  %8325 = vmatmul.mubr.bf16.gmra.mrb[0].mxu0 %v6592
  %v8326 = vpop.f32.mrb[0].mxu0
  %v8327 = vadd.f32 %v8038, %v8326
  %v8328 = vpop.f32.mrb[0].mxu0
  %v8329 = vpop.f32.mrb[0].mxu0
  %v8330 = vadd.f32 %v8041, %v8329
  %v8331 = vpop.f32.mrb[0].mxu0
  %8332 = vmatprep.mubr.bf16.mxu0 %v6602
  %8333 = vmatmul.mubr.bf16.gmra.mrb[0].mxu0 %v6601
  %v8334 = vpop.f32.mrb[0].mxu0
  %v8335 = vadd.f32 %v8046, %v8334
  %v8336 = vpop.f32.mrb[0].mxu0
  %v8337 = vpop.f32.mrb[0].mxu0
  %v8338 = vadd.f32 %v8049, %v8337
  %v8339 = vpop.f32.mrb[0].mxu0
  %8340 = vmatprep.mubr.bf16.mxu0 %v6611
  %8341 = vmatmul.mubr.bf16.gmra.mrb[0].mxu0 %v6610
  %v8342 = vpop.f32.mrb[0].mxu0
  %v8343 = vadd.f32 %v8054, %v8342
  %v8344 = vpop.f32.mrb[0].mxu0
  %v8345 = vpop.f32.mrb[0].mxu0
  %v8346 = vadd.f32 %v8057, %v8345
  %v8347 = vpop.f32.mrb[0].mxu0
  %8348 = vmatprep.mubr.bf16.mxu0 %v6620
  %8349 = vmatmul.mubr.bf16.gmra.mrb[0].mxu0 %v6619
  %v8350 = vpop.f32.mrb[0].mxu0
  %v8351 = vadd.f32 %v8062, %v8350
  %v8352 = vpop.f32.mrb[0].mxu0
  %v8353 = vpop.f32.mrb[0].mxu0
  %v8354 = vadd.f32 %v8065, %v8353
  %v8355 = vpop.f32.mrb[0].mxu0
  %8356 = vmatprep.mubr.bf16.mxu0 %v6629
  %8357 = vmatmul.mubr.bf16.gmra.mrb[0].mxu0 %v6628
  %v8358 = vpop.f32.mrb[0].mxu0
  %v8359 = vadd.f32 %v8070, %v8358
  %v8360 = vpop.f32.mrb[0].mxu0
  %v8361 = vpop.f32.mrb[0].mxu0
  %v8362 = vadd.f32 %v8073, %v8361
  %v8363 = vpop.f32.mrb[0].mxu0
  %8364 = vmatprep.mubr.bf16.mxu0 %v6638
  %8365 = vmatmul.mubr.bf16.gmra.mrb[0].mxu0 %v6637
  %v8366 = vpop.f32.mrb[0].mxu0
  %v8367 = vadd.f32 %v8078, %v8366
  %v8368 = vpop.f32.mrb[0].mxu0
  %v8369 = vpop.f32.mrb[0].mxu0
  %v8370 = vadd.f32 %v8081, %v8369
  %v8371 = vpop.f32.mrb[0].mxu0
  %8372 = vmatprep.mubr.bf16.mxu0 %v6647
  %8373 = vmatmul.mubr.bf16.gmra.mrb[0].mxu0 %v6646
  %v8374 = vpop.f32.mrb[0].mxu0
  %v8375 = vadd.f32 %v8086, %v8374
  %v8376 = vpop.f32.mrb[0].mxu0
  %v8377 = vpop.f32.mrb[0].mxu0
  %v8378 = vadd.f32 %v8089, %v8377
  %v8379 = vpop.f32.mrb[0].mxu0
  %8380 = vdwg.mxu0
  %8381 = vmatprep.subr.bf16.mxu0 0
  %8382 = vmatpush1.bf16.msra.mxu0 %v7145
  %8383 = vmatprep.subr.bf16.mxu0 0
  %8384 = vmatpush1.bf16.msra.mxu0 %v7146
  %8385 = vmatprep.subr.bf16.mxu0 0
  %8386 = vmatpush1.bf16.msra.mxu0 %v7147
  %8387 = vmatprep.subr.bf16.mxu0 0
  %8388 = vmatpush1.bf16.msra.mxu0 %v7148
  %8389 = vmatprep.subr.bf16.mxu0 0
  %8390 = vmatpush1.bf16.msra.mxu0 %v7149
  %8391 = vmatprep.subr.bf16.mxu0 0
  %8392 = vmatpush1.bf16.msra.mxu0 %v7150
  %8393 = vmatprep.subr.bf16.mxu0 0
  %8394 = vmatpush1.bf16.msra.mxu0 %v7151
  %8395 = vmatprep.subr.bf16.mxu0 0
  %8396 = vmatpush1.bf16.msra.mxu0 %v7152
  %8397 = vmatprep.subr.bf16.mxu0 0
  %8398 = vmatpush1.bf16.msra.mxu0 0
  %8399 = vmatprep.subr.bf16.mxu0 0
  %8400 = vmatpush1.bf16.msra.mxu0 0
  %8401 = vmatprep.subr.bf16.mxu0 0
  %8402 = vmatpush1.bf16.msra.mxu0 0
  %8403 = vmatprep.subr.bf16.mxu0 0
  %8404 = vmatpush1.bf16.msra.mxu0 0
  %8405 = vmatprep.subr.bf16.mxu0 0
  %8406 = vmatpush1.bf16.msra.mxu0 0
  %8407 = vmatprep.subr.bf16.mxu0 0
  %8408 = vmatpush1.bf16.msra.mxu0 0
  %8409 = vmatprep.subr.bf16.mxu0 0
  %8410 = vmatpush1.bf16.msra.mxu0 0
  %8411 = vmatprep.subr.bf16.mxu0 0
  %8412 = vmatpush1.bf16.msra.mxu0 0
  %8413 = vmatprep.mubr.bf16.mxu0 0
  %8414 = vmatmul.mubr.bf16.gmra.mrb[0].mxu0 %v6369
  %v8415 = vpop.f32.mrb[0].mxu0
  %v8416 = vadd.f32 %v8127, %v8415
  %v8417 = vpop.f32.mrb[0].mxu0
  %v8418 = vpop.f32.mrb[0].mxu0
  %v8419 = vadd.f32 %v8130, %v8418
  %v8420 = vpop.f32.mrb[0].mxu0
  %8421 = vmatprep.mubr.bf16.mxu0 0
  %8422 = vmatmul.mubr.bf16.gmra.mrb[0].mxu0 %v6378
  %v8423 = vpop.f32.mrb[0].mxu0
  %v8424 = vadd.f32 %v8135, %v8423
  %v8425 = vpop.f32.mrb[0].mxu0
  %v8426 = vpop.f32.mrb[0].mxu0
  %v8427 = vadd.f32 %v8138, %v8426
  %v8428 = vpop.f32.mrb[0].mxu0
  %8429 = vmatprep.mubr.bf16.mxu0 0
  %8430 = vmatmul.mubr.bf16.gmra.mrb[0].mxu0 %v6387
  %v8431 = vpop.f32.mrb[0].mxu0
  %v8432 = vadd.f32 %v8143, %v8431
  %v8433 = vpop.f32.mrb[0].mxu0
  %v8434 = vpop.f32.mrb[0].mxu0
  %v8435 = vadd.f32 %v8146, %v8434
  %v8436 = vpop.f32.mrb[0].mxu0
  %8437 = vmatprep.mubr.bf16.mxu0 0
  %8438 = vmatmul.mubr.bf16.gmra.mrb[0].mxu0 %v6396
  %v8439 = vpop.f32.mrb[0].mxu0
  %v8440 = vadd.f32 %v8151, %v8439
  %v8441 = vpop.f32.mrb[0].mxu0
  %v8442 = vpop.f32.mrb[0].mxu0
  %v8443 = vadd.f32 %v8154, %v8442
  %v8444 = vpop.f32.mrb[0].mxu0
  %8445 = vmatprep.mubr.bf16.mxu0 0
  %8446 = vmatmul.mubr.bf16.gmra.mrb[0].mxu0 %v6405
  %v8447 = vpop.f32.mrb[0].mxu0
  %v8448 = vadd.f32 %v8159, %v8447
  %v8449 = vpop.f32.mrb[0].mxu0
  %v8450 = vpop.f32.mrb[0].mxu0
  %v8451 = vadd.f32 %v8162, %v8450
  %v8452 = vpop.f32.mrb[0].mxu0
  %8453 = vmatprep.mubr.bf16.mxu0 0
  %8454 = vmatmul.mubr.bf16.gmra.mrb[0].mxu0 %v6414
  %v8455 = vpop.f32.mrb[0].mxu0
  %v8456 = vadd.f32 %v8167, %v8455
  %v8457 = vpop.f32.mrb[0].mxu0
  %v8458 = vpop.f32.mrb[0].mxu0
  %v8459 = vadd.f32 %v8170, %v8458
  %v8460 = vpop.f32.mrb[0].mxu0
  %8461 = vmatprep.mubr.bf16.mxu0 0
  %8462 = vmatmul.mubr.bf16.gmra.mrb[0].mxu0 %v6423
  %v8463 = vpop.f32.mrb[0].mxu0
  %v8464 = vadd.f32 %v8175, %v8463
  %v8465 = vpop.f32.mrb[0].mxu0
  %v8466 = vpop.f32.mrb[0].mxu0
  %v8467 = vadd.f32 %v8178, %v8466
  %v8468 = vpop.f32.mrb[0].mxu0
  %8469 = vmatprep.mubr.bf16.mxu0 0
  %8470 = vmatmul.mubr.bf16.gmra.mrb[0].mxu0 %v6432
  %v8471 = vpop.f32.mrb[0].mxu0
  %v8472 = vadd.f32 %v8183, %v8471
  %v8473 = vpop.f32.mrb[0].mxu0
  %v8474 = vpop.f32.mrb[0].mxu0
  %v8475 = vadd.f32 %v8186, %v8474
  %v8476 = vpop.f32.mrb[0].mxu0
  %8477 = vmatprep.mubr.bf16.mxu0 0
  %8478 = vmatmul.mubr.bf16.gmra.mrb[0].mxu0 %v6441
  %v8479 = vpop.f32.mrb[0].mxu0
  %v8480 = vadd.f32 %v8191, %v8479
  %v8481 = vpop.f32.mrb[0].mxu0
  %v8482 = vpop.f32.mrb[0].mxu0
  %v8483 = vadd.f32 %v8194, %v8482
  %v8484 = vpop.f32.mrb[0].mxu0
  %8485 = vmatprep.mubr.bf16.mxu0 0
  %8486 = vmatmul.mubr.bf16.gmra.mrb[0].mxu0 %v6450
  %v8487 = vpop.f32.mrb[0].mxu0
  %v8488 = vadd.f32 %v8199, %v8487
  %v8489 = vpop.f32.mrb[0].mxu0
  %v8490 = vpop.f32.mrb[0].mxu0
  %v8491 = vadd.f32 %v8202, %v8490
  %v8492 = vpop.f32.mrb[0].mxu0
  %8493 = vmatprep.mubr.bf16.mxu0 0
  %8494 = vmatmul.mubr.bf16.gmra.mrb[0].mxu0 %v6459
  %v8495 = vpop.f32.mrb[0].mxu0
  %v8496 = vadd.f32 %v8207, %v8495
  %v8497 = vpop.f32.mrb[0].mxu0
  %v8498 = vpop.f32.mrb[0].mxu0
  %v8499 = vadd.f32 %v8210, %v8498
  %v8500 = vpop.f32.mrb[0].mxu0
  %8501 = vmatprep.mubr.bf16.mxu0 0
  %8502 = vmatmul.mubr.bf16.gmra.mrb[0].mxu0 %v6468
  %v8503 = vpop.f32.mrb[0].mxu0
  %v8504 = vadd.f32 %v8215, %v8503
  %v8505 = vpop.f32.mrb[0].mxu0
  %v8506 = vpop.f32.mrb[0].mxu0
  %v8507 = vadd.f32 %v8218, %v8506
  %v8508 = vpop.f32.mrb[0].mxu0
  %8509 = vmatprep.mubr.bf16.mxu0 0
  %8510 = vmatmul.mubr.bf16.gmra.mrb[0].mxu0 %v6477
  %v8511 = vpop.f32.mrb[0].mxu0
  %v8512 = vadd.f32 %v8223, %v8511
  %v8513 = vpop.f32.mrb[0].mxu0
  %v8514 = vpop.f32.mrb[0].mxu0
  %v8515 = vadd.f32 %v8226, %v8514
  %v8516 = vpop.f32.mrb[0].mxu0
  %8517 = vmatprep.mubr.bf16.mxu0 0
  %8518 = vmatmul.mubr.bf16.gmra.mrb[0].mxu0 %v6486
  %v8519 = vpop.f32.mrb[0].mxu0
  %v8520 = vadd.f32 %v8231, %v8519
  %v8521 = vpop.f32.mrb[0].mxu0
  %v8522 = vpop.f32.mrb[0].mxu0
  %v8523 = vadd.f32 %v8234, %v8522
  %v8524 = vpop.f32.mrb[0].mxu0
  %8525 = vmatprep.mubr.bf16.mxu0 0
  %8526 = vmatmul.mubr.bf16.gmra.mrb[0].mxu0 %v6495
  %v8527 = vpop.f32.mrb[0].mxu0
  %v8528 = vadd.f32 %v8239, %v8527
  %v8529 = vpop.f32.mrb[0].mxu0
  %v8530 = vpop.f32.mrb[0].mxu0
  %v8531 = vadd.f32 %v8242, %v8530
  %v8532 = vpop.f32.mrb[0].mxu0
  %8533 = vmatprep.mubr.bf16.mxu0 0
  %8534 = vmatmul.mubr.bf16.gmra.mrb[0].mxu0 %v6504
  %v8535 = vpop.f32.mrb[0].mxu0
  %v8536 = vadd.f32 %v8247, %v8535
  %v8537 = vpop.f32.mrb[0].mxu0
  %v8538 = vpop.f32.mrb[0].mxu0
  %v8539 = vadd.f32 %v8250, %v8538
  %v8540 = vpop.f32.mrb[0].mxu0
  %8541 = vmatprep.mubr.bf16.mxu0 0
  %8542 = vmatmul.mubr.bf16.gmra.mrb[0].mxu0 %v6513
  %v8543 = vpop.f32.mrb[0].mxu0
  %v8544 = vadd.f32 %v8255, %v8543
  %v8545 = vpop.f32.mrb[0].mxu0
  %v8546 = vpop.f32.mrb[0].mxu0
  %v8547 = vadd.f32 %v8258, %v8546
  %v8548 = vpop.f32.mrb[0].mxu0
  %8549 = vmatprep.mubr.bf16.mxu0 0
  %8550 = vmatmul.mubr.bf16.gmra.mrb[0].mxu0 %v6522
  %v8551 = vpop.f32.mrb[0].mxu0
  %v8552 = vadd.f32 %v8263, %v8551
  %v8553 = vpop.f32.mrb[0].mxu0
  %v8554 = vpop.f32.mrb[0].mxu0
  %v8555 = vadd.f32 %v8266, %v8554
  %v8556 = vpop.f32.mrb[0].mxu0
  %8557 = vmatprep.mubr.bf16.mxu0 0
  %8558 = vmatmul.mubr.bf16.gmra.mrb[0].mxu0 %v6531
  %v8559 = vpop.f32.mrb[0].mxu0
  %v8560 = vadd.f32 %v8271, %v8559
  %v8561 = vpop.f32.mrb[0].mxu0
  %v8562 = vpop.f32.mrb[0].mxu0
  %v8563 = vadd.f32 %v8274, %v8562
  %v8564 = vpop.f32.mrb[0].mxu0
  %8565 = vmatprep.mubr.bf16.mxu0 0
  %8566 = vmatmul.mubr.bf16.gmra.mrb[0].mxu0 %v6540
  %v8567 = vpop.f32.mrb[0].mxu0
  %v8568 = vadd.f32 %v8279, %v8567
  %v8569 = vpop.f32.mrb[0].mxu0
  %v8570 = vpop.f32.mrb[0].mxu0
  %v8571 = vadd.f32 %v8282, %v8570
  %v8572 = vpop.f32.mrb[0].mxu0
  %8573 = vmatprep.mubr.bf16.mxu0 0
  %8574 = vmatmul.mubr.bf16.gmra.mrb[0].mxu0 %v6549
  %v8575 = vpop.f32.mrb[0].mxu0
  %v8576 = vadd.f32 %v8287, %v8575
  %v8577 = vpop.f32.mrb[0].mxu0
  %v8578 = vpop.f32.mrb[0].mxu0
  %v8579 = vadd.f32 %v8290, %v8578
  %v8580 = vpop.f32.mrb[0].mxu0
  %8581 = vmatprep.mubr.bf16.mxu0 0
  %8582 = vmatmul.mubr.bf16.gmra.mrb[0].mxu0 %v6558
  %v8583 = vpop.f32.mrb[0].mxu0
  %v8584 = vadd.f32 %v8295, %v8583
  %v8585 = vpop.f32.mrb[0].mxu0
  %v8586 = vpop.f32.mrb[0].mxu0
  %v8587 = vadd.f32 %v8298, %v8586
  %v8588 = vpop.f32.mrb[0].mxu0
  %8589 = vmatprep.mubr.bf16.mxu0 0
  %8590 = vmatmul.mubr.bf16.gmra.mrb[0].mxu0 %v6567
  %v8591 = vpop.f32.mrb[0].mxu0
  %v8592 = vadd.f32 %v8303, %v8591
  %v8593 = vpop.f32.mrb[0].mxu0
  %v8594 = vpop.f32.mrb[0].mxu0
  %v8595 = vadd.f32 %v8306, %v8594
  %v8596 = vpop.f32.mrb[0].mxu0
  %8597 = vmatprep.mubr.bf16.mxu0 0
  %8598 = vmatmul.mubr.bf16.gmra.mrb[0].mxu0 %v6576
  %v8599 = vpop.f32.mrb[0].mxu0
  %v8600 = vadd.f32 %v8311, %v8599
  %v8601 = vpop.f32.mrb[0].mxu0
  %v8602 = vpop.f32.mrb[0].mxu0
  %v8603 = vadd.f32 %v8314, %v8602
  %v8604 = vpop.f32.mrb[0].mxu0
  %8605 = vmatprep.mubr.bf16.mxu0 0
  %8606 = vmatmul.mubr.bf16.gmra.mrb[0].mxu0 %v6585
  %v8607 = vpop.f32.mrb[0].mxu0
  %v8608 = vadd.f32 %v8319, %v8607
  %v8609 = vpop.f32.mrb[0].mxu0
  %v8610 = vpop.f32.mrb[0].mxu0
  %v8611 = vadd.f32 %v8322, %v8610
  %v8612 = vpop.f32.mrb[0].mxu0
  %8613 = vmatprep.mubr.bf16.mxu0 0
  %8614 = vmatmul.mubr.bf16.gmra.mrb[0].mxu0 %v6594
  %v8615 = vpop.f32.mrb[0].mxu0
  %v8616 = vadd.f32 %v8327, %v8615
  %v8617 = vpop.f32.mrb[0].mxu0
  %v8618 = vpop.f32.mrb[0].mxu0
  %v8619 = vadd.f32 %v8330, %v8618
  %v8620 = vpop.f32.mrb[0].mxu0
  %8621 = vmatprep.mubr.bf16.mxu0 0
  %8622 = vmatmul.mubr.bf16.gmra.mrb[0].mxu0 %v6603
  %v8623 = vpop.f32.mrb[0].mxu0
  %v8624 = vadd.f32 %v8335, %v8623
  %v8625 = vpop.f32.mrb[0].mxu0
  %v8626 = vpop.f32.mrb[0].mxu0
  %v8627 = vadd.f32 %v8338, %v8626
  %v8628 = vpop.f32.mrb[0].mxu0
  %8629 = vmatprep.mubr.bf16.mxu0 0
  %8630 = vmatmul.mubr.bf16.gmra.mrb[0].mxu0 %v6612
  %v8631 = vpop.f32.mrb[0].mxu0
  %v8632 = vadd.f32 %v8343, %v8631
  %v8633 = vpop.f32.mrb[0].mxu0
  %v8634 = vpop.f32.mrb[0].mxu0
  %v8635 = vadd.f32 %v8346, %v8634
  %v8636 = vpop.f32.mrb[0].mxu0
  %8637 = vmatprep.mubr.bf16.mxu0 0
  %8638 = vmatmul.mubr.bf16.gmra.mrb[0].mxu0 %v6621
  %v8639 = vpop.f32.mrb[0].mxu0
  %v8640 = vadd.f32 %v8351, %v8639
  %v8641 = vpop.f32.mrb[0].mxu0
  %v8642 = vpop.f32.mrb[0].mxu0
  %v8643 = vadd.f32 %v8354, %v8642
  %v8644 = vpop.f32.mrb[0].mxu0
  %8645 = vmatprep.mubr.bf16.mxu0 0
  %8646 = vmatmul.mubr.bf16.gmra.mrb[0].mxu0 %v6630
  %v8647 = vpop.f32.mrb[0].mxu0
  %v8648 = vadd.f32 %v8359, %v8647
  %v8649 = vpop.f32.mrb[0].mxu0
  %v8650 = vpop.f32.mrb[0].mxu0
  %v8651 = vadd.f32 %v8362, %v8650
  %v8652 = vpop.f32.mrb[0].mxu0
  %8653 = vmatprep.mubr.bf16.mxu0 0
  %8654 = vmatmul.mubr.bf16.gmra.mrb[0].mxu0 %v6639
  %v8655 = vpop.f32.mrb[0].mxu0
  %v8656 = vadd.f32 %v8367, %v8655
  %v8657 = vpop.f32.mrb[0].mxu0
  %v8658 = vpop.f32.mrb[0].mxu0
  %v8659 = vadd.f32 %v8370, %v8658
  %v8660 = vpop.f32.mrb[0].mxu0
  %8661 = vmatprep.mubr.bf16.mxu0 0
  %8662 = vmatmul.mubr.bf16.gmra.mrb[0].mxu0 %v6648
  %v8663 = vpop.f32.mrb[0].mxu0
  %v8664 = vadd.f32 %v8375, %v8663
  %v8665 = vpop.f32.mrb[0].mxu0
  %v8666 = vpop.f32.mrb[0].mxu0
  %v8667 = vadd.f32 %v8378, %v8666
  %v8668 = vpop.f32.mrb[0].mxu0
  %8669 = vdwg.mxu0
  %v8670 = vld [vmem:[%s5] sm:$0x1]
  %v8671 = vld [vmem:[%s6] sm:$0x1]
  %v8672 = vadd.f32 %v8416, %v8419
  %v8673 = vadd.f32 %v8672, %v8424
  %v8674 = vadd.f32 %v8673, %v8427
  %v8675 = vadd.f32 %v8674, %v8432
  %v8676 = vadd.f32 %v8675, %v8435
  %v8677 = vadd.f32 %v8676, %v8440
  %v8678 = vadd.f32 %v8677, %v8443
  %v8679 = vadd.f32 %v8678, %v8448
  %v8680 = vadd.f32 %v8679, %v8451
  %v8681 = vadd.f32 %v8680, %v8456
  %v8682 = vadd.f32 %v8681, %v8459
  %v8683 = vadd.f32 %v8682, %v8464
  %v8684 = vadd.f32 %v8683, %v8467
  %v8685 = vadd.f32 %v8684, %v8472
  %v8686 = vadd.f32 %v8685, %v8475
  %v8687 = vadd.f32 %v8686, %v8480
  %v8688 = vadd.f32 %v8687, %v8483
  %v8689 = vadd.f32 %v8688, %v8488
  %v8690 = vadd.f32 %v8689, %v8491
  %v8691 = vadd.f32 %v8690, %v8496
  %v8692 = vadd.f32 %v8691, %v8499
  %v8693 = vadd.f32 %v8692, %v8504
  %v8694 = vadd.f32 %v8693, %v8507
  %v8695 = vadd.f32 %v8694, %v8512
  %v8696 = vadd.f32 %v8695, %v8515
  %v8697 = vadd.f32 %v8696, %v8520
  %v8698 = vadd.f32 %v8697, %v8523
  %v8699 = vadd.f32 %v8698, %v8528
  %v8700 = vadd.f32 %v8699, %v8531
  %v8701 = vadd.f32 %v8700, %v8536
  %v8702 = vadd.f32 %v8701, %v8539
  %v8703 = vadd.f32 %v8702, %v8544
  %v8704 = vadd.f32 %v8703, %v8547
  %v8705 = vadd.f32 %v8704, %v8552
  %v8706 = vadd.f32 %v8705, %v8555
  %v8707 = vadd.f32 %v8706, %v8560
  %v8708 = vadd.f32 %v8707, %v8563
  %v8709 = vadd.f32 %v8708, %v8568
  %v8710 = vadd.f32 %v8709, %v8571
  %v8711 = vadd.f32 %v8710, %v8576
  %v8712 = vadd.f32 %v8711, %v8579
  %v8713 = vadd.f32 %v8712, %v8584
  %v8714 = vadd.f32 %v8713, %v8587
  %v8715 = vadd.f32 %v8714, %v8592
  %v8716 = vadd.f32 %v8715, %v8595
  %v8717 = vadd.f32 %v8716, %v8600
  %v8718 = vadd.f32 %v8717, %v8603
  %v8719 = vadd.f32 %v8718, %v8608
  %v8720 = vadd.f32 %v8719, %v8611
  %v8721 = vadd.f32 %v8720, %v8616
  %v8722 = vadd.f32 %v8721, %v8619
  %v8723 = vadd.f32 %v8722, %v8624
  %v8724 = vadd.f32 %v8723, %v8627
  %v8725 = vadd.f32 %v8724, %v8632
  %v8726 = vadd.f32 %v8725, %v8635
  %v8727 = vadd.f32 %v8726, %v8640
  %v8728 = vadd.f32 %v8727, %v8643
  %v8729 = vadd.f32 %v8728, %v8648
  %v8730 = vadd.f32 %v8729, %v8651
  %v8731 = vadd.f32 %v8730, %v8656
  %v8732 = vadd.f32 %v8731, %v8659
  %v8733 = vadd.f32 %v8732, %v8664
  %v8734 = vadd.f32 %v8733, %v8667
  %v8735 = vrot.slane %v8734, 4
  %v8736 = vadd.f32 %v8734, %v8735
  %v8737 = vrot.slane %v8736, 2
  %v8738 = vadd.f32 %v8736, %v8737
  %v8739 = vrot.slane %v8738, 1
  %v8740 = vadd.f32 %v8738, %v8739
  %v8741 = vmul.f32 %v8740, %v725
  %v8742 = vsub.f32 %v8416, %v8741
  %v8743 = vsub.f32 %v8419, %v8741
  %v8744 = vsub.f32 %v8424, %v8741
  %v8745 = vsub.f32 %v8427, %v8741
  %v8746 = vsub.f32 %v8432, %v8741
  %v8747 = vsub.f32 %v8435, %v8741
  %v8748 = vsub.f32 %v8440, %v8741
  %v8749 = vsub.f32 %v8443, %v8741
  %v8750 = vsub.f32 %v8448, %v8741
  %v8751 = vsub.f32 %v8451, %v8741
  %v8752 = vsub.f32 %v8456, %v8741
  %v8753 = vsub.f32 %v8459, %v8741
  %v8754 = vsub.f32 %v8464, %v8741
  %v8755 = vsub.f32 %v8467, %v8741
  %v8756 = vsub.f32 %v8472, %v8741
  %v8757 = vsub.f32 %v8475, %v8741
  %v8758 = vsub.f32 %v8480, %v8741
  %v8759 = vsub.f32 %v8483, %v8741
  %v8760 = vsub.f32 %v8488, %v8741
  %v8761 = vsub.f32 %v8491, %v8741
  %v8762 = vsub.f32 %v8496, %v8741
  %v8763 = vsub.f32 %v8499, %v8741
  %v8764 = vsub.f32 %v8504, %v8741
  %v8765 = vsub.f32 %v8507, %v8741
  %v8766 = vsub.f32 %v8512, %v8741
  %v8767 = vsub.f32 %v8515, %v8741
  %v8768 = vsub.f32 %v8520, %v8741
  %v8769 = vsub.f32 %v8523, %v8741
  %v8770 = vsub.f32 %v8528, %v8741
  %v8771 = vsub.f32 %v8531, %v8741
  %v8772 = vsub.f32 %v8536, %v8741
  %v8773 = vsub.f32 %v8539, %v8741
  %v8774 = vsub.f32 %v8544, %v8741
  %v8775 = vsub.f32 %v8547, %v8741
  %v8776 = vsub.f32 %v8552, %v8741
  %v8777 = vsub.f32 %v8555, %v8741
  %v8778 = vsub.f32 %v8560, %v8741
  %v8779 = vsub.f32 %v8563, %v8741
  %v8780 = vsub.f32 %v8568, %v8741
  %v8781 = vsub.f32 %v8571, %v8741
  %v8782 = vsub.f32 %v8576, %v8741
  %v8783 = vsub.f32 %v8579, %v8741
  %v8784 = vsub.f32 %v8584, %v8741
  %v8785 = vsub.f32 %v8587, %v8741
  %v8786 = vsub.f32 %v8592, %v8741
  %v8787 = vsub.f32 %v8595, %v8741
  %v8788 = vsub.f32 %v8600, %v8741
  %v8789 = vsub.f32 %v8603, %v8741
  %v8790 = vsub.f32 %v8608, %v8741
  %v8791 = vsub.f32 %v8611, %v8741
  %v8792 = vsub.f32 %v8616, %v8741
  %v8793 = vsub.f32 %v8619, %v8741
  %v8794 = vsub.f32 %v8624, %v8741
  %v8795 = vsub.f32 %v8627, %v8741
  %v8796 = vsub.f32 %v8632, %v8741
  %v8797 = vsub.f32 %v8635, %v8741
  %v8798 = vsub.f32 %v8640, %v8741
  %v8799 = vsub.f32 %v8643, %v8741
  %v8800 = vsub.f32 %v8648, %v8741
  %v8801 = vsub.f32 %v8651, %v8741
  %v8802 = vsub.f32 %v8656, %v8741
  %v8803 = vsub.f32 %v8659, %v8741
  %v8804 = vsub.f32 %v8664, %v8741
  %v8805 = vsub.f32 %v8667, %v8741
  %v8806 = vmul.f32 %v8742, %v8742
  %v8807 = vmul.f32 %v8743, %v8743
  %v8808 = vmul.f32 %v8744, %v8744
  %v8809 = vmul.f32 %v8745, %v8745
  %v8810 = vmul.f32 %v8746, %v8746
  %v8811 = vmul.f32 %v8747, %v8747
  %v8812 = vmul.f32 %v8748, %v8748
  %v8813 = vmul.f32 %v8749, %v8749
  %v8814 = vmul.f32 %v8750, %v8750
  %v8815 = vmul.f32 %v8751, %v8751
  %v8816 = vmul.f32 %v8752, %v8752
  %v8817 = vmul.f32 %v8753, %v8753
  %v8818 = vmul.f32 %v8754, %v8754
  %v8819 = vmul.f32 %v8755, %v8755
  %v8820 = vmul.f32 %v8756, %v8756
  %v8821 = vmul.f32 %v8757, %v8757
  %v8822 = vmul.f32 %v8758, %v8758
  %v8823 = vmul.f32 %v8759, %v8759
  %v8824 = vmul.f32 %v8760, %v8760
  %v8825 = vmul.f32 %v8761, %v8761
  %v8826 = vmul.f32 %v8762, %v8762
  %v8827 = vmul.f32 %v8763, %v8763
  %v8828 = vmul.f32 %v8764, %v8764
  %v8829 = vmul.f32 %v8765, %v8765
  %v8830 = vmul.f32 %v8766, %v8766
  %v8831 = vmul.f32 %v8767, %v8767
  %v8832 = vmul.f32 %v8768, %v8768
  %v8833 = vmul.f32 %v8769, %v8769
  %v8834 = vmul.f32 %v8770, %v8770
  %v8835 = vmul.f32 %v8771, %v8771
  %v8836 = vmul.f32 %v8772, %v8772
  %v8837 = vmul.f32 %v8773, %v8773
  %v8838 = vmul.f32 %v8774, %v8774
  %v8839 = vmul.f32 %v8775, %v8775
  %v8840 = vmul.f32 %v8776, %v8776
  %v8841 = vmul.f32 %v8777, %v8777
  %v8842 = vmul.f32 %v8778, %v8778
  %v8843 = vmul.f32 %v8779, %v8779
  %v8844 = vmul.f32 %v8780, %v8780
  %v8845 = vmul.f32 %v8781, %v8781
  %v8846 = vmul.f32 %v8782, %v8782
  %v8847 = vmul.f32 %v8783, %v8783
  %v8848 = vmul.f32 %v8784, %v8784
  %v8849 = vmul.f32 %v8785, %v8785
  %v8850 = vmul.f32 %v8786, %v8786
  %v8851 = vmul.f32 %v8787, %v8787
  %v8852 = vmul.f32 %v8788, %v8788
  %v8853 = vmul.f32 %v8789, %v8789
  %v8854 = vmul.f32 %v8790, %v8790
  %v8855 = vmul.f32 %v8791, %v8791
  %v8856 = vmul.f32 %v8792, %v8792
  %v8857 = vmul.f32 %v8793, %v8793
  %v8858 = vmul.f32 %v8794, %v8794
  %v8859 = vmul.f32 %v8795, %v8795
  %v8860 = vmul.f32 %v8796, %v8796
  %v8861 = vmul.f32 %v8797, %v8797
  %v8862 = vmul.f32 %v8798, %v8798
  %v8863 = vmul.f32 %v8799, %v8799
  %v8864 = vmul.f32 %v8800, %v8800
  %v8865 = vmul.f32 %v8801, %v8801
  %v8866 = vmul.f32 %v8802, %v8802
  %v8867 = vmul.f32 %v8803, %v8803
  %v8868 = vmul.f32 %v8804, %v8804
  %v8869 = vmul.f32 %v8805, %v8805
  %v8870 = vadd.f32 %v8806, %v8807
  %v8871 = vadd.f32 %v8870, %v8808
  %v8872 = vadd.f32 %v8871, %v8809
  %v8873 = vadd.f32 %v8872, %v8810
  %v8874 = vadd.f32 %v8873, %v8811
  %v8875 = vadd.f32 %v8874, %v8812
  %v8876 = vadd.f32 %v8875, %v8813
  %v8877 = vadd.f32 %v8876, %v8814
  %v8878 = vadd.f32 %v8877, %v8815
  %v8879 = vadd.f32 %v8878, %v8816
  %v8880 = vadd.f32 %v8879, %v8817
  %v8881 = vadd.f32 %v8880, %v8818
  %v8882 = vadd.f32 %v8881, %v8819
  %v8883 = vadd.f32 %v8882, %v8820
  %v8884 = vadd.f32 %v8883, %v8821
  %v8885 = vadd.f32 %v8884, %v8822
  %v8886 = vadd.f32 %v8885, %v8823
  %v8887 = vadd.f32 %v8886, %v8824
  %v8888 = vadd.f32 %v8887, %v8825
  %v8889 = vadd.f32 %v8888, %v8826
  %v8890 = vadd.f32 %v8889, %v8827
  %v8891 = vadd.f32 %v8890, %v8828
  %v8892 = vadd.f32 %v8891, %v8829
  %v8893 = vadd.f32 %v8892, %v8830
  %v8894 = vadd.f32 %v8893, %v8831
  %v8895 = vadd.f32 %v8894, %v8832
  %v8896 = vadd.f32 %v8895, %v8833
  %v8897 = vadd.f32 %v8896, %v8834
  %v8898 = vadd.f32 %v8897, %v8835
  %v8899 = vadd.f32 %v8898, %v8836
  %v8900 = vadd.f32 %v8899, %v8837
  %v8901 = vadd.f32 %v8900, %v8838
  %v8902 = vadd.f32 %v8901, %v8839
  %v8903 = vadd.f32 %v8902, %v8840
  %v8904 = vadd.f32 %v8903, %v8841
  %v8905 = vadd.f32 %v8904, %v8842
  %v8906 = vadd.f32 %v8905, %v8843
  %v8907 = vadd.f32 %v8906, %v8844
  %v8908 = vadd.f32 %v8907, %v8845
  %v8909 = vadd.f32 %v8908, %v8846
  %v8910 = vadd.f32 %v8909, %v8847
  %v8911 = vadd.f32 %v8910, %v8848
  %v8912 = vadd.f32 %v8911, %v8849
  %v8913 = vadd.f32 %v8912, %v8850
  %v8914 = vadd.f32 %v8913, %v8851
  %v8915 = vadd.f32 %v8914, %v8852
  %v8916 = vadd.f32 %v8915, %v8853
  %v8917 = vadd.f32 %v8916, %v8854
  %v8918 = vadd.f32 %v8917, %v8855
  %v8919 = vadd.f32 %v8918, %v8856
  %v8920 = vadd.f32 %v8919, %v8857
  %v8921 = vadd.f32 %v8920, %v8858
  %v8922 = vadd.f32 %v8921, %v8859
  %v8923 = vadd.f32 %v8922, %v8860
  %v8924 = vadd.f32 %v8923, %v8861
  %v8925 = vadd.f32 %v8924, %v8862
  %v8926 = vadd.f32 %v8925, %v8863
  %v8927 = vadd.f32 %v8926, %v8864
  %v8928 = vadd.f32 %v8927, %v8865
  %v8929 = vadd.f32 %v8928, %v8866
  %v8930 = vadd.f32 %v8929, %v8867
  %v8931 = vadd.f32 %v8930, %v8868
  %v8932 = vadd.f32 %v8931, %v8869
  %v8933 = vrot.slane %v8932, 4
  %v8934 = vadd.f32 %v8932, %v8933
  %v8935 = vrot.slane %v8934, 2
  %v8936 = vadd.f32 %v8934, %v8935
  %v8937 = vrot.slane %v8936, 1
  %v8938 = vadd.f32 %v8936, %v8937
  %v8939 = vmul.f32 %v8938, %v725
  %v8940 = vadd.f32 %v8939, 1e-05
  %v8941 = vrsqrt.pop %v8940
  %v8942 = vmul.f32 %v8742, %v8941
  %v8943 = vmul.f32 %v8743, %v8941
  %v8944 = vmul.f32 %v8744, %v8941
  %v8945 = vmul.f32 %v8745, %v8941
  %v8946 = vmul.f32 %v8746, %v8941
  %v8947 = vmul.f32 %v8747, %v8941
  %v8948 = vmul.f32 %v8748, %v8941
  %v8949 = vmul.f32 %v8749, %v8941
  %v8950 = vmul.f32 %v8750, %v8941
  %v8951 = vmul.f32 %v8751, %v8941
  %v8952 = vmul.f32 %v8752, %v8941
  %v8953 = vmul.f32 %v8753, %v8941
  %v8954 = vmul.f32 %v8754, %v8941
  %v8955 = vmul.f32 %v8755, %v8941
  %v8956 = vmul.f32 %v8756, %v8941
  %v8957 = vmul.f32 %v8757, %v8941
  %v8958 = vmul.f32 %v8758, %v8941
  %v8959 = vmul.f32 %v8759, %v8941
  %v8960 = vmul.f32 %v8760, %v8941
  %v8961 = vmul.f32 %v8761, %v8941
  %v8962 = vmul.f32 %v8762, %v8941
  %v8963 = vmul.f32 %v8763, %v8941
  %v8964 = vmul.f32 %v8764, %v8941
  %v8965 = vmul.f32 %v8765, %v8941
  %v8966 = vmul.f32 %v8766, %v8941
  %v8967 = vmul.f32 %v8767, %v8941
  %v8968 = vmul.f32 %v8768, %v8941
  %v8969 = vmul.f32 %v8769, %v8941
  %v8970 = vmul.f32 %v8770, %v8941
  %v8971 = vmul.f32 %v8771, %v8941
  %v8972 = vmul.f32 %v8772, %v8941
  %v8973 = vmul.f32 %v8773, %v8941
  %v8974 = vmul.f32 %v8774, %v8941
  %v8975 = vmul.f32 %v8775, %v8941
  %v8976 = vmul.f32 %v8776, %v8941
  %v8977 = vmul.f32 %v8777, %v8941
  %v8978 = vmul.f32 %v8778, %v8941
  %v8979 = vmul.f32 %v8779, %v8941
  %v8980 = vmul.f32 %v8780, %v8941
  %v8981 = vmul.f32 %v8781, %v8941
  %v8982 = vmul.f32 %v8782, %v8941
  %v8983 = vmul.f32 %v8783, %v8941
  %v8984 = vmul.f32 %v8784, %v8941
  %v8985 = vmul.f32 %v8785, %v8941
  %v8986 = vmul.f32 %v8786, %v8941
  %v8987 = vmul.f32 %v8787, %v8941
  %v8988 = vmul.f32 %v8788, %v8941
  %v8989 = vmul.f32 %v8789, %v8941
  %v8990 = vmul.f32 %v8790, %v8941
  %v8991 = vmul.f32 %v8791, %v8941
  %v8992 = vmul.f32 %v8792, %v8941
  %v8993 = vmul.f32 %v8793, %v8941
  %v8994 = vmul.f32 %v8794, %v8941
  %v8995 = vmul.f32 %v8795, %v8941
  %v8996 = vmul.f32 %v8796, %v8941
  %v8997 = vmul.f32 %v8797, %v8941
  %v8998 = vmul.f32 %v8798, %v8941
  %v8999 = vmul.f32 %v8799, %v8941
  %v9000 = vmul.f32 %v8800, %v8941
  %v9001 = vmul.f32 %v8801, %v8941
  %v9002 = vmul.f32 %v8802, %v8941
  %v9003 = vmul.f32 %v8803, %v8941
  %v9004 = vmul.f32 %v8804, %v8941
  %v9005 = vmul.f32 %v8805, %v8941
  %v9007 = vlaneseq
  %v9008 = vshrl.u32 %v9007, 7
  %v9009 = vsub.s32 0, %v9008
  %v9010 = vrot.slane %v8670, %v9009
  %v9012 = vmul.f32 %v8942, %v9010
  %v9013 = vmul.f32 %v8943, %v9010
  %v9014 = vmul.f32 %v8944, %v9010
  %v9015 = vmul.f32 %v8945, %v9010
  %v9016 = vmul.f32 %v8946, %v9010
  %v9017 = vmul.f32 %v8947, %v9010
  %v9018 = vmul.f32 %v8948, %v9010
  %v9019 = vmul.f32 %v8949, %v9010
  %v9020 = vmul.f32 %v8950, %v9010
  %v9021 = vmul.f32 %v8951, %v9010
  %v9022 = vmul.f32 %v8952, %v9010
  %v9023 = vmul.f32 %v8953, %v9010
  %v9024 = vmul.f32 %v8954, %v9010
  %v9025 = vmul.f32 %v8955, %v9010
  %v9026 = vmul.f32 %v8956, %v9010
  %v9027 = vmul.f32 %v8957, %v9010
  %v9028 = vmul.f32 %v8958, %v9010
  %v9029 = vmul.f32 %v8959, %v9010
  %v9030 = vmul.f32 %v8960, %v9010
  %v9031 = vmul.f32 %v8961, %v9010
  %v9032 = vmul.f32 %v8962, %v9010
  %v9033 = vmul.f32 %v8963, %v9010
  %v9034 = vmul.f32 %v8964, %v9010
  %v9035 = vmul.f32 %v8965, %v9010
  %v9036 = vmul.f32 %v8966, %v9010
  %v9037 = vmul.f32 %v8967, %v9010
  %v9038 = vmul.f32 %v8968, %v9010
  %v9039 = vmul.f32 %v8969, %v9010
  %v9040 = vmul.f32 %v8970, %v9010
  %v9041 = vmul.f32 %v8971, %v9010
  %v9042 = vmul.f32 %v8972, %v9010
  %v9043 = vmul.f32 %v8973, %v9010
  %v9044 = vmul.f32 %v8974, %v9010
  %v9045 = vmul.f32 %v8975, %v9010
  %v9046 = vmul.f32 %v8976, %v9010
  %v9047 = vmul.f32 %v8977, %v9010
  %v9048 = vmul.f32 %v8978, %v9010
  %v9049 = vmul.f32 %v8979, %v9010
  %v9050 = vmul.f32 %v8980, %v9010
  %v9051 = vmul.f32 %v8981, %v9010
  %v9052 = vmul.f32 %v8982, %v9010
  %v9053 = vmul.f32 %v8983, %v9010
  %v9054 = vmul.f32 %v8984, %v9010
  %v9055 = vmul.f32 %v8985, %v9010
  %v9056 = vmul.f32 %v8986, %v9010
  %v9057 = vmul.f32 %v8987, %v9010
  %v9058 = vmul.f32 %v8988, %v9010
  %v9059 = vmul.f32 %v8989, %v9010
  %v9060 = vmul.f32 %v8990, %v9010
  %v9061 = vmul.f32 %v8991, %v9010
  %v9062 = vmul.f32 %v8992, %v9010
  %v9063 = vmul.f32 %v8993, %v9010
  %v9064 = vmul.f32 %v8994, %v9010
  %v9065 = vmul.f32 %v8995, %v9010
  %v9066 = vmul.f32 %v8996, %v9010
  %v9067 = vmul.f32 %v8997, %v9010
  %v9068 = vmul.f32 %v8998, %v9010
  %v9069 = vmul.f32 %v8999, %v9010
  %v9070 = vmul.f32 %v9000, %v9010
  %v9071 = vmul.f32 %v9001, %v9010
  %v9072 = vmul.f32 %v9002, %v9010
  %v9073 = vmul.f32 %v9003, %v9010
  %v9074 = vmul.f32 %v9004, %v9010
  %v9075 = vmul.f32 %v9005, %v9010
  %v9077 = vlaneseq
  %v9078 = vshrl.u32 %v9077, 7
  %v9079 = vsub.s32 0, %v9078
  %v9080 = vrot.slane %v8671, %v9079
  %v9082 = vadd.f32 %v9012, %v9080
  %v9083 = vadd.f32 %v9013, %v9080
  %v9084 = vadd.f32 %v9014, %v9080
  %v9085 = vadd.f32 %v9015, %v9080
  %v9086 = vadd.f32 %v9016, %v9080
  %v9087 = vadd.f32 %v9017, %v9080
  %v9088 = vadd.f32 %v9018, %v9080
  %v9089 = vadd.f32 %v9019, %v9080
  %v9090 = vadd.f32 %v9020, %v9080
  %v9091 = vadd.f32 %v9021, %v9080
  %v9092 = vadd.f32 %v9022, %v9080
  %v9093 = vadd.f32 %v9023, %v9080
  %v9094 = vadd.f32 %v9024, %v9080
  %v9095 = vadd.f32 %v9025, %v9080
  %v9096 = vadd.f32 %v9026, %v9080
  %v9097 = vadd.f32 %v9027, %v9080
  %v9098 = vadd.f32 %v9028, %v9080
  %v9099 = vadd.f32 %v9029, %v9080
  %v9100 = vadd.f32 %v9030, %v9080
  %v9101 = vadd.f32 %v9031, %v9080
  %v9102 = vadd.f32 %v9032, %v9080
  %v9103 = vadd.f32 %v9033, %v9080
  %v9104 = vadd.f32 %v9034, %v9080
  %v9105 = vadd.f32 %v9035, %v9080
  %v9106 = vadd.f32 %v9036, %v9080
  %v9107 = vadd.f32 %v9037, %v9080
  %v9108 = vadd.f32 %v9038, %v9080
  %v9109 = vadd.f32 %v9039, %v9080
  %v9110 = vadd.f32 %v9040, %v9080
  %v9111 = vadd.f32 %v9041, %v9080
  %v9112 = vadd.f32 %v9042, %v9080
  %v9113 = vadd.f32 %v9043, %v9080
  %v9114 = vadd.f32 %v9044, %v9080
  %v9115 = vadd.f32 %v9045, %v9080
  %v9116 = vadd.f32 %v9046, %v9080
  %v9117 = vadd.f32 %v9047, %v9080
  %v9118 = vadd.f32 %v9048, %v9080
  %v9119 = vadd.f32 %v9049, %v9080
  %v9120 = vadd.f32 %v9050, %v9080
  %v9121 = vadd.f32 %v9051, %v9080
  %v9122 = vadd.f32 %v9052, %v9080
  %v9123 = vadd.f32 %v9053, %v9080
  %v9124 = vadd.f32 %v9054, %v9080
  %v9125 = vadd.f32 %v9055, %v9080
  %v9126 = vadd.f32 %v9056, %v9080
  %v9127 = vadd.f32 %v9057, %v9080
  %v9128 = vadd.f32 %v9058, %v9080
  %v9129 = vadd.f32 %v9059, %v9080
  %v9130 = vadd.f32 %v9060, %v9080
  %v9131 = vadd.f32 %v9061, %v9080
  %v9132 = vadd.f32 %v9062, %v9080
  %v9133 = vadd.f32 %v9063, %v9080
  %v9134 = vadd.f32 %v9064, %v9080
  %v9135 = vadd.f32 %v9065, %v9080
  %v9136 = vadd.f32 %v9066, %v9080
  %v9137 = vadd.f32 %v9067, %v9080
  %v9138 = vadd.f32 %v9068, %v9080
  %v9139 = vadd.f32 %v9069, %v9080
  %v9140 = vadd.f32 %v9070, %v9080
  %v9141 = vadd.f32 %v9071, %v9080
  %v9142 = vadd.f32 %v9072, %v9080
  %v9143 = vadd.f32 %v9073, %v9080
  %v9144 = vadd.f32 %v9074, %v9080
  %v9145 = vadd.f32 %v9075, %v9080
  %v9146 = vmax.f32 %v9082, 0.0
  %v9147 = vmax.f32 %v9083, 0.0
  %v9148 = vmax.f32 %v9084, 0.0
  %v9149 = vmax.f32 %v9085, 0.0
  %v9150 = vmax.f32 %v9086, 0.0
  %v9151 = vmax.f32 %v9087, 0.0
  %v9152 = vmax.f32 %v9088, 0.0
  %v9153 = vmax.f32 %v9089, 0.0
  %v9154 = vmax.f32 %v9090, 0.0
  %v9155 = vmax.f32 %v9091, 0.0
  %v9156 = vmax.f32 %v9092, 0.0
  %v9157 = vmax.f32 %v9093, 0.0
  %v9158 = vmax.f32 %v9094, 0.0
  %v9159 = vmax.f32 %v9095, 0.0
  %v9160 = vmax.f32 %v9096, 0.0
  %v9161 = vmax.f32 %v9097, 0.0
  %v9162 = vmax.f32 %v9098, 0.0
  %v9163 = vmax.f32 %v9099, 0.0
  %v9164 = vmax.f32 %v9100, 0.0
  %v9165 = vmax.f32 %v9101, 0.0
  %v9166 = vmax.f32 %v9102, 0.0
  %v9167 = vmax.f32 %v9103, 0.0
  %v9168 = vmax.f32 %v9104, 0.0
  %v9169 = vmax.f32 %v9105, 0.0
  %v9170 = vmax.f32 %v9106, 0.0
  %v9171 = vmax.f32 %v9107, 0.0
  %v9172 = vmax.f32 %v9108, 0.0
  %v9173 = vmax.f32 %v9109, 0.0
  %v9174 = vmax.f32 %v9110, 0.0
  %v9175 = vmax.f32 %v9111, 0.0
  %v9176 = vmax.f32 %v9112, 0.0
  %v9177 = vmax.f32 %v9113, 0.0
  %v9178 = vmax.f32 %v9114, 0.0
  %v9179 = vmax.f32 %v9115, 0.0
  %v9180 = vmax.f32 %v9116, 0.0
  %v9181 = vmax.f32 %v9117, 0.0
  %v9182 = vmax.f32 %v9118, 0.0
  %v9183 = vmax.f32 %v9119, 0.0
  %v9184 = vmax.f32 %v9120, 0.0
  %v9185 = vmax.f32 %v9121, 0.0
  %v9186 = vmax.f32 %v9122, 0.0
  %v9187 = vmax.f32 %v9123, 0.0
  %v9188 = vmax.f32 %v9124, 0.0
  %v9189 = vmax.f32 %v9125, 0.0
  %v9190 = vmax.f32 %v9126, 0.0
  %v9191 = vmax.f32 %v9127, 0.0
  %v9192 = vmax.f32 %v9128, 0.0
  %v9193 = vmax.f32 %v9129, 0.0
  %v9194 = vmax.f32 %v9130, 0.0
  %v9195 = vmax.f32 %v9131, 0.0
  %v9196 = vmax.f32 %v9132, 0.0
  %v9197 = vmax.f32 %v9133, 0.0
  %v9198 = vmax.f32 %v9134, 0.0
  %v9199 = vmax.f32 %v9135, 0.0
  %v9200 = vmax.f32 %v9136, 0.0
  %v9201 = vmax.f32 %v9137, 0.0
  %v9202 = vmax.f32 %v9138, 0.0
  %v9203 = vmax.f32 %v9139, 0.0
  %v9204 = vmax.f32 %v9140, 0.0
  %v9205 = vmax.f32 %v9141, 0.0
  %v9206 = vmax.f32 %v9142, 0.0
  %v9207 = vmax.f32 %v9143, 0.0
  %v9208 = vmax.f32 %v9144, 0.0
  %v9209 = vmax.f32 %v9145, 0.0
  %v9210 = vpack.c.bf16 %v9147, %v9146
  %v9211 = vpack.c.bf16 %v9149, %v9148
  %v9212 = vpack.c.bf16 %v9151, %v9150
  %v9213 = vpack.c.bf16 %v9153, %v9152
  %v9214 = vpack.c.bf16 %v9155, %v9154
  %v9215 = vpack.c.bf16 %v9157, %v9156
  %v9216 = vpack.c.bf16 %v9159, %v9158
  %v9217 = vpack.c.bf16 %v9161, %v9160
  %v9218 = vpack.c.bf16 %v9163, %v9162
  %v9219 = vpack.c.bf16 %v9165, %v9164
  %v9220 = vpack.c.bf16 %v9167, %v9166
  %v9221 = vpack.c.bf16 %v9169, %v9168
  %v9222 = vpack.c.bf16 %v9171, %v9170
  %v9223 = vpack.c.bf16 %v9173, %v9172
  %v9224 = vpack.c.bf16 %v9175, %v9174
  %v9225 = vpack.c.bf16 %v9177, %v9176
  %v9226 = vpack.c.bf16 %v9179, %v9178
  %v9227 = vpack.c.bf16 %v9181, %v9180
  %v9228 = vpack.c.bf16 %v9183, %v9182
  %v9229 = vpack.c.bf16 %v9185, %v9184
  %v9230 = vpack.c.bf16 %v9187, %v9186
  %v9231 = vpack.c.bf16 %v9189, %v9188
  %v9232 = vpack.c.bf16 %v9191, %v9190
  %v9233 = vpack.c.bf16 %v9193, %v9192
  %v9234 = vpack.c.bf16 %v9195, %v9194
  %v9235 = vpack.c.bf16 %v9197, %v9196
  %v9236 = vpack.c.bf16 %v9199, %v9198
  %v9237 = vpack.c.bf16 %v9201, %v9200
  %v9238 = vpack.c.bf16 %v9203, %v9202
  %v9239 = vpack.c.bf16 %v9205, %v9204
  %v9240 = vpack.c.bf16 %v9207, %v9206
  %v9241 = vpack.c.bf16 %v9209, %v9208
  %v9242 = vld [vmem:[%s7] sm:$0xf]
  %v9243 = vld [vmem:[%s7 + $0x4] sm:$0xf]
  %v9244 = vld [vmem:[%s7 + $0x8] sm:$0xf]
  %v9245 = vld [vmem:[%s7 + $0xc] sm:$0xf]
  %v9246 = vld [vmem:[%s7 + $0x10] sm:$0xf]
  %v9247 = vld [vmem:[%s7 + $0x14] sm:$0xf]
  %v9248 = vld [vmem:[%s7 + $0x18] sm:$0xf]
  %v9249 = vld [vmem:[%s7 + $0x1c] sm:$0xf]
  %v9250 = vld [vmem:[%s7 + $0x20] sm:$0xf]
  %v9251 = vld [vmem:[%s7 + $0x24] sm:$0xf]
  %v9252 = vld [vmem:[%s7 + $0x28] sm:$0xf]
  %v9253 = vld [vmem:[%s7 + $0x2c] sm:$0xf]
  %v9254 = vld [vmem:[%s7 + $0x30] sm:$0xf]
  %v9255 = vld [vmem:[%s7 + $0x34] sm:$0xf]
  %v9256 = vld [vmem:[%s7 + $0x38] sm:$0xf]
  %v9257 = vld [vmem:[%s7 + $0x3c] sm:$0xf]
  %v9274 = vunpack.c.l.b16 %v9242
  %v9275 = vunpack.c.l.b16 %v9243
  %v9276 = vunpack.c.l.b16 %v9244
  %v9277 = vunpack.c.l.b16 %v9245
  %v9278 = vunpack.c.l.b16 %v9246
  %v9279 = vunpack.c.l.b16 %v9247
  %v9280 = vunpack.c.l.b16 %v9248
  %v9281 = vunpack.c.l.b16 %v9249
  %v9282 = vunpack.c.l.b16 %v9250
  %v9283 = vunpack.c.l.b16 %v9251
  %v9284 = vunpack.c.l.b16 %v9252
  %v9285 = vunpack.c.l.b16 %v9253
  %v9286 = vunpack.c.l.b16 %v9254
  %v9287 = vunpack.c.l.b16 %v9255
  %v9288 = vunpack.c.l.b16 %v9256
  %v9289 = vunpack.c.l.b16 %v9257
  %v9290 = vpack.c.b16 %v9275, %v9274
  %v9291 = vpack.c.b16 %v9277, %v9276
  %v9292 = vpack.c.b16 %v9279, %v9278
  %v9293 = vpack.c.b16 %v9281, %v9280
  %v9294 = vpack.c.b16 %v9283, %v9282
  %v9295 = vpack.c.b16 %v9285, %v9284
  %v9296 = vpack.c.b16 %v9287, %v9286
  %v9297 = vpack.c.b16 %v9289, %v9288
  %9306 = vmatprep.subr.bf16.mxu0 0
  %9307 = vmatpush1.bf16.msra.mxu0 %v9290
  %9308 = vmatprep.subr.bf16.mxu0 0
  %9309 = vmatpush1.bf16.msra.mxu0 %v9291
  %9310 = vmatprep.subr.bf16.mxu0 0
  %9311 = vmatpush1.bf16.msra.mxu0 %v9292
  %9312 = vmatprep.subr.bf16.mxu0 0
  %9313 = vmatpush1.bf16.msra.mxu0 %v9293
  %9314 = vmatprep.subr.bf16.mxu0 0
  %9315 = vmatpush1.bf16.msra.mxu0 %v9294
  %9316 = vmatprep.subr.bf16.mxu0 0
  %9317 = vmatpush1.bf16.msra.mxu0 %v9295
  %9318 = vmatprep.subr.bf16.mxu0 0
  %9319 = vmatpush1.bf16.msra.mxu0 %v9296
  %9320 = vmatprep.subr.bf16.mxu0 0
  %9321 = vmatpush1.bf16.msra.mxu0 %v9297
  %9322 = vmatprep.subr.bf16.mxu0 0
  %9323 = vmatpush1.bf16.msra.mxu0 0
  %9324 = vmatprep.subr.bf16.mxu0 0
  %9325 = vmatpush1.bf16.msra.mxu0 0
  %9326 = vmatprep.subr.bf16.mxu0 0
  %9327 = vmatpush1.bf16.msra.mxu0 0
  %9328 = vmatprep.subr.bf16.mxu0 0
  %9329 = vmatpush1.bf16.msra.mxu0 0
  %9330 = vmatprep.subr.bf16.mxu0 0
  %9331 = vmatpush1.bf16.msra.mxu0 0
  %9332 = vmatprep.subr.bf16.mxu0 0
  %9333 = vmatpush1.bf16.msra.mxu0 0
  %9334 = vmatprep.subr.bf16.mxu0 0
  %9335 = vmatpush1.bf16.msra.mxu0 0
  %9336 = vmatprep.subr.bf16.mxu0 0
  %9337 = vmatpush1.bf16.msra.mxu0 0
  %9338 = vmatprep.mubr.bf16.mxu0 0
  %9339 = vmatmul.mubr.bf16.gmra.mrb[0].mxu0 %v9210
  %v9340 = vpop.f32.mrb[0].mxu0
  %v9341 = vadd.f32 0.0, %v9340
  %v9342 = vpop.f32.mrb[0].mxu0
  %v9343 = vpop.f32.mrb[0].mxu0
  %v9344 = vadd.f32 0.0, %v9343
  %v9345 = vpop.f32.mrb[0].mxu0
  %9346 = vmatprep.mubr.bf16.mxu0 0
  %9347 = vmatmul.mubr.bf16.gmra.mrb[0].mxu0 %v9211
  %v9348 = vpop.f32.mrb[0].mxu0
  %v9349 = vadd.f32 0.0, %v9348
  %v9350 = vpop.f32.mrb[0].mxu0
  %v9351 = vpop.f32.mrb[0].mxu0
  %v9352 = vadd.f32 0.0, %v9351
  %v9353 = vpop.f32.mrb[0].mxu0
  %9354 = vmatprep.mubr.bf16.mxu0 0
  %9355 = vmatmul.mubr.bf16.gmra.mrb[0].mxu0 %v9212
  %v9356 = vpop.f32.mrb[0].mxu0
  %v9357 = vadd.f32 0.0, %v9356
  %v9358 = vpop.f32.mrb[0].mxu0
  %v9359 = vpop.f32.mrb[0].mxu0
  %v9360 = vadd.f32 0.0, %v9359
  %v9361 = vpop.f32.mrb[0].mxu0
  %9362 = vmatprep.mubr.bf16.mxu0 0
  %9363 = vmatmul.mubr.bf16.gmra.mrb[0].mxu0 %v9213
  %v9364 = vpop.f32.mrb[0].mxu0
  %v9365 = vadd.f32 0.0, %v9364
  %v9366 = vpop.f32.mrb[0].mxu0
  %v9367 = vpop.f32.mrb[0].mxu0
  %v9368 = vadd.f32 0.0, %v9367
  %v9369 = vpop.f32.mrb[0].mxu0
  %9370 = vmatprep.mubr.bf16.mxu0 0
  %9371 = vmatmul.mubr.bf16.gmra.mrb[0].mxu0 %v9214
  %v9372 = vpop.f32.mrb[0].mxu0
  %v9373 = vadd.f32 0.0, %v9372
  %v9374 = vpop.f32.mrb[0].mxu0
  %v9375 = vpop.f32.mrb[0].mxu0
  %v9376 = vadd.f32 0.0, %v9375
  %v9377 = vpop.f32.mrb[0].mxu0
  %9378 = vmatprep.mubr.bf16.mxu0 0
  %9379 = vmatmul.mubr.bf16.gmra.mrb[0].mxu0 %v9215
  %v9380 = vpop.f32.mrb[0].mxu0
  %v9381 = vadd.f32 0.0, %v9380
  %v9382 = vpop.f32.mrb[0].mxu0
  %v9383 = vpop.f32.mrb[0].mxu0
  %v9384 = vadd.f32 0.0, %v9383
  %v9385 = vpop.f32.mrb[0].mxu0
  %9386 = vmatprep.mubr.bf16.mxu0 0
  %9387 = vmatmul.mubr.bf16.gmra.mrb[0].mxu0 %v9216
  %v9388 = vpop.f32.mrb[0].mxu0
  %v9389 = vadd.f32 0.0, %v9388
  %v9390 = vpop.f32.mrb[0].mxu0
  %v9391 = vpop.f32.mrb[0].mxu0
  %v9392 = vadd.f32 0.0, %v9391
  %v9393 = vpop.f32.mrb[0].mxu0
  %9394 = vmatprep.mubr.bf16.mxu0 0
  %9395 = vmatmul.mubr.bf16.gmra.mrb[0].mxu0 %v9217
  %v9396 = vpop.f32.mrb[0].mxu0
  %v9397 = vadd.f32 0.0, %v9396
  %v9398 = vpop.f32.mrb[0].mxu0
  %v9399 = vpop.f32.mrb[0].mxu0
  %v9400 = vadd.f32 0.0, %v9399
  %v9401 = vpop.f32.mrb[0].mxu0
  %9402 = vmatprep.mubr.bf16.mxu0 0
  %9403 = vmatmul.mubr.bf16.gmra.mrb[0].mxu0 %v9218
  %v9404 = vpop.f32.mrb[0].mxu0
  %v9405 = vadd.f32 0.0, %v9404
  %v9406 = vpop.f32.mrb[0].mxu0
  %v9407 = vpop.f32.mrb[0].mxu0
  %v9408 = vadd.f32 0.0, %v9407
  %v9409 = vpop.f32.mrb[0].mxu0
  %9410 = vmatprep.mubr.bf16.mxu0 0
  %9411 = vmatmul.mubr.bf16.gmra.mrb[0].mxu0 %v9219
  %v9412 = vpop.f32.mrb[0].mxu0
  %v9413 = vadd.f32 0.0, %v9412
  %v9414 = vpop.f32.mrb[0].mxu0
  %v9415 = vpop.f32.mrb[0].mxu0
  %v9416 = vadd.f32 0.0, %v9415
  %v9417 = vpop.f32.mrb[0].mxu0
  %9418 = vmatprep.mubr.bf16.mxu0 0
  %9419 = vmatmul.mubr.bf16.gmra.mrb[0].mxu0 %v9220
  %v9420 = vpop.f32.mrb[0].mxu0
  %v9421 = vadd.f32 0.0, %v9420
  %v9422 = vpop.f32.mrb[0].mxu0
  %v9423 = vpop.f32.mrb[0].mxu0
  %v9424 = vadd.f32 0.0, %v9423
  %v9425 = vpop.f32.mrb[0].mxu0
  %9426 = vmatprep.mubr.bf16.mxu0 0
  %9427 = vmatmul.mubr.bf16.gmra.mrb[0].mxu0 %v9221
  %v9428 = vpop.f32.mrb[0].mxu0
  %v9429 = vadd.f32 0.0, %v9428
  %v9430 = vpop.f32.mrb[0].mxu0
  %v9431 = vpop.f32.mrb[0].mxu0
  %v9432 = vadd.f32 0.0, %v9431
  %v9433 = vpop.f32.mrb[0].mxu0
  %9434 = vmatprep.mubr.bf16.mxu0 0
  %9435 = vmatmul.mubr.bf16.gmra.mrb[0].mxu0 %v9222
  %v9436 = vpop.f32.mrb[0].mxu0
  %v9437 = vadd.f32 0.0, %v9436
  %v9438 = vpop.f32.mrb[0].mxu0
  %v9439 = vpop.f32.mrb[0].mxu0
  %v9440 = vadd.f32 0.0, %v9439
  %v9441 = vpop.f32.mrb[0].mxu0
  %9442 = vmatprep.mubr.bf16.mxu0 0
  %9443 = vmatmul.mubr.bf16.gmra.mrb[0].mxu0 %v9223
  %v9444 = vpop.f32.mrb[0].mxu0
  %v9445 = vadd.f32 0.0, %v9444
  %v9446 = vpop.f32.mrb[0].mxu0
  %v9447 = vpop.f32.mrb[0].mxu0
  %v9448 = vadd.f32 0.0, %v9447
  %v9449 = vpop.f32.mrb[0].mxu0
  %9450 = vmatprep.mubr.bf16.mxu0 0
  %9451 = vmatmul.mubr.bf16.gmra.mrb[0].mxu0 %v9224
  %v9452 = vpop.f32.mrb[0].mxu0
  %v9453 = vadd.f32 0.0, %v9452
  %v9454 = vpop.f32.mrb[0].mxu0
  %v9455 = vpop.f32.mrb[0].mxu0
  %v9456 = vadd.f32 0.0, %v9455
  %v9457 = vpop.f32.mrb[0].mxu0
  %9458 = vmatprep.mubr.bf16.mxu0 0
  %9459 = vmatmul.mubr.bf16.gmra.mrb[0].mxu0 %v9225
  %v9460 = vpop.f32.mrb[0].mxu0
  %v9461 = vadd.f32 0.0, %v9460
  %v9462 = vpop.f32.mrb[0].mxu0
  %v9463 = vpop.f32.mrb[0].mxu0
  %v9464 = vadd.f32 0.0, %v9463
  %v9465 = vpop.f32.mrb[0].mxu0
  %9466 = vmatprep.mubr.bf16.mxu0 0
  %9467 = vmatmul.mubr.bf16.gmra.mrb[0].mxu0 %v9226
  %v9468 = vpop.f32.mrb[0].mxu0
  %v9469 = vadd.f32 0.0, %v9468
  %v9470 = vpop.f32.mrb[0].mxu0
  %v9471 = vpop.f32.mrb[0].mxu0
  %v9472 = vadd.f32 0.0, %v9471
  %v9473 = vpop.f32.mrb[0].mxu0
  %9474 = vmatprep.mubr.bf16.mxu0 0
  %9475 = vmatmul.mubr.bf16.gmra.mrb[0].mxu0 %v9227
  %v9476 = vpop.f32.mrb[0].mxu0
  %v9477 = vadd.f32 0.0, %v9476
  %v9478 = vpop.f32.mrb[0].mxu0
  %v9479 = vpop.f32.mrb[0].mxu0
  %v9480 = vadd.f32 0.0, %v9479
  %v9481 = vpop.f32.mrb[0].mxu0
  %9482 = vmatprep.mubr.bf16.mxu0 0
  %9483 = vmatmul.mubr.bf16.gmra.mrb[0].mxu0 %v9228
  %v9484 = vpop.f32.mrb[0].mxu0
  %v9485 = vadd.f32 0.0, %v9484
  %v9486 = vpop.f32.mrb[0].mxu0
  %v9487 = vpop.f32.mrb[0].mxu0
  %v9488 = vadd.f32 0.0, %v9487
  %v9489 = vpop.f32.mrb[0].mxu0
  %9490 = vmatprep.mubr.bf16.mxu0 0
  %9491 = vmatmul.mubr.bf16.gmra.mrb[0].mxu0 %v9229
  %v9492 = vpop.f32.mrb[0].mxu0
  %v9493 = vadd.f32 0.0, %v9492
  %v9494 = vpop.f32.mrb[0].mxu0
  %v9495 = vpop.f32.mrb[0].mxu0
  %v9496 = vadd.f32 0.0, %v9495
  %v9497 = vpop.f32.mrb[0].mxu0
  %9498 = vmatprep.mubr.bf16.mxu0 0
  %9499 = vmatmul.mubr.bf16.gmra.mrb[0].mxu0 %v9230
  %v9500 = vpop.f32.mrb[0].mxu0
  %v9501 = vadd.f32 0.0, %v9500
  %v9502 = vpop.f32.mrb[0].mxu0
  %v9503 = vpop.f32.mrb[0].mxu0
  %v9504 = vadd.f32 0.0, %v9503
  %v9505 = vpop.f32.mrb[0].mxu0
  %9506 = vmatprep.mubr.bf16.mxu0 0
  %9507 = vmatmul.mubr.bf16.gmra.mrb[0].mxu0 %v9231
  %v9508 = vpop.f32.mrb[0].mxu0
  %v9509 = vadd.f32 0.0, %v9508
  %v9510 = vpop.f32.mrb[0].mxu0
  %v9511 = vpop.f32.mrb[0].mxu0
  %v9512 = vadd.f32 0.0, %v9511
  %v9513 = vpop.f32.mrb[0].mxu0
  %9514 = vmatprep.mubr.bf16.mxu0 0
  %9515 = vmatmul.mubr.bf16.gmra.mrb[0].mxu0 %v9232
  %v9516 = vpop.f32.mrb[0].mxu0
  %v9517 = vadd.f32 0.0, %v9516
  %v9518 = vpop.f32.mrb[0].mxu0
  %v9519 = vpop.f32.mrb[0].mxu0
  %v9520 = vadd.f32 0.0, %v9519
  %v9521 = vpop.f32.mrb[0].mxu0
  %9522 = vmatprep.mubr.bf16.mxu0 0
  %9523 = vmatmul.mubr.bf16.gmra.mrb[0].mxu0 %v9233
  %v9524 = vpop.f32.mrb[0].mxu0
  %v9525 = vadd.f32 0.0, %v9524
  %v9526 = vpop.f32.mrb[0].mxu0
  %v9527 = vpop.f32.mrb[0].mxu0
  %v9528 = vadd.f32 0.0, %v9527
  %v9529 = vpop.f32.mrb[0].mxu0
  %9530 = vmatprep.mubr.bf16.mxu0 0
  %9531 = vmatmul.mubr.bf16.gmra.mrb[0].mxu0 %v9234
  %v9532 = vpop.f32.mrb[0].mxu0
  %v9533 = vadd.f32 0.0, %v9532
  %v9534 = vpop.f32.mrb[0].mxu0
  %v9535 = vpop.f32.mrb[0].mxu0
  %v9536 = vadd.f32 0.0, %v9535
  %v9537 = vpop.f32.mrb[0].mxu0
  %9538 = vmatprep.mubr.bf16.mxu0 0
  %9539 = vmatmul.mubr.bf16.gmra.mrb[0].mxu0 %v9235
  %v9540 = vpop.f32.mrb[0].mxu0
  %v9541 = vadd.f32 0.0, %v9540
  %v9542 = vpop.f32.mrb[0].mxu0
  %v9543 = vpop.f32.mrb[0].mxu0
  %v9544 = vadd.f32 0.0, %v9543
  %v9545 = vpop.f32.mrb[0].mxu0
  %9546 = vmatprep.mubr.bf16.mxu0 0
  %9547 = vmatmul.mubr.bf16.gmra.mrb[0].mxu0 %v9236
  %v9548 = vpop.f32.mrb[0].mxu0
  %v9549 = vadd.f32 0.0, %v9548
  %v9550 = vpop.f32.mrb[0].mxu0
  %v9551 = vpop.f32.mrb[0].mxu0
  %v9552 = vadd.f32 0.0, %v9551
  %v9553 = vpop.f32.mrb[0].mxu0
  %9554 = vmatprep.mubr.bf16.mxu0 0
  %9555 = vmatmul.mubr.bf16.gmra.mrb[0].mxu0 %v9237
  %v9556 = vpop.f32.mrb[0].mxu0
  %v9557 = vadd.f32 0.0, %v9556
  %v9558 = vpop.f32.mrb[0].mxu0
  %v9559 = vpop.f32.mrb[0].mxu0
  %v9560 = vadd.f32 0.0, %v9559
  %v9561 = vpop.f32.mrb[0].mxu0
  %9562 = vmatprep.mubr.bf16.mxu0 0
  %9563 = vmatmul.mubr.bf16.gmra.mrb[0].mxu0 %v9238
  %v9564 = vpop.f32.mrb[0].mxu0
  %v9565 = vadd.f32 0.0, %v9564
  %v9566 = vpop.f32.mrb[0].mxu0
  %v9567 = vpop.f32.mrb[0].mxu0
  %v9568 = vadd.f32 0.0, %v9567
  %v9569 = vpop.f32.mrb[0].mxu0
  %9570 = vmatprep.mubr.bf16.mxu0 0
  %9571 = vmatmul.mubr.bf16.gmra.mrb[0].mxu0 %v9239
  %v9572 = vpop.f32.mrb[0].mxu0
  %v9573 = vadd.f32 0.0, %v9572
  %v9574 = vpop.f32.mrb[0].mxu0
  %v9575 = vpop.f32.mrb[0].mxu0
  %v9576 = vadd.f32 0.0, %v9575
  %v9577 = vpop.f32.mrb[0].mxu0
  %9578 = vmatprep.mubr.bf16.mxu0 0
  %9579 = vmatmul.mubr.bf16.gmra.mrb[0].mxu0 %v9240
  %v9580 = vpop.f32.mrb[0].mxu0
  %v9581 = vadd.f32 0.0, %v9580
  %v9582 = vpop.f32.mrb[0].mxu0
  %v9583 = vpop.f32.mrb[0].mxu0
  %v9584 = vadd.f32 0.0, %v9583
  %v9585 = vpop.f32.mrb[0].mxu0
  %9586 = vmatprep.mubr.bf16.mxu0 0
  %9587 = vmatmul.mubr.bf16.gmra.mrb[0].mxu0 %v9241
  %v9588 = vpop.f32.mrb[0].mxu0
  %v9589 = vadd.f32 0.0, %v9588
  %v9590 = vpop.f32.mrb[0].mxu0
  %v9591 = vpop.f32.mrb[0].mxu0
  %v9592 = vadd.f32 0.0, %v9591
  %v9593 = vpop.f32.mrb[0].mxu0
  %9594 = vdwg.mxu0
  %v9595 = vld [vmem:[%s8] sm:$0x1]
  %v9596 = vld [vmem:[%s9] sm:$0x1]
  %v9597 = vadd.f32 %v9341, %v9344
  %v9598 = vadd.f32 %v9597, %v9349
  %v9599 = vadd.f32 %v9598, %v9352
  %v9600 = vadd.f32 %v9599, %v9357
  %v9601 = vadd.f32 %v9600, %v9360
  %v9602 = vadd.f32 %v9601, %v9365
  %v9603 = vadd.f32 %v9602, %v9368
  %v9604 = vadd.f32 %v9603, %v9373
  %v9605 = vadd.f32 %v9604, %v9376
  %v9606 = vadd.f32 %v9605, %v9381
  %v9607 = vadd.f32 %v9606, %v9384
  %v9608 = vadd.f32 %v9607, %v9389
  %v9609 = vadd.f32 %v9608, %v9392
  %v9610 = vadd.f32 %v9609, %v9397
  %v9611 = vadd.f32 %v9610, %v9400
  %v9612 = vadd.f32 %v9611, %v9405
  %v9613 = vadd.f32 %v9612, %v9408
  %v9614 = vadd.f32 %v9613, %v9413
  %v9615 = vadd.f32 %v9614, %v9416
  %v9616 = vadd.f32 %v9615, %v9421
  %v9617 = vadd.f32 %v9616, %v9424
  %v9618 = vadd.f32 %v9617, %v9429
  %v9619 = vadd.f32 %v9618, %v9432
  %v9620 = vadd.f32 %v9619, %v9437
  %v9621 = vadd.f32 %v9620, %v9440
  %v9622 = vadd.f32 %v9621, %v9445
  %v9623 = vadd.f32 %v9622, %v9448
  %v9624 = vadd.f32 %v9623, %v9453
  %v9625 = vadd.f32 %v9624, %v9456
  %v9626 = vadd.f32 %v9625, %v9461
  %v9627 = vadd.f32 %v9626, %v9464
  %v9628 = vadd.f32 %v9627, %v9469
  %v9629 = vadd.f32 %v9628, %v9472
  %v9630 = vadd.f32 %v9629, %v9477
  %v9631 = vadd.f32 %v9630, %v9480
  %v9632 = vadd.f32 %v9631, %v9485
  %v9633 = vadd.f32 %v9632, %v9488
  %v9634 = vadd.f32 %v9633, %v9493
  %v9635 = vadd.f32 %v9634, %v9496
  %v9636 = vadd.f32 %v9635, %v9501
  %v9637 = vadd.f32 %v9636, %v9504
  %v9638 = vadd.f32 %v9637, %v9509
  %v9639 = vadd.f32 %v9638, %v9512
  %v9640 = vadd.f32 %v9639, %v9517
  %v9641 = vadd.f32 %v9640, %v9520
  %v9642 = vadd.f32 %v9641, %v9525
  %v9643 = vadd.f32 %v9642, %v9528
  %v9644 = vadd.f32 %v9643, %v9533
  %v9645 = vadd.f32 %v9644, %v9536
  %v9646 = vadd.f32 %v9645, %v9541
  %v9647 = vadd.f32 %v9646, %v9544
  %v9648 = vadd.f32 %v9647, %v9549
  %v9649 = vadd.f32 %v9648, %v9552
  %v9650 = vadd.f32 %v9649, %v9557
  %v9651 = vadd.f32 %v9650, %v9560
  %v9652 = vadd.f32 %v9651, %v9565
  %v9653 = vadd.f32 %v9652, %v9568
  %v9654 = vadd.f32 %v9653, %v9573
  %v9655 = vadd.f32 %v9654, %v9576
  %v9656 = vadd.f32 %v9655, %v9581
  %v9657 = vadd.f32 %v9656, %v9584
  %v9658 = vadd.f32 %v9657, %v9589
  %v9659 = vadd.f32 %v9658, %v9592
  %v9660 = vrot.slane %v9659, 4
  %v9661 = vadd.f32 %v9659, %v9660
  %v9662 = vrot.slane %v9661, 2
  %v9663 = vadd.f32 %v9661, %v9662
  %v9664 = vrot.slane %v9663, 1
  %v9665 = vadd.f32 %v9663, %v9664
  %v9666 = vmul.f32 %v9665, %v725
  %v9667 = vsub.f32 %v9341, %v9666
  %v9668 = vsub.f32 %v9344, %v9666
  %v9669 = vsub.f32 %v9349, %v9666
  %v9670 = vsub.f32 %v9352, %v9666
  %v9671 = vsub.f32 %v9357, %v9666
  %v9672 = vsub.f32 %v9360, %v9666
  %v9673 = vsub.f32 %v9365, %v9666
  %v9674 = vsub.f32 %v9368, %v9666
  %v9675 = vsub.f32 %v9373, %v9666
  %v9676 = vsub.f32 %v9376, %v9666
  %v9677 = vsub.f32 %v9381, %v9666
  %v9678 = vsub.f32 %v9384, %v9666
  %v9679 = vsub.f32 %v9389, %v9666
  %v9680 = vsub.f32 %v9392, %v9666
  %v9681 = vsub.f32 %v9397, %v9666
  %v9682 = vsub.f32 %v9400, %v9666
  %v9683 = vsub.f32 %v9405, %v9666
  %v9684 = vsub.f32 %v9408, %v9666
  %v9685 = vsub.f32 %v9413, %v9666
  %v9686 = vsub.f32 %v9416, %v9666
  %v9687 = vsub.f32 %v9421, %v9666
  %v9688 = vsub.f32 %v9424, %v9666
  %v9689 = vsub.f32 %v9429, %v9666
  %v9690 = vsub.f32 %v9432, %v9666
  %v9691 = vsub.f32 %v9437, %v9666
  %v9692 = vsub.f32 %v9440, %v9666
  %v9693 = vsub.f32 %v9445, %v9666
  %v9694 = vsub.f32 %v9448, %v9666
  %v9695 = vsub.f32 %v9453, %v9666
  %v9696 = vsub.f32 %v9456, %v9666
  %v9697 = vsub.f32 %v9461, %v9666
  %v9698 = vsub.f32 %v9464, %v9666
  %v9699 = vsub.f32 %v9469, %v9666
  %v9700 = vsub.f32 %v9472, %v9666
  %v9701 = vsub.f32 %v9477, %v9666
  %v9702 = vsub.f32 %v9480, %v9666
  %v9703 = vsub.f32 %v9485, %v9666
  %v9704 = vsub.f32 %v9488, %v9666
  %v9705 = vsub.f32 %v9493, %v9666
  %v9706 = vsub.f32 %v9496, %v9666
  %v9707 = vsub.f32 %v9501, %v9666
  %v9708 = vsub.f32 %v9504, %v9666
  %v9709 = vsub.f32 %v9509, %v9666
  %v9710 = vsub.f32 %v9512, %v9666
  %v9711 = vsub.f32 %v9517, %v9666
  %v9712 = vsub.f32 %v9520, %v9666
  %v9713 = vsub.f32 %v9525, %v9666
  %v9714 = vsub.f32 %v9528, %v9666
  %v9715 = vsub.f32 %v9533, %v9666
  %v9716 = vsub.f32 %v9536, %v9666
  %v9717 = vsub.f32 %v9541, %v9666
  %v9718 = vsub.f32 %v9544, %v9666
  %v9719 = vsub.f32 %v9549, %v9666
  %v9720 = vsub.f32 %v9552, %v9666
  %v9721 = vsub.f32 %v9557, %v9666
  %v9722 = vsub.f32 %v9560, %v9666
  %v9723 = vsub.f32 %v9565, %v9666
  %v9724 = vsub.f32 %v9568, %v9666
  %v9725 = vsub.f32 %v9573, %v9666
  %v9726 = vsub.f32 %v9576, %v9666
  %v9727 = vsub.f32 %v9581, %v9666
  %v9728 = vsub.f32 %v9584, %v9666
  %v9729 = vsub.f32 %v9589, %v9666
  %v9730 = vsub.f32 %v9592, %v9666
  %v9731 = vmul.f32 %v9667, %v9667
  %v9732 = vmul.f32 %v9668, %v9668
  %v9733 = vmul.f32 %v9669, %v9669
  %v9734 = vmul.f32 %v9670, %v9670
  %v9735 = vmul.f32 %v9671, %v9671
  %v9736 = vmul.f32 %v9672, %v9672
  %v9737 = vmul.f32 %v9673, %v9673
  %v9738 = vmul.f32 %v9674, %v9674
  %v9739 = vmul.f32 %v9675, %v9675
  %v9740 = vmul.f32 %v9676, %v9676
  %v9741 = vmul.f32 %v9677, %v9677
  %v9742 = vmul.f32 %v9678, %v9678
  %v9743 = vmul.f32 %v9679, %v9679
  %v9744 = vmul.f32 %v9680, %v9680
  %v9745 = vmul.f32 %v9681, %v9681
  %v9746 = vmul.f32 %v9682, %v9682
  %v9747 = vmul.f32 %v9683, %v9683
  %v9748 = vmul.f32 %v9684, %v9684
  %v9749 = vmul.f32 %v9685, %v9685
  %v9750 = vmul.f32 %v9686, %v9686
  %v9751 = vmul.f32 %v9687, %v9687
  %v9752 = vmul.f32 %v9688, %v9688
  %v9753 = vmul.f32 %v9689, %v9689
  %v9754 = vmul.f32 %v9690, %v9690
  %v9755 = vmul.f32 %v9691, %v9691
  %v9756 = vmul.f32 %v9692, %v9692
  %v9757 = vmul.f32 %v9693, %v9693
  %v9758 = vmul.f32 %v9694, %v9694
  %v9759 = vmul.f32 %v9695, %v9695
  %v9760 = vmul.f32 %v9696, %v9696
  %v9761 = vmul.f32 %v9697, %v9697
  %v9762 = vmul.f32 %v9698, %v9698
  %v9763 = vmul.f32 %v9699, %v9699
  %v9764 = vmul.f32 %v9700, %v9700
  %v9765 = vmul.f32 %v9701, %v9701
  %v9766 = vmul.f32 %v9702, %v9702
  %v9767 = vmul.f32 %v9703, %v9703
  %v9768 = vmul.f32 %v9704, %v9704
  %v9769 = vmul.f32 %v9705, %v9705
  %v9770 = vmul.f32 %v9706, %v9706
  %v9771 = vmul.f32 %v9707, %v9707
  %v9772 = vmul.f32 %v9708, %v9708
  %v9773 = vmul.f32 %v9709, %v9709
  %v9774 = vmul.f32 %v9710, %v9710
  %v9775 = vmul.f32 %v9711, %v9711
  %v9776 = vmul.f32 %v9712, %v9712
  %v9777 = vmul.f32 %v9713, %v9713
  %v9778 = vmul.f32 %v9714, %v9714
  %v9779 = vmul.f32 %v9715, %v9715
  %v9780 = vmul.f32 %v9716, %v9716
  %v9781 = vmul.f32 %v9717, %v9717
  %v9782 = vmul.f32 %v9718, %v9718
  %v9783 = vmul.f32 %v9719, %v9719
  %v9784 = vmul.f32 %v9720, %v9720
  %v9785 = vmul.f32 %v9721, %v9721
  %v9786 = vmul.f32 %v9722, %v9722
  %v9787 = vmul.f32 %v9723, %v9723
  %v9788 = vmul.f32 %v9724, %v9724
  %v9789 = vmul.f32 %v9725, %v9725
  %v9790 = vmul.f32 %v9726, %v9726
  %v9791 = vmul.f32 %v9727, %v9727
  %v9792 = vmul.f32 %v9728, %v9728
  %v9793 = vmul.f32 %v9729, %v9729
  %v9794 = vmul.f32 %v9730, %v9730
  %v9795 = vadd.f32 %v9731, %v9732
  %v9796 = vadd.f32 %v9795, %v9733
  %v9797 = vadd.f32 %v9796, %v9734
  %v9798 = vadd.f32 %v9797, %v9735
  %v9799 = vadd.f32 %v9798, %v9736
  %v9800 = vadd.f32 %v9799, %v9737
  %v9801 = vadd.f32 %v9800, %v9738
  %v9802 = vadd.f32 %v9801, %v9739
  %v9803 = vadd.f32 %v9802, %v9740
  %v9804 = vadd.f32 %v9803, %v9741
  %v9805 = vadd.f32 %v9804, %v9742
  %v9806 = vadd.f32 %v9805, %v9743
  %v9807 = vadd.f32 %v9806, %v9744
  %v9808 = vadd.f32 %v9807, %v9745
  %v9809 = vadd.f32 %v9808, %v9746
  %v9810 = vadd.f32 %v9809, %v9747
  %v9811 = vadd.f32 %v9810, %v9748
  %v9812 = vadd.f32 %v9811, %v9749
  %v9813 = vadd.f32 %v9812, %v9750
  %v9814 = vadd.f32 %v9813, %v9751
  %v9815 = vadd.f32 %v9814, %v9752
  %v9816 = vadd.f32 %v9815, %v9753
  %v9817 = vadd.f32 %v9816, %v9754
  %v9818 = vadd.f32 %v9817, %v9755
  %v9819 = vadd.f32 %v9818, %v9756
  %v9820 = vadd.f32 %v9819, %v9757
  %v9821 = vadd.f32 %v9820, %v9758
  %v9822 = vadd.f32 %v9821, %v9759
  %v9823 = vadd.f32 %v9822, %v9760
  %v9824 = vadd.f32 %v9823, %v9761
  %v9825 = vadd.f32 %v9824, %v9762
  %v9826 = vadd.f32 %v9825, %v9763
  %v9827 = vadd.f32 %v9826, %v9764
  %v9828 = vadd.f32 %v9827, %v9765
  %v9829 = vadd.f32 %v9828, %v9766
  %v9830 = vadd.f32 %v9829, %v9767
  %v9831 = vadd.f32 %v9830, %v9768
  %v9832 = vadd.f32 %v9831, %v9769
  %v9833 = vadd.f32 %v9832, %v9770
  %v9834 = vadd.f32 %v9833, %v9771
  %v9835 = vadd.f32 %v9834, %v9772
  %v9836 = vadd.f32 %v9835, %v9773
  %v9837 = vadd.f32 %v9836, %v9774
  %v9838 = vadd.f32 %v9837, %v9775
  %v9839 = vadd.f32 %v9838, %v9776
  %v9840 = vadd.f32 %v9839, %v9777
  %v9841 = vadd.f32 %v9840, %v9778
  %v9842 = vadd.f32 %v9841, %v9779
  %v9843 = vadd.f32 %v9842, %v9780
  %v9844 = vadd.f32 %v9843, %v9781
  %v9845 = vadd.f32 %v9844, %v9782
  %v9846 = vadd.f32 %v9845, %v9783
  %v9847 = vadd.f32 %v9846, %v9784
  %v9848 = vadd.f32 %v9847, %v9785
  %v9849 = vadd.f32 %v9848, %v9786
  %v9850 = vadd.f32 %v9849, %v9787
  %v9851 = vadd.f32 %v9850, %v9788
  %v9852 = vadd.f32 %v9851, %v9789
  %v9853 = vadd.f32 %v9852, %v9790
  %v9854 = vadd.f32 %v9853, %v9791
  %v9855 = vadd.f32 %v9854, %v9792
  %v9856 = vadd.f32 %v9855, %v9793
  %v9857 = vadd.f32 %v9856, %v9794
  %v9858 = vrot.slane %v9857, 4
  %v9859 = vadd.f32 %v9857, %v9858
  %v9860 = vrot.slane %v9859, 2
  %v9861 = vadd.f32 %v9859, %v9860
  %v9862 = vrot.slane %v9861, 1
  %v9863 = vadd.f32 %v9861, %v9862
  %v9864 = vmul.f32 %v9863, %v725
  %v9865 = vadd.f32 %v9864, 1e-05
  %v9866 = vrsqrt.pop %v9865
  %v9867 = vmul.f32 %v9667, %v9866
  %v9868 = vmul.f32 %v9668, %v9866
  %v9869 = vmul.f32 %v9669, %v9866
  %v9870 = vmul.f32 %v9670, %v9866
  %v9871 = vmul.f32 %v9671, %v9866
  %v9872 = vmul.f32 %v9672, %v9866
  %v9873 = vmul.f32 %v9673, %v9866
  %v9874 = vmul.f32 %v9674, %v9866
  %v9875 = vmul.f32 %v9675, %v9866
  %v9876 = vmul.f32 %v9676, %v9866
  %v9877 = vmul.f32 %v9677, %v9866
  %v9878 = vmul.f32 %v9678, %v9866
  %v9879 = vmul.f32 %v9679, %v9866
  %v9880 = vmul.f32 %v9680, %v9866
  %v9881 = vmul.f32 %v9681, %v9866
  %v9882 = vmul.f32 %v9682, %v9866
  %v9883 = vmul.f32 %v9683, %v9866
  %v9884 = vmul.f32 %v9684, %v9866
  %v9885 = vmul.f32 %v9685, %v9866
  %v9886 = vmul.f32 %v9686, %v9866
  %v9887 = vmul.f32 %v9687, %v9866
  %v9888 = vmul.f32 %v9688, %v9866
  %v9889 = vmul.f32 %v9689, %v9866
  %v9890 = vmul.f32 %v9690, %v9866
  %v9891 = vmul.f32 %v9691, %v9866
  %v9892 = vmul.f32 %v9692, %v9866
  %v9893 = vmul.f32 %v9693, %v9866
  %v9894 = vmul.f32 %v9694, %v9866
  %v9895 = vmul.f32 %v9695, %v9866
  %v9896 = vmul.f32 %v9696, %v9866
  %v9897 = vmul.f32 %v9697, %v9866
  %v9898 = vmul.f32 %v9698, %v9866
  %v9899 = vmul.f32 %v9699, %v9866
  %v9900 = vmul.f32 %v9700, %v9866
  %v9901 = vmul.f32 %v9701, %v9866
  %v9902 = vmul.f32 %v9702, %v9866
  %v9903 = vmul.f32 %v9703, %v9866
  %v9904 = vmul.f32 %v9704, %v9866
  %v9905 = vmul.f32 %v9705, %v9866
  %v9906 = vmul.f32 %v9706, %v9866
  %v9907 = vmul.f32 %v9707, %v9866
  %v9908 = vmul.f32 %v9708, %v9866
  %v9909 = vmul.f32 %v9709, %v9866
  %v9910 = vmul.f32 %v9710, %v9866
  %v9911 = vmul.f32 %v9711, %v9866
  %v9912 = vmul.f32 %v9712, %v9866
  %v9913 = vmul.f32 %v9713, %v9866
  %v9914 = vmul.f32 %v9714, %v9866
  %v9915 = vmul.f32 %v9715, %v9866
  %v9916 = vmul.f32 %v9716, %v9866
  %v9917 = vmul.f32 %v9717, %v9866
  %v9918 = vmul.f32 %v9718, %v9866
  %v9919 = vmul.f32 %v9719, %v9866
  %v9920 = vmul.f32 %v9720, %v9866
  %v9921 = vmul.f32 %v9721, %v9866
  %v9922 = vmul.f32 %v9722, %v9866
  %v9923 = vmul.f32 %v9723, %v9866
  %v9924 = vmul.f32 %v9724, %v9866
  %v9925 = vmul.f32 %v9725, %v9866
  %v9926 = vmul.f32 %v9726, %v9866
  %v9927 = vmul.f32 %v9727, %v9866
  %v9928 = vmul.f32 %v9728, %v9866
  %v9929 = vmul.f32 %v9729, %v9866
  %v9930 = vmul.f32 %v9730, %v9866
  %v9932 = vlaneseq
  %v9933 = vshrl.u32 %v9932, 7
  %v9934 = vsub.s32 0, %v9933
  %v9935 = vrot.slane %v9595, %v9934
  %v9937 = vmul.f32 %v9867, %v9935
  %v9938 = vmul.f32 %v9868, %v9935
  %v9939 = vmul.f32 %v9869, %v9935
  %v9940 = vmul.f32 %v9870, %v9935
  %v9941 = vmul.f32 %v9871, %v9935
  %v9942 = vmul.f32 %v9872, %v9935
  %v9943 = vmul.f32 %v9873, %v9935
  %v9944 = vmul.f32 %v9874, %v9935
  %v9945 = vmul.f32 %v9875, %v9935
  %v9946 = vmul.f32 %v9876, %v9935
  %v9947 = vmul.f32 %v9877, %v9935
  %v9948 = vmul.f32 %v9878, %v9935
  %v9949 = vmul.f32 %v9879, %v9935
  %v9950 = vmul.f32 %v9880, %v9935
  %v9951 = vmul.f32 %v9881, %v9935
  %v9952 = vmul.f32 %v9882, %v9935
  %v9953 = vmul.f32 %v9883, %v9935
  %v9954 = vmul.f32 %v9884, %v9935
  %v9955 = vmul.f32 %v9885, %v9935
  %v9956 = vmul.f32 %v9886, %v9935
  %v9957 = vmul.f32 %v9887, %v9935
  %v9958 = vmul.f32 %v9888, %v9935
  %v9959 = vmul.f32 %v9889, %v9935
  %v9960 = vmul.f32 %v9890, %v9935
  %v9961 = vmul.f32 %v9891, %v9935
  %v9962 = vmul.f32 %v9892, %v9935
  %v9963 = vmul.f32 %v9893, %v9935
  %v9964 = vmul.f32 %v9894, %v9935
  %v9965 = vmul.f32 %v9895, %v9935
  %v9966 = vmul.f32 %v9896, %v9935
  %v9967 = vmul.f32 %v9897, %v9935
  %v9968 = vmul.f32 %v9898, %v9935
  %v9969 = vmul.f32 %v9899, %v9935
  %v9970 = vmul.f32 %v9900, %v9935
  %v9971 = vmul.f32 %v9901, %v9935
  %v9972 = vmul.f32 %v9902, %v9935
  %v9973 = vmul.f32 %v9903, %v9935
  %v9974 = vmul.f32 %v9904, %v9935
  %v9975 = vmul.f32 %v9905, %v9935
  %v9976 = vmul.f32 %v9906, %v9935
  %v9977 = vmul.f32 %v9907, %v9935
  %v9978 = vmul.f32 %v9908, %v9935
  %v9979 = vmul.f32 %v9909, %v9935
  %v9980 = vmul.f32 %v9910, %v9935
  %v9981 = vmul.f32 %v9911, %v9935
  %v9982 = vmul.f32 %v9912, %v9935
  %v9983 = vmul.f32 %v9913, %v9935
  %v9984 = vmul.f32 %v9914, %v9935
  %v9985 = vmul.f32 %v9915, %v9935
  %v9986 = vmul.f32 %v9916, %v9935
  %v9987 = vmul.f32 %v9917, %v9935
  %v9988 = vmul.f32 %v9918, %v9935
  %v9989 = vmul.f32 %v9919, %v9935
  %v9990 = vmul.f32 %v9920, %v9935
  %v9991 = vmul.f32 %v9921, %v9935
  %v9992 = vmul.f32 %v9922, %v9935
  %v9993 = vmul.f32 %v9923, %v9935
  %v9994 = vmul.f32 %v9924, %v9935
  %v9995 = vmul.f32 %v9925, %v9935
  %v9996 = vmul.f32 %v9926, %v9935
  %v9997 = vmul.f32 %v9927, %v9935
  %v9998 = vmul.f32 %v9928, %v9935
  %v9999 = vmul.f32 %v9929, %v9935
  %v10000 = vmul.f32 %v9930, %v9935
  %v10002 = vlaneseq
  %v10003 = vshrl.u32 %v10002, 7
  %v10004 = vsub.s32 0, %v10003
  %v10005 = vrot.slane %v9596, %v10004
  %v10007 = vadd.f32 %v9937, %v10005
  %v10008 = vadd.f32 %v9938, %v10005
  %v10009 = vadd.f32 %v9939, %v10005
  %v10010 = vadd.f32 %v9940, %v10005
  %v10011 = vadd.f32 %v9941, %v10005
  %v10012 = vadd.f32 %v9942, %v10005
  %v10013 = vadd.f32 %v9943, %v10005
  %v10014 = vadd.f32 %v9944, %v10005
  %v10015 = vadd.f32 %v9945, %v10005
  %v10016 = vadd.f32 %v9946, %v10005
  %v10017 = vadd.f32 %v9947, %v10005
  %v10018 = vadd.f32 %v9948, %v10005
  %v10019 = vadd.f32 %v9949, %v10005
  %v10020 = vadd.f32 %v9950, %v10005
  %v10021 = vadd.f32 %v9951, %v10005
  %v10022 = vadd.f32 %v9952, %v10005
  %v10023 = vadd.f32 %v9953, %v10005
  %v10024 = vadd.f32 %v9954, %v10005
  %v10025 = vadd.f32 %v9955, %v10005
  %v10026 = vadd.f32 %v9956, %v10005
  %v10027 = vadd.f32 %v9957, %v10005
  %v10028 = vadd.f32 %v9958, %v10005
  %v10029 = vadd.f32 %v9959, %v10005
  %v10030 = vadd.f32 %v9960, %v10005
  %v10031 = vadd.f32 %v9961, %v10005
  %v10032 = vadd.f32 %v9962, %v10005
  %v10033 = vadd.f32 %v9963, %v10005
  %v10034 = vadd.f32 %v9964, %v10005
  %v10035 = vadd.f32 %v9965, %v10005
  %v10036 = vadd.f32 %v9966, %v10005
  %v10037 = vadd.f32 %v9967, %v10005
  %v10038 = vadd.f32 %v9968, %v10005
  %v10039 = vadd.f32 %v9969, %v10005
  %v10040 = vadd.f32 %v9970, %v10005
  %v10041 = vadd.f32 %v9971, %v10005
  %v10042 = vadd.f32 %v9972, %v10005
  %v10043 = vadd.f32 %v9973, %v10005
  %v10044 = vadd.f32 %v9974, %v10005
  %v10045 = vadd.f32 %v9975, %v10005
  %v10046 = vadd.f32 %v9976, %v10005
  %v10047 = vadd.f32 %v9977, %v10005
  %v10048 = vadd.f32 %v9978, %v10005
  %v10049 = vadd.f32 %v9979, %v10005
  %v10050 = vadd.f32 %v9980, %v10005
  %v10051 = vadd.f32 %v9981, %v10005
  %v10052 = vadd.f32 %v9982, %v10005
  %v10053 = vadd.f32 %v9983, %v10005
  %v10054 = vadd.f32 %v9984, %v10005
  %v10055 = vadd.f32 %v9985, %v10005
  %v10056 = vadd.f32 %v9986, %v10005
  %v10057 = vadd.f32 %v9987, %v10005
  %v10058 = vadd.f32 %v9988, %v10005
  %v10059 = vadd.f32 %v9989, %v10005
  %v10060 = vadd.f32 %v9990, %v10005
  %v10061 = vadd.f32 %v9991, %v10005
  %v10062 = vadd.f32 %v9992, %v10005
  %v10063 = vadd.f32 %v9993, %v10005
  %v10064 = vadd.f32 %v9994, %v10005
  %v10065 = vadd.f32 %v9995, %v10005
  %v10066 = vadd.f32 %v9996, %v10005
  %v10067 = vadd.f32 %v9997, %v10005
  %v10068 = vadd.f32 %v9998, %v10005
  %v10069 = vadd.f32 %v9999, %v10005
  %v10070 = vadd.f32 %v10000, %v10005
  %v10071 = vld [vmem:[%s10] sm:$0xf]
  %v10072 = vld [vmem:[%s10 + $0x4] sm:$0xf]
  %v10073 = vld [vmem:[%s10 + $0x8] sm:$0xf]
  %v10074 = vld [vmem:[%s10 + $0xc] sm:$0xf]
  %v10075 = vld [vmem:[%s10 + $0x10] sm:$0xf]
  %v10076 = vld [vmem:[%s10 + $0x14] sm:$0xf]
  %v10077 = vld [vmem:[%s10 + $0x18] sm:$0xf]
  %v10078 = vld [vmem:[%s10 + $0x1c] sm:$0xf]
  %v10079 = vld [vmem:[%s10 + $0x20] sm:$0xf]
  %v10080 = vld [vmem:[%s10 + $0x24] sm:$0xf]
  %v10081 = vld [vmem:[%s10 + $0x28] sm:$0xf]
  %v10082 = vld [vmem:[%s10 + $0x2c] sm:$0xf]
  %v10083 = vld [vmem:[%s10 + $0x30] sm:$0xf]
  %v10084 = vld [vmem:[%s10 + $0x34] sm:$0xf]
  %v10085 = vld [vmem:[%s10 + $0x38] sm:$0xf]
  %v10086 = vld [vmem:[%s10 + $0x3c] sm:$0xf]
  %v10103 = vunpack.c.l.b16 %v10071
  %v10104 = vunpack.c.l.b16 %v10072
  %v10105 = vunpack.c.l.b16 %v10073
  %v10106 = vunpack.c.l.b16 %v10074
  %v10107 = vunpack.c.l.b16 %v10075
  %v10108 = vunpack.c.l.b16 %v10076
  %v10109 = vunpack.c.l.b16 %v10077
  %v10110 = vunpack.c.l.b16 %v10078
  %v10111 = vunpack.c.l.b16 %v10079
  %v10112 = vunpack.c.l.b16 %v10080
  %v10113 = vunpack.c.l.b16 %v10081
  %v10114 = vunpack.c.l.b16 %v10082
  %v10115 = vunpack.c.l.b16 %v10083
  %v10116 = vunpack.c.l.b16 %v10084
  %v10117 = vunpack.c.l.b16 %v10085
  %v10118 = vunpack.c.l.b16 %v10086
  %v10119 = vpack.c.b16 %v10104, %v10103
  %v10120 = vpack.c.b16 %v10106, %v10105
  %v10121 = vpack.c.b16 %v10108, %v10107
  %v10122 = vpack.c.b16 %v10110, %v10109
  %v10123 = vpack.c.b16 %v10112, %v10111
  %v10124 = vpack.c.b16 %v10114, %v10113
  %v10125 = vpack.c.b16 %v10116, %v10115
  %v10126 = vpack.c.b16 %v10118, %v10117
  %10135 = vmatprep.subr.bf16.mxu0 0
  %10136 = vmatpush1.bf16.msra.mxu0 %v10119
  %10137 = vmatprep.subr.bf16.mxu0 0
  %10138 = vmatpush1.bf16.msra.mxu0 %v10120
  %10139 = vmatprep.subr.bf16.mxu0 0
  %10140 = vmatpush1.bf16.msra.mxu0 %v10121
  %10141 = vmatprep.subr.bf16.mxu0 0
  %10142 = vmatpush1.bf16.msra.mxu0 %v10122
  %10143 = vmatprep.subr.bf16.mxu0 0
  %10144 = vmatpush1.bf16.msra.mxu0 %v10123
  %10145 = vmatprep.subr.bf16.mxu0 0
  %10146 = vmatpush1.bf16.msra.mxu0 %v10124
  %10147 = vmatprep.subr.bf16.mxu0 0
  %10148 = vmatpush1.bf16.msra.mxu0 %v10125
  %10149 = vmatprep.subr.bf16.mxu0 0
  %10150 = vmatpush1.bf16.msra.mxu0 %v10126
  %10151 = vmatprep.subr.bf16.mxu0 0
  %10152 = vmatpush1.bf16.msra.mxu0 0
  %10153 = vmatprep.subr.bf16.mxu0 0
  %10154 = vmatpush1.bf16.msra.mxu0 0
  %10155 = vmatprep.subr.bf16.mxu0 0
  %10156 = vmatpush1.bf16.msra.mxu0 0
  %10157 = vmatprep.subr.bf16.mxu0 0
  %10158 = vmatpush1.bf16.msra.mxu0 0
  %10159 = vmatprep.subr.bf16.mxu0 0
  %10160 = vmatpush1.bf16.msra.mxu0 0
  %10161 = vmatprep.subr.bf16.mxu0 0
  %10162 = vmatpush1.bf16.msra.mxu0 0
  %10163 = vmatprep.subr.bf16.mxu0 0
  %10164 = vmatpush1.bf16.msra.mxu0 0
  %10165 = vmatprep.subr.bf16.mxu0 0
  %10166 = vmatpush1.bf16.msra.mxu0 0
  %10167 = vmatprep.mubr.bf16.mxu0 0
  %10168 = vmatmul.mubr.bf16.gmra.mrb[0].mxu0 %v253
  %v10169 = vpop.f32.mrb[0].mxu0
  %v10170 = vadd.f32 0.0, %v10169
  %v10171 = vpop.f32.mrb[0].mxu0
  %v10172 = vpop.f32.mrb[0].mxu0
  %v10173 = vadd.f32 0.0, %v10172
  %v10174 = vpop.f32.mrb[0].mxu0
  %10175 = vmatprep.mubr.bf16.mxu0 0
  %10176 = vmatmul.mubr.bf16.gmra.mrb[0].mxu0 %v254
  %v10177 = vpop.f32.mrb[0].mxu0
  %v10178 = vadd.f32 0.0, %v10177
  %v10179 = vpop.f32.mrb[0].mxu0
  %v10180 = vpop.f32.mrb[0].mxu0
  %v10181 = vadd.f32 0.0, %v10180
  %v10182 = vpop.f32.mrb[0].mxu0
  %10183 = vmatprep.mubr.bf16.mxu0 0
  %10184 = vmatmul.mubr.bf16.gmra.mrb[0].mxu0 %v255
  %v10185 = vpop.f32.mrb[0].mxu0
  %v10186 = vadd.f32 0.0, %v10185
  %v10187 = vpop.f32.mrb[0].mxu0
  %v10188 = vpop.f32.mrb[0].mxu0
  %v10189 = vadd.f32 0.0, %v10188
  %v10190 = vpop.f32.mrb[0].mxu0
  %10191 = vmatprep.mubr.bf16.mxu0 0
  %10192 = vmatmul.mubr.bf16.gmra.mrb[0].mxu0 %v256
  %v10193 = vpop.f32.mrb[0].mxu0
  %v10194 = vadd.f32 0.0, %v10193
  %v10195 = vpop.f32.mrb[0].mxu0
  %v10196 = vpop.f32.mrb[0].mxu0
  %v10197 = vadd.f32 0.0, %v10196
  %v10198 = vpop.f32.mrb[0].mxu0
  %10199 = vmatprep.mubr.bf16.mxu0 0
  %10200 = vmatmul.mubr.bf16.gmra.mrb[0].mxu0 %v257
  %v10201 = vpop.f32.mrb[0].mxu0
  %v10202 = vadd.f32 0.0, %v10201
  %v10203 = vpop.f32.mrb[0].mxu0
  %v10204 = vpop.f32.mrb[0].mxu0
  %v10205 = vadd.f32 0.0, %v10204
  %v10206 = vpop.f32.mrb[0].mxu0
  %10207 = vmatprep.mubr.bf16.mxu0 0
  %10208 = vmatmul.mubr.bf16.gmra.mrb[0].mxu0 %v258
  %v10209 = vpop.f32.mrb[0].mxu0
  %v10210 = vadd.f32 0.0, %v10209
  %v10211 = vpop.f32.mrb[0].mxu0
  %v10212 = vpop.f32.mrb[0].mxu0
  %v10213 = vadd.f32 0.0, %v10212
  %v10214 = vpop.f32.mrb[0].mxu0
  %10215 = vmatprep.mubr.bf16.mxu0 0
  %10216 = vmatmul.mubr.bf16.gmra.mrb[0].mxu0 %v259
  %v10217 = vpop.f32.mrb[0].mxu0
  %v10218 = vadd.f32 0.0, %v10217
  %v10219 = vpop.f32.mrb[0].mxu0
  %v10220 = vpop.f32.mrb[0].mxu0
  %v10221 = vadd.f32 0.0, %v10220
  %v10222 = vpop.f32.mrb[0].mxu0
  %10223 = vmatprep.mubr.bf16.mxu0 0
  %10224 = vmatmul.mubr.bf16.gmra.mrb[0].mxu0 %v260
  %v10225 = vpop.f32.mrb[0].mxu0
  %v10226 = vadd.f32 0.0, %v10225
  %v10227 = vpop.f32.mrb[0].mxu0
  %v10228 = vpop.f32.mrb[0].mxu0
  %v10229 = vadd.f32 0.0, %v10228
  %v10230 = vpop.f32.mrb[0].mxu0
  %10231 = vmatprep.mubr.bf16.mxu0 0
  %10232 = vmatmul.mubr.bf16.gmra.mrb[0].mxu0 %v261
  %v10233 = vpop.f32.mrb[0].mxu0
  %v10234 = vadd.f32 0.0, %v10233
  %v10235 = vpop.f32.mrb[0].mxu0
  %v10236 = vpop.f32.mrb[0].mxu0
  %v10237 = vadd.f32 0.0, %v10236
  %v10238 = vpop.f32.mrb[0].mxu0
  %10239 = vmatprep.mubr.bf16.mxu0 0
  %10240 = vmatmul.mubr.bf16.gmra.mrb[0].mxu0 %v262
  %v10241 = vpop.f32.mrb[0].mxu0
  %v10242 = vadd.f32 0.0, %v10241
  %v10243 = vpop.f32.mrb[0].mxu0
  %v10244 = vpop.f32.mrb[0].mxu0
  %v10245 = vadd.f32 0.0, %v10244
  %v10246 = vpop.f32.mrb[0].mxu0
  %10247 = vmatprep.mubr.bf16.mxu0 0
  %10248 = vmatmul.mubr.bf16.gmra.mrb[0].mxu0 %v263
  %v10249 = vpop.f32.mrb[0].mxu0
  %v10250 = vadd.f32 0.0, %v10249
  %v10251 = vpop.f32.mrb[0].mxu0
  %v10252 = vpop.f32.mrb[0].mxu0
  %v10253 = vadd.f32 0.0, %v10252
  %v10254 = vpop.f32.mrb[0].mxu0
  %10255 = vmatprep.mubr.bf16.mxu0 0
  %10256 = vmatmul.mubr.bf16.gmra.mrb[0].mxu0 %v264
  %v10257 = vpop.f32.mrb[0].mxu0
  %v10258 = vadd.f32 0.0, %v10257
  %v10259 = vpop.f32.mrb[0].mxu0
  %v10260 = vpop.f32.mrb[0].mxu0
  %v10261 = vadd.f32 0.0, %v10260
  %v10262 = vpop.f32.mrb[0].mxu0
  %10263 = vmatprep.mubr.bf16.mxu0 0
  %10264 = vmatmul.mubr.bf16.gmra.mrb[0].mxu0 %v265
  %v10265 = vpop.f32.mrb[0].mxu0
  %v10266 = vadd.f32 0.0, %v10265
  %v10267 = vpop.f32.mrb[0].mxu0
  %v10268 = vpop.f32.mrb[0].mxu0
  %v10269 = vadd.f32 0.0, %v10268
  %v10270 = vpop.f32.mrb[0].mxu0
  %10271 = vmatprep.mubr.bf16.mxu0 0
  %10272 = vmatmul.mubr.bf16.gmra.mrb[0].mxu0 %v266
  %v10273 = vpop.f32.mrb[0].mxu0
  %v10274 = vadd.f32 0.0, %v10273
  %v10275 = vpop.f32.mrb[0].mxu0
  %v10276 = vpop.f32.mrb[0].mxu0
  %v10277 = vadd.f32 0.0, %v10276
  %v10278 = vpop.f32.mrb[0].mxu0
  %10279 = vmatprep.mubr.bf16.mxu0 0
  %10280 = vmatmul.mubr.bf16.gmra.mrb[0].mxu0 %v267
  %v10281 = vpop.f32.mrb[0].mxu0
  %v10282 = vadd.f32 0.0, %v10281
  %v10283 = vpop.f32.mrb[0].mxu0
  %v10284 = vpop.f32.mrb[0].mxu0
  %v10285 = vadd.f32 0.0, %v10284
  %v10286 = vpop.f32.mrb[0].mxu0
  %10287 = vmatprep.mubr.bf16.mxu0 0
  %10288 = vmatmul.mubr.bf16.gmra.mrb[0].mxu0 %v268
  %v10289 = vpop.f32.mrb[0].mxu0
  %v10290 = vadd.f32 0.0, %v10289
  %v10291 = vpop.f32.mrb[0].mxu0
  %v10292 = vpop.f32.mrb[0].mxu0
  %v10293 = vadd.f32 0.0, %v10292
  %v10294 = vpop.f32.mrb[0].mxu0
  %10295 = vmatprep.mubr.bf16.mxu0 0
  %10296 = vmatmul.mubr.bf16.gmra.mrb[0].mxu0 %v269
  %v10297 = vpop.f32.mrb[0].mxu0
  %v10298 = vadd.f32 0.0, %v10297
  %v10299 = vpop.f32.mrb[0].mxu0
  %v10300 = vpop.f32.mrb[0].mxu0
  %v10301 = vadd.f32 0.0, %v10300
  %v10302 = vpop.f32.mrb[0].mxu0
  %10303 = vmatprep.mubr.bf16.mxu0 0
  %10304 = vmatmul.mubr.bf16.gmra.mrb[0].mxu0 %v270
  %v10305 = vpop.f32.mrb[0].mxu0
  %v10306 = vadd.f32 0.0, %v10305
  %v10307 = vpop.f32.mrb[0].mxu0
  %v10308 = vpop.f32.mrb[0].mxu0
  %v10309 = vadd.f32 0.0, %v10308
  %v10310 = vpop.f32.mrb[0].mxu0
  %10311 = vmatprep.mubr.bf16.mxu0 0
  %10312 = vmatmul.mubr.bf16.gmra.mrb[0].mxu0 %v271
  %v10313 = vpop.f32.mrb[0].mxu0
  %v10314 = vadd.f32 0.0, %v10313
  %v10315 = vpop.f32.mrb[0].mxu0
  %v10316 = vpop.f32.mrb[0].mxu0
  %v10317 = vadd.f32 0.0, %v10316
  %v10318 = vpop.f32.mrb[0].mxu0
  %10319 = vmatprep.mubr.bf16.mxu0 0
  %10320 = vmatmul.mubr.bf16.gmra.mrb[0].mxu0 %v272
  %v10321 = vpop.f32.mrb[0].mxu0
  %v10322 = vadd.f32 0.0, %v10321
  %v10323 = vpop.f32.mrb[0].mxu0
  %v10324 = vpop.f32.mrb[0].mxu0
  %v10325 = vadd.f32 0.0, %v10324
  %v10326 = vpop.f32.mrb[0].mxu0
  %10327 = vmatprep.mubr.bf16.mxu0 0
  %10328 = vmatmul.mubr.bf16.gmra.mrb[0].mxu0 %v273
  %v10329 = vpop.f32.mrb[0].mxu0
  %v10330 = vadd.f32 0.0, %v10329
  %v10331 = vpop.f32.mrb[0].mxu0
  %v10332 = vpop.f32.mrb[0].mxu0
  %v10333 = vadd.f32 0.0, %v10332
  %v10334 = vpop.f32.mrb[0].mxu0
  %10335 = vmatprep.mubr.bf16.mxu0 0
  %10336 = vmatmul.mubr.bf16.gmra.mrb[0].mxu0 %v274
  %v10337 = vpop.f32.mrb[0].mxu0
  %v10338 = vadd.f32 0.0, %v10337
  %v10339 = vpop.f32.mrb[0].mxu0
  %v10340 = vpop.f32.mrb[0].mxu0
  %v10341 = vadd.f32 0.0, %v10340
  %v10342 = vpop.f32.mrb[0].mxu0
  %10343 = vmatprep.mubr.bf16.mxu0 0
  %10344 = vmatmul.mubr.bf16.gmra.mrb[0].mxu0 %v275
  %v10345 = vpop.f32.mrb[0].mxu0
  %v10346 = vadd.f32 0.0, %v10345
  %v10347 = vpop.f32.mrb[0].mxu0
  %v10348 = vpop.f32.mrb[0].mxu0
  %v10349 = vadd.f32 0.0, %v10348
  %v10350 = vpop.f32.mrb[0].mxu0
  %10351 = vmatprep.mubr.bf16.mxu0 0
  %10352 = vmatmul.mubr.bf16.gmra.mrb[0].mxu0 %v276
  %v10353 = vpop.f32.mrb[0].mxu0
  %v10354 = vadd.f32 0.0, %v10353
  %v10355 = vpop.f32.mrb[0].mxu0
  %v10356 = vpop.f32.mrb[0].mxu0
  %v10357 = vadd.f32 0.0, %v10356
  %v10358 = vpop.f32.mrb[0].mxu0
  %10359 = vmatprep.mubr.bf16.mxu0 0
  %10360 = vmatmul.mubr.bf16.gmra.mrb[0].mxu0 %v277
  %v10361 = vpop.f32.mrb[0].mxu0
  %v10362 = vadd.f32 0.0, %v10361
  %v10363 = vpop.f32.mrb[0].mxu0
  %v10364 = vpop.f32.mrb[0].mxu0
  %v10365 = vadd.f32 0.0, %v10364
  %v10366 = vpop.f32.mrb[0].mxu0
  %10367 = vmatprep.mubr.bf16.mxu0 0
  %10368 = vmatmul.mubr.bf16.gmra.mrb[0].mxu0 %v278
  %v10369 = vpop.f32.mrb[0].mxu0
  %v10370 = vadd.f32 0.0, %v10369
  %v10371 = vpop.f32.mrb[0].mxu0
  %v10372 = vpop.f32.mrb[0].mxu0
  %v10373 = vadd.f32 0.0, %v10372
  %v10374 = vpop.f32.mrb[0].mxu0
  %10375 = vmatprep.mubr.bf16.mxu0 0
  %10376 = vmatmul.mubr.bf16.gmra.mrb[0].mxu0 %v279
  %v10377 = vpop.f32.mrb[0].mxu0
  %v10378 = vadd.f32 0.0, %v10377
  %v10379 = vpop.f32.mrb[0].mxu0
  %v10380 = vpop.f32.mrb[0].mxu0
  %v10381 = vadd.f32 0.0, %v10380
  %v10382 = vpop.f32.mrb[0].mxu0
  %10383 = vmatprep.mubr.bf16.mxu0 0
  %10384 = vmatmul.mubr.bf16.gmra.mrb[0].mxu0 %v280
  %v10385 = vpop.f32.mrb[0].mxu0
  %v10386 = vadd.f32 0.0, %v10385
  %v10387 = vpop.f32.mrb[0].mxu0
  %v10388 = vpop.f32.mrb[0].mxu0
  %v10389 = vadd.f32 0.0, %v10388
  %v10390 = vpop.f32.mrb[0].mxu0
  %10391 = vmatprep.mubr.bf16.mxu0 0
  %10392 = vmatmul.mubr.bf16.gmra.mrb[0].mxu0 %v281
  %v10393 = vpop.f32.mrb[0].mxu0
  %v10394 = vadd.f32 0.0, %v10393
  %v10395 = vpop.f32.mrb[0].mxu0
  %v10396 = vpop.f32.mrb[0].mxu0
  %v10397 = vadd.f32 0.0, %v10396
  %v10398 = vpop.f32.mrb[0].mxu0
  %10399 = vmatprep.mubr.bf16.mxu0 0
  %10400 = vmatmul.mubr.bf16.gmra.mrb[0].mxu0 %v282
  %v10401 = vpop.f32.mrb[0].mxu0
  %v10402 = vadd.f32 0.0, %v10401
  %v10403 = vpop.f32.mrb[0].mxu0
  %v10404 = vpop.f32.mrb[0].mxu0
  %v10405 = vadd.f32 0.0, %v10404
  %v10406 = vpop.f32.mrb[0].mxu0
  %10407 = vmatprep.mubr.bf16.mxu0 0
  %10408 = vmatmul.mubr.bf16.gmra.mrb[0].mxu0 %v283
  %v10409 = vpop.f32.mrb[0].mxu0
  %v10410 = vadd.f32 0.0, %v10409
  %v10411 = vpop.f32.mrb[0].mxu0
  %v10412 = vpop.f32.mrb[0].mxu0
  %v10413 = vadd.f32 0.0, %v10412
  %v10414 = vpop.f32.mrb[0].mxu0
  %10415 = vmatprep.mubr.bf16.mxu0 0
  %10416 = vmatmul.mubr.bf16.gmra.mrb[0].mxu0 %v284
  %v10417 = vpop.f32.mrb[0].mxu0
  %v10418 = vadd.f32 0.0, %v10417
  %v10419 = vpop.f32.mrb[0].mxu0
  %v10420 = vpop.f32.mrb[0].mxu0
  %v10421 = vadd.f32 0.0, %v10420
  %v10422 = vpop.f32.mrb[0].mxu0
  %10423 = vdwg.mxu0
  %v10424 = vld [vmem:[%s11] sm:$0x1]
  %v10425 = vld [vmem:[%s12] sm:$0x1]
  %v10426 = vadd.f32 %v10170, %v10173
  %v10427 = vadd.f32 %v10426, %v10178
  %v10428 = vadd.f32 %v10427, %v10181
  %v10429 = vadd.f32 %v10428, %v10186
  %v10430 = vadd.f32 %v10429, %v10189
  %v10431 = vadd.f32 %v10430, %v10194
  %v10432 = vadd.f32 %v10431, %v10197
  %v10433 = vadd.f32 %v10432, %v10202
  %v10434 = vadd.f32 %v10433, %v10205
  %v10435 = vadd.f32 %v10434, %v10210
  %v10436 = vadd.f32 %v10435, %v10213
  %v10437 = vadd.f32 %v10436, %v10218
  %v10438 = vadd.f32 %v10437, %v10221
  %v10439 = vadd.f32 %v10438, %v10226
  %v10440 = vadd.f32 %v10439, %v10229
  %v10441 = vadd.f32 %v10440, %v10234
  %v10442 = vadd.f32 %v10441, %v10237
  %v10443 = vadd.f32 %v10442, %v10242
  %v10444 = vadd.f32 %v10443, %v10245
  %v10445 = vadd.f32 %v10444, %v10250
  %v10446 = vadd.f32 %v10445, %v10253
  %v10447 = vadd.f32 %v10446, %v10258
  %v10448 = vadd.f32 %v10447, %v10261
  %v10449 = vadd.f32 %v10448, %v10266
  %v10450 = vadd.f32 %v10449, %v10269
  %v10451 = vadd.f32 %v10450, %v10274
  %v10452 = vadd.f32 %v10451, %v10277
  %v10453 = vadd.f32 %v10452, %v10282
  %v10454 = vadd.f32 %v10453, %v10285
  %v10455 = vadd.f32 %v10454, %v10290
  %v10456 = vadd.f32 %v10455, %v10293
  %v10457 = vadd.f32 %v10456, %v10298
  %v10458 = vadd.f32 %v10457, %v10301
  %v10459 = vadd.f32 %v10458, %v10306
  %v10460 = vadd.f32 %v10459, %v10309
  %v10461 = vadd.f32 %v10460, %v10314
  %v10462 = vadd.f32 %v10461, %v10317
  %v10463 = vadd.f32 %v10462, %v10322
  %v10464 = vadd.f32 %v10463, %v10325
  %v10465 = vadd.f32 %v10464, %v10330
  %v10466 = vadd.f32 %v10465, %v10333
  %v10467 = vadd.f32 %v10466, %v10338
  %v10468 = vadd.f32 %v10467, %v10341
  %v10469 = vadd.f32 %v10468, %v10346
  %v10470 = vadd.f32 %v10469, %v10349
  %v10471 = vadd.f32 %v10470, %v10354
  %v10472 = vadd.f32 %v10471, %v10357
  %v10473 = vadd.f32 %v10472, %v10362
  %v10474 = vadd.f32 %v10473, %v10365
  %v10475 = vadd.f32 %v10474, %v10370
  %v10476 = vadd.f32 %v10475, %v10373
  %v10477 = vadd.f32 %v10476, %v10378
  %v10478 = vadd.f32 %v10477, %v10381
  %v10479 = vadd.f32 %v10478, %v10386
  %v10480 = vadd.f32 %v10479, %v10389
  %v10481 = vadd.f32 %v10480, %v10394
  %v10482 = vadd.f32 %v10481, %v10397
  %v10483 = vadd.f32 %v10482, %v10402
  %v10484 = vadd.f32 %v10483, %v10405
  %v10485 = vadd.f32 %v10484, %v10410
  %v10486 = vadd.f32 %v10485, %v10413
  %v10487 = vadd.f32 %v10486, %v10418
  %v10488 = vadd.f32 %v10487, %v10421
  %v10489 = vrot.slane %v10488, 4
  %v10490 = vadd.f32 %v10488, %v10489
  %v10491 = vrot.slane %v10490, 2
  %v10492 = vadd.f32 %v10490, %v10491
  %v10493 = vrot.slane %v10492, 1
  %v10494 = vadd.f32 %v10492, %v10493
  %v10495 = vmul.f32 %v10494, %v725
  %v10496 = vsub.f32 %v10170, %v10495
  %v10497 = vsub.f32 %v10173, %v10495
  %v10498 = vsub.f32 %v10178, %v10495
  %v10499 = vsub.f32 %v10181, %v10495
  %v10500 = vsub.f32 %v10186, %v10495
  %v10501 = vsub.f32 %v10189, %v10495
  %v10502 = vsub.f32 %v10194, %v10495
  %v10503 = vsub.f32 %v10197, %v10495
  %v10504 = vsub.f32 %v10202, %v10495
  %v10505 = vsub.f32 %v10205, %v10495
  %v10506 = vsub.f32 %v10210, %v10495
  %v10507 = vsub.f32 %v10213, %v10495
  %v10508 = vsub.f32 %v10218, %v10495
  %v10509 = vsub.f32 %v10221, %v10495
  %v10510 = vsub.f32 %v10226, %v10495
  %v10511 = vsub.f32 %v10229, %v10495
  %v10512 = vsub.f32 %v10234, %v10495
  %v10513 = vsub.f32 %v10237, %v10495
  %v10514 = vsub.f32 %v10242, %v10495
  %v10515 = vsub.f32 %v10245, %v10495
  %v10516 = vsub.f32 %v10250, %v10495
  %v10517 = vsub.f32 %v10253, %v10495
  %v10518 = vsub.f32 %v10258, %v10495
  %v10519 = vsub.f32 %v10261, %v10495
  %v10520 = vsub.f32 %v10266, %v10495
  %v10521 = vsub.f32 %v10269, %v10495
  %v10522 = vsub.f32 %v10274, %v10495
  %v10523 = vsub.f32 %v10277, %v10495
  %v10524 = vsub.f32 %v10282, %v10495
  %v10525 = vsub.f32 %v10285, %v10495
  %v10526 = vsub.f32 %v10290, %v10495
  %v10527 = vsub.f32 %v10293, %v10495
  %v10528 = vsub.f32 %v10298, %v10495
  %v10529 = vsub.f32 %v10301, %v10495
  %v10530 = vsub.f32 %v10306, %v10495
  %v10531 = vsub.f32 %v10309, %v10495
  %v10532 = vsub.f32 %v10314, %v10495
  %v10533 = vsub.f32 %v10317, %v10495
  %v10534 = vsub.f32 %v10322, %v10495
  %v10535 = vsub.f32 %v10325, %v10495
  %v10536 = vsub.f32 %v10330, %v10495
  %v10537 = vsub.f32 %v10333, %v10495
  %v10538 = vsub.f32 %v10338, %v10495
  %v10539 = vsub.f32 %v10341, %v10495
  %v10540 = vsub.f32 %v10346, %v10495
  %v10541 = vsub.f32 %v10349, %v10495
  %v10542 = vsub.f32 %v10354, %v10495
  %v10543 = vsub.f32 %v10357, %v10495
  %v10544 = vsub.f32 %v10362, %v10495
  %v10545 = vsub.f32 %v10365, %v10495
  %v10546 = vsub.f32 %v10370, %v10495
  %v10547 = vsub.f32 %v10373, %v10495
  %v10548 = vsub.f32 %v10378, %v10495
  %v10549 = vsub.f32 %v10381, %v10495
  %v10550 = vsub.f32 %v10386, %v10495
  %v10551 = vsub.f32 %v10389, %v10495
  %v10552 = vsub.f32 %v10394, %v10495
  %v10553 = vsub.f32 %v10397, %v10495
  %v10554 = vsub.f32 %v10402, %v10495
  %v10555 = vsub.f32 %v10405, %v10495
  %v10556 = vsub.f32 %v10410, %v10495
  %v10557 = vsub.f32 %v10413, %v10495
  %v10558 = vsub.f32 %v10418, %v10495
  %v10559 = vsub.f32 %v10421, %v10495
  %v10560 = vmul.f32 %v10496, %v10496
  %v10561 = vmul.f32 %v10497, %v10497
  %v10562 = vmul.f32 %v10498, %v10498
  %v10563 = vmul.f32 %v10499, %v10499
  %v10564 = vmul.f32 %v10500, %v10500
  %v10565 = vmul.f32 %v10501, %v10501
  %v10566 = vmul.f32 %v10502, %v10502
  %v10567 = vmul.f32 %v10503, %v10503
  %v10568 = vmul.f32 %v10504, %v10504
  %v10569 = vmul.f32 %v10505, %v10505
  %v10570 = vmul.f32 %v10506, %v10506
  %v10571 = vmul.f32 %v10507, %v10507
  %v10572 = vmul.f32 %v10508, %v10508
  %v10573 = vmul.f32 %v10509, %v10509
  %v10574 = vmul.f32 %v10510, %v10510
  %v10575 = vmul.f32 %v10511, %v10511
  %v10576 = vmul.f32 %v10512, %v10512
  %v10577 = vmul.f32 %v10513, %v10513
  %v10578 = vmul.f32 %v10514, %v10514
  %v10579 = vmul.f32 %v10515, %v10515
  %v10580 = vmul.f32 %v10516, %v10516
  %v10581 = vmul.f32 %v10517, %v10517
  %v10582 = vmul.f32 %v10518, %v10518
  %v10583 = vmul.f32 %v10519, %v10519
  %v10584 = vmul.f32 %v10520, %v10520
  %v10585 = vmul.f32 %v10521, %v10521
  %v10586 = vmul.f32 %v10522, %v10522
  %v10587 = vmul.f32 %v10523, %v10523
  %v10588 = vmul.f32 %v10524, %v10524
  %v10589 = vmul.f32 %v10525, %v10525
  %v10590 = vmul.f32 %v10526, %v10526
  %v10591 = vmul.f32 %v10527, %v10527
  %v10592 = vmul.f32 %v10528, %v10528
  %v10593 = vmul.f32 %v10529, %v10529
  %v10594 = vmul.f32 %v10530, %v10530
  %v10595 = vmul.f32 %v10531, %v10531
  %v10596 = vmul.f32 %v10532, %v10532
  %v10597 = vmul.f32 %v10533, %v10533
  %v10598 = vmul.f32 %v10534, %v10534
  %v10599 = vmul.f32 %v10535, %v10535
  %v10600 = vmul.f32 %v10536, %v10536
  %v10601 = vmul.f32 %v10537, %v10537
  %v10602 = vmul.f32 %v10538, %v10538
  %v10603 = vmul.f32 %v10539, %v10539
  %v10604 = vmul.f32 %v10540, %v10540
  %v10605 = vmul.f32 %v10541, %v10541
  %v10606 = vmul.f32 %v10542, %v10542
  %v10607 = vmul.f32 %v10543, %v10543
  %v10608 = vmul.f32 %v10544, %v10544
  %v10609 = vmul.f32 %v10545, %v10545
  %v10610 = vmul.f32 %v10546, %v10546
  %v10611 = vmul.f32 %v10547, %v10547
  %v10612 = vmul.f32 %v10548, %v10548
  %v10613 = vmul.f32 %v10549, %v10549
  %v10614 = vmul.f32 %v10550, %v10550
  %v10615 = vmul.f32 %v10551, %v10551
  %v10616 = vmul.f32 %v10552, %v10552
  %v10617 = vmul.f32 %v10553, %v10553
  %v10618 = vmul.f32 %v10554, %v10554
  %v10619 = vmul.f32 %v10555, %v10555
  %v10620 = vmul.f32 %v10556, %v10556
  %v10621 = vmul.f32 %v10557, %v10557
  %v10622 = vmul.f32 %v10558, %v10558
  %v10623 = vmul.f32 %v10559, %v10559
  %v10624 = vadd.f32 %v10560, %v10561
  %v10625 = vadd.f32 %v10624, %v10562
  %v10626 = vadd.f32 %v10625, %v10563
  %v10627 = vadd.f32 %v10626, %v10564
  %v10628 = vadd.f32 %v10627, %v10565
  %v10629 = vadd.f32 %v10628, %v10566
  %v10630 = vadd.f32 %v10629, %v10567
  %v10631 = vadd.f32 %v10630, %v10568
  %v10632 = vadd.f32 %v10631, %v10569
  %v10633 = vadd.f32 %v10632, %v10570
  %v10634 = vadd.f32 %v10633, %v10571
  %v10635 = vadd.f32 %v10634, %v10572
  %v10636 = vadd.f32 %v10635, %v10573
  %v10637 = vadd.f32 %v10636, %v10574
  %v10638 = vadd.f32 %v10637, %v10575
  %v10639 = vadd.f32 %v10638, %v10576
  %v10640 = vadd.f32 %v10639, %v10577
  %v10641 = vadd.f32 %v10640, %v10578
  %v10642 = vadd.f32 %v10641, %v10579
  %v10643 = vadd.f32 %v10642, %v10580
  %v10644 = vadd.f32 %v10643, %v10581
  %v10645 = vadd.f32 %v10644, %v10582
  %v10646 = vadd.f32 %v10645, %v10583
  %v10647 = vadd.f32 %v10646, %v10584
  %v10648 = vadd.f32 %v10647, %v10585
  %v10649 = vadd.f32 %v10648, %v10586
  %v10650 = vadd.f32 %v10649, %v10587
  %v10651 = vadd.f32 %v10650, %v10588
  %v10652 = vadd.f32 %v10651, %v10589
  %v10653 = vadd.f32 %v10652, %v10590
  %v10654 = vadd.f32 %v10653, %v10591
  %v10655 = vadd.f32 %v10654, %v10592
  %v10656 = vadd.f32 %v10655, %v10593
  %v10657 = vadd.f32 %v10656, %v10594
  %v10658 = vadd.f32 %v10657, %v10595
  %v10659 = vadd.f32 %v10658, %v10596
  %v10660 = vadd.f32 %v10659, %v10597
  %v10661 = vadd.f32 %v10660, %v10598
  %v10662 = vadd.f32 %v10661, %v10599
  %v10663 = vadd.f32 %v10662, %v10600
  %v10664 = vadd.f32 %v10663, %v10601
  %v10665 = vadd.f32 %v10664, %v10602
  %v10666 = vadd.f32 %v10665, %v10603
  %v10667 = vadd.f32 %v10666, %v10604
  %v10668 = vadd.f32 %v10667, %v10605
  %v10669 = vadd.f32 %v10668, %v10606
  %v10670 = vadd.f32 %v10669, %v10607
  %v10671 = vadd.f32 %v10670, %v10608
  %v10672 = vadd.f32 %v10671, %v10609
  %v10673 = vadd.f32 %v10672, %v10610
  %v10674 = vadd.f32 %v10673, %v10611
  %v10675 = vadd.f32 %v10674, %v10612
  %v10676 = vadd.f32 %v10675, %v10613
  %v10677 = vadd.f32 %v10676, %v10614
  %v10678 = vadd.f32 %v10677, %v10615
  %v10679 = vadd.f32 %v10678, %v10616
  %v10680 = vadd.f32 %v10679, %v10617
  %v10681 = vadd.f32 %v10680, %v10618
  %v10682 = vadd.f32 %v10681, %v10619
  %v10683 = vadd.f32 %v10682, %v10620
  %v10684 = vadd.f32 %v10683, %v10621
  %v10685 = vadd.f32 %v10684, %v10622
  %v10686 = vadd.f32 %v10685, %v10623
  %v10687 = vrot.slane %v10686, 4
  %v10688 = vadd.f32 %v10686, %v10687
  %v10689 = vrot.slane %v10688, 2
  %v10690 = vadd.f32 %v10688, %v10689
  %v10691 = vrot.slane %v10690, 1
  %v10692 = vadd.f32 %v10690, %v10691
  %v10693 = vmul.f32 %v10692, %v725
  %v10694 = vadd.f32 %v10693, 1e-05
  %v10695 = vrsqrt.pop %v10694
  %v10696 = vmul.f32 %v10496, %v10695
  %v10697 = vmul.f32 %v10497, %v10695
  %v10698 = vmul.f32 %v10498, %v10695
  %v10699 = vmul.f32 %v10499, %v10695
  %v10700 = vmul.f32 %v10500, %v10695
  %v10701 = vmul.f32 %v10501, %v10695
  %v10702 = vmul.f32 %v10502, %v10695
  %v10703 = vmul.f32 %v10503, %v10695
  %v10704 = vmul.f32 %v10504, %v10695
  %v10705 = vmul.f32 %v10505, %v10695
  %v10706 = vmul.f32 %v10506, %v10695
  %v10707 = vmul.f32 %v10507, %v10695
  %v10708 = vmul.f32 %v10508, %v10695
  %v10709 = vmul.f32 %v10509, %v10695
  %v10710 = vmul.f32 %v10510, %v10695
  %v10711 = vmul.f32 %v10511, %v10695
  %v10712 = vmul.f32 %v10512, %v10695
  %v10713 = vmul.f32 %v10513, %v10695
  %v10714 = vmul.f32 %v10514, %v10695
  %v10715 = vmul.f32 %v10515, %v10695
  %v10716 = vmul.f32 %v10516, %v10695
  %v10717 = vmul.f32 %v10517, %v10695
  %v10718 = vmul.f32 %v10518, %v10695
  %v10719 = vmul.f32 %v10519, %v10695
  %v10720 = vmul.f32 %v10520, %v10695
  %v10721 = vmul.f32 %v10521, %v10695
  %v10722 = vmul.f32 %v10522, %v10695
  %v10723 = vmul.f32 %v10523, %v10695
  %v10724 = vmul.f32 %v10524, %v10695
  %v10725 = vmul.f32 %v10525, %v10695
  %v10726 = vmul.f32 %v10526, %v10695
  %v10727 = vmul.f32 %v10527, %v10695
  %v10728 = vmul.f32 %v10528, %v10695
  %v10729 = vmul.f32 %v10529, %v10695
  %v10730 = vmul.f32 %v10530, %v10695
  %v10731 = vmul.f32 %v10531, %v10695
  %v10732 = vmul.f32 %v10532, %v10695
  %v10733 = vmul.f32 %v10533, %v10695
  %v10734 = vmul.f32 %v10534, %v10695
  %v10735 = vmul.f32 %v10535, %v10695
  %v10736 = vmul.f32 %v10536, %v10695
  %v10737 = vmul.f32 %v10537, %v10695
  %v10738 = vmul.f32 %v10538, %v10695
  %v10739 = vmul.f32 %v10539, %v10695
  %v10740 = vmul.f32 %v10540, %v10695
  %v10741 = vmul.f32 %v10541, %v10695
  %v10742 = vmul.f32 %v10542, %v10695
  %v10743 = vmul.f32 %v10543, %v10695
  %v10744 = vmul.f32 %v10544, %v10695
  %v10745 = vmul.f32 %v10545, %v10695
  %v10746 = vmul.f32 %v10546, %v10695
  %v10747 = vmul.f32 %v10547, %v10695
  %v10748 = vmul.f32 %v10548, %v10695
  %v10749 = vmul.f32 %v10549, %v10695
  %v10750 = vmul.f32 %v10550, %v10695
  %v10751 = vmul.f32 %v10551, %v10695
  %v10752 = vmul.f32 %v10552, %v10695
  %v10753 = vmul.f32 %v10553, %v10695
  %v10754 = vmul.f32 %v10554, %v10695
  %v10755 = vmul.f32 %v10555, %v10695
  %v10756 = vmul.f32 %v10556, %v10695
  %v10757 = vmul.f32 %v10557, %v10695
  %v10758 = vmul.f32 %v10558, %v10695
  %v10759 = vmul.f32 %v10559, %v10695
  %v10761 = vlaneseq
  %v10762 = vshrl.u32 %v10761, 7
  %v10763 = vsub.s32 0, %v10762
  %v10764 = vrot.slane %v10424, %v10763
  %v10766 = vmul.f32 %v10696, %v10764
  %v10767 = vmul.f32 %v10697, %v10764
  %v10768 = vmul.f32 %v10698, %v10764
  %v10769 = vmul.f32 %v10699, %v10764
  %v10770 = vmul.f32 %v10700, %v10764
  %v10771 = vmul.f32 %v10701, %v10764
  %v10772 = vmul.f32 %v10702, %v10764
  %v10773 = vmul.f32 %v10703, %v10764
  %v10774 = vmul.f32 %v10704, %v10764
  %v10775 = vmul.f32 %v10705, %v10764
  %v10776 = vmul.f32 %v10706, %v10764
  %v10777 = vmul.f32 %v10707, %v10764
  %v10778 = vmul.f32 %v10708, %v10764
  %v10779 = vmul.f32 %v10709, %v10764
  %v10780 = vmul.f32 %v10710, %v10764
  %v10781 = vmul.f32 %v10711, %v10764
  %v10782 = vmul.f32 %v10712, %v10764
  %v10783 = vmul.f32 %v10713, %v10764
  %v10784 = vmul.f32 %v10714, %v10764
  %v10785 = vmul.f32 %v10715, %v10764
  %v10786 = vmul.f32 %v10716, %v10764
  %v10787 = vmul.f32 %v10717, %v10764
  %v10788 = vmul.f32 %v10718, %v10764
  %v10789 = vmul.f32 %v10719, %v10764
  %v10790 = vmul.f32 %v10720, %v10764
  %v10791 = vmul.f32 %v10721, %v10764
  %v10792 = vmul.f32 %v10722, %v10764
  %v10793 = vmul.f32 %v10723, %v10764
  %v10794 = vmul.f32 %v10724, %v10764
  %v10795 = vmul.f32 %v10725, %v10764
  %v10796 = vmul.f32 %v10726, %v10764
  %v10797 = vmul.f32 %v10727, %v10764
  %v10798 = vmul.f32 %v10728, %v10764
  %v10799 = vmul.f32 %v10729, %v10764
  %v10800 = vmul.f32 %v10730, %v10764
  %v10801 = vmul.f32 %v10731, %v10764
  %v10802 = vmul.f32 %v10732, %v10764
  %v10803 = vmul.f32 %v10733, %v10764
  %v10804 = vmul.f32 %v10734, %v10764
  %v10805 = vmul.f32 %v10735, %v10764
  %v10806 = vmul.f32 %v10736, %v10764
  %v10807 = vmul.f32 %v10737, %v10764
  %v10808 = vmul.f32 %v10738, %v10764
  %v10809 = vmul.f32 %v10739, %v10764
  %v10810 = vmul.f32 %v10740, %v10764
  %v10811 = vmul.f32 %v10741, %v10764
  %v10812 = vmul.f32 %v10742, %v10764
  %v10813 = vmul.f32 %v10743, %v10764
  %v10814 = vmul.f32 %v10744, %v10764
  %v10815 = vmul.f32 %v10745, %v10764
  %v10816 = vmul.f32 %v10746, %v10764
  %v10817 = vmul.f32 %v10747, %v10764
  %v10818 = vmul.f32 %v10748, %v10764
  %v10819 = vmul.f32 %v10749, %v10764
  %v10820 = vmul.f32 %v10750, %v10764
  %v10821 = vmul.f32 %v10751, %v10764
  %v10822 = vmul.f32 %v10752, %v10764
  %v10823 = vmul.f32 %v10753, %v10764
  %v10824 = vmul.f32 %v10754, %v10764
  %v10825 = vmul.f32 %v10755, %v10764
  %v10826 = vmul.f32 %v10756, %v10764
  %v10827 = vmul.f32 %v10757, %v10764
  %v10828 = vmul.f32 %v10758, %v10764
  %v10829 = vmul.f32 %v10759, %v10764
  %v10831 = vlaneseq
  %v10832 = vshrl.u32 %v10831, 7
  %v10833 = vsub.s32 0, %v10832
  %v10834 = vrot.slane %v10425, %v10833
  %v10836 = vadd.f32 %v10766, %v10834
  %v10837 = vadd.f32 %v10767, %v10834
  %v10838 = vadd.f32 %v10768, %v10834
  %v10839 = vadd.f32 %v10769, %v10834
  %v10840 = vadd.f32 %v10770, %v10834
  %v10841 = vadd.f32 %v10771, %v10834
  %v10842 = vadd.f32 %v10772, %v10834
  %v10843 = vadd.f32 %v10773, %v10834
  %v10844 = vadd.f32 %v10774, %v10834
  %v10845 = vadd.f32 %v10775, %v10834
  %v10846 = vadd.f32 %v10776, %v10834
  %v10847 = vadd.f32 %v10777, %v10834
  %v10848 = vadd.f32 %v10778, %v10834
  %v10849 = vadd.f32 %v10779, %v10834
  %v10850 = vadd.f32 %v10780, %v10834
  %v10851 = vadd.f32 %v10781, %v10834
  %v10852 = vadd.f32 %v10782, %v10834
  %v10853 = vadd.f32 %v10783, %v10834
  %v10854 = vadd.f32 %v10784, %v10834
  %v10855 = vadd.f32 %v10785, %v10834
  %v10856 = vadd.f32 %v10786, %v10834
  %v10857 = vadd.f32 %v10787, %v10834
  %v10858 = vadd.f32 %v10788, %v10834
  %v10859 = vadd.f32 %v10789, %v10834
  %v10860 = vadd.f32 %v10790, %v10834
  %v10861 = vadd.f32 %v10791, %v10834
  %v10862 = vadd.f32 %v10792, %v10834
  %v10863 = vadd.f32 %v10793, %v10834
  %v10864 = vadd.f32 %v10794, %v10834
  %v10865 = vadd.f32 %v10795, %v10834
  %v10866 = vadd.f32 %v10796, %v10834
  %v10867 = vadd.f32 %v10797, %v10834
  %v10868 = vadd.f32 %v10798, %v10834
  %v10869 = vadd.f32 %v10799, %v10834
  %v10870 = vadd.f32 %v10800, %v10834
  %v10871 = vadd.f32 %v10801, %v10834
  %v10872 = vadd.f32 %v10802, %v10834
  %v10873 = vadd.f32 %v10803, %v10834
  %v10874 = vadd.f32 %v10804, %v10834
  %v10875 = vadd.f32 %v10805, %v10834
  %v10876 = vadd.f32 %v10806, %v10834
  %v10877 = vadd.f32 %v10807, %v10834
  %v10878 = vadd.f32 %v10808, %v10834
  %v10879 = vadd.f32 %v10809, %v10834
  %v10880 = vadd.f32 %v10810, %v10834
  %v10881 = vadd.f32 %v10811, %v10834
  %v10882 = vadd.f32 %v10812, %v10834
  %v10883 = vadd.f32 %v10813, %v10834
  %v10884 = vadd.f32 %v10814, %v10834
  %v10885 = vadd.f32 %v10815, %v10834
  %v10886 = vadd.f32 %v10816, %v10834
  %v10887 = vadd.f32 %v10817, %v10834
  %v10888 = vadd.f32 %v10818, %v10834
  %v10889 = vadd.f32 %v10819, %v10834
  %v10890 = vadd.f32 %v10820, %v10834
  %v10891 = vadd.f32 %v10821, %v10834
  %v10892 = vadd.f32 %v10822, %v10834
  %v10893 = vadd.f32 %v10823, %v10834
  %v10894 = vadd.f32 %v10824, %v10834
  %v10895 = vadd.f32 %v10825, %v10834
  %v10896 = vadd.f32 %v10826, %v10834
  %v10897 = vadd.f32 %v10827, %v10834
  %v10898 = vadd.f32 %v10828, %v10834
  %v10899 = vadd.f32 %v10829, %v10834
  %v10900 = vadd.f32 %v10007, %v10836
  %v10901 = vadd.f32 %v10008, %v10837
  %v10902 = vadd.f32 %v10009, %v10838
  %v10903 = vadd.f32 %v10010, %v10839
  %v10904 = vadd.f32 %v10011, %v10840
  %v10905 = vadd.f32 %v10012, %v10841
  %v10906 = vadd.f32 %v10013, %v10842
  %v10907 = vadd.f32 %v10014, %v10843
  %v10908 = vadd.f32 %v10015, %v10844
  %v10909 = vadd.f32 %v10016, %v10845
  %v10910 = vadd.f32 %v10017, %v10846
  %v10911 = vadd.f32 %v10018, %v10847
  %v10912 = vadd.f32 %v10019, %v10848
  %v10913 = vadd.f32 %v10020, %v10849
  %v10914 = vadd.f32 %v10021, %v10850
  %v10915 = vadd.f32 %v10022, %v10851
  %v10916 = vadd.f32 %v10023, %v10852
  %v10917 = vadd.f32 %v10024, %v10853
  %v10918 = vadd.f32 %v10025, %v10854
  %v10919 = vadd.f32 %v10026, %v10855
  %v10920 = vadd.f32 %v10027, %v10856
  %v10921 = vadd.f32 %v10028, %v10857
  %v10922 = vadd.f32 %v10029, %v10858
  %v10923 = vadd.f32 %v10030, %v10859
  %v10924 = vadd.f32 %v10031, %v10860
  %v10925 = vadd.f32 %v10032, %v10861
  %v10926 = vadd.f32 %v10033, %v10862
  %v10927 = vadd.f32 %v10034, %v10863
  %v10928 = vadd.f32 %v10035, %v10864
  %v10929 = vadd.f32 %v10036, %v10865
  %v10930 = vadd.f32 %v10037, %v10866
  %v10931 = vadd.f32 %v10038, %v10867
  %v10932 = vadd.f32 %v10039, %v10868
  %v10933 = vadd.f32 %v10040, %v10869
  %v10934 = vadd.f32 %v10041, %v10870
  %v10935 = vadd.f32 %v10042, %v10871
  %v10936 = vadd.f32 %v10043, %v10872
  %v10937 = vadd.f32 %v10044, %v10873
  %v10938 = vadd.f32 %v10045, %v10874
  %v10939 = vadd.f32 %v10046, %v10875
  %v10940 = vadd.f32 %v10047, %v10876
  %v10941 = vadd.f32 %v10048, %v10877
  %v10942 = vadd.f32 %v10049, %v10878
  %v10943 = vadd.f32 %v10050, %v10879
  %v10944 = vadd.f32 %v10051, %v10880
  %v10945 = vadd.f32 %v10052, %v10881
  %v10946 = vadd.f32 %v10053, %v10882
  %v10947 = vadd.f32 %v10054, %v10883
  %v10948 = vadd.f32 %v10055, %v10884
  %v10949 = vadd.f32 %v10056, %v10885
  %v10950 = vadd.f32 %v10057, %v10886
  %v10951 = vadd.f32 %v10058, %v10887
  %v10952 = vadd.f32 %v10059, %v10888
  %v10953 = vadd.f32 %v10060, %v10889
  %v10954 = vadd.f32 %v10061, %v10890
  %v10955 = vadd.f32 %v10062, %v10891
  %v10956 = vadd.f32 %v10063, %v10892
  %v10957 = vadd.f32 %v10064, %v10893
  %v10958 = vadd.f32 %v10065, %v10894
  %v10959 = vadd.f32 %v10066, %v10895
  %v10960 = vadd.f32 %v10067, %v10896
  %v10961 = vadd.f32 %v10068, %v10897
  %v10962 = vadd.f32 %v10069, %v10898
  %v10963 = vadd.f32 %v10070, %v10899
  %v10964 = vmax.f32 %v10900, 0.0
  %v10965 = vmax.f32 %v10901, 0.0
  %v10966 = vmax.f32 %v10902, 0.0
  %v10967 = vmax.f32 %v10903, 0.0
  %v10968 = vmax.f32 %v10904, 0.0
  %v10969 = vmax.f32 %v10905, 0.0
  %v10970 = vmax.f32 %v10906, 0.0
  %v10971 = vmax.f32 %v10907, 0.0
  %v10972 = vmax.f32 %v10908, 0.0
  %v10973 = vmax.f32 %v10909, 0.0
  %v10974 = vmax.f32 %v10910, 0.0
  %v10975 = vmax.f32 %v10911, 0.0
  %v10976 = vmax.f32 %v10912, 0.0
  %v10977 = vmax.f32 %v10913, 0.0
  %v10978 = vmax.f32 %v10914, 0.0
  %v10979 = vmax.f32 %v10915, 0.0
  %v10980 = vmax.f32 %v10916, 0.0
  %v10981 = vmax.f32 %v10917, 0.0
  %v10982 = vmax.f32 %v10918, 0.0
  %v10983 = vmax.f32 %v10919, 0.0
  %v10984 = vmax.f32 %v10920, 0.0
  %v10985 = vmax.f32 %v10921, 0.0
  %v10986 = vmax.f32 %v10922, 0.0
  %v10987 = vmax.f32 %v10923, 0.0
  %v10988 = vmax.f32 %v10924, 0.0
  %v10989 = vmax.f32 %v10925, 0.0
  %v10990 = vmax.f32 %v10926, 0.0
  %v10991 = vmax.f32 %v10927, 0.0
  %v10992 = vmax.f32 %v10928, 0.0
  %v10993 = vmax.f32 %v10929, 0.0
  %v10994 = vmax.f32 %v10930, 0.0
  %v10995 = vmax.f32 %v10931, 0.0
  %v10996 = vmax.f32 %v10932, 0.0
  %v10997 = vmax.f32 %v10933, 0.0
  %v10998 = vmax.f32 %v10934, 0.0
  %v10999 = vmax.f32 %v10935, 0.0
  %v11000 = vmax.f32 %v10936, 0.0
  %v11001 = vmax.f32 %v10937, 0.0
  %v11002 = vmax.f32 %v10938, 0.0
  %v11003 = vmax.f32 %v10939, 0.0
  %v11004 = vmax.f32 %v10940, 0.0
  %v11005 = vmax.f32 %v10941, 0.0
  %v11006 = vmax.f32 %v10942, 0.0
  %v11007 = vmax.f32 %v10943, 0.0
  %v11008 = vmax.f32 %v10944, 0.0
  %v11009 = vmax.f32 %v10945, 0.0
  %v11010 = vmax.f32 %v10946, 0.0
  %v11011 = vmax.f32 %v10947, 0.0
  %v11012 = vmax.f32 %v10948, 0.0
  %v11013 = vmax.f32 %v10949, 0.0
  %v11014 = vmax.f32 %v10950, 0.0
  %v11015 = vmax.f32 %v10951, 0.0
  %v11016 = vmax.f32 %v10952, 0.0
  %v11017 = vmax.f32 %v10953, 0.0
  %v11018 = vmax.f32 %v10954, 0.0
  %v11019 = vmax.f32 %v10955, 0.0
  %v11020 = vmax.f32 %v10956, 0.0
  %v11021 = vmax.f32 %v10957, 0.0
  %v11022 = vmax.f32 %v10958, 0.0
  %v11023 = vmax.f32 %v10959, 0.0
  %v11024 = vmax.f32 %v10960, 0.0
  %v11025 = vmax.f32 %v10961, 0.0
  %v11026 = vmax.f32 %v10962, 0.0
  %v11027 = vmax.f32 %v10963, 0.0
  %v11028 = vpack.c.bf16 %v10965, %v10964
  %v11029 = vpack.c.bf16 %v10967, %v10966
  %v11030 = vpack.c.bf16 %v10969, %v10968
  %v11031 = vpack.c.bf16 %v10971, %v10970
  %v11032 = vpack.c.bf16 %v10973, %v10972
  %v11033 = vpack.c.bf16 %v10975, %v10974
  %v11034 = vpack.c.bf16 %v10977, %v10976
  %v11035 = vpack.c.bf16 %v10979, %v10978
  %v11036 = vpack.c.bf16 %v10981, %v10980
  %v11037 = vpack.c.bf16 %v10983, %v10982
  %v11038 = vpack.c.bf16 %v10985, %v10984
  %v11039 = vpack.c.bf16 %v10987, %v10986
  %v11040 = vpack.c.bf16 %v10989, %v10988
  %v11041 = vpack.c.bf16 %v10991, %v10990
  %v11042 = vpack.c.bf16 %v10993, %v10992
  %v11043 = vpack.c.bf16 %v10995, %v10994
  %v11044 = vpack.c.bf16 %v10997, %v10996
  %v11045 = vpack.c.bf16 %v10999, %v10998
  %v11046 = vpack.c.bf16 %v11001, %v11000
  %v11047 = vpack.c.bf16 %v11003, %v11002
  %v11048 = vpack.c.bf16 %v11005, %v11004
  %v11049 = vpack.c.bf16 %v11007, %v11006
  %v11050 = vpack.c.bf16 %v11009, %v11008
  %v11051 = vpack.c.bf16 %v11011, %v11010
  %v11052 = vpack.c.bf16 %v11013, %v11012
  %v11053 = vpack.c.bf16 %v11015, %v11014
  %v11054 = vpack.c.bf16 %v11017, %v11016
  %v11055 = vpack.c.bf16 %v11019, %v11018
  %v11056 = vpack.c.bf16 %v11021, %v11020
  %v11057 = vpack.c.bf16 %v11023, %v11022
  %v11058 = vpack.c.bf16 %v11025, %v11024
  %v11059 = vpack.c.bf16 %v11027, %v11026
  %v11092 = vunpack.c.l.b16 %v11028
  %v11093 = vunpack.c.h.b16 %v11028
  %v11094 = vunpack.c.l.b16 %v11029
  %v11095 = vunpack.c.h.b16 %v11029
  %v11096 = vunpack.c.l.b16 %v11030
  %v11097 = vunpack.c.h.b16 %v11030
  %v11098 = vunpack.c.l.b16 %v11031
  %v11099 = vunpack.c.h.b16 %v11031
  %v11100 = vunpack.c.l.b16 %v11032
  %v11101 = vunpack.c.h.b16 %v11032
  %v11102 = vunpack.c.l.b16 %v11033
  %v11103 = vunpack.c.h.b16 %v11033
  %v11104 = vunpack.c.l.b16 %v11034
  %v11105 = vunpack.c.h.b16 %v11034
  %v11106 = vunpack.c.l.b16 %v11035
  %v11107 = vunpack.c.h.b16 %v11035
  %v11108 = vunpack.c.l.b16 %v11036
  %v11109 = vunpack.c.h.b16 %v11036
  %v11110 = vunpack.c.l.b16 %v11037
  %v11111 = vunpack.c.h.b16 %v11037
  %v11112 = vunpack.c.l.b16 %v11038
  %v11113 = vunpack.c.h.b16 %v11038
  %v11114 = vunpack.c.l.b16 %v11039
  %v11115 = vunpack.c.h.b16 %v11039
  %v11116 = vunpack.c.l.b16 %v11040
  %v11117 = vunpack.c.h.b16 %v11040
  %v11118 = vunpack.c.l.b16 %v11041
  %v11119 = vunpack.c.h.b16 %v11041
  %v11120 = vunpack.c.l.b16 %v11042
  %v11121 = vunpack.c.h.b16 %v11042
  %v11122 = vunpack.c.l.b16 %v11043
  %v11123 = vunpack.c.h.b16 %v11043
  %v11124 = vunpack.c.l.b16 %v11044
  %v11125 = vunpack.c.h.b16 %v11044
  %v11126 = vunpack.c.l.b16 %v11045
  %v11127 = vunpack.c.h.b16 %v11045
  %v11128 = vunpack.c.l.b16 %v11046
  %v11129 = vunpack.c.h.b16 %v11046
  %v11130 = vunpack.c.l.b16 %v11047
  %v11131 = vunpack.c.h.b16 %v11047
  %v11132 = vunpack.c.l.b16 %v11048
  %v11133 = vunpack.c.h.b16 %v11048
  %v11134 = vunpack.c.l.b16 %v11049
  %v11135 = vunpack.c.h.b16 %v11049
  %v11136 = vunpack.c.l.b16 %v11050
  %v11137 = vunpack.c.h.b16 %v11050
  %v11138 = vunpack.c.l.b16 %v11051
  %v11139 = vunpack.c.h.b16 %v11051
  %v11140 = vunpack.c.l.b16 %v11052
  %v11141 = vunpack.c.h.b16 %v11052
  %v11142 = vunpack.c.l.b16 %v11053
  %v11143 = vunpack.c.h.b16 %v11053
  %v11144 = vunpack.c.l.b16 %v11054
  %v11145 = vunpack.c.h.b16 %v11054
  %v11146 = vunpack.c.l.b16 %v11055
  %v11147 = vunpack.c.h.b16 %v11055
  %v11148 = vunpack.c.l.b16 %v11056
  %v11149 = vunpack.c.h.b16 %v11056
  %v11150 = vunpack.c.l.b16 %v11057
  %v11151 = vunpack.c.h.b16 %v11057
  %v11152 = vunpack.c.l.b16 %v11058
  %v11153 = vunpack.c.h.b16 %v11058
  %v11154 = vunpack.c.l.b16 %v11059
  %v11155 = vunpack.c.h.b16 %v11059
  %v11156 = vpack.c.b16 %v11092, %v11092
  %v11157 = vpack.c.b16 %v11093, %v11093
  %v11158 = vpack.c.b16 %v11094, %v11094
  %v11159 = vpack.c.b16 %v11095, %v11095
  %v11160 = vpack.c.b16 %v11096, %v11096
  %v11161 = vpack.c.b16 %v11097, %v11097
  %v11162 = vpack.c.b16 %v11098, %v11098
  %v11163 = vpack.c.b16 %v11099, %v11099
  %v11164 = vpack.c.b16 %v11100, %v11100
  %v11165 = vpack.c.b16 %v11101, %v11101
  %v11166 = vpack.c.b16 %v11102, %v11102
  %v11167 = vpack.c.b16 %v11103, %v11103
  %v11168 = vpack.c.b16 %v11104, %v11104
  %v11169 = vpack.c.b16 %v11105, %v11105
  %v11170 = vpack.c.b16 %v11106, %v11106
  %v11171 = vpack.c.b16 %v11107, %v11107
  %v11172 = vpack.c.b16 %v11108, %v11108
  %v11173 = vpack.c.b16 %v11109, %v11109
  %v11174 = vpack.c.b16 %v11110, %v11110
  %v11175 = vpack.c.b16 %v11111, %v11111
  %v11176 = vpack.c.b16 %v11112, %v11112
  %v11177 = vpack.c.b16 %v11113, %v11113
  %v11178 = vpack.c.b16 %v11114, %v11114
  %v11179 = vpack.c.b16 %v11115, %v11115
  %v11180 = vpack.c.b16 %v11116, %v11116
  %v11181 = vpack.c.b16 %v11117, %v11117
  %v11182 = vpack.c.b16 %v11118, %v11118
  %v11183 = vpack.c.b16 %v11119, %v11119
  %v11184 = vpack.c.b16 %v11120, %v11120
  %v11185 = vpack.c.b16 %v11121, %v11121
  %v11186 = vpack.c.b16 %v11122, %v11122
  %v11187 = vpack.c.b16 %v11123, %v11123
  %v11188 = vpack.c.b16 %v11124, %v11124
  %v11189 = vpack.c.b16 %v11125, %v11125
  %v11190 = vpack.c.b16 %v11126, %v11126
  %v11191 = vpack.c.b16 %v11127, %v11127
  %v11192 = vpack.c.b16 %v11128, %v11128
  %v11193 = vpack.c.b16 %v11129, %v11129
  %v11194 = vpack.c.b16 %v11130, %v11130
  %v11195 = vpack.c.b16 %v11131, %v11131
  %v11196 = vpack.c.b16 %v11132, %v11132
  %v11197 = vpack.c.b16 %v11133, %v11133
  %v11198 = vpack.c.b16 %v11134, %v11134
  %v11199 = vpack.c.b16 %v11135, %v11135
  %v11200 = vpack.c.b16 %v11136, %v11136
  %v11201 = vpack.c.b16 %v11137, %v11137
  %v11202 = vpack.c.b16 %v11138, %v11138
  %v11203 = vpack.c.b16 %v11139, %v11139
  %v11204 = vpack.c.b16 %v11140, %v11140
  %v11205 = vpack.c.b16 %v11141, %v11141
  %v11206 = vpack.c.b16 %v11142, %v11142
  %v11207 = vpack.c.b16 %v11143, %v11143
  %v11208 = vpack.c.b16 %v11144, %v11144
  %v11209 = vpack.c.b16 %v11145, %v11145
  %v11210 = vpack.c.b16 %v11146, %v11146
  %v11211 = vpack.c.b16 %v11147, %v11147
  %v11212 = vpack.c.b16 %v11148, %v11148
  %v11213 = vpack.c.b16 %v11149, %v11149
  %v11214 = vpack.c.b16 %v11150, %v11150
  %v11215 = vpack.c.b16 %v11151, %v11151
  %v11216 = vpack.c.b16 %v11152, %v11152
  %v11217 = vpack.c.b16 %v11153, %v11153
  %v11218 = vpack.c.b16 %v11154, %v11154
  %v11219 = vpack.c.b16 %v11155, %v11155
  %11284 = vst [vmem:[%s13] sm:$0xf] %v11156
  %11285 = vst [vmem:[%s13 + $0x4] sm:$0xf] %v11157
  %11286 = vst [vmem:[%s13 + $0x8] sm:$0xf] %v11158
  %11287 = vst [vmem:[%s13 + $0xc] sm:$0xf] %v11159
  %11288 = vst [vmem:[%s13 + $0x10] sm:$0xf] %v11160
  %11289 = vst [vmem:[%s13 + $0x14] sm:$0xf] %v11161
  %11290 = vst [vmem:[%s13 + $0x18] sm:$0xf] %v11162
  %11291 = vst [vmem:[%s13 + $0x1c] sm:$0xf] %v11163
  %11292 = vst [vmem:[%s13 + $0x20] sm:$0xf] %v11164
  %11293 = vst [vmem:[%s13 + $0x24] sm:$0xf] %v11165
  %11294 = vst [vmem:[%s13 + $0x28] sm:$0xf] %v11166
  %11295 = vst [vmem:[%s13 + $0x2c] sm:$0xf] %v11167
  %11296 = vst [vmem:[%s13 + $0x30] sm:$0xf] %v11168
  %11297 = vst [vmem:[%s13 + $0x34] sm:$0xf] %v11169
  %11298 = vst [vmem:[%s13 + $0x38] sm:$0xf] %v11170
  %11299 = vst [vmem:[%s13 + $0x3c] sm:$0xf] %v11171
  %11300 = vst [vmem:[%s13 + $0x40] sm:$0xf] %v11172
  %11301 = vst [vmem:[%s13 + $0x44] sm:$0xf] %v11173
  %11302 = vst [vmem:[%s13 + $0x48] sm:$0xf] %v11174
  %11303 = vst [vmem:[%s13 + $0x4c] sm:$0xf] %v11175
  %11304 = vst [vmem:[%s13 + $0x50] sm:$0xf] %v11176
  %11305 = vst [vmem:[%s13 + $0x54] sm:$0xf] %v11177
  %11306 = vst [vmem:[%s13 + $0x58] sm:$0xf] %v11178
  %11307 = vst [vmem:[%s13 + $0x5c] sm:$0xf] %v11179
  %11308 = vst [vmem:[%s13 + $0x60] sm:$0xf] %v11180
  %11309 = vst [vmem:[%s13 + $0x64] sm:$0xf] %v11181
  %11310 = vst [vmem:[%s13 + $0x68] sm:$0xf] %v11182
  %11311 = vst [vmem:[%s13 + $0x6c] sm:$0xf] %v11183
  %11312 = vst [vmem:[%s13 + $0x70] sm:$0xf] %v11184
  %11313 = vst [vmem:[%s13 + $0x74] sm:$0xf] %v11185
  %11314 = vst [vmem:[%s13 + $0x78] sm:$0xf] %v11186
  %11315 = vst [vmem:[%s13 + $0x7c] sm:$0xf] %v11187
  %11316 = vst [vmem:[%s13 + $0x80] sm:$0xf] %v11188
  %11317 = vst [vmem:[%s13 + $0x84] sm:$0xf] %v11189
  %11318 = vst [vmem:[%s13 + $0x88] sm:$0xf] %v11190
  %11319 = vst [vmem:[%s13 + $0x8c] sm:$0xf] %v11191
  %11320 = vst [vmem:[%s13 + $0x90] sm:$0xf] %v11192
  %11321 = vst [vmem:[%s13 + $0x94] sm:$0xf] %v11193
  %11322 = vst [vmem:[%s13 + $0x98] sm:$0xf] %v11194
  %11323 = vst [vmem:[%s13 + $0x9c] sm:$0xf] %v11195
  %11324 = vst [vmem:[%s13 + $0xa0] sm:$0xf] %v11196
  %11325 = vst [vmem:[%s13 + $0xa4] sm:$0xf] %v11197
  %11326 = vst [vmem:[%s13 + $0xa8] sm:$0xf] %v11198
  %11327 = vst [vmem:[%s13 + $0xac] sm:$0xf] %v11199
  %11328 = vst [vmem:[%s13 + $0xb0] sm:$0xf] %v11200
  %11329 = vst [vmem:[%s13 + $0xb4] sm:$0xf] %v11201
  %11330 = vst [vmem:[%s13 + $0xb8] sm:$0xf] %v11202
  %11331 = vst [vmem:[%s13 + $0xbc] sm:$0xf] %v11203
  %11332 = vst [vmem:[%s13 + $0xc0] sm:$0xf] %v11204
  %11333 = vst [vmem:[%s13 + $0xc4] sm:$0xf] %v11205
  %11334 = vst [vmem:[%s13 + $0xc8] sm:$0xf] %v11206
  %11335 = vst [vmem:[%s13 + $0xcc] sm:$0xf] %v11207
  %11336 = vst [vmem:[%s13 + $0xd0] sm:$0xf] %v11208
  %11337 = vst [vmem:[%s13 + $0xd4] sm:$0xf] %v11209
  %11338 = vst [vmem:[%s13 + $0xd8] sm:$0xf] %v11210
  %11339 = vst [vmem:[%s13 + $0xdc] sm:$0xf] %v11211
  %11340 = vst [vmem:[%s13 + $0xe0] sm:$0xf] %v11212
  %11341 = vst [vmem:[%s13 + $0xe4] sm:$0xf] %v11213
  %11342 = vst [vmem:[%s13 + $0xe8] sm:$0xf] %v11214
  %11343 = vst [vmem:[%s13 + $0xec] sm:$0xf] %v11215
  %11344 = vst [vmem:[%s13 + $0xf0] sm:$0xf] %v11216
  %11345 = vst [vmem:[%s13 + $0xf4] sm:$0xf] %v11217
  %11346 = vst [vmem:[%s13 + $0xf8] sm:$0xf] %v11218
  %11347 = vst [vmem:[%s13 + $0xfc] sm:$0xf] %v11219
  // Predicated region
  $region54: #{bottleneck_forward.1} parent=0 // pred_check
    _
  $region55: #{bottleneck_forward.1} parent=0 // pred_check_branch
    %11349 = sbr.rel (0) target = $region57
  $region56: #{bottleneck_forward.1} parent=0 // pred_region
    _
  $region57: #{bottleneck_forward.1} parent=0 // pred_fallthru
    _
  // Predicated region
  $region58: #{bottleneck_forward.1} parent=0 // pred_check
    _
  $region59: #{bottleneck_forward.1} parent=0 // pred_check_branch
    %11351 = sbr.rel (0) target = $region61
  $region60: #{bottleneck_forward.1} parent=0 // pred_region
    _
  $region61: #{bottleneck_forward.1} parent=0 // pred_fallthru
    _

</llo_original>
